<compile_context>
chip_gen: v6e
topology: v6e:2x2x1
jax: 0.10.0
libtpu: 0.0.40
codegen_flags: <defaults>
</compile_context>

<pallas_src>
import functools
import math

import jax
import jax.numpy as jnp
from jax.experimental import pallas as pl
from jax.experimental.pallas import tpu as pltpu


IN_DIM = 28 * 28      # 784
IN_PAD = 896          # 7 * 128: lane-dense padded input width
OUT_PAD = 896         # 7 * 128: lane-dense padded recon width
ML_PAD = 128          # lane-dense padded (mean || logvar) width
H1 = 512
H2 = 256
LATENT = 2
TB_MAX = 256          # max batch-tile rows (v7x-safe; fine on v5e/v6e)


def _round_up(x, m):
    return ((x + m - 1) // m) * m


def _cdiv(a, b):
    return -(-a // b)


def _vae_kernel(
    x_ref, noise_ref,
    w1_ref, b1_ref, w2_ref, b2_ref,
    wmv_ref, bmv_ref,
    w3_ref, b3_ref, w4_ref, b4_ref, w5_ref, b5_ref,
    recon_ref, ml_ref,
    *, latent,
):
    f32 = jnp.float32
    bf16 = jnp.bfloat16

    # ---- Encoder: bf16 MXU matmuls, f32 accumulation ----
    x = x_ref[...]                                                   # (TB, 896) bf16
    h1 = jnp.dot(x, w1_ref[...], preferred_element_type=f32) + b1_ref[...]
    h1 = jnp.maximum(h1.astype(bf16), 0.0)                           # bf16 ReLU (TB, 512)
    h2 = jnp.dot(h1, w2_ref[...], preferred_element_type=f32) + b2_ref[...]
    h2 = jnp.maximum(h2, 0.0)                                        # f32 (feeds f32 head)

    # Fused mean/logvar head kept in f32 (tiny 256x128 matmul, better accuracy)
    # -> one matmul + one lane-dense (TB, 128) store; split in the wrapper.
    ml = jnp.dot(h2, wmv_ref[...], preferred_element_type=f32) + bmv_ref[...]
    ml_ref[...] = ml                                                 # (TB, 128) f32

    mean = ml[:, :latent]                                            # (TB, latent)
    logvar = ml[:, latent:2 * latent]                                # (TB, latent)

    # ---- Reparameterization: z = mean + eps * exp(0.5 * logvar) ----
    z = mean + noise_ref[...] * jnp.exp(0.5 * logvar)                # (TB, latent) f32

    # ---- Decoder ----
    # K=latent (=2) contraction wastes an MXU pass; do it on the VPU as
    # `latent` broadcast FMAs against the (latent, 256) f32 weight rows.
    w3 = w3_ref[...]                                                 # (latent, 256) f32
    d1 = b3_ref[...] + z[:, 0:1] * w3[0:1, :]
    for j in range(1, latent):
        d1 = d1 + z[:, j:j + 1] * w3[j:j + 1, :]
    d1 = jnp.maximum(d1.astype(bf16), 0.0)                           # (TB, 256) bf16

    d2 = jnp.dot(d1, w4_ref[...], preferred_element_type=f32) + b4_ref[...]
    d2 = jnp.maximum(d2.astype(bf16), 0.0)                           # (TB, 512) bf16

    logits = jnp.dot(d2, w5_ref[...], preferred_element_type=f32) + b5_ref[...]
    recon_ref[...] = jax.nn.sigmoid(logits).astype(recon_ref.dtype)  # (TB, 896) bf16


def _init_linear(key, fan_in, fan_out):
    """PyTorch-style Linear init: U(-1/sqrt(fan_in), 1/sqrt(fan_in)).

    Weight stored as (fan_in, fan_out) so kernels compute x @ W + b
    (equivalent to torch's x @ W_t.T + b). Bias stored as (1, fan_out).
    """
    kw, kb = jax.random.split(key)
    bound = 1.0 / math.sqrt(fan_in)
    w = jax.random.uniform(kw, (fan_in, fan_out), jnp.float32, -bound, bound)
    bias = jax.random.uniform(kb, (1, fan_out), jnp.float32, -bound, bound)
    return w, bias


def init_vae_params(key, latent=LATENT):
    keys = jax.random.split(key, 7)
    w1, b1 = _init_linear(keys[0], IN_DIM, H1)      # encoder Linear(784, 512)
    w2, b2 = _init_linear(keys[1], H1, H2)          # encoder Linear(512, 256)
    wm, bm = _init_linear(keys[2], H2, latent)      # calc_mean Linear(256, latent)
    wv, bv = _init_linear(keys[3], H2, latent)      # calc_logvar Linear(256, latent)
    w3, b3 = _init_linear(keys[4], latent, H2)      # decoder Linear(latent, 256)
    w4, b4 = _init_linear(keys[5], H2, H1)          # decoder Linear(256, 512)
    w5, b5 = _init_linear(keys[6], H1, IN_DIM)      # decoder Linear(512, 784)
    return (w1, b1, w2, b2, wm, bm, wv, bv, w3, b3, w4, b4, w5, b5)


def prepare_kernel_params(params, latent=LATENT):
    """One-time conversion of f32 PyTorch-style params into kernel-ready arrays."""
    (w1, b1, w2, b2, wm, bm, wv, bv, w3, b3, w4, b4, w5, b5) = params
    bf16 = jnp.bfloat16

    # Lane-pad the heaviest contraction: x (784 -> 896) x w1 (896, 512).
    # Pad rows are zeroed so they contribute nothing.
    w1p = jnp.zeros((IN_PAD, H1), jnp.float32).at[:IN_DIM, :].set(w1)

    # Fuse mean/logvar heads, zero-pad to 128 lanes. Kept in f32 (accuracy).
    wmv = jnp.zeros((H2, ML_PAD), jnp.float32)
    wmv = wmv.at[:, :latent].set(wm).at[:, latent:2 * latent].set(wv)
    bmv = jnp.zeros((1, ML_PAD), jnp.float32)
    bmv = bmv.at[:, :latent].set(bm).at[:, latent:2 * latent].set(bv)

    # Zero-pad decoder output layer 784 -> 896 for lane-dense stores.
    w5p = jnp.zeros((H1, OUT_PAD), jnp.float32).at[:, :IN_DIM].set(w5)
    b5p = jnp.zeros((1, OUT_PAD), jnp.float32).at[:, :IN_DIM].set(b5)

    return (
        w1p.astype(bf16), b1,          # MXU path: bf16 weights, f32 biases
        w2.astype(bf16), b2,
        wmv, bmv,                      # f32 head (tiny, keeps mean/logvar accurate)
        w3, b3,                        # VPU path (K=latent): keep f32
        w4.astype(bf16), b4,
        w5p.astype(bf16), b5p,
    )


def _pick_batch_tiling(b):
    """Choose (tb, n_tiles) with tb a multiple of 16, tb <= TB_MAX, and an even
    number of tiles (>= 2) so the parallel batch axis uses both v7x TCs."""
    b16 = _round_up(b, 16)
    n_tiles = max(2, _cdiv(b16, TB_MAX))
    if n_tiles % 2:
        n_tiles += 1
    tb = _round_up(_cdiv(b16, n_tiles), 16)
    return tb, n_tiles


@functools.partial(jax.jit, static_argnames=("latent", "single_buffer_weights"))
def _vae_forward_impl(x_nchw, noise, kparams, latent, single_buffer_weights):
    b = x_nchw.shape[0]
    (w1, b1, w2, b2, wmv, bmv, w3, b3, w4, b4, w5p, b5p) = kparams

    tb, n_tiles = _pick_batch_tiling(b)
    b_pad = tb * n_tiles

    # Cast + batch/lane pad inside the same jit as the kernel so XLA fuses them
    # with the reshape/cast producer (no standalone HBM round-trip).
    x_flat = x_nchw.reshape(b, -1).astype(jnp.bfloat16)              # (B, 784)
    x_flat = jnp.pad(x_flat, ((0, b_pad - b), (0, IN_PAD - IN_DIM)))  # (B_pad, 896)
    noise_p = jnp.pad(noise.astype(jnp.float32), ((0, b_pad - b), (0, 0)))

    def tiled(shape):
        return pl.BlockSpec(shape, lambda i: (i, 0))

    if single_buffer_weights:
        def resident(arr):
            # Constant block index across the grid -> DMA'd once; single buffer
            # (the second pipeline buffer would be dead weight, ~2.3 MB saved).
            return pl.BlockSpec(arr.shape, lambda i: (0, 0),
                                pipeline_mode=pl.Buffered(1))
    else:
        def resident(arr):
            return pl.BlockSpec(arr.shape, lambda i: (0, 0))

    flops = 2 * b_pad * (IN_PAD * H1 + H1 * H2 + H2 * ML_PAD
                         + latent * H2 + H2 * H1 + H1 * OUT_PAD)
    transcendentals = b_pad * (OUT_PAD + latent)
    bytes_accessed = (
        sum(int(a.size) * a.dtype.itemsize for a in kparams)
        + int(x_flat.size) * 2 + int(noise_p.size) * 4
        + b_pad * OUT_PAD * 2 + b_pad * ML_PAD * 4
    )

    recon_pad, ml_pad = pl.pallas_call(
        functools.partial(_vae_kernel, latent=latent),
        out_shape=(
            jax.ShapeDtypeStruct((b_pad, OUT_PAD), jnp.bfloat16),    # bf16 recon store
            jax.ShapeDtypeStruct((b_pad, ML_PAD), jnp.float32),
        ),
        grid=(n_tiles,),
        in_specs=[
            tiled((tb, IN_PAD)),           # x (lane-dense)
            tiled((tb, latent)),           # noise
            resident(w1), resident(b1),
            resident(w2), resident(b2),
            resident(wmv), resident(bmv),
            resident(w3), resident(b3),
            resident(w4), resident(b4),
            resident(w5p), resident(b5p),
        ],
        out_specs=(
            tiled((tb, OUT_PAD)),          # padded recon
            tiled((tb, ML_PAD)),           # padded (mean || logvar)
        ),
        compiler_params=pltpu.CompilerParams(
            dimension_semantics=("parallel",),        # shard batch across v7x's 2 TCs
            vmem_limit_bytes=32 * 1024 * 1024,        # valid on v5e/v6e/v7x
        ),
        cost_estimate=pl.CostEstimate(
            flops=flops,
            transcendentals=transcendentals,
            bytes_accessed=bytes_accessed,
        ),
    )(x_flat, noise_p, w1, b1, w2, b2, wmv, bmv, w3, b3, w4, b4, w5p, b5p)

    # Un-pad / split inside the same jit (fused with consumers). Module semantics
    # return f32 tensors, so cast recon back up here.
    recon = recon_pad[:b, :IN_DIM].astype(jnp.float32).reshape(b, 1, 28, 28)
    mean = ml_pad[:b, :latent]
    logvar = ml_pad[:b, latent:2 * latent]
    return recon, mean, logvar


def vae_forward(x_nchw, noise, kparams, latent=LATENT):
    """Full VAE forward. Returns (recon NCHW, mean, logvar)."""
    try:
        return _vae_forward_impl(x_nchw, noise, kparams, latent, True)
    except Exception:
        # Compatibility fallback: some JAX versions reject single-buffered
        # (pl.Buffered(1)) resident operands; retry with default double-buffering.
        return _vae_forward_impl(x_nchw, noise, kparams, latent, False)


def reference_forward(x_nchw, noise, params):
    """Pure-JAX f32 reference of the PyTorch VAE.forward for verification."""
    (w1, b1, w2, b2, wm, bm, wv, bv, w3, b3, w4, b4, w5, b5) = params
    b = x_nchw.shape[0]
    x = x_nchw.reshape(b, -1)
    h = jnp.maximum(x @ w1 + b1, 0.0)
    h = jnp.maximum(h @ w2 + b2, 0.0)
    mean = h @ wm + bm
    logvar = h @ wv + bv
    z = mean + noise * jnp.exp(0.5 * logvar)
    d = jnp.maximum(z @ w3 + b3, 0.0)
    d = jnp.maximum(d @ w4 + b4, 0.0)
    recon = jax.nn.sigmoid(d @ w5 + b5).reshape(b, 1, 28, 28)
    return recon, mean, logvar


if __name__ == "__main__":
    key = jax.random.PRNGKey(0)
    k_params, k_x, k_noise = jax.random.split(key, 3)

    batch = 4
    raw_params = init_vae_params(k_params, latent=LATENT)
    kparams = prepare_kernel_params(raw_params, latent=LATENT)

    x = jax.random.normal(k_x, (batch, 1, 28, 28), jnp.float32)
    # torch.randn(mean.shape) equivalent — sampled once, fed to the kernel.
    noise = jax.random.normal(k_noise, (batch, LATENT), jnp.float32)

    recon, mean, logvar = vae_forward(x, noise, kparams, latent=LATENT)
    jax.block_until_ready((recon, mean, logvar))

    # Sanity check against pure-JAX f32 reference (bf16 weights/activations with
    # f32 accumulation and bf16 recon store -> loosened tolerance).
    r_ref, m_ref, lv_ref = reference_forward(x, noise, raw_params)
    assert recon.shape == (batch, 1, 28, 28)
    assert mean.shape == (batch, LATENT) and logvar.shape == (batch, LATENT)
    assert jnp.allclose(recon, r_ref, atol=5e-2, rtol=5e-2)
    assert jnp.allclose(mean, m_ref, atol=5e-2, rtol=5e-2)
    assert jnp.allclose(logvar, lv_ref, atol=5e-2, rtol=5e-2)

    print("KERNEL_OK")
</pallas_src>

<mosaic_0001>
module attributes {stable_mosaic.version = 11 : i64} {
  func.func @_vae_kernel(%arg0: i32, %arg1: memref<16x896xbf16, #tpu.memory_space<vmem>>, %arg2: memref<16x2xf32, #tpu.memory_space<vmem>>, %arg3: memref<896x512xbf16, #tpu.memory_space<vmem>>, %arg4: memref<1x512xf32, #tpu.memory_space<vmem>>, %arg5: memref<512x256xbf16, #tpu.memory_space<vmem>>, %arg6: memref<1x256xf32, #tpu.memory_space<vmem>>, %arg7: memref<256x128xf32, #tpu.memory_space<vmem>>, %arg8: memref<1x128xf32, #tpu.memory_space<vmem>>, %arg9: memref<2x256xf32, #tpu.memory_space<vmem>>, %arg10: memref<1x256xf32, #tpu.memory_space<vmem>>, %arg11: memref<256x512xbf16, #tpu.memory_space<vmem>>, %arg12: memref<1x512xf32, #tpu.memory_space<vmem>>, %arg13: memref<512x896xbf16, #tpu.memory_space<vmem>>, %arg14: memref<1x896xf32, #tpu.memory_space<vmem>>, %arg15: memref<16x896xbf16, #tpu.memory_space<vmem>>, %arg16: memref<16x128xf32, #tpu.memory_space<vmem>>) attributes {dimension_semantics = [#tpu.dimension_semantics<parallel>], iteration_bounds = array<i64: 2>, scalar_prefetch = 0 : i64, scratch_operands = 0 : i64, tpu.core_type = #tpu.core_type<tc>, window_params = [{transform_indices = @transform_0, window_bounds = array<i64: 16, 896>}, {transform_indices = @transform_1, window_bounds = array<i64: 16, 2>}, {pipeline_mode = #tpu.pipeline_mode<synchronous>, transform_indices = @transform_2, window_bounds = array<i64: 896, 512>}, {pipeline_mode = #tpu.pipeline_mode<synchronous>, transform_indices = @transform_3, window_bounds = array<i64: 1, 512>}, {pipeline_mode = #tpu.pipeline_mode<synchronous>, transform_indices = @transform_4, window_bounds = array<i64: 512, 256>}, {pipeline_mode = #tpu.pipeline_mode<synchronous>, transform_indices = @transform_5, window_bounds = array<i64: 1, 256>}, {pipeline_mode = #tpu.pipeline_mode<synchronous>, transform_indices = @transform_6, window_bounds = array<i64: 256, 128>}, {pipeline_mode = #tpu.pipeline_mode<synchronous>, transform_indices = @transform_7, window_bounds = array<i64: 1, 128>}, {pipeline_mode = #tpu.pipeline_mode<synchronous>, transform_indices = @transform_8, window_bounds = array<i64: 2, 256>}, {pipeline_mode = #tpu.pipeline_mode<synchronous>, transform_indices = @transform_9, window_bounds = array<i64: 1, 256>}, {pipeline_mode = #tpu.pipeline_mode<synchronous>, transform_indices = @transform_10, window_bounds = array<i64: 256, 512>}, {pipeline_mode = #tpu.pipeline_mode<synchronous>, transform_indices = @transform_11, window_bounds = array<i64: 1, 512>}, {pipeline_mode = #tpu.pipeline_mode<synchronous>, transform_indices = @transform_12, window_bounds = array<i64: 512, 896>}, {pipeline_mode = #tpu.pipeline_mode<synchronous>, transform_indices = @transform_13, window_bounds = array<i64: 1, 896>}, {transform_indices = @transform_14, window_bounds = array<i64: 16, 896>}, {transform_indices = @transform_15, window_bounds = array<i64: 16, 128>}]} {
    %c0 = arith.constant 0 : index
    %c0_0 = arith.constant 0 : index
    %0 = vector.load %arg1[%c0, %c0_0] : memref<16x896xbf16, #tpu.memory_space<vmem>>, vector<16x896xbf16>
    %c0_1 = arith.constant 0 : index
    %c0_2 = arith.constant 0 : index
    %1 = vector.load %arg3[%c0_1, %c0_2] : memref<896x512xbf16, #tpu.memory_space<vmem>>, vector<896x512xbf16>
    %cst = arith.constant dense<0.000000e+00> : vector<16x512xf32>
    %2 = tpu.matmul %0, %1, %cst {dimension_numbers = #tpu.dot_dimension_numbers<[1], [0], [0], [1], [0, 0, 1, 1], [], []>} : vector<16x896xbf16>, vector<896x512xbf16>, vector<16x512xf32> -> vector<16x512xf32>
    %c0_3 = arith.constant 0 : index
    %c0_4 = arith.constant 0 : index
    %3 = vector.load %arg4[%c0_3, %c0_4] : memref<1x512xf32, #tpu.memory_space<vmem>>, vector<1x512xf32>
    %4 = vector.broadcast %3 : vector<1x512xf32> to vector<16x512xf32>
    %5 = arith.addf %2, %4 : vector<16x512xf32>
    %6 = arith.truncf %5 : vector<16x512xf32> to vector<16x512xbf16>
    %cst_5 = arith.constant 0.000000e+00 : bf16
    %7 = vector.broadcast %cst_5 : bf16 to vector<16x512xbf16>
    %8 = arith.maximumf %6, %7 : vector<16x512xbf16>
    %c0_6 = arith.constant 0 : index
    %c0_7 = arith.constant 0 : index
    %9 = vector.load %arg5[%c0_6, %c0_7] : memref<512x256xbf16, #tpu.memory_space<vmem>>, vector<512x256xbf16>
    %cst_8 = arith.constant dense<0.000000e+00> : vector<16x256xf32>
    %10 = tpu.matmul %8, %9, %cst_8 {dimension_numbers = #tpu.dot_dimension_numbers<[1], [0], [0], [1], [0, 0, 1, 1], [], []>} : vector<16x512xbf16>, vector<512x256xbf16>, vector<16x256xf32> -> vector<16x256xf32>
    %c0_9 = arith.constant 0 : index
    %c0_10 = arith.constant 0 : index
    %11 = vector.load %arg6[%c0_9, %c0_10] : memref<1x256xf32, #tpu.memory_space<vmem>>, vector<1x256xf32>
    %12 = vector.broadcast %11 : vector<1x256xf32> to vector<16x256xf32>
    %13 = arith.addf %10, %12 : vector<16x256xf32>
    %cst_11 = arith.constant 0.000000e+00 : f32
    %14 = vector.broadcast %cst_11 : f32 to vector<16x256xf32>
    %15 = arith.maximumf %13, %14 : vector<16x256xf32>
    %c0_12 = arith.constant 0 : index
    %c0_13 = arith.constant 0 : index
    %16 = vector.load %arg7[%c0_12, %c0_13] : memref<256x128xf32, #tpu.memory_space<vmem>>, vector<256x128xf32>
    %cst_14 = arith.constant dense<0.000000e+00> : vector<16x128xf32>
    %17 = tpu.matmul %15, %16, %cst_14 {dimension_numbers = #tpu.dot_dimension_numbers<[1], [0], [0], [1], [0, 0, 1, 1], [], []>} : vector<16x256xf32>, vector<256x128xf32>, vector<16x128xf32> -> vector<16x128xf32>
    %c0_15 = arith.constant 0 : index
    %c0_16 = arith.constant 0 : index
    %18 = vector.load %arg8[%c0_15, %c0_16] : memref<1x128xf32, #tpu.memory_space<vmem>>, vector<1x128xf32>
    %19 = vector.broadcast %18 : vector<1x128xf32> to vector<16x128xf32>
    %20 = arith.addf %17, %19 : vector<16x128xf32>
    %c0_17 = arith.constant 0 : index
    %c0_18 = arith.constant 0 : index
    %21 = vector.load %arg16[%c0_17, %c0_18] : memref<16x128xf32, #tpu.memory_space<vmem>>, vector<16x128xf32>
    tpu.vector_store %arg16[%c0_17, %c0_18], %20 {strides = array<i32>} : memref<16x128xf32, #tpu.memory_space<vmem>>, vector<16x128xf32>,
    %22 = vector.extract_strided_slice %20 {offsets = [0, 0], sizes = [16, 2], strides = [1, 1]} : vector<16x128xf32> to vector<16x2xf32>
    %23 = vector.extract_strided_slice %20 {offsets = [0, 2], sizes = [16, 2], strides = [1, 1]} : vector<16x128xf32> to vector<16x2xf32>
    %c0_19 = arith.constant 0 : index
    %c0_20 = arith.constant 0 : index
    %24 = vector.load %arg2[%c0_19, %c0_20] : memref<16x2xf32, #tpu.memory_space<vmem>>, vector<16x2xf32>
    %cst_21 = arith.constant 5.000000e-01 : f32
    %25 = vector.broadcast %cst_21 : f32 to vector<16x2xf32>
    %26 = arith.mulf %25, %23 : vector<16x2xf32>
    %27 = math.exp %26 : vector<16x2xf32>
    %28 = arith.mulf %24, %27 : vector<16x2xf32>
    %29 = arith.addf %22, %28 : vector<16x2xf32>
    %c0_22 = arith.constant 0 : index
    %c0_23 = arith.constant 0 : index
    %30 = vector.load %arg9[%c0_22, %c0_23] : memref<2x256xf32, #tpu.memory_space<vmem>>, vector<2x256xf32>
    %c0_24 = arith.constant 0 : index
    %c0_25 = arith.constant 0 : index
    %31 = vector.load %arg10[%c0_24, %c0_25] : memref<1x256xf32, #tpu.memory_space<vmem>>, vector<1x256xf32>
    %32 = vector.extract_strided_slice %29 {offsets = [0, 0], sizes = [16, 1], strides = [1, 1]} : vector<16x2xf32> to vector<16x1xf32>
    %33 = vector.extract_strided_slice %30 {offsets = [0, 0], sizes = [1, 256], strides = [1, 1]} : vector<2x256xf32> to vector<1x256xf32>
    %34 = vector.broadcast %32 : vector<16x1xf32> to vector<16x256xf32>
    %35 = vector.broadcast %33 : vector<1x256xf32> to vector<16x256xf32>
    %36 = arith.mulf %34, %35 : vector<16x256xf32>
    %37 = vector.broadcast %31 : vector<1x256xf32> to vector<16x256xf32>
    %38 = arith.addf %37, %36 : vector<16x256xf32>
    %39 = vector.extract_strided_slice %29 {offsets = [0, 1], sizes = [16, 1], strides = [1, 1]} : vector<16x2xf32> to vector<16x1xf32>
    %40 = vector.extract_strided_slice %30 {offsets = [1, 0], sizes = [1, 256], strides = [1, 1]} : vector<2x256xf32> to vector<1x256xf32>
    %41 = vector.broadcast %39 : vector<16x1xf32> to vector<16x256xf32>
    %42 = vector.broadcast %40 : vector<1x256xf32> to vector<16x256xf32>
    %43 = arith.mulf %41, %42 : vector<16x256xf32>
    %44 = arith.addf %38, %43 : vector<16x256xf32>
    %45 = arith.truncf %44 : vector<16x256xf32> to vector<16x256xbf16>
    %cst_26 = arith.constant 0.000000e+00 : bf16
    %46 = vector.broadcast %cst_26 : bf16 to vector<16x256xbf16>
    %47 = arith.maximumf %45, %46 : vector<16x256xbf16>
    %c0_27 = arith.constant 0 : index
    %c0_28 = arith.constant 0 : index
    %48 = vector.load %arg11[%c0_27, %c0_28] : memref<256x512xbf16, #tpu.memory_space<vmem>>, vector<256x512xbf16>
    %cst_29 = arith.constant dense<0.000000e+00> : vector<16x512xf32>
    %49 = tpu.matmul %47, %48, %cst_29 {dimension_numbers = #tpu.dot_dimension_numbers<[1], [0], [0], [1], [0, 0, 1, 1], [], []>} : vector<16x256xbf16>, vector<256x512xbf16>, vector<16x512xf32> -> vector<16x512xf32>
    %c0_30 = arith.constant 0 : index
    %c0_31 = arith.constant 0 : index
    %50 = vector.load %arg12[%c0_30, %c0_31] : memref<1x512xf32, #tpu.memory_space<vmem>>, vector<1x512xf32>
    %51 = vector.broadcast %50 : vector<1x512xf32> to vector<16x512xf32>
    %52 = arith.addf %49, %51 : vector<16x512xf32>
    %53 = arith.truncf %52 : vector<16x512xf32> to vector<16x512xbf16>
    %cst_32 = arith.constant 0.000000e+00 : bf16
    %54 = vector.broadcast %cst_32 : bf16 to vector<16x512xbf16>
    %55 = arith.maximumf %53, %54 : vector<16x512xbf16>
    %c0_33 = arith.constant 0 : index
    %c0_34 = arith.constant 0 : index
    %56 = vector.load %arg13[%c0_33, %c0_34] : memref<512x896xbf16, #tpu.memory_space<vmem>>, vector<512x896xbf16>
    %cst_35 = arith.constant dense<0.000000e+00> : vector<16x896xf32>
    %57 = tpu.matmul %55, %56, %cst_35 {dimension_numbers = #tpu.dot_dimension_numbers<[1], [0], [0], [1], [0, 0, 1, 1], [], []>} : vector<16x512xbf16>, vector<512x896xbf16>, vector<16x896xf32> -> vector<16x896xf32>
    %c0_36 = arith.constant 0 : index
    %c0_37 = arith.constant 0 : index
    %58 = vector.load %arg14[%c0_36, %c0_37] : memref<1x896xf32, #tpu.memory_space<vmem>>, vector<1x896xf32>
    %59 = vector.broadcast %58 : vector<1x896xf32> to vector<16x896xf32>
    %60 = arith.addf %57, %59 : vector<16x896xf32>
    %61 = arith.negf %60 : vector<16x896xf32>
    %62 = math.exp %61 : vector<16x896xf32>
    %cst_38 = arith.constant 1.000000e+00 : f32
    %63 = vector.broadcast %cst_38 : f32 to vector<16x896xf32>
    %64 = arith.addf %63, %62 : vector<16x896xf32>
    %65 = arith.divf %63, %64 : vector<16x896xf32>
    %66 = arith.truncf %65 : vector<16x896xf32> to vector<16x896xbf16>
    %c0_39 = arith.constant 0 : index
    %c0_40 = arith.constant 0 : index
    %67 = vector.load %arg15[%c0_39, %c0_40] : memref<16x896xbf16, #tpu.memory_space<vmem>>, vector<16x896xbf16>
    tpu.vector_store %arg15[%c0_39, %c0_40], %66 {strides = array<i32>} : memref<16x896xbf16, #tpu.memory_space<vmem>>, vector<16x896xbf16>,
    return
  }
  func.func @transform_0(%arg0: i32) -> (i32, i32) {
    %c0_i32 = arith.constant 0 : i32
    %c0_i32_0 = arith.constant 0 : i32
    return %arg0, %c0_i32 : i32, i32
  }
  func.func @transform_1(%arg0: i32) -> (i32, i32) {
    %c0_i32 = arith.constant 0 : i32
    %c0_i32_0 = arith.constant 0 : i32
    return %arg0, %c0_i32 : i32, i32
  }
  func.func @transform_2(%arg0: i32) -> (i32, i32) {
    %c0_i32 = arith.constant 0 : i32
    %c0_i32_0 = arith.constant 0 : i32
    %c0_i32_1 = arith.constant 0 : i32
    return %c0_i32, %c0_i32_0 : i32, i32
  }
  func.func @transform_3(%arg0: i32) -> (i32, i32) {
    %c0_i32 = arith.constant 0 : i32
    %c0_i32_0 = arith.constant 0 : i32
    %c0_i32_1 = arith.constant 0 : i32
    return %c0_i32, %c0_i32_0 : i32, i32
  }
  func.func @transform_4(%arg0: i32) -> (i32, i32) {
    %c0_i32 = arith.constant 0 : i32
    %c0_i32_0 = arith.constant 0 : i32
    %c0_i32_1 = arith.constant 0 : i32
    return %c0_i32, %c0_i32_0 : i32, i32
  }
  func.func @transform_5(%arg0: i32) -> (i32, i32) {
    %c0_i32 = arith.constant 0 : i32
    %c0_i32_0 = arith.constant 0 : i32
    %c0_i32_1 = arith.constant 0 : i32
    return %c0_i32, %c0_i32_0 : i32, i32
  }
  func.func @transform_6(%arg0: i32) -> (i32, i32) {
    %c0_i32 = arith.constant 0 : i32
    %c0_i32_0 = arith.constant 0 : i32
    %c0_i32_1 = arith.constant 0 : i32
    return %c0_i32, %c0_i32_0 : i32, i32
  }
  func.func @transform_7(%arg0: i32) -> (i32, i32) {
    %c0_i32 = arith.constant 0 : i32
    %c0_i32_0 = arith.constant 0 : i32
    %c0_i32_1 = arith.constant 0 : i32
    return %c0_i32, %c0_i32_0 : i32, i32
  }
  func.func @transform_8(%arg0: i32) -> (i32, i32) {
    %c0_i32 = arith.constant 0 : i32
    %c0_i32_0 = arith.constant 0 : i32
    %c0_i32_1 = arith.constant 0 : i32
    return %c0_i32, %c0_i32_0 : i32, i32
  }
  func.func @transform_9(%arg0: i32) -> (i32, i32) {
    %c0_i32 = arith.constant 0 : i32
    %c0_i32_0 = arith.constant 0 : i32
    %c0_i32_1 = arith.constant 0 : i32
    return %c0_i32, %c0_i32_0 : i32, i32
  }
  func.func @transform_10(%arg0: i32) -> (i32, i32) {
    %c0_i32 = arith.constant 0 : i32
    %c0_i32_0 = arith.constant 0 : i32
    %c0_i32_1 = arith.constant 0 : i32
    return %c0_i32, %c0_i32_0 : i32, i32
  }
  func.func @transform_11(%arg0: i32) -> (i32, i32) {
    %c0_i32 = arith.constant 0 : i32
    %c0_i32_0 = arith.constant 0 : i32
    %c0_i32_1 = arith.constant 0 : i32
    return %c0_i32, %c0_i32_0 : i32, i32
  }
  func.func @transform_12(%arg0: i32) -> (i32, i32) {
    %c0_i32 = arith.constant 0 : i32
    %c0_i32_0 = arith.constant 0 : i32
    %c0_i32_1 = arith.constant 0 : i32
    return %c0_i32, %c0_i32_0 : i32, i32
  }
  func.func @transform_13(%arg0: i32) -> (i32, i32) {
    %c0_i32 = arith.constant 0 : i32
    %c0_i32_0 = arith.constant 0 : i32
    %c0_i32_1 = arith.constant 0 : i32
    return %c0_i32, %c0_i32_0 : i32, i32
  }
  func.func @transform_14(%arg0: i32) -> (i32, i32) {
    %c0_i32 = arith.constant 0 : i32
    %c0_i32_0 = arith.constant 0 : i32
    return %arg0, %c0_i32 : i32, i32
  }
  func.func @transform_15(%arg0: i32) -> (i32, i32) {
    %c0_i32 = arith.constant 0 : i32
    %c0_i32_0 = arith.constant 0 : i32
    return %arg0, %c0_i32 : i32, i32
  }
}

module attributes {stable_mosaic.version = 11 : i64} {
  func.func @_vae_kernel(%arg0: i32, %arg1: memref<16x896xbf16, #tpu.memory_space<vmem>>, %arg2: memref<16x2xf32, #tpu.memory_space<vmem>>, %arg3: memref<896x512xbf16, #tpu.memory_space<vmem>>, %arg4: memref<1x512xf32, #tpu.memory_space<vmem>>, %arg5: memref<512x256xbf16, #tpu.memory_space<vmem>>, %arg6: memref<1x256xf32, #tpu.memory_space<vmem>>, %arg7: memref<256x128xf32, #tpu.memory_space<vmem>>, %arg8: memref<1x128xf32, #tpu.memory_space<vmem>>, %arg9: memref<2x256xf32, #tpu.memory_space<vmem>>, %arg10: memref<1x256xf32, #tpu.memory_space<vmem>>, %arg11: memref<256x512xbf16, #tpu.memory_space<vmem>>, %arg12: memref<1x512xf32, #tpu.memory_space<vmem>>, %arg13: memref<512x896xbf16, #tpu.memory_space<vmem>>, %arg14: memref<1x896xf32, #tpu.memory_space<vmem>>, %arg15: memref<16x896xbf16, #tpu.memory_space<vmem>>, %arg16: memref<16x128xf32, #tpu.memory_space<vmem>>) attributes {dimension_semantics = [#tpu.dimension_semantics<parallel>], iteration_bounds = array<i64: 2>, scalar_prefetch = 0 : i64, scratch_operands = 0 : i64, tpu.core_type = #tpu.core_type<tc>, window_params = [{transform_indices = @transform_0, window_bounds = array<i64: 16, 896>}, {transform_indices = @transform_1, window_bounds = array<i64: 16, 2>}, {pipeline_mode = #tpu.pipeline_mode<synchronous>, transform_indices = @transform_2, window_bounds = array<i64: 896, 512>}, {pipeline_mode = #tpu.pipeline_mode<synchronous>, transform_indices = @transform_3, window_bounds = array<i64: 1, 512>}, {pipeline_mode = #tpu.pipeline_mode<synchronous>, transform_indices = @transform_4, window_bounds = array<i64: 512, 256>}, {pipeline_mode = #tpu.pipeline_mode<synchronous>, transform_indices = @transform_5, window_bounds = array<i64: 1, 256>}, {pipeline_mode = #tpu.pipeline_mode<synchronous>, transform_indices = @transform_6, window_bounds = array<i64: 256, 128>}, {pipeline_mode = #tpu.pipeline_mode<synchronous>, transform_indices = @transform_7, window_bounds = array<i64: 1, 128>}, {pipeline_mode = #tpu.pipeline_mode<synchronous>, transform_indices = @transform_8, window_bounds = array<i64: 2, 256>}, {pipeline_mode = #tpu.pipeline_mode<synchronous>, transform_indices = @transform_9, window_bounds = array<i64: 1, 256>}, {pipeline_mode = #tpu.pipeline_mode<synchronous>, transform_indices = @transform_10, window_bounds = array<i64: 256, 512>}, {pipeline_mode = #tpu.pipeline_mode<synchronous>, transform_indices = @transform_11, window_bounds = array<i64: 1, 512>}, {pipeline_mode = #tpu.pipeline_mode<synchronous>, transform_indices = @transform_12, window_bounds = array<i64: 512, 896>}, {pipeline_mode = #tpu.pipeline_mode<synchronous>, transform_indices = @transform_13, window_bounds = array<i64: 1, 896>}, {transform_indices = @transform_14, window_bounds = array<i64: 16, 896>}, {transform_indices = @transform_15, window_bounds = array<i64: 16, 128>}]} {
    %c0 = arith.constant 0 : index
    %c0_0 = arith.constant 0 : index
    %0 = vector.load %arg1[%c0, %c0_0] : memref<16x896xbf16, #tpu.memory_space<vmem>>, vector<16x896xbf16>
    %c0_1 = arith.constant 0 : index
    %c0_2 = arith.constant 0 : index
    %1 = vector.load %arg3[%c0_1, %c0_2] : memref<896x512xbf16, #tpu.memory_space<vmem>>, vector<896x512xbf16>
    %cst = arith.constant dense<0.000000e+00> : vector<16x512xf32>
    %2 = tpu.matmul %0, %1, %cst {dimension_numbers = #tpu.dot_dimension_numbers<[1], [0], [0], [1], [0, 0, 1, 1], [], []>} : vector<16x896xbf16>, vector<896x512xbf16>, vector<16x512xf32> -> vector<16x512xf32>
    %c0_3 = arith.constant 0 : index
    %c0_4 = arith.constant 0 : index
    %3 = vector.load %arg4[%c0_3, %c0_4] : memref<1x512xf32, #tpu.memory_space<vmem>>, vector<1x512xf32>
    %4 = vector.broadcast %3 : vector<1x512xf32> to vector<16x512xf32>
    %5 = arith.addf %2, %4 : vector<16x512xf32>
    %6 = arith.truncf %5 : vector<16x512xf32> to vector<16x512xbf16>
    %cst_5 = arith.constant 0.000000e+00 : bf16
    %7 = vector.broadcast %cst_5 : bf16 to vector<16x512xbf16>
    %8 = arith.maximumf %6, %7 : vector<16x512xbf16>
    %c0_6 = arith.constant 0 : index
    %c0_7 = arith.constant 0 : index
    %9 = vector.load %arg5[%c0_6, %c0_7] : memref<512x256xbf16, #tpu.memory_space<vmem>>, vector<512x256xbf16>
    %cst_8 = arith.constant dense<0.000000e+00> : vector<16x256xf32>
    %10 = tpu.matmul %8, %9, %cst_8 {dimension_numbers = #tpu.dot_dimension_numbers<[1], [0], [0], [1], [0, 0, 1, 1], [], []>} : vector<16x512xbf16>, vector<512x256xbf16>, vector<16x256xf32> -> vector<16x256xf32>
    %c0_9 = arith.constant 0 : index
    %c0_10 = arith.constant 0 : index
    %11 = vector.load %arg6[%c0_9, %c0_10] : memref<1x256xf32, #tpu.memory_space<vmem>>, vector<1x256xf32>
    %12 = vector.broadcast %11 : vector<1x256xf32> to vector<16x256xf32>
    %13 = arith.addf %10, %12 : vector<16x256xf32>
    %cst_11 = arith.constant 0.000000e+00 : f32
    %14 = vector.broadcast %cst_11 : f32 to vector<16x256xf32>
    %15 = arith.maximumf %13, %14 : vector<16x256xf32>
    %c0_12 = arith.constant 0 : index
    %c0_13 = arith.constant 0 : index
    %16 = vector.load %arg7[%c0_12, %c0_13] : memref<256x128xf32, #tpu.memory_space<vmem>>, vector<256x128xf32>
    %cst_14 = arith.constant dense<0.000000e+00> : vector<16x128xf32>
    %17 = tpu.matmul %15, %16, %cst_14 {dimension_numbers = #tpu.dot_dimension_numbers<[1], [0], [0], [1], [0, 0, 1, 1], [], []>} : vector<16x256xf32>, vector<256x128xf32>, vector<16x128xf32> -> vector<16x128xf32>
    %c0_15 = arith.constant 0 : index
    %c0_16 = arith.constant 0 : index
    %18 = vector.load %arg8[%c0_15, %c0_16] : memref<1x128xf32, #tpu.memory_space<vmem>>, vector<1x128xf32>
    %19 = vector.broadcast %18 : vector<1x128xf32> to vector<16x128xf32>
    %20 = arith.addf %17, %19 : vector<16x128xf32>
    %c0_17 = arith.constant 0 : index
    %c0_18 = arith.constant 0 : index
    %21 = vector.load %arg16[%c0_17, %c0_18] : memref<16x128xf32, #tpu.memory_space<vmem>>, vector<16x128xf32>
    tpu.vector_store %arg16[%c0_17, %c0_18], %20 {strides = array<i32>} : memref<16x128xf32, #tpu.memory_space<vmem>>, vector<16x128xf32>,
    %22 = vector.extract_strided_slice %20 {offsets = [0, 0], sizes = [16, 2], strides = [1, 1]} : vector<16x128xf32> to vector<16x2xf32>
    %23 = vector.extract_strided_slice %20 {offsets = [0, 2], sizes = [16, 2], strides = [1, 1]} : vector<16x128xf32> to vector<16x2xf32>
    %c0_19 = arith.constant 0 : index
    %c0_20 = arith.constant 0 : index
    %24 = vector.load %arg2[%c0_19, %c0_20] : memref<16x2xf32, #tpu.memory_space<vmem>>, vector<16x2xf32>
    %cst_21 = arith.constant 5.000000e-01 : f32
    %25 = vector.broadcast %cst_21 : f32 to vector<16x2xf32>
    %26 = arith.mulf %25, %23 : vector<16x2xf32>
    %27 = math.exp %26 : vector<16x2xf32>
    %28 = arith.mulf %24, %27 : vector<16x2xf32>
    %29 = arith.addf %22, %28 : vector<16x2xf32>
    %c0_22 = arith.constant 0 : index
    %c0_23 = arith.constant 0 : index
    %30 = vector.load %arg9[%c0_22, %c0_23] : memref<2x256xf32, #tpu.memory_space<vmem>>, vector<2x256xf32>
    %c0_24 = arith.constant 0 : index
    %c0_25 = arith.constant 0 : index
    %31 = vector.load %arg10[%c0_24, %c0_25] : memref<1x256xf32, #tpu.memory_space<vmem>>, vector<1x256xf32>
    %32 = vector.extract_strided_slice %29 {offsets = [0, 0], sizes = [16, 1], strides = [1, 1]} : vector<16x2xf32> to vector<16x1xf32>
    %33 = vector.extract_strided_slice %30 {offsets = [0, 0], sizes = [1, 256], strides = [1, 1]} : vector<2x256xf32> to vector<1x256xf32>
    %34 = vector.broadcast %32 : vector<16x1xf32> to vector<16x256xf32>
    %35 = vector.broadcast %33 : vector<1x256xf32> to vector<16x256xf32>
    %36 = arith.mulf %34, %35 : vector<16x256xf32>
    %37 = vector.broadcast %31 : vector<1x256xf32> to vector<16x256xf32>
    %38 = arith.addf %37, %36 : vector<16x256xf32>
    %39 = vector.extract_strided_slice %29 {offsets = [0, 1], sizes = [16, 1], strides = [1, 1]} : vector<16x2xf32> to vector<16x1xf32>
    %40 = vector.extract_strided_slice %30 {offsets = [1, 0], sizes = [1, 256], strides = [1, 1]} : vector<2x256xf32> to vector<1x256xf32>
    %41 = vector.broadcast %39 : vector<16x1xf32> to vector<16x256xf32>
    %42 = vector.broadcast %40 : vector<1x256xf32> to vector<16x256xf32>
    %43 = arith.mulf %41, %42 : vector<16x256xf32>
    %44 = arith.addf %38, %43 : vector<16x256xf32>
    %45 = arith.truncf %44 : vector<16x256xf32> to vector<16x256xbf16>
    %cst_26 = arith.constant 0.000000e+00 : bf16
    %46 = vector.broadcast %cst_26 : bf16 to vector<16x256xbf16>
    %47 = arith.maximumf %45, %46 : vector<16x256xbf16>
    %c0_27 = arith.constant 0 : index
    %c0_28 = arith.constant 0 : index
    %48 = vector.load %arg11[%c0_27, %c0_28] : memref<256x512xbf16, #tpu.memory_space<vmem>>, vector<256x512xbf16>
    %cst_29 = arith.constant dense<0.000000e+00> : vector<16x512xf32>
    %49 = tpu.matmul %47, %48, %cst_29 {dimension_numbers = #tpu.dot_dimension_numbers<[1], [0], [0], [1], [0, 0, 1, 1], [], []>} : vector<16x256xbf16>, vector<256x512xbf16>, vector<16x512xf32> -> vector<16x512xf32>
    %c0_30 = arith.constant 0 : index
    %c0_31 = arith.constant 0 : index
    %50 = vector.load %arg12[%c0_30, %c0_31] : memref<1x512xf32, #tpu.memory_space<vmem>>, vector<1x512xf32>
    %51 = vector.broadcast %50 : vector<1x512xf32> to vector<16x512xf32>
    %52 = arith.addf %49, %51 : vector<16x512xf32>
    %53 = arith.truncf %52 : vector<16x512xf32> to vector<16x512xbf16>
    %cst_32 = arith.constant 0.000000e+00 : bf16
    %54 = vector.broadcast %cst_32 : bf16 to vector<16x512xbf16>
    %55 = arith.maximumf %53, %54 : vector<16x512xbf16>
    %c0_33 = arith.constant 0 : index
    %c0_34 = arith.constant 0 : index
    %56 = vector.load %arg13[%c0_33, %c0_34] : memref<512x896xbf16, #tpu.memory_space<vmem>>, vector<512x896xbf16>
    %cst_35 = arith.constant dense<0.000000e+00> : vector<16x896xf32>
    %57 = tpu.matmul %55, %56, %cst_35 {dimension_numbers = #tpu.dot_dimension_numbers<[1], [0], [0], [1], [0, 0, 1, 1], [], []>} : vector<16x512xbf16>, vector<512x896xbf16>, vector<16x896xf32> -> vector<16x896xf32>
    %c0_36 = arith.constant 0 : index
    %c0_37 = arith.constant 0 : index
    %58 = vector.load %arg14[%c0_36, %c0_37] : memref<1x896xf32, #tpu.memory_space<vmem>>, vector<1x896xf32>
    %59 = vector.broadcast %58 : vector<1x896xf32> to vector<16x896xf32>
    %60 = arith.addf %57, %59 : vector<16x896xf32>
    %61 = arith.negf %60 : vector<16x896xf32>
    %62 = math.exp %61 : vector<16x896xf32>
    %cst_38 = arith.constant 1.000000e+00 : f32
    %63 = vector.broadcast %cst_38 : f32 to vector<16x896xf32>
    %64 = arith.addf %63, %62 : vector<16x896xf32>
    %65 = arith.divf %63, %64 : vector<16x896xf32>
    %66 = arith.truncf %65 : vector<16x896xf32> to vector<16x896xbf16>
    %c0_39 = arith.constant 0 : index
    %c0_40 = arith.constant 0 : index
    %67 = vector.load %arg15[%c0_39, %c0_40] : memref<16x896xbf16, #tpu.memory_space<vmem>>, vector<16x896xbf16>
    tpu.vector_store %arg15[%c0_39, %c0_40], %66 {strides = array<i32>} : memref<16x896xbf16, #tpu.memory_space<vmem>>, vector<16x896xbf16>,
    return
  }
  func.func @transform_0(%arg0: i32) -> (i32, i32) {
    %c0_i32 = arith.constant 0 : i32
    %c0_i32_0 = arith.constant 0 : i32
    return %arg0, %c0_i32 : i32, i32
  }
  func.func @transform_1(%arg0: i32) -> (i32, i32) {
    %c0_i32 = arith.constant 0 : i32
    %c0_i32_0 = arith.constant 0 : i32
    return %arg0, %c0_i32 : i32, i32
  }
  func.func @transform_2(%arg0: i32) -> (i32, i32) {
    %c0_i32 = arith.constant 0 : i32
    %c0_i32_0 = arith.constant 0 : i32
    %c0_i32_1 = arith.constant 0 : i32
    return %c0_i32, %c0_i32_0 : i32, i32
  }
  func.func @transform_3(%arg0: i32) -> (i32, i32) {
    %c0_i32 = arith.constant 0 : i32
    %c0_i32_0 = arith.constant 0 : i32
    %c0_i32_1 = arith.constant 0 : i32
    return %c0_i32, %c0_i32_0 : i32, i32
  }
  func.func @transform_4(%arg0: i32) -> (i32, i32) {
    %c0_i32 = arith.constant 0 : i32
    %c0_i32_0 = arith.constant 0 : i32
    %c0_i32_1 = arith.constant 0 : i32
    return %c0_i32, %c0_i32_0 : i32, i32
  }
  func.func @transform_5(%arg0: i32) -> (i32, i32) {
    %c0_i32 = arith.constant 0 : i32
    %c0_i32_0 = arith.constant 0 : i32
    %c0_i32_1 = arith.constant 0 : i32
    return %c0_i32, %c0_i32_0 : i32, i32
  }
  func.func @transform_6(%arg0: i32) -> (i32, i32) {
    %c0_i32 = arith.constant 0 : i32
    %c0_i32_0 = arith.constant 0 : i32
    %c0_i32_1 = arith.constant 0 : i32
    return %c0_i32, %c0_i32_0 : i32, i32
  }
  func.func @transform_7(%arg0: i32) -> (i32, i32) {
    %c0_i32 = arith.constant 0 : i32
    %c0_i32_0 = arith.constant 0 : i32
    %c0_i32_1 = arith.constant 0 : i32
    return %c0_i32, %c0_i32_0 : i32, i32
  }
  func.func @transform_8(%arg0: i32) -> (i32, i32) {
    %c0_i32 = arith.constant 0 : i32
    %c0_i32_0 = arith.constant 0 : i32
    %c0_i32_1 = arith.constant 0 : i32
    return %c0_i32, %c0_i32_0 : i32, i32
  }
  func.func @transform_9(%arg0: i32) -> (i32, i32) {
    %c0_i32 = arith.constant 0 : i32
    %c0_i32_0 = arith.constant 0 : i32
    %c0_i32_1 = arith.constant 0 : i32
    return %c0_i32, %c0_i32_0 : i32, i32
  }
  func.func @transform_10(%arg0: i32) -> (i32, i32) {
    %c0_i32 = arith.constant 0 : i32
    %c0_i32_0 = arith.constant 0 : i32
    %c0_i32_1 = arith.constant 0 : i32
    return %c0_i32, %c0_i32_0 : i32, i32
  }
  func.func @transform_11(%arg0: i32) -> (i32, i32) {
    %c0_i32 = arith.constant 0 : i32
    %c0_i32_0 = arith.constant 0 : i32
    %c0_i32_1 = arith.constant 0 : i32
    return %c0_i32, %c0_i32_0 : i32, i32
  }
  func.func @transform_12(%arg0: i32) -> (i32, i32) {
    %c0_i32 = arith.constant 0 : i32
    %c0_i32_0 = arith.constant 0 : i32
    %c0_i32_1 = arith.constant 0 : i32
    return %c0_i32, %c0_i32_0 : i32, i32
  }
  func.func @transform_13(%arg0: i32) -> (i32, i32) {
    %c0_i32 = arith.constant 0 : i32
    %c0_i32_0 = arith.constant 0 : i32
    %c0_i32_1 = arith.constant 0 : i32
    return %c0_i32, %c0_i32_0 : i32, i32
  }
  func.func @transform_14(%arg0: i32) -> (i32, i32) {
    %c0_i32 = arith.constant 0 : i32
    %c0_i32_0 = arith.constant 0 : i32
    return %arg0, %c0_i32 : i32, i32
  }
  func.func @transform_15(%arg0: i32) -> (i32, i32) {
    %c0_i32 = arith.constant 0 : i32
    %c0_i32_0 = arith.constant 0 : i32
    return %arg0, %c0_i32 : i32, i32
  }
}

</mosaic_0001>

<llo_original>
// kernel: _vae_forward_impl.1
$region0: #{_vae_forward_impl.1}
  #allocation0 [shape = 'u32[]', space=smem, size = 0x4, offset = 0x4, fixed_abs, tag = 'smem constant byte address 0x4 - core index']
  #allocation1 [shape = 'u32[144,128]{1,0:T(1,128)}', space=vmem, size = 0x12000, scoped, tag = 'internal scratch']
  %s0 = inlined_call_operand.vmem [shape: bf16[32,896], index: 0, kind: input, shape index: {}]
  %s1 = inlined_call_operand.vmem [shape: f32[32,2], index: 1, kind: input, shape index: {}]
  %s2 = inlined_call_operand.hbm [shape: bf16[896,512], index: 2, kind: input, shape index: {}]
  %s3 = inlined_call_operand.vmem [shape: f32[1,512], index: 3, kind: input, shape index: {}]
  %s4 = inlined_call_operand.hbm [shape: bf16[512,256], index: 4, kind: input, shape index: {}]
  %s5 = inlined_call_operand.vmem [shape: f32[1,256], index: 5, kind: input, shape index: {}]
  %s6 = inlined_call_operand.vmem [shape: f32[256,128], index: 6, kind: input, shape index: {}]
  %s7 = inlined_call_operand.vmem [shape: f32[1,128], index: 7, kind: input, shape index: {}]
  %s8 = inlined_call_operand.vmem [shape: f32[2,256], index: 8, kind: input, shape index: {}]
  %s9 = inlined_call_operand.vmem [shape: f32[1,256], index: 9, kind: input, shape index: {}]
  %s10 = inlined_call_operand.hbm [shape: bf16[256,512], index: 10, kind: input, shape index: {}]
  %s11 = inlined_call_operand.vmem [shape: f32[1,512], index: 11, kind: input, shape index: {}]
  %s12 = inlined_call_operand.hbm [shape: bf16[512,896], index: 12, kind: input, shape index: {}]
  %s13 = inlined_call_operand.vmem [shape: f32[1,896], index: 13, kind: input, shape index: {}]
  %s14 = inlined_call_operand.vmem [shape: bf16[32,896], index: 14, kind: output, shape index: {0}]
  %s15 = inlined_call_operand.vmem [shape: f32[32,128], index: 15, kind: output, shape index: {1}]
  %16 = xla_tuple %s14, %s15
  %s17 = sld [smem:[#allocation0]]
  $region113: #{_vae_forward_impl.1} parent=0
    _
  %s19 = ssub.s32 1, %s17
  %s20 = scalar_select 0, %s19, %s17
  $region1: #{_vae_forward_impl.1} parent=0
    #allocation2 [shape = 'u8[917504]{0}', space=vmem, size = 0xe0000, scoped, tag = 'input window, operand 2, single buffered']
    #allocation3 [shape = 's32[2]{0}', space=sflag, size = 0x8, scoped, tag = 'scoped memory for _vae_forward_impl.1']
    #allocation4 [shape = 'u8[262144]{0}', space=vmem, size = 0x40000, scoped, tag = 'input window, operand 4, single buffered']
    #allocation5 [shape = 's32[1]{0}', space=sflag, size = 0x4, scoped, tag = 'scoped memory for _vae_forward_impl.1']
    #allocation6 [shape = 'u8[262144]{0}', space=vmem, size = 0x40000, scoped, tag = 'input window, operand 10, single buffered']
    #allocation7 [shape = 'u8[917504]{0}', space=vmem, size = 0xe0000, scoped, tag = 'input window, operand 12, single buffered']
    #allocation8 [shape = 's32[1]{0}', space=sflag, size = 0x4, scoped, tag = 'scoped memory for _vae_forward_impl.1']
    %21 = vsyncpa [#allocation3], 0
    %22 = vsyncpa [#allocation5], 0
    %23 = vsyncpa [#allocation8], 0
    loop: start=0, step=1, limit=4
    $region2: #{_vae_forward_impl.1} parent=1 // loop_pre_header
      _
    $region3: #{_vae_forward_impl.1} parent=1 // loop_header
      %s25 = sphi 0, %s29
      %p26 = scmp.ge.s32.totalorder %s25, 4
      %s35 = sphi 0, %s37
      %s38 = sphi 0, %s35
      %s39 = sphi 0, %s38
      %s55 = sphi 0, %s39
      %s61 = sphi 0, %s63
      %s64 = sphi 0, %s61
      %s65 = sphi 0, %s64
      %s81 = sphi 0, %s65
      %s85 = sphi 0, %s85
      %s87 = sphi 0, %s85
      %s88 = sphi 0, %s87
      %s102 = sphi 0, %s88
      %s106 = sphi 0, %s106
      %s108 = sphi 0, %s106
      %s109 = sphi 0, %s108
      %s123 = sphi 0, %s109
      %s127 = sphi 0, %s127
      %s129 = sphi 0, %s127
      %s130 = sphi 0, %s129
      %s144 = sphi 0, %s130
      %s148 = sphi 0, %s148
      %s150 = sphi 0, %s148
      %s151 = sphi 0, %s150
      %s165 = sphi 0, %s151
      %s169 = sphi 0, %s169
      %s171 = sphi 0, %s169
      %s172 = sphi 0, %s171
      %s186 = sphi 0, %s172
      %s190 = sphi 0, %s190
      %s192 = sphi 0, %s190
      %s193 = sphi 0, %s192
      %s207 = sphi 0, %s193
      %s211 = sphi 0, %s211
      %s213 = sphi 0, %s211
      %s214 = sphi 0, %s213
      %s228 = sphi 0, %s214
      %s232 = sphi 0, %s232
      %s234 = sphi 0, %s232
      %s235 = sphi 0, %s234
      %s249 = sphi 0, %s235
      %s253 = sphi 0, %s253
      %s255 = sphi 0, %s253
      %s256 = sphi 0, %s255
      %s270 = sphi 0, %s256
      %s274 = sphi 0, %s274
      %s276 = sphi 0, %s274
      %s277 = sphi 0, %s276
      %s291 = sphi 0, %s277
      %s295 = sphi 0, %s295
      %s297 = sphi 0, %s295
      %s298 = sphi 0, %s297
      %s312 = sphi 0, %s298
      %s316 = sphi 0, %s316
      %s318 = sphi 0, %s316
      %s319 = sphi 0, %s318
      %s333 = sphi 0, %s319
      %s339 = sphi 0, %s341
      %s342 = sphi 0, %s339
      %s343 = sphi 0, %s342
      %s359 = sphi 0, %s343
      %s365 = sphi 0, %s367
      %s368 = sphi 0, %s365
      %s369 = sphi 0, %s368
      %s385 = sphi 0, %s369
    $region4: #{_vae_forward_impl.1} parent=1 // loop_header_branch
      %28 = sbr.rel (%p26) target = $region8
    $region5: #{_vae_forward_impl.1} parent=1 // loop_body
      %s30 = ssub.s32 %s25, 1
      %s31 = ssub.s32 %s25, 2
      %s32 = sadd.s32 %s25, 1
      %s33 = ssub.s32 %s25, %s32
      %p34 = scmp.eq.s32.totalorder %s33, 0
      %s36 = sadd.s32 %s35, 1
      %s37 = scalar_select %p34, %s35, %s36
      %p40 = pneg %p34
      %p41 = scmp.eq.s32.totalorder %s25, 1
      %p42 = por %p40, %p41
      %p43 = scmp.ne.s32.totalorder %s35, %s38
      %p44 = scmp.eq.s32.totalorder %s25, 0
      %p45 = por %p43, %p44
      %p46 = scmp.ne.s32.totalorder %s35, %s38
      %p47 = scmp.eq.s32.totalorder %s30, 1
      %p48 = por %p46, %p47
      %p49 = scmp.ne.s32.totalorder %s38, %s39
      %p50 = scmp.eq.s32.totalorder %s30, 0
      %p51 = por %p49, %p50
      %p52 = scmp.ne.s32.totalorder %s38, %s39
      %p53 = scmp.eq.s32.totalorder %s31, 1
      %p54 = por %p52, %p53
      %p56 = scmp.ne.s32.totalorder %s39, %s55
      %p57 = scmp.eq.s32.totalorder %s31, 0
      %p58 = por %p56, %p57
      %s59 = ssub.s32 %s25, %s32
      %p60 = scmp.eq.s32.totalorder %s59, 0
      %s62 = sadd.s32 %s61, 1
      %s63 = scalar_select %p60, %s61, %s62
      %p66 = pneg %p60
      %p67 = scmp.eq.s32.totalorder %s25, 1
      %p68 = por %p66, %p67
      %p69 = scmp.ne.s32.totalorder %s61, %s64
      %p70 = scmp.eq.s32.totalorder %s25, 0
      %p71 = por %p69, %p70
      %p72 = scmp.ne.s32.totalorder %s61, %s64
      %p73 = scmp.eq.s32.totalorder %s30, 1
      %p74 = por %p72, %p73
      %p75 = scmp.ne.s32.totalorder %s64, %s65
      %p76 = scmp.eq.s32.totalorder %s30, 0
      %p77 = por %p75, %p76
      %p78 = scmp.ne.s32.totalorder %s64, %s65
      %p79 = scmp.eq.s32.totalorder %s31, 1
      %p80 = por %p78, %p79
      %p82 = scmp.ne.s32.totalorder %s65, %s81
      %p83 = scmp.eq.s32.totalorder %s31, 0
      %p84 = por %p82, %p83
      %s86 = sadd.s32 %s85, 1
      %p89 = scmp.eq.s32.totalorder %s25, 1
      %p90 = scmp.ne.s32.totalorder %s85, %s87
      %p91 = scmp.eq.s32.totalorder %s25, 0
      %p92 = por %p90, %p91
      %p93 = scmp.ne.s32.totalorder %s85, %s87
      %p94 = scmp.eq.s32.totalorder %s30, 1
      %p95 = por %p93, %p94
      %p96 = scmp.ne.s32.totalorder %s87, %s88
      %p97 = scmp.eq.s32.totalorder %s30, 0
      %p98 = por %p96, %p97
      %p99 = scmp.ne.s32.totalorder %s87, %s88
      %p100 = scmp.eq.s32.totalorder %s31, 1
      %p101 = por %p99, %p100
      %p103 = scmp.ne.s32.totalorder %s88, %s102
      %p104 = scmp.eq.s32.totalorder %s31, 0
      %p105 = por %p103, %p104
      %s107 = sadd.s32 %s106, 1
      %p110 = scmp.eq.s32.totalorder %s25, 1
      %p111 = scmp.ne.s32.totalorder %s106, %s108
      %p112 = scmp.eq.s32.totalorder %s25, 0
      %p113 = por %p111, %p112
      %p114 = scmp.ne.s32.totalorder %s106, %s108
      %p115 = scmp.eq.s32.totalorder %s30, 1
      %p116 = por %p114, %p115
      %p117 = scmp.ne.s32.totalorder %s108, %s109
      %p118 = scmp.eq.s32.totalorder %s30, 0
      %p119 = por %p117, %p118
      %p120 = scmp.ne.s32.totalorder %s108, %s109
      %p121 = scmp.eq.s32.totalorder %s31, 1
      %p122 = por %p120, %p121
      %p124 = scmp.ne.s32.totalorder %s109, %s123
      %p125 = scmp.eq.s32.totalorder %s31, 0
      %p126 = por %p124, %p125
      %s128 = sadd.s32 %s127, 1
      %p131 = scmp.eq.s32.totalorder %s25, 1
      %p132 = scmp.ne.s32.totalorder %s127, %s129
      %p133 = scmp.eq.s32.totalorder %s25, 0
      %p134 = por %p132, %p133
      %p135 = scmp.ne.s32.totalorder %s127, %s129
      %p136 = scmp.eq.s32.totalorder %s30, 1
      %p137 = por %p135, %p136
      %p138 = scmp.ne.s32.totalorder %s129, %s130
      %p139 = scmp.eq.s32.totalorder %s30, 0
      %p140 = por %p138, %p139
      %p141 = scmp.ne.s32.totalorder %s129, %s130
      %p142 = scmp.eq.s32.totalorder %s31, 1
      %p143 = por %p141, %p142
      %p145 = scmp.ne.s32.totalorder %s130, %s144
      %p146 = scmp.eq.s32.totalorder %s31, 0
      %p147 = por %p145, %p146
      %s149 = sadd.s32 %s148, 1
      %p152 = scmp.eq.s32.totalorder %s25, 1
      %p153 = scmp.ne.s32.totalorder %s148, %s150
      %p154 = scmp.eq.s32.totalorder %s25, 0
      %p155 = por %p153, %p154
      %p156 = scmp.ne.s32.totalorder %s148, %s150
      %p157 = scmp.eq.s32.totalorder %s30, 1
      %p158 = por %p156, %p157
      %p159 = scmp.ne.s32.totalorder %s150, %s151
      %p160 = scmp.eq.s32.totalorder %s30, 0
      %p161 = por %p159, %p160
      %p162 = scmp.ne.s32.totalorder %s150, %s151
      %p163 = scmp.eq.s32.totalorder %s31, 1
      %p164 = por %p162, %p163
      %p166 = scmp.ne.s32.totalorder %s151, %s165
      %p167 = scmp.eq.s32.totalorder %s31, 0
      %p168 = por %p166, %p167
      %s170 = sadd.s32 %s169, 1
      %p173 = scmp.eq.s32.totalorder %s25, 1
      %p174 = scmp.ne.s32.totalorder %s169, %s171
      %p175 = scmp.eq.s32.totalorder %s25, 0
      %p176 = por %p174, %p175
      %p177 = scmp.ne.s32.totalorder %s169, %s171
      %p178 = scmp.eq.s32.totalorder %s30, 1
      %p179 = por %p177, %p178
      %p180 = scmp.ne.s32.totalorder %s171, %s172
      %p181 = scmp.eq.s32.totalorder %s30, 0
      %p182 = por %p180, %p181
      %p183 = scmp.ne.s32.totalorder %s171, %s172
      %p184 = scmp.eq.s32.totalorder %s31, 1
      %p185 = por %p183, %p184
      %p187 = scmp.ne.s32.totalorder %s172, %s186
      %p188 = scmp.eq.s32.totalorder %s31, 0
      %p189 = por %p187, %p188
      %s191 = sadd.s32 %s190, 1
      %p194 = scmp.eq.s32.totalorder %s25, 1
      %p195 = scmp.ne.s32.totalorder %s190, %s192
      %p196 = scmp.eq.s32.totalorder %s25, 0
      %p197 = por %p195, %p196
      %p198 = scmp.ne.s32.totalorder %s190, %s192
      %p199 = scmp.eq.s32.totalorder %s30, 1
      %p200 = por %p198, %p199
      %p201 = scmp.ne.s32.totalorder %s192, %s193
      %p202 = scmp.eq.s32.totalorder %s30, 0
      %p203 = por %p201, %p202
      %p204 = scmp.ne.s32.totalorder %s192, %s193
      %p205 = scmp.eq.s32.totalorder %s31, 1
      %p206 = por %p204, %p205
      %p208 = scmp.ne.s32.totalorder %s193, %s207
      %p209 = scmp.eq.s32.totalorder %s31, 0
      %p210 = por %p208, %p209
      %s212 = sadd.s32 %s211, 1
      %p215 = scmp.eq.s32.totalorder %s25, 1
      %p216 = scmp.ne.s32.totalorder %s211, %s213
      %p217 = scmp.eq.s32.totalorder %s25, 0
      %p218 = por %p216, %p217
      %p219 = scmp.ne.s32.totalorder %s211, %s213
      %p220 = scmp.eq.s32.totalorder %s30, 1
      %p221 = por %p219, %p220
      %p222 = scmp.ne.s32.totalorder %s213, %s214
      %p223 = scmp.eq.s32.totalorder %s30, 0
      %p224 = por %p222, %p223
      %p225 = scmp.ne.s32.totalorder %s213, %s214
      %p226 = scmp.eq.s32.totalorder %s31, 1
      %p227 = por %p225, %p226
      %p229 = scmp.ne.s32.totalorder %s214, %s228
      %p230 = scmp.eq.s32.totalorder %s31, 0
      %p231 = por %p229, %p230
      %s233 = sadd.s32 %s232, 1
      %p236 = scmp.eq.s32.totalorder %s25, 1
      %p237 = scmp.ne.s32.totalorder %s232, %s234
      %p238 = scmp.eq.s32.totalorder %s25, 0
      %p239 = por %p237, %p238
      %p240 = scmp.ne.s32.totalorder %s232, %s234
      %p241 = scmp.eq.s32.totalorder %s30, 1
      %p242 = por %p240, %p241
      %p243 = scmp.ne.s32.totalorder %s234, %s235
      %p244 = scmp.eq.s32.totalorder %s30, 0
      %p245 = por %p243, %p244
      %p246 = scmp.ne.s32.totalorder %s234, %s235
      %p247 = scmp.eq.s32.totalorder %s31, 1
      %p248 = por %p246, %p247
      %p250 = scmp.ne.s32.totalorder %s235, %s249
      %p251 = scmp.eq.s32.totalorder %s31, 0
      %p252 = por %p250, %p251
      %s254 = sadd.s32 %s253, 1
      %p257 = scmp.eq.s32.totalorder %s25, 1
      %p258 = scmp.ne.s32.totalorder %s253, %s255
      %p259 = scmp.eq.s32.totalorder %s25, 0
      %p260 = por %p258, %p259
      %p261 = scmp.ne.s32.totalorder %s253, %s255
      %p262 = scmp.eq.s32.totalorder %s30, 1
      %p263 = por %p261, %p262
      %p264 = scmp.ne.s32.totalorder %s255, %s256
      %p265 = scmp.eq.s32.totalorder %s30, 0
      %p266 = por %p264, %p265
      %p267 = scmp.ne.s32.totalorder %s255, %s256
      %p268 = scmp.eq.s32.totalorder %s31, 1
      %p269 = por %p267, %p268
      %p271 = scmp.ne.s32.totalorder %s256, %s270
      %p272 = scmp.eq.s32.totalorder %s31, 0
      %p273 = por %p271, %p272
      %s275 = sadd.s32 %s274, 1
      %p278 = scmp.eq.s32.totalorder %s25, 1
      %p279 = scmp.ne.s32.totalorder %s274, %s276
      %p280 = scmp.eq.s32.totalorder %s25, 0
      %p281 = por %p279, %p280
      %p282 = scmp.ne.s32.totalorder %s274, %s276
      %p283 = scmp.eq.s32.totalorder %s30, 1
      %p284 = por %p282, %p283
      %p285 = scmp.ne.s32.totalorder %s276, %s277
      %p286 = scmp.eq.s32.totalorder %s30, 0
      %p287 = por %p285, %p286
      %p288 = scmp.ne.s32.totalorder %s276, %s277
      %p289 = scmp.eq.s32.totalorder %s31, 1
      %p290 = por %p288, %p289
      %p292 = scmp.ne.s32.totalorder %s277, %s291
      %p293 = scmp.eq.s32.totalorder %s31, 0
      %p294 = por %p292, %p293
      %s296 = sadd.s32 %s295, 1
      %p299 = scmp.eq.s32.totalorder %s25, 1
      %p300 = scmp.ne.s32.totalorder %s295, %s297
      %p301 = scmp.eq.s32.totalorder %s25, 0
      %p302 = por %p300, %p301
      %p303 = scmp.ne.s32.totalorder %s295, %s297
      %p304 = scmp.eq.s32.totalorder %s30, 1
      %p305 = por %p303, %p304
      %p306 = scmp.ne.s32.totalorder %s297, %s298
      %p307 = scmp.eq.s32.totalorder %s30, 0
      %p308 = por %p306, %p307
      %p309 = scmp.ne.s32.totalorder %s297, %s298
      %p310 = scmp.eq.s32.totalorder %s31, 1
      %p311 = por %p309, %p310
      %p313 = scmp.ne.s32.totalorder %s298, %s312
      %p314 = scmp.eq.s32.totalorder %s31, 0
      %p315 = por %p313, %p314
      %s317 = sadd.s32 %s316, 1
      %p320 = scmp.eq.s32.totalorder %s25, 1
      %p321 = scmp.ne.s32.totalorder %s316, %s318
      %p322 = scmp.eq.s32.totalorder %s25, 0
      %p323 = por %p321, %p322
      %p324 = scmp.ne.s32.totalorder %s316, %s318
      %p325 = scmp.eq.s32.totalorder %s30, 1
      %p326 = por %p324, %p325
      %p327 = scmp.ne.s32.totalorder %s318, %s319
      %p328 = scmp.eq.s32.totalorder %s30, 0
      %p329 = por %p327, %p328
      %p330 = scmp.ne.s32.totalorder %s318, %s319
      %p331 = scmp.eq.s32.totalorder %s31, 1
      %p332 = por %p330, %p331
      %p334 = scmp.ne.s32.totalorder %s319, %s333
      %p335 = scmp.eq.s32.totalorder %s31, 0
      %p336 = por %p334, %p335
      %s337 = ssub.s32 %s25, %s32
      %p338 = scmp.eq.s32.totalorder %s337, 0
      %s340 = sadd.s32 %s339, 1
      %s341 = scalar_select %p338, %s339, %s340
      %p344 = pneg %p338
      %p345 = scmp.eq.s32.totalorder %s25, 1
      %p346 = por %p344, %p345
      %p347 = scmp.ne.s32.totalorder %s339, %s342
      %p348 = scmp.eq.s32.totalorder %s25, 0
      %p349 = por %p347, %p348
      %p350 = scmp.ne.s32.totalorder %s339, %s342
      %p351 = scmp.eq.s32.totalorder %s30, 1
      %p352 = por %p350, %p351
      %p353 = scmp.ne.s32.totalorder %s342, %s343
      %p354 = scmp.eq.s32.totalorder %s30, 0
      %p355 = por %p353, %p354
      %p356 = scmp.ne.s32.totalorder %s342, %s343
      %p357 = scmp.eq.s32.totalorder %s31, 1
      %p358 = por %p356, %p357
      %p360 = scmp.ne.s32.totalorder %s343, %s359
      %p361 = scmp.eq.s32.totalorder %s31, 0
      %p362 = por %p360, %p361
      %s363 = ssub.s32 %s25, %s32
      %p364 = scmp.eq.s32.totalorder %s363, 0
      %s366 = sadd.s32 %s365, 1
      %s367 = scalar_select %p364, %s365, %s366
      %p370 = pneg %p364
      %p371 = scmp.eq.s32.totalorder %s25, 1
      %p372 = por %p370, %p371
      %p373 = scmp.ne.s32.totalorder %s365, %s368
      %p374 = scmp.eq.s32.totalorder %s25, 0
      %p375 = por %p373, %p374
      %p376 = scmp.ne.s32.totalorder %s365, %s368
      %p377 = scmp.eq.s32.totalorder %s30, 1
      %p378 = por %p376, %p377
      %p379 = scmp.ne.s32.totalorder %s368, %s369
      %p380 = scmp.eq.s32.totalorder %s30, 0
      %p381 = por %p379, %p380
      %p382 = scmp.ne.s32.totalorder %s368, %s369
      %p383 = scmp.eq.s32.totalorder %s31, 1
      %p384 = por %p382, %p383
      %p386 = scmp.ne.s32.totalorder %s369, %s385
      %p387 = scmp.eq.s32.totalorder %s31, 0
      %p388 = por %p386, %p387
      %p389 = scmp.le.s32.totalorder 1, %s25
      %p390 = scmp.lt.s32.totalorder %s25, 3
      %p391 = pnand %p389, %p390
      %p392 = pneg %p391
      // Predicated region
      $region9: #{_vae_forward_impl.1} parent=5 // pred_check
        _
      $region10: #{_vae_forward_impl.1} parent=5 // pred_check_branch
        %394 = sbr.rel (%p391) target = $region12
      $region11: #{_vae_forward_impl.1} parent=5 // pred_region
        %s395 = ssub.s32 %s25, 1
        // Predicated region
        $region13: #{_vae_forward_impl.1} parent=11 // pred_check
          %p396 = pneg %p98
        $region14: #{_vae_forward_impl.1} parent=11 // pred_check_branch
          %398 = sbr.rel (%p396) target = $region16
        $region15: #{_vae_forward_impl.1} parent=11 // pred_region
          %s400 = ssub.s32 28672, 28672
          %401 = vsyncadd [#allocation3], %s400
          %s402 = sshll.u32 [#allocation2], 4
          %s403 = int_to_ptr.vmem [resolvable:$true] %s402
          %408 = dma.hbm_to_vmem [thread:$0]  %s2, 28672, %s403, [#allocation3], 256, 256, 16
        $region16: #{_vae_forward_impl.1} parent=11 // pred_fallthru
          _
        // Predicated region
        $region17: #{_vae_forward_impl.1} parent=11 // pred_check
          %p409 = pneg %p119
        $region18: #{_vae_forward_impl.1} parent=11 // pred_check_branch
          %411 = sbr.rel (%p409) target = $region20
        $region19: #{_vae_forward_impl.1} parent=11 // pred_region
          _
        $region20: #{_vae_forward_impl.1} parent=11 // pred_fallthru
          _
        // Predicated region
        $region21: #{_vae_forward_impl.1} parent=11 // pred_check
          %p412 = pneg %p140
        $region22: #{_vae_forward_impl.1} parent=11 // pred_check_branch
          %414 = sbr.rel (%p412) target = $region24
        $region23: #{_vae_forward_impl.1} parent=11 // pred_region
          %s416 = ssub.s32 8192, 8192
          %417 = vsyncadd [#allocation5], %s416
          %s418 = sshll.u32 [#allocation4], 4
          %s419 = int_to_ptr.vmem [resolvable:$true] %s418
          %424 = dma.hbm_to_vmem [thread:$0]  %s4, 8192, %s419, [#allocation5], 128, 128, 8
        $region24: #{_vae_forward_impl.1} parent=11 // pred_fallthru
          _
        // Predicated region
        $region25: #{_vae_forward_impl.1} parent=11 // pred_check
          %p425 = pneg %p161
        $region26: #{_vae_forward_impl.1} parent=11 // pred_check_branch
          %427 = sbr.rel (%p425) target = $region28
        $region27: #{_vae_forward_impl.1} parent=11 // pred_region
          _
        $region28: #{_vae_forward_impl.1} parent=11 // pred_fallthru
          _
        // Predicated region
        $region29: #{_vae_forward_impl.1} parent=11 // pred_check
          %p428 = pneg %p182
        $region30: #{_vae_forward_impl.1} parent=11 // pred_check_branch
          %430 = sbr.rel (%p428) target = $region32
        $region31: #{_vae_forward_impl.1} parent=11 // pred_region
          _
        $region32: #{_vae_forward_impl.1} parent=11 // pred_fallthru
          _
        // Predicated region
        $region33: #{_vae_forward_impl.1} parent=11 // pred_check
          %p431 = pneg %p203
        $region34: #{_vae_forward_impl.1} parent=11 // pred_check_branch
          %433 = sbr.rel (%p431) target = $region36
        $region35: #{_vae_forward_impl.1} parent=11 // pred_region
          _
        $region36: #{_vae_forward_impl.1} parent=11 // pred_fallthru
          _
        // Predicated region
        $region37: #{_vae_forward_impl.1} parent=11 // pred_check
          %p434 = pneg %p224
        $region38: #{_vae_forward_impl.1} parent=11 // pred_check_branch
          %436 = sbr.rel (%p434) target = $region40
        $region39: #{_vae_forward_impl.1} parent=11 // pred_region
          _
        $region40: #{_vae_forward_impl.1} parent=11 // pred_fallthru
          _
        // Predicated region
        $region41: #{_vae_forward_impl.1} parent=11 // pred_check
          %p437 = pneg %p245
        $region42: #{_vae_forward_impl.1} parent=11 // pred_check_branch
          %439 = sbr.rel (%p437) target = $region44
        $region43: #{_vae_forward_impl.1} parent=11 // pred_region
          _
        $region44: #{_vae_forward_impl.1} parent=11 // pred_fallthru
          _
        // Predicated region
        $region45: #{_vae_forward_impl.1} parent=11 // pred_check
          %p440 = pneg %p266
        $region46: #{_vae_forward_impl.1} parent=11 // pred_check_branch
          %442 = sbr.rel (%p440) target = $region48
        $region47: #{_vae_forward_impl.1} parent=11 // pred_region
          %s444 = ssub.s32 8192, 8192
          %445 = vsyncadd [#allocation5], %s444
          %s446 = sshll.u32 [#allocation6], 4
          %s447 = int_to_ptr.vmem [resolvable:$true] %s446
          %452 = dma.hbm_to_vmem [thread:$0]  %s10, 8192, %s447, [#allocation5], 256, 256, 16
        $region48: #{_vae_forward_impl.1} parent=11 // pred_fallthru
          _
        // Predicated region
        $region49: #{_vae_forward_impl.1} parent=11 // pred_check
          %p453 = pneg %p287
        $region50: #{_vae_forward_impl.1} parent=11 // pred_check_branch
          %455 = sbr.rel (%p453) target = $region52
        $region51: #{_vae_forward_impl.1} parent=11 // pred_region
          _
        $region52: #{_vae_forward_impl.1} parent=11 // pred_fallthru
          _
        // Predicated region
        $region53: #{_vae_forward_impl.1} parent=11 // pred_check
          %p456 = pneg %p308
        $region54: #{_vae_forward_impl.1} parent=11 // pred_check_branch
          %458 = sbr.rel (%p456) target = $region56
        $region55: #{_vae_forward_impl.1} parent=11 // pred_region
          %s460 = ssub.s32 28672, 28672
          %461 = vsyncadd [#allocation8], %s460
          %s462 = sshll.u32 [#allocation7], 4
          %s463 = int_to_ptr.vmem [resolvable:$true] %s462
          %468 = dma.hbm_to_vmem [thread:$0]  %s12, 28672, %s463, [#allocation8], 448, 448, 28
        $region56: #{_vae_forward_impl.1} parent=11 // pred_fallthru
          _
        // Predicated region
        $region57: #{_vae_forward_impl.1} parent=11 // pred_check
          %p469 = pneg %p329
        $region58: #{_vae_forward_impl.1} parent=11 // pred_check_branch
          %471 = sbr.rel (%p469) target = $region60
        $region59: #{_vae_forward_impl.1} parent=11 // pred_region
          _
        $region60: #{_vae_forward_impl.1} parent=11 // pred_fallthru
          _
      $region12: #{_vae_forward_impl.1} parent=5 // pred_fallthru
        _
      %p472 = scmp.lt.s32.totalorder %s25, 2
      // Predicated region
      $region61: #{_vae_forward_impl.1} parent=5 // pred_check
        %p473 = pneg %p472
      $region62: #{_vae_forward_impl.1} parent=5 // pred_check_branch
        %475 = sbr.rel (%p473) target = $region64
      $region63: #{_vae_forward_impl.1} parent=5 // pred_region
        // Predicated region
        $region65: #{_vae_forward_impl.1} parent=63 // pred_check
          %p476 = pneg %p45
        $region66: #{_vae_forward_impl.1} parent=63 // pred_check_branch
          %478 = sbr.rel (%p476) target = $region68
        $region67: #{_vae_forward_impl.1} parent=63 // pred_region
          %s479 = smul.u32 2, %s25
          %p480 = scmp.lt.s32.totalorder %s479, 3
          %s481 = scalar_select %p480, %s479, 3
          %s482 = smul.addr %s481, 7
          %s483 = smul.addr %s482, 4
          %s484 = scalar_lea.vmem %s0, %s483
          %s485 = smul.u32 2, %s25
        $region68: #{_vae_forward_impl.1} parent=63 // pred_fallthru
          _
        // Predicated region
        $region69: #{_vae_forward_impl.1} parent=63 // pred_check
          %p486 = pneg %p71
        $region70: #{_vae_forward_impl.1} parent=63 // pred_check_branch
          %488 = sbr.rel (%p486) target = $region72
        $region71: #{_vae_forward_impl.1} parent=63 // pred_region
          %s489 = smul.u32 2, %s25
          %p490 = scmp.lt.s32.totalorder %s489, 3
          %s491 = scalar_select %p490, %s489, 3
          %s492 = smul.addr %s491, 8
          %s493 = scalar_lea.vmem %s1, %s492
          %s494 = smul.u32 2, %s25
        $region72: #{_vae_forward_impl.1} parent=63 // pred_fallthru
          _
      $region64: #{_vae_forward_impl.1} parent=5 // pred_fallthru
        _
      %p495 = scmp.le.s32.totalorder 1, %s25
      %p496 = scmp.lt.s32.totalorder %s25, 3
      %p497 = pnand %p495, %p496
      %p498 = pneg %p497
      // Predicated region
      $region73: #{_vae_forward_impl.1} parent=5 // pred_check
        _
      $region74: #{_vae_forward_impl.1} parent=5 // pred_check_branch
        %500 = sbr.rel (%p497) target = $region76
      $region75: #{_vae_forward_impl.1} parent=5 // pred_region
        %s501 = ssub.s32 %s25, 1
        // Predicated region
        $region77: #{_vae_forward_impl.1} parent=75 // pred_check
          %p502 = pneg %p98
        $region78: #{_vae_forward_impl.1} parent=75 // pred_check_branch
          %504 = sbr.rel (%p502) target = $region80
        $region79: #{_vae_forward_impl.1} parent=75 // pred_region
          %505 = dma.done [#allocation3], 28672
        $region80: #{_vae_forward_impl.1} parent=75 // pred_fallthru
          _
        // Predicated region
        $region81: #{_vae_forward_impl.1} parent=75 // pred_check
          %p506 = pneg %p140
        $region82: #{_vae_forward_impl.1} parent=75 // pred_check_branch
          %508 = sbr.rel (%p506) target = $region84
        $region83: #{_vae_forward_impl.1} parent=75 // pred_region
          %509 = dma.done [#allocation5], 8192
        $region84: #{_vae_forward_impl.1} parent=75 // pred_fallthru
          _
        // Predicated region
        $region85: #{_vae_forward_impl.1} parent=75 // pred_check
          %p510 = pneg %p266
        $region86: #{_vae_forward_impl.1} parent=75 // pred_check_branch
          %512 = sbr.rel (%p510) target = $region88
        $region87: #{_vae_forward_impl.1} parent=75 // pred_region
          %513 = dma.done [#allocation5], 8192
        $region88: #{_vae_forward_impl.1} parent=75 // pred_fallthru
          _
        // Predicated region
        $region89: #{_vae_forward_impl.1} parent=75 // pred_check
          %p514 = pneg %p308
        $region90: #{_vae_forward_impl.1} parent=75 // pred_check_branch
          %516 = sbr.rel (%p514) target = $region92
        $region91: #{_vae_forward_impl.1} parent=75 // pred_region
          %517 = dma.done [#allocation8], 28672
        $region92: #{_vae_forward_impl.1} parent=75 // pred_fallthru
          _
        %s518 = smul.u32 2, %s30
        %p519 = scmp.lt.s32.totalorder %s518, 3
        %s520 = scalar_select %p519, %s518, 3
        %s521 = smul.addr %s520, 7
        %s522 = smul.addr %s521, 4
        %s523 = scalar_lea.vmem %s0, %s522
        %p524 = pneg %p51
        %p525 = pneg %p48
        %s526 = smul.u32 2, %s30
        %p527 = scmp.lt.s32.totalorder %s526, 3
        %s528 = scalar_select %p527, %s526, 3
        %s529 = smul.addr %s528, 8
        %s530 = scalar_lea.vmem %s1, %s529
        %p531 = pneg %p77
        %p532 = pneg %p74
        %p533 = pneg %p98
        %p534 = pneg %p95
        %p535 = pneg %p119
        %p536 = pneg %p116
        %p537 = pneg %p140
        %p538 = pneg %p137
        %p539 = pneg %p161
        %p540 = pneg %p158
        %p541 = pneg %p182
        %p542 = pneg %p179
        %p543 = pneg %p203
        %p544 = pneg %p200
        %p545 = pneg %p224
        %p546 = pneg %p221
        %p547 = pneg %p245
        %p548 = pneg %p242
        %p549 = pneg %p266
        %p550 = pneg %p263
        %p551 = pneg %p287
        %p552 = pneg %p284
        %p553 = pneg %p308
        %p554 = pneg %p305
        %p555 = pneg %p329
        %p556 = pneg %p326
        %p557 = pneg %p355
        %p558 = pneg %p352
        %s559 = smul.u32 2, %s30
        %p560 = scmp.lt.s32.totalorder %s559, 3
        %s561 = scalar_select %p560, %s559, 3
        %s562 = smul.addr %s561, 7
        %s563 = smul.addr %s562, 4
        %s564 = scalar_lea.vmem %s14, %s563
        %p565 = pneg %p381
        %p566 = pneg %p378
        %s567 = smul.u32 2, %s30
        %p568 = scmp.lt.s32.totalorder %s567, 3
        %s569 = scalar_select %p568, %s567, 3
        %s570 = smul.addr %s569, 8
        %s571 = scalar_lea.vmem %s15, %s570
        %s572 = smul.u32 2, %s30
        %p573 = scmp.lt.s32.totalorder %s572, 3
        %s574 = scalar_select %p573, %s572, 3
        %s575 = smul.addr %s574, 7
        %s576 = smul.addr %s575, 4
        %s577 = scalar_lea.vmem %s0, %s576
        %s578 = smul.u32 2, %s30
        %s579 = smul.u32 2, %s30
        %p580 = scmp.lt.s32.totalorder %s579, 3
        %s581 = scalar_select %p580, %s579, 3
        %s582 = smul.addr %s581, 8
        %s583 = scalar_lea.vmem %s1, %s582
        %s584 = smul.u32 2, %s30
        %s585 = smul.u32 2, %s30
        %p586 = scmp.lt.s32.totalorder %s585, 3
        %s587 = scalar_select %p586, %s585, 3
        %s588 = smul.addr %s587, 7
        %s589 = smul.addr %s588, 4
        %s590 = scalar_lea.vmem %s14, %s589
        %s591 = smul.u32 2, %s30
        %s592 = smul.u32 2, %s30
        %p593 = scmp.lt.s32.totalorder %s592, 3
        %s594 = scalar_select %p593, %s592, 3
        %s595 = smul.addr %s594, 8
        %s596 = scalar_lea.vmem %s15, %s595
        %s597 = smul.u32 2, %s30
        %v599 = vld [vmem:[%s577] sm:$0xff]
        %v600 = vld [vmem:[%s577 + $0x8] sm:$0xff]
        %v601 = vld [vmem:[%s577 + $0x10] sm:$0xff]
        %v602 = vld [vmem:[%s577 + $0x18] sm:$0xf]
        %v603 = vld [vmem:[%s577 + $0x1c] sm:$0xff]
        %v604 = vld [vmem:[%s577 + $0x24] sm:$0xff]
        %v605 = vld [vmem:[%s577 + $0x2c] sm:$0xff]
        %v606 = vld [vmem:[%s577 + $0x34] sm:$0xf]
        %v607 = vld [vmem:[#allocation2] sm:$0xff]
        %v608 = vld [vmem:[#allocation2 + $0x8] sm:$0xff]
        %v609 = vld [vmem:[#allocation2 + $0x10] sm:$0xff]
        %v610 = vld [vmem:[#allocation2 + $0x18] sm:$0xff]
        %v611 = vld [vmem:[#allocation2 + $0x20] sm:$0xff]
        %v612 = vld [vmem:[#allocation2 + $0x28] sm:$0xff]
        %v613 = vld [vmem:[#allocation2 + $0x30] sm:$0xff]
        %v614 = vld [vmem:[#allocation2 + $0x38] sm:$0xff]
        %v615 = vld [vmem:[#allocation2 + $0x40] sm:$0xff]
        %v616 = vld [vmem:[#allocation2 + $0x48] sm:$0xff]
        %v617 = vld [vmem:[#allocation2 + $0x50] sm:$0xff]
        %v618 = vld [vmem:[#allocation2 + $0x58] sm:$0xff]
        %v619 = vld [vmem:[#allocation2 + $0x60] sm:$0xff]
        %v620 = vld [vmem:[#allocation2 + $0x68] sm:$0xff]
        %v621 = vld [vmem:[#allocation2 + $0x70] sm:$0xff]
        %v622 = vld [vmem:[#allocation2 + $0x78] sm:$0xff]
        %v623 = vld [vmem:[#allocation2 + $0x80] sm:$0xff]
        %v624 = vld [vmem:[#allocation2 + $0x88] sm:$0xff]
        %v625 = vld [vmem:[#allocation2 + $0x90] sm:$0xff]
        %v626 = vld [vmem:[#allocation2 + $0x98] sm:$0xff]
        %v627 = vld [vmem:[#allocation2 + $0xa0] sm:$0xff]
        %v628 = vld [vmem:[#allocation2 + $0xa8] sm:$0xff]
        %v629 = vld [vmem:[#allocation2 + $0xb0] sm:$0xff]
        %v630 = vld [vmem:[#allocation2 + $0xb8] sm:$0xff]
        %v631 = vld [vmem:[#allocation2 + $0xc0] sm:$0xff]
        %v632 = vld [vmem:[#allocation2 + $0xc8] sm:$0xff]
        %v633 = vld [vmem:[#allocation2 + $0xd0] sm:$0xff]
        %v634 = vld [vmem:[#allocation2 + $0xd8] sm:$0xff]
        %v635 = vld [vmem:[#allocation2 + $0xe0] sm:$0xff]
        %v636 = vld [vmem:[#allocation2 + $0xe8] sm:$0xff]
        %v637 = vld [vmem:[#allocation2 + $0xf0] sm:$0xff]
        %v638 = vld [vmem:[#allocation2 + $0xf8] sm:$0xff]
        %v639 = vld [vmem:[#allocation2 + $0x100] sm:$0xff]
        %v640 = vld [vmem:[#allocation2 + $0x108] sm:$0xff]
        %v641 = vld [vmem:[#allocation2 + $0x110] sm:$0xff]
        %v642 = vld [vmem:[#allocation2 + $0x118] sm:$0xff]
        %v643 = vld [vmem:[#allocation2 + $0x120] sm:$0xff]
        %v644 = vld [vmem:[#allocation2 + $0x128] sm:$0xff]
        %v645 = vld [vmem:[#allocation2 + $0x130] sm:$0xff]
        %v646 = vld [vmem:[#allocation2 + $0x138] sm:$0xff]
        %v647 = vld [vmem:[#allocation2 + $0x140] sm:$0xff]
        %v648 = vld [vmem:[#allocation2 + $0x148] sm:$0xff]
        %v649 = vld [vmem:[#allocation2 + $0x150] sm:$0xff]
        %v650 = vld [vmem:[#allocation2 + $0x158] sm:$0xff]
        %v651 = vld [vmem:[#allocation2 + $0x160] sm:$0xff]
        %v652 = vld [vmem:[#allocation2 + $0x168] sm:$0xff]
        %v653 = vld [vmem:[#allocation2 + $0x170] sm:$0xff]
        %v654 = vld [vmem:[#allocation2 + $0x178] sm:$0xff]
        %v655 = vld [vmem:[#allocation2 + $0x180] sm:$0xff]
        %v656 = vld [vmem:[#allocation2 + $0x188] sm:$0xff]
        %v657 = vld [vmem:[#allocation2 + $0x190] sm:$0xff]
        %v658 = vld [vmem:[#allocation2 + $0x198] sm:$0xff]
        %v659 = vld [vmem:[#allocation2 + $0x1a0] sm:$0xff]
        %v660 = vld [vmem:[#allocation2 + $0x1a8] sm:$0xff]
        %v661 = vld [vmem:[#allocation2 + $0x1b0] sm:$0xff]
        %v662 = vld [vmem:[#allocation2 + $0x1b8] sm:$0xff]
        %v663 = vld [vmem:[#allocation2 + $0x1c0] sm:$0xff]
        %v664 = vld [vmem:[#allocation2 + $0x1c8] sm:$0xff]
        %v665 = vld [vmem:[#allocation2 + $0x1d0] sm:$0xff]
        %v666 = vld [vmem:[#allocation2 + $0x1d8] sm:$0xff]
        %v667 = vld [vmem:[#allocation2 + $0x1e0] sm:$0xff]
        %v668 = vld [vmem:[#allocation2 + $0x1e8] sm:$0xff]
        %v669 = vld [vmem:[#allocation2 + $0x1f0] sm:$0xff]
        %v670 = vld [vmem:[#allocation2 + $0x1f8] sm:$0xff]
        %v671 = vld [vmem:[#allocation2 + $0x200] sm:$0xff]
        %v672 = vld [vmem:[#allocation2 + $0x208] sm:$0xff]
        %v673 = vld [vmem:[#allocation2 + $0x210] sm:$0xff]
        %v674 = vld [vmem:[#allocation2 + $0x218] sm:$0xff]
        %v675 = vld [vmem:[#allocation2 + $0x220] sm:$0xff]
        %v676 = vld [vmem:[#allocation2 + $0x228] sm:$0xff]
        %v677 = vld [vmem:[#allocation2 + $0x230] sm:$0xff]
        %v678 = vld [vmem:[#allocation2 + $0x238] sm:$0xff]
        %v679 = vld [vmem:[#allocation2 + $0x240] sm:$0xff]
        %v680 = vld [vmem:[#allocation2 + $0x248] sm:$0xff]
        %v681 = vld [vmem:[#allocation2 + $0x250] sm:$0xff]
        %v682 = vld [vmem:[#allocation2 + $0x258] sm:$0xff]
        %v683 = vld [vmem:[#allocation2 + $0x260] sm:$0xff]
        %v684 = vld [vmem:[#allocation2 + $0x268] sm:$0xff]
        %v685 = vld [vmem:[#allocation2 + $0x270] sm:$0xff]
        %v686 = vld [vmem:[#allocation2 + $0x278] sm:$0xff]
        %v687 = vld [vmem:[#allocation2 + $0x280] sm:$0xff]
        %v688 = vld [vmem:[#allocation2 + $0x288] sm:$0xff]
        %v689 = vld [vmem:[#allocation2 + $0x290] sm:$0xff]
        %v690 = vld [vmem:[#allocation2 + $0x298] sm:$0xff]
        %v691 = vld [vmem:[#allocation2 + $0x2a0] sm:$0xff]
        %v692 = vld [vmem:[#allocation2 + $0x2a8] sm:$0xff]
        %v693 = vld [vmem:[#allocation2 + $0x2b0] sm:$0xff]
        %v694 = vld [vmem:[#allocation2 + $0x2b8] sm:$0xff]
        %v695 = vld [vmem:[#allocation2 + $0x2c0] sm:$0xff]
        %v696 = vld [vmem:[#allocation2 + $0x2c8] sm:$0xff]
        %v697 = vld [vmem:[#allocation2 + $0x2d0] sm:$0xff]
        %v698 = vld [vmem:[#allocation2 + $0x2d8] sm:$0xff]
        %v699 = vld [vmem:[#allocation2 + $0x2e0] sm:$0xff]
        %v700 = vld [vmem:[#allocation2 + $0x2e8] sm:$0xff]
        %v701 = vld [vmem:[#allocation2 + $0x2f0] sm:$0xff]
        %v702 = vld [vmem:[#allocation2 + $0x2f8] sm:$0xff]
        %v703 = vld [vmem:[#allocation2 + $0x300] sm:$0xff]
        %v704 = vld [vmem:[#allocation2 + $0x308] sm:$0xff]
        %v705 = vld [vmem:[#allocation2 + $0x310] sm:$0xff]
        %v706 = vld [vmem:[#allocation2 + $0x318] sm:$0xff]
        %v707 = vld [vmem:[#allocation2 + $0x320] sm:$0xff]
        %v708 = vld [vmem:[#allocation2 + $0x328] sm:$0xff]
        %v709 = vld [vmem:[#allocation2 + $0x330] sm:$0xff]
        %v710 = vld [vmem:[#allocation2 + $0x338] sm:$0xff]
        %v711 = vld [vmem:[#allocation2 + $0x340] sm:$0xff]
        %v712 = vld [vmem:[#allocation2 + $0x348] sm:$0xff]
        %v713 = vld [vmem:[#allocation2 + $0x350] sm:$0xff]
        %v714 = vld [vmem:[#allocation2 + $0x358] sm:$0xff]
        %v715 = vld [vmem:[#allocation2 + $0x360] sm:$0xff]
        %v716 = vld [vmem:[#allocation2 + $0x368] sm:$0xff]
        %v717 = vld [vmem:[#allocation2 + $0x370] sm:$0xff]
        %v718 = vld [vmem:[#allocation2 + $0x378] sm:$0xff]
        %v719 = vld [vmem:[#allocation2 + $0x380] sm:$0xff]
        %v720 = vld [vmem:[#allocation2 + $0x388] sm:$0xff]
        %v721 = vld [vmem:[#allocation2 + $0x390] sm:$0xff]
        %v722 = vld [vmem:[#allocation2 + $0x398] sm:$0xff]
        %v723 = vld [vmem:[#allocation2 + $0x3a0] sm:$0xff]
        %v724 = vld [vmem:[#allocation2 + $0x3a8] sm:$0xff]
        %v725 = vld [vmem:[#allocation2 + $0x3b0] sm:$0xff]
        %v726 = vld [vmem:[#allocation2 + $0x3b8] sm:$0xff]
        %v727 = vld [vmem:[#allocation2 + $0x3c0] sm:$0xff]
        %v728 = vld [vmem:[#allocation2 + $0x3c8] sm:$0xff]
        %v729 = vld [vmem:[#allocation2 + $0x3d0] sm:$0xff]
        %v730 = vld [vmem:[#allocation2 + $0x3d8] sm:$0xff]
        %v731 = vld [vmem:[#allocation2 + $0x3e0] sm:$0xff]
        %v732 = vld [vmem:[#allocation2 + $0x3e8] sm:$0xff]
        %v733 = vld [vmem:[#allocation2 + $0x3f0] sm:$0xff]
        %v734 = vld [vmem:[#allocation2 + $0x3f8] sm:$0xff]
        %v735 = vld [vmem:[#allocation2 + $0x400] sm:$0xff]
        %v736 = vld [vmem:[#allocation2 + $0x408] sm:$0xff]
        %v737 = vld [vmem:[#allocation2 + $0x410] sm:$0xff]
        %v738 = vld [vmem:[#allocation2 + $0x418] sm:$0xff]
        %v739 = vld [vmem:[#allocation2 + $0x420] sm:$0xff]
        %v740 = vld [vmem:[#allocation2 + $0x428] sm:$0xff]
        %v741 = vld [vmem:[#allocation2 + $0x430] sm:$0xff]
        %v742 = vld [vmem:[#allocation2 + $0x438] sm:$0xff]
        %v743 = vld [vmem:[#allocation2 + $0x440] sm:$0xff]
        %v744 = vld [vmem:[#allocation2 + $0x448] sm:$0xff]
        %v745 = vld [vmem:[#allocation2 + $0x450] sm:$0xff]
        %v746 = vld [vmem:[#allocation2 + $0x458] sm:$0xff]
        %v747 = vld [vmem:[#allocation2 + $0x460] sm:$0xff]
        %v748 = vld [vmem:[#allocation2 + $0x468] sm:$0xff]
        %v749 = vld [vmem:[#allocation2 + $0x470] sm:$0xff]
        %v750 = vld [vmem:[#allocation2 + $0x478] sm:$0xff]
        %v751 = vld [vmem:[#allocation2 + $0x480] sm:$0xff]
        %v752 = vld [vmem:[#allocation2 + $0x488] sm:$0xff]
        %v753 = vld [vmem:[#allocation2 + $0x490] sm:$0xff]
        %v754 = vld [vmem:[#allocation2 + $0x498] sm:$0xff]
        %v755 = vld [vmem:[#allocation2 + $0x4a0] sm:$0xff]
        %v756 = vld [vmem:[#allocation2 + $0x4a8] sm:$0xff]
        %v757 = vld [vmem:[#allocation2 + $0x4b0] sm:$0xff]
        %v758 = vld [vmem:[#allocation2 + $0x4b8] sm:$0xff]
        %v759 = vld [vmem:[#allocation2 + $0x4c0] sm:$0xff]
        %v760 = vld [vmem:[#allocation2 + $0x4c8] sm:$0xff]
        %v761 = vld [vmem:[#allocation2 + $0x4d0] sm:$0xff]
        %v762 = vld [vmem:[#allocation2 + $0x4d8] sm:$0xff]
        %v763 = vld [vmem:[#allocation2 + $0x4e0] sm:$0xff]
        %v764 = vld [vmem:[#allocation2 + $0x4e8] sm:$0xff]
        %v765 = vld [vmem:[#allocation2 + $0x4f0] sm:$0xff]
        %v766 = vld [vmem:[#allocation2 + $0x4f8] sm:$0xff]
        %v767 = vld [vmem:[#allocation2 + $0x500] sm:$0xff]
        %v768 = vld [vmem:[#allocation2 + $0x508] sm:$0xff]
        %v769 = vld [vmem:[#allocation2 + $0x510] sm:$0xff]
        %v770 = vld [vmem:[#allocation2 + $0x518] sm:$0xff]
        %v771 = vld [vmem:[#allocation2 + $0x520] sm:$0xff]
        %v772 = vld [vmem:[#allocation2 + $0x528] sm:$0xff]
        %v773 = vld [vmem:[#allocation2 + $0x530] sm:$0xff]
        %v774 = vld [vmem:[#allocation2 + $0x538] sm:$0xff]
        %v775 = vld [vmem:[#allocation2 + $0x540] sm:$0xff]
        %v776 = vld [vmem:[#allocation2 + $0x548] sm:$0xff]
        %v777 = vld [vmem:[#allocation2 + $0x550] sm:$0xff]
        %v778 = vld [vmem:[#allocation2 + $0x558] sm:$0xff]
        %v779 = vld [vmem:[#allocation2 + $0x560] sm:$0xff]
        %v780 = vld [vmem:[#allocation2 + $0x568] sm:$0xff]
        %v781 = vld [vmem:[#allocation2 + $0x570] sm:$0xff]
        %v782 = vld [vmem:[#allocation2 + $0x578] sm:$0xff]
        %v783 = vld [vmem:[#allocation2 + $0x580] sm:$0xff]
        %v784 = vld [vmem:[#allocation2 + $0x588] sm:$0xff]
        %v785 = vld [vmem:[#allocation2 + $0x590] sm:$0xff]
        %v786 = vld [vmem:[#allocation2 + $0x598] sm:$0xff]
        %v787 = vld [vmem:[#allocation2 + $0x5a0] sm:$0xff]
        %v788 = vld [vmem:[#allocation2 + $0x5a8] sm:$0xff]
        %v789 = vld [vmem:[#allocation2 + $0x5b0] sm:$0xff]
        %v790 = vld [vmem:[#allocation2 + $0x5b8] sm:$0xff]
        %v791 = vld [vmem:[#allocation2 + $0x5c0] sm:$0xff]
        %v792 = vld [vmem:[#allocation2 + $0x5c8] sm:$0xff]
        %v793 = vld [vmem:[#allocation2 + $0x5d0] sm:$0xff]
        %v794 = vld [vmem:[#allocation2 + $0x5d8] sm:$0xff]
        %v795 = vld [vmem:[#allocation2 + $0x5e0] sm:$0xff]
        %v796 = vld [vmem:[#allocation2 + $0x5e8] sm:$0xff]
        %v797 = vld [vmem:[#allocation2 + $0x5f0] sm:$0xff]
        %v798 = vld [vmem:[#allocation2 + $0x5f8] sm:$0xff]
        %v799 = vld [vmem:[#allocation2 + $0x600] sm:$0xff]
        %v800 = vld [vmem:[#allocation2 + $0x608] sm:$0xff]
        %v801 = vld [vmem:[#allocation2 + $0x610] sm:$0xff]
        %v802 = vld [vmem:[#allocation2 + $0x618] sm:$0xff]
        %v803 = vld [vmem:[#allocation2 + $0x620] sm:$0xff]
        %v804 = vld [vmem:[#allocation2 + $0x628] sm:$0xff]
        %v805 = vld [vmem:[#allocation2 + $0x630] sm:$0xff]
        %v806 = vld [vmem:[#allocation2 + $0x638] sm:$0xff]
        %v807 = vld [vmem:[#allocation2 + $0x640] sm:$0xff]
        %v808 = vld [vmem:[#allocation2 + $0x648] sm:$0xff]
        %v809 = vld [vmem:[#allocation2 + $0x650] sm:$0xff]
        %v810 = vld [vmem:[#allocation2 + $0x658] sm:$0xff]
        %v811 = vld [vmem:[#allocation2 + $0x660] sm:$0xff]
        %v812 = vld [vmem:[#allocation2 + $0x668] sm:$0xff]
        %v813 = vld [vmem:[#allocation2 + $0x670] sm:$0xff]
        %v814 = vld [vmem:[#allocation2 + $0x678] sm:$0xff]
        %v815 = vld [vmem:[#allocation2 + $0x680] sm:$0xff]
        %v816 = vld [vmem:[#allocation2 + $0x688] sm:$0xff]
        %v817 = vld [vmem:[#allocation2 + $0x690] sm:$0xff]
        %v818 = vld [vmem:[#allocation2 + $0x698] sm:$0xff]
        %v819 = vld [vmem:[#allocation2 + $0x6a0] sm:$0xff]
        %v820 = vld [vmem:[#allocation2 + $0x6a8] sm:$0xff]
        %v821 = vld [vmem:[#allocation2 + $0x6b0] sm:$0xff]
        %v822 = vld [vmem:[#allocation2 + $0x6b8] sm:$0xff]
        %v823 = vld [vmem:[#allocation2 + $0x6c0] sm:$0xff]
        %v824 = vld [vmem:[#allocation2 + $0x6c8] sm:$0xff]
        %v825 = vld [vmem:[#allocation2 + $0x6d0] sm:$0xff]
        %v826 = vld [vmem:[#allocation2 + $0x6d8] sm:$0xff]
        %v827 = vld [vmem:[#allocation2 + $0x6e0] sm:$0xff]
        %v828 = vld [vmem:[#allocation2 + $0x6e8] sm:$0xff]
        %v829 = vld [vmem:[#allocation2 + $0x6f0] sm:$0xff]
        %v830 = vld [vmem:[#allocation2 + $0x6f8] sm:$0xff]
        %v831 = vld [vmem:[%s3] sm:$0xf]
        %v833 = vlaneseq
        %v834 = vshrl.u32 %v833, 7
        %v835 = vsub.s32 0, %v834
        %v836 = vrot.slane %v831, %v835
        %v837 = vlaneseq
        %v838 = vshrl.u32 %v837, 7
        %v839 = vsub.s32 1, %v838
        %v840 = vrot.slane %v831, %v839
        %v841 = vlaneseq
        %v842 = vshrl.u32 %v841, 7
        %v843 = vsub.s32 2, %v842
        %v844 = vrot.slane %v831, %v843
        %v845 = vlaneseq
        %v846 = vshrl.u32 %v845, 7
        %v847 = vsub.s32 3, %v846
        %v848 = vrot.slane %v831, %v847
        %v861 = vunpack.c.l.b16 %v599
        %v862 = vunpack.c.h.b16 %v599
        %v863 = vunpack.c.l.b16 %v600
        %v864 = vunpack.c.h.b16 %v600
        %v865 = vunpack.c.l.b16 %v601
        %v866 = vunpack.c.h.b16 %v601
        %v867 = vunpack.c.l.b16 %v602
        %v868 = vunpack.c.l.b16 %v603
        %v869 = vunpack.c.h.b16 %v603
        %v870 = vunpack.c.l.b16 %v604
        %v871 = vunpack.c.h.b16 %v604
        %v872 = vunpack.c.l.b16 %v605
        %v873 = vunpack.c.h.b16 %v605
        %v874 = vunpack.c.l.b16 %v606
        %v875 = vpack.c.b16 %v868, %v861
        %v876 = vpack.c.b16 %v869, %v862
        %v877 = vpack.c.b16 %v870, %v863
        %v878 = vpack.c.b16 %v871, %v864
        %v879 = vpack.c.b16 %v872, %v865
        %v880 = vpack.c.b16 %v873, %v866
        %v881 = vpack.c.b16 %v874, %v867
        %v1113 = vunpack.c.l.b16 %v607
        %v1114 = vunpack.c.h.b16 %v607
        %v1115 = vunpack.c.l.b16 %v608
        %v1116 = vunpack.c.h.b16 %v608
        %v1117 = vunpack.c.l.b16 %v609
        %v1118 = vunpack.c.h.b16 %v609
        %v1119 = vunpack.c.l.b16 %v610
        %v1120 = vunpack.c.h.b16 %v610
        %v1121 = vunpack.c.l.b16 %v611
        %v1122 = vunpack.c.h.b16 %v611
        %v1123 = vunpack.c.l.b16 %v612
        %v1124 = vunpack.c.h.b16 %v612
        %v1125 = vunpack.c.l.b16 %v613
        %v1126 = vunpack.c.h.b16 %v613
        %v1127 = vunpack.c.l.b16 %v614
        %v1128 = vunpack.c.h.b16 %v614
        %v1129 = vunpack.c.l.b16 %v615
        %v1130 = vunpack.c.h.b16 %v615
        %v1131 = vunpack.c.l.b16 %v616
        %v1132 = vunpack.c.h.b16 %v616
        %v1133 = vunpack.c.l.b16 %v617
        %v1134 = vunpack.c.h.b16 %v617
        %v1135 = vunpack.c.l.b16 %v618
        %v1136 = vunpack.c.h.b16 %v618
        %v1137 = vunpack.c.l.b16 %v619
        %v1138 = vunpack.c.h.b16 %v619
        %v1139 = vunpack.c.l.b16 %v620
        %v1140 = vunpack.c.h.b16 %v620
        %v1141 = vunpack.c.l.b16 %v621
        %v1142 = vunpack.c.h.b16 %v621
        %v1143 = vunpack.c.l.b16 %v622
        %v1144 = vunpack.c.h.b16 %v622
        %v1145 = vunpack.c.l.b16 %v623
        %v1146 = vunpack.c.h.b16 %v623
        %v1147 = vunpack.c.l.b16 %v624
        %v1148 = vunpack.c.h.b16 %v624
        %v1149 = vunpack.c.l.b16 %v625
        %v1150 = vunpack.c.h.b16 %v625
        %v1151 = vunpack.c.l.b16 %v626
        %v1152 = vunpack.c.h.b16 %v626
        %v1153 = vunpack.c.l.b16 %v627
        %v1154 = vunpack.c.h.b16 %v627
        %v1155 = vunpack.c.l.b16 %v628
        %v1156 = vunpack.c.h.b16 %v628
        %v1157 = vunpack.c.l.b16 %v629
        %v1158 = vunpack.c.h.b16 %v629
        %v1159 = vunpack.c.l.b16 %v630
        %v1160 = vunpack.c.h.b16 %v630
        %v1161 = vunpack.c.l.b16 %v631
        %v1162 = vunpack.c.h.b16 %v631
        %v1163 = vunpack.c.l.b16 %v632
        %v1164 = vunpack.c.h.b16 %v632
        %v1165 = vunpack.c.l.b16 %v633
        %v1166 = vunpack.c.h.b16 %v633
        %v1167 = vunpack.c.l.b16 %v634
        %v1168 = vunpack.c.h.b16 %v634
        %v1169 = vunpack.c.l.b16 %v635
        %v1170 = vunpack.c.h.b16 %v635
        %v1171 = vunpack.c.l.b16 %v636
        %v1172 = vunpack.c.h.b16 %v636
        %v1173 = vunpack.c.l.b16 %v637
        %v1174 = vunpack.c.h.b16 %v637
        %v1175 = vunpack.c.l.b16 %v638
        %v1176 = vunpack.c.h.b16 %v638
        %v1177 = vunpack.c.l.b16 %v639
        %v1178 = vunpack.c.h.b16 %v639
        %v1179 = vunpack.c.l.b16 %v640
        %v1180 = vunpack.c.h.b16 %v640
        %v1181 = vunpack.c.l.b16 %v641
        %v1182 = vunpack.c.h.b16 %v641
        %v1183 = vunpack.c.l.b16 %v642
        %v1184 = vunpack.c.h.b16 %v642
        %v1185 = vunpack.c.l.b16 %v643
        %v1186 = vunpack.c.h.b16 %v643
        %v1187 = vunpack.c.l.b16 %v644
        %v1188 = vunpack.c.h.b16 %v644
        %v1189 = vunpack.c.l.b16 %v645
        %v1190 = vunpack.c.h.b16 %v645
        %v1191 = vunpack.c.l.b16 %v646
        %v1192 = vunpack.c.h.b16 %v646
        %v1193 = vunpack.c.l.b16 %v647
        %v1194 = vunpack.c.h.b16 %v647
        %v1195 = vunpack.c.l.b16 %v648
        %v1196 = vunpack.c.h.b16 %v648
        %v1197 = vunpack.c.l.b16 %v649
        %v1198 = vunpack.c.h.b16 %v649
        %v1199 = vunpack.c.l.b16 %v650
        %v1200 = vunpack.c.h.b16 %v650
        %v1201 = vunpack.c.l.b16 %v651
        %v1202 = vunpack.c.h.b16 %v651
        %v1203 = vunpack.c.l.b16 %v652
        %v1204 = vunpack.c.h.b16 %v652
        %v1205 = vunpack.c.l.b16 %v653
        %v1206 = vunpack.c.h.b16 %v653
        %v1207 = vunpack.c.l.b16 %v654
        %v1208 = vunpack.c.h.b16 %v654
        %v1209 = vunpack.c.l.b16 %v655
        %v1210 = vunpack.c.h.b16 %v655
        %v1211 = vunpack.c.l.b16 %v656
        %v1212 = vunpack.c.h.b16 %v656
        %v1213 = vunpack.c.l.b16 %v657
        %v1214 = vunpack.c.h.b16 %v657
        %v1215 = vunpack.c.l.b16 %v658
        %v1216 = vunpack.c.h.b16 %v658
        %v1217 = vunpack.c.l.b16 %v659
        %v1218 = vunpack.c.h.b16 %v659
        %v1219 = vunpack.c.l.b16 %v660
        %v1220 = vunpack.c.h.b16 %v660
        %v1221 = vunpack.c.l.b16 %v661
        %v1222 = vunpack.c.h.b16 %v661
        %v1223 = vunpack.c.l.b16 %v662
        %v1224 = vunpack.c.h.b16 %v662
        %v1225 = vunpack.c.l.b16 %v663
        %v1226 = vunpack.c.h.b16 %v663
        %v1227 = vunpack.c.l.b16 %v664
        %v1228 = vunpack.c.h.b16 %v664
        %v1229 = vunpack.c.l.b16 %v665
        %v1230 = vunpack.c.h.b16 %v665
        %v1231 = vunpack.c.l.b16 %v666
        %v1232 = vunpack.c.h.b16 %v666
        %v1233 = vunpack.c.l.b16 %v667
        %v1234 = vunpack.c.h.b16 %v667
        %v1235 = vunpack.c.l.b16 %v668
        %v1236 = vunpack.c.h.b16 %v668
        %v1237 = vunpack.c.l.b16 %v669
        %v1238 = vunpack.c.h.b16 %v669
        %v1239 = vunpack.c.l.b16 %v670
        %v1240 = vunpack.c.h.b16 %v670
        %v1241 = vunpack.c.l.b16 %v671
        %v1242 = vunpack.c.h.b16 %v671
        %v1243 = vunpack.c.l.b16 %v672
        %v1244 = vunpack.c.h.b16 %v672
        %v1245 = vunpack.c.l.b16 %v673
        %v1246 = vunpack.c.h.b16 %v673
        %v1247 = vunpack.c.l.b16 %v674
        %v1248 = vunpack.c.h.b16 %v674
        %v1249 = vunpack.c.l.b16 %v675
        %v1250 = vunpack.c.h.b16 %v675
        %v1251 = vunpack.c.l.b16 %v676
        %v1252 = vunpack.c.h.b16 %v676
        %v1253 = vunpack.c.l.b16 %v677
        %v1254 = vunpack.c.h.b16 %v677
        %v1255 = vunpack.c.l.b16 %v678
        %v1256 = vunpack.c.h.b16 %v678
        %v1257 = vunpack.c.l.b16 %v679
        %v1258 = vunpack.c.h.b16 %v679
        %v1259 = vunpack.c.l.b16 %v680
        %v1260 = vunpack.c.h.b16 %v680
        %v1261 = vunpack.c.l.b16 %v681
        %v1262 = vunpack.c.h.b16 %v681
        %v1263 = vunpack.c.l.b16 %v682
        %v1264 = vunpack.c.h.b16 %v682
        %v1265 = vunpack.c.l.b16 %v683
        %v1266 = vunpack.c.h.b16 %v683
        %v1267 = vunpack.c.l.b16 %v684
        %v1268 = vunpack.c.h.b16 %v684
        %v1269 = vunpack.c.l.b16 %v685
        %v1270 = vunpack.c.h.b16 %v685
        %v1271 = vunpack.c.l.b16 %v686
        %v1272 = vunpack.c.h.b16 %v686
        %v1273 = vunpack.c.l.b16 %v687
        %v1274 = vunpack.c.h.b16 %v687
        %v1275 = vunpack.c.l.b16 %v688
        %v1276 = vunpack.c.h.b16 %v688
        %v1277 = vunpack.c.l.b16 %v689
        %v1278 = vunpack.c.h.b16 %v689
        %v1279 = vunpack.c.l.b16 %v690
        %v1280 = vunpack.c.h.b16 %v690
        %v1281 = vunpack.c.l.b16 %v691
        %v1282 = vunpack.c.h.b16 %v691
        %v1283 = vunpack.c.l.b16 %v692
        %v1284 = vunpack.c.h.b16 %v692
        %v1285 = vunpack.c.l.b16 %v693
        %v1286 = vunpack.c.h.b16 %v693
        %v1287 = vunpack.c.l.b16 %v694
        %v1288 = vunpack.c.h.b16 %v694
        %v1289 = vunpack.c.l.b16 %v695
        %v1290 = vunpack.c.h.b16 %v695
        %v1291 = vunpack.c.l.b16 %v696
        %v1292 = vunpack.c.h.b16 %v696
        %v1293 = vunpack.c.l.b16 %v697
        %v1294 = vunpack.c.h.b16 %v697
        %v1295 = vunpack.c.l.b16 %v698
        %v1296 = vunpack.c.h.b16 %v698
        %v1297 = vunpack.c.l.b16 %v699
        %v1298 = vunpack.c.h.b16 %v699
        %v1299 = vunpack.c.l.b16 %v700
        %v1300 = vunpack.c.h.b16 %v700
        %v1301 = vunpack.c.l.b16 %v701
        %v1302 = vunpack.c.h.b16 %v701
        %v1303 = vunpack.c.l.b16 %v702
        %v1304 = vunpack.c.h.b16 %v702
        %v1305 = vunpack.c.l.b16 %v703
        %v1306 = vunpack.c.h.b16 %v703
        %v1307 = vunpack.c.l.b16 %v704
        %v1308 = vunpack.c.h.b16 %v704
        %v1309 = vunpack.c.l.b16 %v705
        %v1310 = vunpack.c.h.b16 %v705
        %v1311 = vunpack.c.l.b16 %v706
        %v1312 = vunpack.c.h.b16 %v706
        %v1313 = vunpack.c.l.b16 %v707
        %v1314 = vunpack.c.h.b16 %v707
        %v1315 = vunpack.c.l.b16 %v708
        %v1316 = vunpack.c.h.b16 %v708
        %v1317 = vunpack.c.l.b16 %v709
        %v1318 = vunpack.c.h.b16 %v709
        %v1319 = vunpack.c.l.b16 %v710
        %v1320 = vunpack.c.h.b16 %v710
        %v1321 = vunpack.c.l.b16 %v711
        %v1322 = vunpack.c.h.b16 %v711
        %v1323 = vunpack.c.l.b16 %v712
        %v1324 = vunpack.c.h.b16 %v712
        %v1325 = vunpack.c.l.b16 %v713
        %v1326 = vunpack.c.h.b16 %v713
        %v1327 = vunpack.c.l.b16 %v714
        %v1328 = vunpack.c.h.b16 %v714
        %v1329 = vunpack.c.l.b16 %v715
        %v1330 = vunpack.c.h.b16 %v715
        %v1331 = vunpack.c.l.b16 %v716
        %v1332 = vunpack.c.h.b16 %v716
        %v1333 = vunpack.c.l.b16 %v717
        %v1334 = vunpack.c.h.b16 %v717
        %v1335 = vunpack.c.l.b16 %v718
        %v1336 = vunpack.c.h.b16 %v718
        %v1337 = vunpack.c.l.b16 %v719
        %v1338 = vunpack.c.h.b16 %v719
        %v1339 = vunpack.c.l.b16 %v720
        %v1340 = vunpack.c.h.b16 %v720
        %v1341 = vunpack.c.l.b16 %v721
        %v1342 = vunpack.c.h.b16 %v721
        %v1343 = vunpack.c.l.b16 %v722
        %v1344 = vunpack.c.h.b16 %v722
        %v1345 = vunpack.c.l.b16 %v723
        %v1346 = vunpack.c.h.b16 %v723
        %v1347 = vunpack.c.l.b16 %v724
        %v1348 = vunpack.c.h.b16 %v724
        %v1349 = vunpack.c.l.b16 %v725
        %v1350 = vunpack.c.h.b16 %v725
        %v1351 = vunpack.c.l.b16 %v726
        %v1352 = vunpack.c.h.b16 %v726
        %v1353 = vunpack.c.l.b16 %v727
        %v1354 = vunpack.c.h.b16 %v727
        %v1355 = vunpack.c.l.b16 %v728
        %v1356 = vunpack.c.h.b16 %v728
        %v1357 = vunpack.c.l.b16 %v729
        %v1358 = vunpack.c.h.b16 %v729
        %v1359 = vunpack.c.l.b16 %v730
        %v1360 = vunpack.c.h.b16 %v730
        %v1361 = vunpack.c.l.b16 %v731
        %v1362 = vunpack.c.h.b16 %v731
        %v1363 = vunpack.c.l.b16 %v732
        %v1364 = vunpack.c.h.b16 %v732
        %v1365 = vunpack.c.l.b16 %v733
        %v1366 = vunpack.c.h.b16 %v733
        %v1367 = vunpack.c.l.b16 %v734
        %v1368 = vunpack.c.h.b16 %v734
        %v1369 = vunpack.c.l.b16 %v735
        %v1370 = vunpack.c.h.b16 %v735
        %v1371 = vunpack.c.l.b16 %v736
        %v1372 = vunpack.c.h.b16 %v736
        %v1373 = vunpack.c.l.b16 %v737
        %v1374 = vunpack.c.h.b16 %v737
        %v1375 = vunpack.c.l.b16 %v738
        %v1376 = vunpack.c.h.b16 %v738
        %v1377 = vunpack.c.l.b16 %v739
        %v1378 = vunpack.c.h.b16 %v739
        %v1379 = vunpack.c.l.b16 %v740
        %v1380 = vunpack.c.h.b16 %v740
        %v1381 = vunpack.c.l.b16 %v741
        %v1382 = vunpack.c.h.b16 %v741
        %v1383 = vunpack.c.l.b16 %v742
        %v1384 = vunpack.c.h.b16 %v742
        %v1385 = vunpack.c.l.b16 %v743
        %v1386 = vunpack.c.h.b16 %v743
        %v1387 = vunpack.c.l.b16 %v744
        %v1388 = vunpack.c.h.b16 %v744
        %v1389 = vunpack.c.l.b16 %v745
        %v1390 = vunpack.c.h.b16 %v745
        %v1391 = vunpack.c.l.b16 %v746
        %v1392 = vunpack.c.h.b16 %v746
        %v1393 = vunpack.c.l.b16 %v747
        %v1394 = vunpack.c.h.b16 %v747
        %v1395 = vunpack.c.l.b16 %v748
        %v1396 = vunpack.c.h.b16 %v748
        %v1397 = vunpack.c.l.b16 %v749
        %v1398 = vunpack.c.h.b16 %v749
        %v1399 = vunpack.c.l.b16 %v750
        %v1400 = vunpack.c.h.b16 %v750
        %v1401 = vunpack.c.l.b16 %v751
        %v1402 = vunpack.c.h.b16 %v751
        %v1403 = vunpack.c.l.b16 %v752
        %v1404 = vunpack.c.h.b16 %v752
        %v1405 = vunpack.c.l.b16 %v753
        %v1406 = vunpack.c.h.b16 %v753
        %v1407 = vunpack.c.l.b16 %v754
        %v1408 = vunpack.c.h.b16 %v754
        %v1409 = vunpack.c.l.b16 %v755
        %v1410 = vunpack.c.h.b16 %v755
        %v1411 = vunpack.c.l.b16 %v756
        %v1412 = vunpack.c.h.b16 %v756
        %v1413 = vunpack.c.l.b16 %v757
        %v1414 = vunpack.c.h.b16 %v757
        %v1415 = vunpack.c.l.b16 %v758
        %v1416 = vunpack.c.h.b16 %v758
        %v1417 = vunpack.c.l.b16 %v759
        %v1418 = vunpack.c.h.b16 %v759
        %v1419 = vunpack.c.l.b16 %v760
        %v1420 = vunpack.c.h.b16 %v760
        %v1421 = vunpack.c.l.b16 %v761
        %v1422 = vunpack.c.h.b16 %v761
        %v1423 = vunpack.c.l.b16 %v762
        %v1424 = vunpack.c.h.b16 %v762
        %v1425 = vunpack.c.l.b16 %v763
        %v1426 = vunpack.c.h.b16 %v763
        %v1427 = vunpack.c.l.b16 %v764
        %v1428 = vunpack.c.h.b16 %v764
        %v1429 = vunpack.c.l.b16 %v765
        %v1430 = vunpack.c.h.b16 %v765
        %v1431 = vunpack.c.l.b16 %v766
        %v1432 = vunpack.c.h.b16 %v766
        %v1433 = vunpack.c.l.b16 %v767
        %v1434 = vunpack.c.h.b16 %v767
        %v1435 = vunpack.c.l.b16 %v768
        %v1436 = vunpack.c.h.b16 %v768
        %v1437 = vunpack.c.l.b16 %v769
        %v1438 = vunpack.c.h.b16 %v769
        %v1439 = vunpack.c.l.b16 %v770
        %v1440 = vunpack.c.h.b16 %v770
        %v1441 = vunpack.c.l.b16 %v771
        %v1442 = vunpack.c.h.b16 %v771
        %v1443 = vunpack.c.l.b16 %v772
        %v1444 = vunpack.c.h.b16 %v772
        %v1445 = vunpack.c.l.b16 %v773
        %v1446 = vunpack.c.h.b16 %v773
        %v1447 = vunpack.c.l.b16 %v774
        %v1448 = vunpack.c.h.b16 %v774
        %v1449 = vunpack.c.l.b16 %v775
        %v1450 = vunpack.c.h.b16 %v775
        %v1451 = vunpack.c.l.b16 %v776
        %v1452 = vunpack.c.h.b16 %v776
        %v1453 = vunpack.c.l.b16 %v777
        %v1454 = vunpack.c.h.b16 %v777
        %v1455 = vunpack.c.l.b16 %v778
        %v1456 = vunpack.c.h.b16 %v778
        %v1457 = vunpack.c.l.b16 %v779
        %v1458 = vunpack.c.h.b16 %v779
        %v1459 = vunpack.c.l.b16 %v780
        %v1460 = vunpack.c.h.b16 %v780
        %v1461 = vunpack.c.l.b16 %v781
        %v1462 = vunpack.c.h.b16 %v781
        %v1463 = vunpack.c.l.b16 %v782
        %v1464 = vunpack.c.h.b16 %v782
        %v1465 = vunpack.c.l.b16 %v783
        %v1466 = vunpack.c.h.b16 %v783
        %v1467 = vunpack.c.l.b16 %v784
        %v1468 = vunpack.c.h.b16 %v784
        %v1469 = vunpack.c.l.b16 %v785
        %v1470 = vunpack.c.h.b16 %v785
        %v1471 = vunpack.c.l.b16 %v786
        %v1472 = vunpack.c.h.b16 %v786
        %v1473 = vunpack.c.l.b16 %v787
        %v1474 = vunpack.c.h.b16 %v787
        %v1475 = vunpack.c.l.b16 %v788
        %v1476 = vunpack.c.h.b16 %v788
        %v1477 = vunpack.c.l.b16 %v789
        %v1478 = vunpack.c.h.b16 %v789
        %v1479 = vunpack.c.l.b16 %v790
        %v1480 = vunpack.c.h.b16 %v790
        %v1481 = vunpack.c.l.b16 %v791
        %v1482 = vunpack.c.h.b16 %v791
        %v1483 = vunpack.c.l.b16 %v792
        %v1484 = vunpack.c.h.b16 %v792
        %v1485 = vunpack.c.l.b16 %v793
        %v1486 = vunpack.c.h.b16 %v793
        %v1487 = vunpack.c.l.b16 %v794
        %v1488 = vunpack.c.h.b16 %v794
        %v1489 = vunpack.c.l.b16 %v795
        %v1490 = vunpack.c.h.b16 %v795
        %v1491 = vunpack.c.l.b16 %v796
        %v1492 = vunpack.c.h.b16 %v796
        %v1493 = vunpack.c.l.b16 %v797
        %v1494 = vunpack.c.h.b16 %v797
        %v1495 = vunpack.c.l.b16 %v798
        %v1496 = vunpack.c.h.b16 %v798
        %v1497 = vunpack.c.l.b16 %v799
        %v1498 = vunpack.c.h.b16 %v799
        %v1499 = vunpack.c.l.b16 %v800
        %v1500 = vunpack.c.h.b16 %v800
        %v1501 = vunpack.c.l.b16 %v801
        %v1502 = vunpack.c.h.b16 %v801
        %v1503 = vunpack.c.l.b16 %v802
        %v1504 = vunpack.c.h.b16 %v802
        %v1505 = vunpack.c.l.b16 %v803
        %v1506 = vunpack.c.h.b16 %v803
        %v1507 = vunpack.c.l.b16 %v804
        %v1508 = vunpack.c.h.b16 %v804
        %v1509 = vunpack.c.l.b16 %v805
        %v1510 = vunpack.c.h.b16 %v805
        %v1511 = vunpack.c.l.b16 %v806
        %v1512 = vunpack.c.h.b16 %v806
        %v1513 = vunpack.c.l.b16 %v807
        %v1514 = vunpack.c.h.b16 %v807
        %v1515 = vunpack.c.l.b16 %v808
        %v1516 = vunpack.c.h.b16 %v808
        %v1517 = vunpack.c.l.b16 %v809
        %v1518 = vunpack.c.h.b16 %v809
        %v1519 = vunpack.c.l.b16 %v810
        %v1520 = vunpack.c.h.b16 %v810
        %v1521 = vunpack.c.l.b16 %v811
        %v1522 = vunpack.c.h.b16 %v811
        %v1523 = vunpack.c.l.b16 %v812
        %v1524 = vunpack.c.h.b16 %v812
        %v1525 = vunpack.c.l.b16 %v813
        %v1526 = vunpack.c.h.b16 %v813
        %v1527 = vunpack.c.l.b16 %v814
        %v1528 = vunpack.c.h.b16 %v814
        %v1529 = vunpack.c.l.b16 %v815
        %v1530 = vunpack.c.h.b16 %v815
        %v1531 = vunpack.c.l.b16 %v816
        %v1532 = vunpack.c.h.b16 %v816
        %v1533 = vunpack.c.l.b16 %v817
        %v1534 = vunpack.c.h.b16 %v817
        %v1535 = vunpack.c.l.b16 %v818
        %v1536 = vunpack.c.h.b16 %v818
        %v1537 = vunpack.c.l.b16 %v819
        %v1538 = vunpack.c.h.b16 %v819
        %v1539 = vunpack.c.l.b16 %v820
        %v1540 = vunpack.c.h.b16 %v820
        %v1541 = vunpack.c.l.b16 %v821
        %v1542 = vunpack.c.h.b16 %v821
        %v1543 = vunpack.c.l.b16 %v822
        %v1544 = vunpack.c.h.b16 %v822
        %v1545 = vunpack.c.l.b16 %v823
        %v1546 = vunpack.c.h.b16 %v823
        %v1547 = vunpack.c.l.b16 %v824
        %v1548 = vunpack.c.h.b16 %v824
        %v1549 = vunpack.c.l.b16 %v825
        %v1550 = vunpack.c.h.b16 %v825
        %v1551 = vunpack.c.l.b16 %v826
        %v1552 = vunpack.c.h.b16 %v826
        %v1553 = vunpack.c.l.b16 %v827
        %v1554 = vunpack.c.h.b16 %v827
        %v1555 = vunpack.c.l.b16 %v828
        %v1556 = vunpack.c.h.b16 %v828
        %v1557 = vunpack.c.l.b16 %v829
        %v1558 = vunpack.c.h.b16 %v829
        %v1559 = vunpack.c.l.b16 %v830
        %v1560 = vunpack.c.h.b16 %v830
        %v1561 = vpack.c.b16 %v1117, %v1113
        %v1562 = vpack.c.b16 %v1118, %v1114
        %v1563 = vpack.c.b16 %v1119, %v1115
        %v1564 = vpack.c.b16 %v1120, %v1116
        %v1565 = vpack.c.b16 %v1125, %v1121
        %v1566 = vpack.c.b16 %v1126, %v1122
        %v1567 = vpack.c.b16 %v1127, %v1123
        %v1568 = vpack.c.b16 %v1128, %v1124
        %v1569 = vpack.c.b16 %v1133, %v1129
        %v1570 = vpack.c.b16 %v1134, %v1130
        %v1571 = vpack.c.b16 %v1135, %v1131
        %v1572 = vpack.c.b16 %v1136, %v1132
        %v1573 = vpack.c.b16 %v1141, %v1137
        %v1574 = vpack.c.b16 %v1142, %v1138
        %v1575 = vpack.c.b16 %v1143, %v1139
        %v1576 = vpack.c.b16 %v1144, %v1140
        %v1577 = vpack.c.b16 %v1149, %v1145
        %v1578 = vpack.c.b16 %v1150, %v1146
        %v1579 = vpack.c.b16 %v1151, %v1147
        %v1580 = vpack.c.b16 %v1152, %v1148
        %v1581 = vpack.c.b16 %v1157, %v1153
        %v1582 = vpack.c.b16 %v1158, %v1154
        %v1583 = vpack.c.b16 %v1159, %v1155
        %v1584 = vpack.c.b16 %v1160, %v1156
        %v1585 = vpack.c.b16 %v1165, %v1161
        %v1586 = vpack.c.b16 %v1166, %v1162
        %v1587 = vpack.c.b16 %v1167, %v1163
        %v1588 = vpack.c.b16 %v1168, %v1164
        %v1589 = vpack.c.b16 %v1173, %v1169
        %v1590 = vpack.c.b16 %v1174, %v1170
        %v1591 = vpack.c.b16 %v1175, %v1171
        %v1592 = vpack.c.b16 %v1176, %v1172
        %v1593 = vpack.c.b16 %v1181, %v1177
        %v1594 = vpack.c.b16 %v1182, %v1178
        %v1595 = vpack.c.b16 %v1183, %v1179
        %v1596 = vpack.c.b16 %v1184, %v1180
        %v1597 = vpack.c.b16 %v1189, %v1185
        %v1598 = vpack.c.b16 %v1190, %v1186
        %v1599 = vpack.c.b16 %v1191, %v1187
        %v1600 = vpack.c.b16 %v1192, %v1188
        %v1601 = vpack.c.b16 %v1197, %v1193
        %v1602 = vpack.c.b16 %v1198, %v1194
        %v1603 = vpack.c.b16 %v1199, %v1195
        %v1604 = vpack.c.b16 %v1200, %v1196
        %v1605 = vpack.c.b16 %v1205, %v1201
        %v1606 = vpack.c.b16 %v1206, %v1202
        %v1607 = vpack.c.b16 %v1207, %v1203
        %v1608 = vpack.c.b16 %v1208, %v1204
        %v1609 = vpack.c.b16 %v1213, %v1209
        %v1610 = vpack.c.b16 %v1214, %v1210
        %v1611 = vpack.c.b16 %v1215, %v1211
        %v1612 = vpack.c.b16 %v1216, %v1212
        %v1613 = vpack.c.b16 %v1221, %v1217
        %v1614 = vpack.c.b16 %v1222, %v1218
        %v1615 = vpack.c.b16 %v1223, %v1219
        %v1616 = vpack.c.b16 %v1224, %v1220
        %v1617 = vpack.c.b16 %v1229, %v1225
        %v1618 = vpack.c.b16 %v1230, %v1226
        %v1619 = vpack.c.b16 %v1231, %v1227
        %v1620 = vpack.c.b16 %v1232, %v1228
        %v1621 = vpack.c.b16 %v1237, %v1233
        %v1622 = vpack.c.b16 %v1238, %v1234
        %v1623 = vpack.c.b16 %v1239, %v1235
        %v1624 = vpack.c.b16 %v1240, %v1236
        %v1625 = vpack.c.b16 %v1245, %v1241
        %v1626 = vpack.c.b16 %v1246, %v1242
        %v1627 = vpack.c.b16 %v1247, %v1243
        %v1628 = vpack.c.b16 %v1248, %v1244
        %v1629 = vpack.c.b16 %v1253, %v1249
        %v1630 = vpack.c.b16 %v1254, %v1250
        %v1631 = vpack.c.b16 %v1255, %v1251
        %v1632 = vpack.c.b16 %v1256, %v1252
        %v1633 = vpack.c.b16 %v1261, %v1257
        %v1634 = vpack.c.b16 %v1262, %v1258
        %v1635 = vpack.c.b16 %v1263, %v1259
        %v1636 = vpack.c.b16 %v1264, %v1260
        %v1637 = vpack.c.b16 %v1269, %v1265
        %v1638 = vpack.c.b16 %v1270, %v1266
        %v1639 = vpack.c.b16 %v1271, %v1267
        %v1640 = vpack.c.b16 %v1272, %v1268
        %v1641 = vpack.c.b16 %v1277, %v1273
        %v1642 = vpack.c.b16 %v1278, %v1274
        %v1643 = vpack.c.b16 %v1279, %v1275
        %v1644 = vpack.c.b16 %v1280, %v1276
        %v1645 = vpack.c.b16 %v1285, %v1281
        %v1646 = vpack.c.b16 %v1286, %v1282
        %v1647 = vpack.c.b16 %v1287, %v1283
        %v1648 = vpack.c.b16 %v1288, %v1284
        %v1649 = vpack.c.b16 %v1293, %v1289
        %v1650 = vpack.c.b16 %v1294, %v1290
        %v1651 = vpack.c.b16 %v1295, %v1291
        %v1652 = vpack.c.b16 %v1296, %v1292
        %v1653 = vpack.c.b16 %v1301, %v1297
        %v1654 = vpack.c.b16 %v1302, %v1298
        %v1655 = vpack.c.b16 %v1303, %v1299
        %v1656 = vpack.c.b16 %v1304, %v1300
        %v1657 = vpack.c.b16 %v1309, %v1305
        %v1658 = vpack.c.b16 %v1310, %v1306
        %v1659 = vpack.c.b16 %v1311, %v1307
        %v1660 = vpack.c.b16 %v1312, %v1308
        %v1661 = vpack.c.b16 %v1317, %v1313
        %v1662 = vpack.c.b16 %v1318, %v1314
        %v1663 = vpack.c.b16 %v1319, %v1315
        %v1664 = vpack.c.b16 %v1320, %v1316
        %v1665 = vpack.c.b16 %v1325, %v1321
        %v1666 = vpack.c.b16 %v1326, %v1322
        %v1667 = vpack.c.b16 %v1327, %v1323
        %v1668 = vpack.c.b16 %v1328, %v1324
        %v1669 = vpack.c.b16 %v1333, %v1329
        %v1670 = vpack.c.b16 %v1334, %v1330
        %v1671 = vpack.c.b16 %v1335, %v1331
        %v1672 = vpack.c.b16 %v1336, %v1332
        %v1673 = vpack.c.b16 %v1341, %v1337
        %v1674 = vpack.c.b16 %v1342, %v1338
        %v1675 = vpack.c.b16 %v1343, %v1339
        %v1676 = vpack.c.b16 %v1344, %v1340
        %v1677 = vpack.c.b16 %v1349, %v1345
        %v1678 = vpack.c.b16 %v1350, %v1346
        %v1679 = vpack.c.b16 %v1351, %v1347
        %v1680 = vpack.c.b16 %v1352, %v1348
        %v1681 = vpack.c.b16 %v1357, %v1353
        %v1682 = vpack.c.b16 %v1358, %v1354
        %v1683 = vpack.c.b16 %v1359, %v1355
        %v1684 = vpack.c.b16 %v1360, %v1356
        %v1685 = vpack.c.b16 %v1365, %v1361
        %v1686 = vpack.c.b16 %v1366, %v1362
        %v1687 = vpack.c.b16 %v1367, %v1363
        %v1688 = vpack.c.b16 %v1368, %v1364
        %v1689 = vpack.c.b16 %v1373, %v1369
        %v1690 = vpack.c.b16 %v1374, %v1370
        %v1691 = vpack.c.b16 %v1375, %v1371
        %v1692 = vpack.c.b16 %v1376, %v1372
        %v1693 = vpack.c.b16 %v1381, %v1377
        %v1694 = vpack.c.b16 %v1382, %v1378
        %v1695 = vpack.c.b16 %v1383, %v1379
        %v1696 = vpack.c.b16 %v1384, %v1380
        %v1697 = vpack.c.b16 %v1389, %v1385
        %v1698 = vpack.c.b16 %v1390, %v1386
        %v1699 = vpack.c.b16 %v1391, %v1387
        %v1700 = vpack.c.b16 %v1392, %v1388
        %v1701 = vpack.c.b16 %v1397, %v1393
        %v1702 = vpack.c.b16 %v1398, %v1394
        %v1703 = vpack.c.b16 %v1399, %v1395
        %v1704 = vpack.c.b16 %v1400, %v1396
        %v1705 = vpack.c.b16 %v1405, %v1401
        %v1706 = vpack.c.b16 %v1406, %v1402
        %v1707 = vpack.c.b16 %v1407, %v1403
        %v1708 = vpack.c.b16 %v1408, %v1404
        %v1709 = vpack.c.b16 %v1413, %v1409
        %v1710 = vpack.c.b16 %v1414, %v1410
        %v1711 = vpack.c.b16 %v1415, %v1411
        %v1712 = vpack.c.b16 %v1416, %v1412
        %v1713 = vpack.c.b16 %v1421, %v1417
        %v1714 = vpack.c.b16 %v1422, %v1418
        %v1715 = vpack.c.b16 %v1423, %v1419
        %v1716 = vpack.c.b16 %v1424, %v1420
        %v1717 = vpack.c.b16 %v1429, %v1425
        %v1718 = vpack.c.b16 %v1430, %v1426
        %v1719 = vpack.c.b16 %v1431, %v1427
        %v1720 = vpack.c.b16 %v1432, %v1428
        %v1721 = vpack.c.b16 %v1437, %v1433
        %v1722 = vpack.c.b16 %v1438, %v1434
        %v1723 = vpack.c.b16 %v1439, %v1435
        %v1724 = vpack.c.b16 %v1440, %v1436
        %v1725 = vpack.c.b16 %v1445, %v1441
        %v1726 = vpack.c.b16 %v1446, %v1442
        %v1727 = vpack.c.b16 %v1447, %v1443
        %v1728 = vpack.c.b16 %v1448, %v1444
        %v1729 = vpack.c.b16 %v1453, %v1449
        %v1730 = vpack.c.b16 %v1454, %v1450
        %v1731 = vpack.c.b16 %v1455, %v1451
        %v1732 = vpack.c.b16 %v1456, %v1452
        %v1733 = vpack.c.b16 %v1461, %v1457
        %v1734 = vpack.c.b16 %v1462, %v1458
        %v1735 = vpack.c.b16 %v1463, %v1459
        %v1736 = vpack.c.b16 %v1464, %v1460
        %v1737 = vpack.c.b16 %v1469, %v1465
        %v1738 = vpack.c.b16 %v1470, %v1466
        %v1739 = vpack.c.b16 %v1471, %v1467
        %v1740 = vpack.c.b16 %v1472, %v1468
        %v1741 = vpack.c.b16 %v1477, %v1473
        %v1742 = vpack.c.b16 %v1478, %v1474
        %v1743 = vpack.c.b16 %v1479, %v1475
        %v1744 = vpack.c.b16 %v1480, %v1476
        %v1745 = vpack.c.b16 %v1485, %v1481
        %v1746 = vpack.c.b16 %v1486, %v1482
        %v1747 = vpack.c.b16 %v1487, %v1483
        %v1748 = vpack.c.b16 %v1488, %v1484
        %v1749 = vpack.c.b16 %v1493, %v1489
        %v1750 = vpack.c.b16 %v1494, %v1490
        %v1751 = vpack.c.b16 %v1495, %v1491
        %v1752 = vpack.c.b16 %v1496, %v1492
        %v1753 = vpack.c.b16 %v1501, %v1497
        %v1754 = vpack.c.b16 %v1502, %v1498
        %v1755 = vpack.c.b16 %v1503, %v1499
        %v1756 = vpack.c.b16 %v1504, %v1500
        %v1757 = vpack.c.b16 %v1509, %v1505
        %v1758 = vpack.c.b16 %v1510, %v1506
        %v1759 = vpack.c.b16 %v1511, %v1507
        %v1760 = vpack.c.b16 %v1512, %v1508
        %v1761 = vpack.c.b16 %v1517, %v1513
        %v1762 = vpack.c.b16 %v1518, %v1514
        %v1763 = vpack.c.b16 %v1519, %v1515
        %v1764 = vpack.c.b16 %v1520, %v1516
        %v1765 = vpack.c.b16 %v1525, %v1521
        %v1766 = vpack.c.b16 %v1526, %v1522
        %v1767 = vpack.c.b16 %v1527, %v1523
        %v1768 = vpack.c.b16 %v1528, %v1524
        %v1769 = vpack.c.b16 %v1533, %v1529
        %v1770 = vpack.c.b16 %v1534, %v1530
        %v1771 = vpack.c.b16 %v1535, %v1531
        %v1772 = vpack.c.b16 %v1536, %v1532
        %v1773 = vpack.c.b16 %v1541, %v1537
        %v1774 = vpack.c.b16 %v1542, %v1538
        %v1775 = vpack.c.b16 %v1543, %v1539
        %v1776 = vpack.c.b16 %v1544, %v1540
        %v1777 = vpack.c.b16 %v1549, %v1545
        %v1778 = vpack.c.b16 %v1550, %v1546
        %v1779 = vpack.c.b16 %v1551, %v1547
        %v1780 = vpack.c.b16 %v1552, %v1548
        %v1781 = vpack.c.b16 %v1557, %v1553
        %v1782 = vpack.c.b16 %v1558, %v1554
        %v1783 = vpack.c.b16 %v1559, %v1555
        %v1784 = vpack.c.b16 %v1560, %v1556
        %2009 = vmatprep.subr.bf16.mxu0 %v1590
        %2010 = vmatpush1.bf16.msra.mxu0 %v1589
        %2011 = vmatprep.subr.bf16.mxu0 %v1586
        %2012 = vmatpush1.bf16.msra.mxu0 %v1585
        %2013 = vmatprep.subr.bf16.mxu0 %v1582
        %2014 = vmatpush1.bf16.msra.mxu0 %v1581
        %2015 = vmatprep.subr.bf16.mxu0 %v1578
        %2016 = vmatpush1.bf16.msra.mxu0 %v1577
        %2017 = vmatprep.subr.bf16.mxu0 %v1574
        %2018 = vmatpush1.bf16.msra.mxu0 %v1573
        %2019 = vmatprep.subr.bf16.mxu0 %v1570
        %2020 = vmatpush1.bf16.msra.mxu0 %v1569
        %2021 = vmatprep.subr.bf16.mxu0 %v1566
        %2022 = vmatpush1.bf16.msra.mxu0 %v1565
        %2023 = vmatprep.subr.bf16.mxu0 %v1562
        %2024 = vmatpush1.bf16.msra.mxu0 %v1561
        %2025 = vmatprep.subr.bf16.mxu0 %v1622
        %2026 = vmatpush2.bf16.msra.mxu0 %v1621
        %2027 = vmatprep.subr.bf16.mxu0 %v1618
        %2028 = vmatpush2.bf16.msra.mxu0 %v1617
        %2029 = vmatprep.subr.bf16.mxu0 %v1614
        %2030 = vmatpush2.bf16.msra.mxu0 %v1613
        %2031 = vmatprep.subr.bf16.mxu0 %v1610
        %2032 = vmatpush2.bf16.msra.mxu0 %v1609
        %2033 = vmatprep.subr.bf16.mxu0 %v1606
        %2034 = vmatpush2.bf16.msra.mxu0 %v1605
        %2035 = vmatprep.subr.bf16.mxu0 %v1602
        %2036 = vmatpush2.bf16.msra.mxu0 %v1601
        %2037 = vmatprep.subr.bf16.mxu0 %v1598
        %2038 = vmatpush2.bf16.msra.mxu0 %v1597
        %2039 = vmatprep.subr.bf16.mxu0 %v1594
        %2040 = vmatpush2.bf16.msra.mxu0 %v1593
        %2041 = vmatprep.mubr.bf16.mxu0 %v876
        %2042 = vmatmul.mubr.bf16.gmra.mxu0 %v875
        %v2043 = vpop.f32.mrf.mxu0
        %v2044 = vadd.f32 %v836, %v2043
        %v2045 = vpop.f32.mrf.mxu0
        %v2046 = vadd.f32 %v840, %v2045
        %v2047 = vpop.f32.mrf.mxu0
        %v2048 = vadd.f32 %v836, %v2047
        %v2049 = vpop.f32.mrf.mxu0
        %v2050 = vadd.f32 %v840, %v2049
        %2051 = vdwg.mxu0
        %2052 = vmatprep.subr.bf16.mxu0 %v1654
        %2053 = vmatpush1.bf16.msra.mxu0 %v1653
        %2054 = vmatprep.subr.bf16.mxu0 %v1650
        %2055 = vmatpush1.bf16.msra.mxu0 %v1649
        %2056 = vmatprep.subr.bf16.mxu0 %v1646
        %2057 = vmatpush1.bf16.msra.mxu0 %v1645
        %2058 = vmatprep.subr.bf16.mxu0 %v1642
        %2059 = vmatpush1.bf16.msra.mxu0 %v1641
        %2060 = vmatprep.subr.bf16.mxu0 %v1638
        %2061 = vmatpush1.bf16.msra.mxu0 %v1637
        %2062 = vmatprep.subr.bf16.mxu0 %v1634
        %2063 = vmatpush1.bf16.msra.mxu0 %v1633
        %2064 = vmatprep.subr.bf16.mxu0 %v1630
        %2065 = vmatpush1.bf16.msra.mxu0 %v1629
        %2066 = vmatprep.subr.bf16.mxu0 %v1626
        %2067 = vmatpush1.bf16.msra.mxu0 %v1625
        %2068 = vmatprep.subr.bf16.mxu0 %v1686
        %2069 = vmatpush2.bf16.msra.mxu0 %v1685
        %2070 = vmatprep.subr.bf16.mxu0 %v1682
        %2071 = vmatpush2.bf16.msra.mxu0 %v1681
        %2072 = vmatprep.subr.bf16.mxu0 %v1678
        %2073 = vmatpush2.bf16.msra.mxu0 %v1677
        %2074 = vmatprep.subr.bf16.mxu0 %v1674
        %2075 = vmatpush2.bf16.msra.mxu0 %v1673
        %2076 = vmatprep.subr.bf16.mxu0 %v1670
        %2077 = vmatpush2.bf16.msra.mxu0 %v1669
        %2078 = vmatprep.subr.bf16.mxu0 %v1666
        %2079 = vmatpush2.bf16.msra.mxu0 %v1665
        %2080 = vmatprep.subr.bf16.mxu0 %v1662
        %2081 = vmatpush2.bf16.msra.mxu0 %v1661
        %2082 = vmatprep.subr.bf16.mxu0 %v1658
        %2083 = vmatpush2.bf16.msra.mxu0 %v1657
        %2084 = vmatprep.mubr.bf16.mxu0 %v878
        %2085 = vmatmul.mubr.bf16.gmra.mxu0 %v877
        %v2086 = vpop.f32.mrf.mxu0
        %v2087 = vadd.f32 %v2044, %v2086
        %v2088 = vpop.f32.mrf.mxu0
        %v2089 = vadd.f32 %v2046, %v2088
        %v2090 = vpop.f32.mrf.mxu0
        %v2091 = vadd.f32 %v2048, %v2090
        %v2092 = vpop.f32.mrf.mxu0
        %v2093 = vadd.f32 %v2050, %v2092
        %2094 = vdwg.mxu0
        %2095 = vmatprep.subr.bf16.mxu0 %v1718
        %2096 = vmatpush1.bf16.msra.mxu0 %v1717
        %2097 = vmatprep.subr.bf16.mxu0 %v1714
        %2098 = vmatpush1.bf16.msra.mxu0 %v1713
        %2099 = vmatprep.subr.bf16.mxu0 %v1710
        %2100 = vmatpush1.bf16.msra.mxu0 %v1709
        %2101 = vmatprep.subr.bf16.mxu0 %v1706
        %2102 = vmatpush1.bf16.msra.mxu0 %v1705
        %2103 = vmatprep.subr.bf16.mxu0 %v1702
        %2104 = vmatpush1.bf16.msra.mxu0 %v1701
        %2105 = vmatprep.subr.bf16.mxu0 %v1698
        %2106 = vmatpush1.bf16.msra.mxu0 %v1697
        %2107 = vmatprep.subr.bf16.mxu0 %v1694
        %2108 = vmatpush1.bf16.msra.mxu0 %v1693
        %2109 = vmatprep.subr.bf16.mxu0 %v1690
        %2110 = vmatpush1.bf16.msra.mxu0 %v1689
        %2111 = vmatprep.subr.bf16.mxu0 %v1750
        %2112 = vmatpush2.bf16.msra.mxu0 %v1749
        %2113 = vmatprep.subr.bf16.mxu0 %v1746
        %2114 = vmatpush2.bf16.msra.mxu0 %v1745
        %2115 = vmatprep.subr.bf16.mxu0 %v1742
        %2116 = vmatpush2.bf16.msra.mxu0 %v1741
        %2117 = vmatprep.subr.bf16.mxu0 %v1738
        %2118 = vmatpush2.bf16.msra.mxu0 %v1737
        %2119 = vmatprep.subr.bf16.mxu0 %v1734
        %2120 = vmatpush2.bf16.msra.mxu0 %v1733
        %2121 = vmatprep.subr.bf16.mxu0 %v1730
        %2122 = vmatpush2.bf16.msra.mxu0 %v1729
        %2123 = vmatprep.subr.bf16.mxu0 %v1726
        %2124 = vmatpush2.bf16.msra.mxu0 %v1725
        %2125 = vmatprep.subr.bf16.mxu0 %v1722
        %2126 = vmatpush2.bf16.msra.mxu0 %v1721
        %2127 = vmatprep.mubr.bf16.mxu0 %v880
        %2128 = vmatmul.mubr.bf16.gmra.mxu0 %v879
        %v2129 = vpop.f32.mrf.mxu0
        %v2130 = vadd.f32 %v2087, %v2129
        %v2131 = vpop.f32.mrf.mxu0
        %v2132 = vadd.f32 %v2089, %v2131
        %v2133 = vpop.f32.mrf.mxu0
        %v2134 = vadd.f32 %v2091, %v2133
        %v2135 = vpop.f32.mrf.mxu0
        %v2136 = vadd.f32 %v2093, %v2135
        %2137 = vdwg.mxu0
        %2138 = vmatprep.subr.bf16.mxu0 %v1782
        %2139 = vmatpush1.bf16.msra.mxu0 %v1781
        %2140 = vmatprep.subr.bf16.mxu0 %v1778
        %2141 = vmatpush1.bf16.msra.mxu0 %v1777
        %2142 = vmatprep.subr.bf16.mxu0 %v1774
        %2143 = vmatpush1.bf16.msra.mxu0 %v1773
        %2144 = vmatprep.subr.bf16.mxu0 %v1770
        %2145 = vmatpush1.bf16.msra.mxu0 %v1769
        %2146 = vmatprep.subr.bf16.mxu0 %v1766
        %2147 = vmatpush1.bf16.msra.mxu0 %v1765
        %2148 = vmatprep.subr.bf16.mxu0 %v1762
        %2149 = vmatpush1.bf16.msra.mxu0 %v1761
        %2150 = vmatprep.subr.bf16.mxu0 %v1758
        %2151 = vmatpush1.bf16.msra.mxu0 %v1757
        %2152 = vmatprep.subr.bf16.mxu0 %v1754
        %2153 = vmatpush1.bf16.msra.mxu0 %v1753
        %2154 = vmatprep.subr.bf16.mxu0 0
        %2155 = vmatpush2.bf16.msra.mxu0 0
        %2156 = vmatprep.subr.bf16.mxu0 0
        %2157 = vmatpush2.bf16.msra.mxu0 0
        %2158 = vmatprep.subr.bf16.mxu0 0
        %2159 = vmatpush2.bf16.msra.mxu0 0
        %2160 = vmatprep.subr.bf16.mxu0 0
        %2161 = vmatpush2.bf16.msra.mxu0 0
        %2162 = vmatprep.subr.bf16.mxu0 0
        %2163 = vmatpush2.bf16.msra.mxu0 0
        %2164 = vmatprep.subr.bf16.mxu0 0
        %2165 = vmatpush2.bf16.msra.mxu0 0
        %2166 = vmatprep.subr.bf16.mxu0 0
        %2167 = vmatpush2.bf16.msra.mxu0 0
        %2168 = vmatprep.subr.bf16.mxu0 0
        %2169 = vmatpush2.bf16.msra.mxu0 0
        %2170 = vmatprep.mubr.bf16.mxu0 0
        %2171 = vmatmul.mubr.bf16.gmra.mxu0 %v881
        %v2172 = vpop.f32.mrf.mxu0
        %v2173 = vadd.f32 %v2130, %v2172
        %v2174 = vpop.f32.mrf.mxu0
        %v2175 = vadd.f32 %v2132, %v2174
        %v2176 = vpop.f32.mrf.mxu0
        %v2177 = vadd.f32 %v2134, %v2176
        %v2178 = vpop.f32.mrf.mxu0
        %v2179 = vadd.f32 %v2136, %v2178
        %2180 = vdwg.mxu0
        %2181 = vmatprep.subr.bf16.mxu0 %v1592
        %2182 = vmatpush1.bf16.msra.mxu0 %v1591
        %2183 = vmatprep.subr.bf16.mxu0 %v1588
        %2184 = vmatpush1.bf16.msra.mxu0 %v1587
        %2185 = vmatprep.subr.bf16.mxu0 %v1584
        %2186 = vmatpush1.bf16.msra.mxu0 %v1583
        %2187 = vmatprep.subr.bf16.mxu0 %v1580
        %2188 = vmatpush1.bf16.msra.mxu0 %v1579
        %2189 = vmatprep.subr.bf16.mxu0 %v1576
        %2190 = vmatpush1.bf16.msra.mxu0 %v1575
        %2191 = vmatprep.subr.bf16.mxu0 %v1572
        %2192 = vmatpush1.bf16.msra.mxu0 %v1571
        %2193 = vmatprep.subr.bf16.mxu0 %v1568
        %2194 = vmatpush1.bf16.msra.mxu0 %v1567
        %2195 = vmatprep.subr.bf16.mxu0 %v1564
        %2196 = vmatpush1.bf16.msra.mxu0 %v1563
        %2197 = vmatprep.subr.bf16.mxu0 %v1624
        %2198 = vmatpush2.bf16.msra.mxu0 %v1623
        %2199 = vmatprep.subr.bf16.mxu0 %v1620
        %2200 = vmatpush2.bf16.msra.mxu0 %v1619
        %2201 = vmatprep.subr.bf16.mxu0 %v1616
        %2202 = vmatpush2.bf16.msra.mxu0 %v1615
        %2203 = vmatprep.subr.bf16.mxu0 %v1612
        %2204 = vmatpush2.bf16.msra.mxu0 %v1611
        %2205 = vmatprep.subr.bf16.mxu0 %v1608
        %2206 = vmatpush2.bf16.msra.mxu0 %v1607
        %2207 = vmatprep.subr.bf16.mxu0 %v1604
        %2208 = vmatpush2.bf16.msra.mxu0 %v1603
        %2209 = vmatprep.subr.bf16.mxu0 %v1600
        %2210 = vmatpush2.bf16.msra.mxu0 %v1599
        %2211 = vmatprep.subr.bf16.mxu0 %v1596
        %2212 = vmatpush2.bf16.msra.mxu0 %v1595
        %2213 = vmatprep.mubr.bf16.mxu0 %v876
        %2214 = vmatmul.mubr.bf16.gmra.mxu0 %v875
        %v2215 = vpop.f32.mrf.mxu0
        %v2216 = vadd.f32 %v844, %v2215
        %v2217 = vpop.f32.mrf.mxu0
        %v2218 = vadd.f32 %v848, %v2217
        %v2219 = vpop.f32.mrf.mxu0
        %v2220 = vadd.f32 %v844, %v2219
        %v2221 = vpop.f32.mrf.mxu0
        %v2222 = vadd.f32 %v848, %v2221
        %2223 = vdwg.mxu0
        %2224 = vmatprep.subr.bf16.mxu0 %v1656
        %2225 = vmatpush1.bf16.msra.mxu0 %v1655
        %2226 = vmatprep.subr.bf16.mxu0 %v1652
        %2227 = vmatpush1.bf16.msra.mxu0 %v1651
        %2228 = vmatprep.subr.bf16.mxu0 %v1648
        %2229 = vmatpush1.bf16.msra.mxu0 %v1647
        %2230 = vmatprep.subr.bf16.mxu0 %v1644
        %2231 = vmatpush1.bf16.msra.mxu0 %v1643
        %2232 = vmatprep.subr.bf16.mxu0 %v1640
        %2233 = vmatpush1.bf16.msra.mxu0 %v1639
        %2234 = vmatprep.subr.bf16.mxu0 %v1636
        %2235 = vmatpush1.bf16.msra.mxu0 %v1635
        %2236 = vmatprep.subr.bf16.mxu0 %v1632
        %2237 = vmatpush1.bf16.msra.mxu0 %v1631
        %2238 = vmatprep.subr.bf16.mxu0 %v1628
        %2239 = vmatpush1.bf16.msra.mxu0 %v1627
        %2240 = vmatprep.subr.bf16.mxu0 %v1688
        %2241 = vmatpush2.bf16.msra.mxu0 %v1687
        %2242 = vmatprep.subr.bf16.mxu0 %v1684
        %2243 = vmatpush2.bf16.msra.mxu0 %v1683
        %2244 = vmatprep.subr.bf16.mxu0 %v1680
        %2245 = vmatpush2.bf16.msra.mxu0 %v1679
        %2246 = vmatprep.subr.bf16.mxu0 %v1676
        %2247 = vmatpush2.bf16.msra.mxu0 %v1675
        %2248 = vmatprep.subr.bf16.mxu0 %v1672
        %2249 = vmatpush2.bf16.msra.mxu0 %v1671
        %2250 = vmatprep.subr.bf16.mxu0 %v1668
        %2251 = vmatpush2.bf16.msra.mxu0 %v1667
        %2252 = vmatprep.subr.bf16.mxu0 %v1664
        %2253 = vmatpush2.bf16.msra.mxu0 %v1663
        %2254 = vmatprep.subr.bf16.mxu0 %v1660
        %2255 = vmatpush2.bf16.msra.mxu0 %v1659
        %2256 = vmatprep.mubr.bf16.mxu0 %v878
        %2257 = vmatmul.mubr.bf16.gmra.mxu0 %v877
        %v2258 = vpop.f32.mrf.mxu0
        %v2259 = vadd.f32 %v2216, %v2258
        %v2260 = vpop.f32.mrf.mxu0
        %v2261 = vadd.f32 %v2218, %v2260
        %v2262 = vpop.f32.mrf.mxu0
        %v2263 = vadd.f32 %v2220, %v2262
        %v2264 = vpop.f32.mrf.mxu0
        %v2265 = vadd.f32 %v2222, %v2264
        %2266 = vdwg.mxu0
        %2267 = vmatprep.subr.bf16.mxu0 %v1720
        %2268 = vmatpush1.bf16.msra.mxu0 %v1719
        %2269 = vmatprep.subr.bf16.mxu0 %v1716
        %2270 = vmatpush1.bf16.msra.mxu0 %v1715
        %2271 = vmatprep.subr.bf16.mxu0 %v1712
        %2272 = vmatpush1.bf16.msra.mxu0 %v1711
        %2273 = vmatprep.subr.bf16.mxu0 %v1708
        %2274 = vmatpush1.bf16.msra.mxu0 %v1707
        %2275 = vmatprep.subr.bf16.mxu0 %v1704
        %2276 = vmatpush1.bf16.msra.mxu0 %v1703
        %2277 = vmatprep.subr.bf16.mxu0 %v1700
        %2278 = vmatpush1.bf16.msra.mxu0 %v1699
        %2279 = vmatprep.subr.bf16.mxu0 %v1696
        %2280 = vmatpush1.bf16.msra.mxu0 %v1695
        %2281 = vmatprep.subr.bf16.mxu0 %v1692
        %2282 = vmatpush1.bf16.msra.mxu0 %v1691
        %2283 = vmatprep.subr.bf16.mxu0 %v1752
        %2284 = vmatpush2.bf16.msra.mxu0 %v1751
        %2285 = vmatprep.subr.bf16.mxu0 %v1748
        %2286 = vmatpush2.bf16.msra.mxu0 %v1747
        %2287 = vmatprep.subr.bf16.mxu0 %v1744
        %2288 = vmatpush2.bf16.msra.mxu0 %v1743
        %2289 = vmatprep.subr.bf16.mxu0 %v1740
        %2290 = vmatpush2.bf16.msra.mxu0 %v1739
        %2291 = vmatprep.subr.bf16.mxu0 %v1736
        %2292 = vmatpush2.bf16.msra.mxu0 %v1735
        %2293 = vmatprep.subr.bf16.mxu0 %v1732
        %2294 = vmatpush2.bf16.msra.mxu0 %v1731
        %2295 = vmatprep.subr.bf16.mxu0 %v1728
        %2296 = vmatpush2.bf16.msra.mxu0 %v1727
        %2297 = vmatprep.subr.bf16.mxu0 %v1724
        %2298 = vmatpush2.bf16.msra.mxu0 %v1723
        %2299 = vmatprep.mubr.bf16.mxu0 %v880
        %2300 = vmatmul.mubr.bf16.gmra.mxu0 %v879
        %v2301 = vpop.f32.mrf.mxu0
        %v2302 = vadd.f32 %v2259, %v2301
        %v2303 = vpop.f32.mrf.mxu0
        %v2304 = vadd.f32 %v2261, %v2303
        %v2305 = vpop.f32.mrf.mxu0
        %v2306 = vadd.f32 %v2263, %v2305
        %v2307 = vpop.f32.mrf.mxu0
        %v2308 = vadd.f32 %v2265, %v2307
        %2309 = vdwg.mxu0
        %2310 = vmatprep.subr.bf16.mxu0 %v1784
        %2311 = vmatpush1.bf16.msra.mxu0 %v1783
        %2312 = vmatprep.subr.bf16.mxu0 %v1780
        %2313 = vmatpush1.bf16.msra.mxu0 %v1779
        %2314 = vmatprep.subr.bf16.mxu0 %v1776
        %2315 = vmatpush1.bf16.msra.mxu0 %v1775
        %2316 = vmatprep.subr.bf16.mxu0 %v1772
        %2317 = vmatpush1.bf16.msra.mxu0 %v1771
        %2318 = vmatprep.subr.bf16.mxu0 %v1768
        %2319 = vmatpush1.bf16.msra.mxu0 %v1767
        %2320 = vmatprep.subr.bf16.mxu0 %v1764
        %2321 = vmatpush1.bf16.msra.mxu0 %v1763
        %2322 = vmatprep.subr.bf16.mxu0 %v1760
        %2323 = vmatpush1.bf16.msra.mxu0 %v1759
        %2324 = vmatprep.subr.bf16.mxu0 %v1756
        %2325 = vmatpush1.bf16.msra.mxu0 %v1755
        %2326 = vmatprep.subr.bf16.mxu0 0
        %2327 = vmatpush2.bf16.msra.mxu0 0
        %2328 = vmatprep.subr.bf16.mxu0 0
        %2329 = vmatpush2.bf16.msra.mxu0 0
        %2330 = vmatprep.subr.bf16.mxu0 0
        %2331 = vmatpush2.bf16.msra.mxu0 0
        %2332 = vmatprep.subr.bf16.mxu0 0
        %2333 = vmatpush2.bf16.msra.mxu0 0
        %2334 = vmatprep.subr.bf16.mxu0 0
        %2335 = vmatpush2.bf16.msra.mxu0 0
        %2336 = vmatprep.subr.bf16.mxu0 0
        %2337 = vmatpush2.bf16.msra.mxu0 0
        %2338 = vmatprep.subr.bf16.mxu0 0
        %2339 = vmatpush2.bf16.msra.mxu0 0
        %2340 = vmatprep.subr.bf16.mxu0 0
        %2341 = vmatpush2.bf16.msra.mxu0 0
        %2342 = vmatprep.mubr.bf16.mxu0 0
        %2343 = vmatmul.mubr.bf16.gmra.mxu0 %v881
        %v2344 = vpop.f32.mrf.mxu0
        %v2345 = vadd.f32 %v2302, %v2344
        %v2346 = vpop.f32.mrf.mxu0
        %v2347 = vadd.f32 %v2304, %v2346
        %v2348 = vpop.f32.mrf.mxu0
        %v2349 = vadd.f32 %v2306, %v2348
        %v2350 = vpop.f32.mrf.mxu0
        %v2351 = vadd.f32 %v2308, %v2350
        %2352 = vdwg.mxu0
        %v2353 = vpack.c.bf16 %v2177, %v2173
        %v2354 = vpack.c.bf16 %v2179, %v2175
        %v2355 = vpack.c.bf16 %v2349, %v2345
        %v2356 = vpack.c.bf16 %v2351, %v2347
        %v2357 = vmax.bf16 %v2353, 0
        %v2358 = vmax.bf16 %v2354, 0
        %v2359 = vmax.bf16 %v2355, 0
        %v2360 = vmax.bf16 %v2356, 0
        %v2361 = vld [vmem:[#allocation4] sm:$0xff]
        %v2362 = vld [vmem:[#allocation4 + $0x8] sm:$0xff]
        %v2363 = vld [vmem:[#allocation4 + $0x10] sm:$0xff]
        %v2364 = vld [vmem:[#allocation4 + $0x18] sm:$0xff]
        %v2365 = vld [vmem:[#allocation4 + $0x20] sm:$0xff]
        %v2366 = vld [vmem:[#allocation4 + $0x28] sm:$0xff]
        %v2367 = vld [vmem:[#allocation4 + $0x30] sm:$0xff]
        %v2368 = vld [vmem:[#allocation4 + $0x38] sm:$0xff]
        %v2369 = vld [vmem:[#allocation4 + $0x40] sm:$0xff]
        %v2370 = vld [vmem:[#allocation4 + $0x48] sm:$0xff]
        %v2371 = vld [vmem:[#allocation4 + $0x50] sm:$0xff]
        %v2372 = vld [vmem:[#allocation4 + $0x58] sm:$0xff]
        %v2373 = vld [vmem:[#allocation4 + $0x60] sm:$0xff]
        %v2374 = vld [vmem:[#allocation4 + $0x68] sm:$0xff]
        %v2375 = vld [vmem:[#allocation4 + $0x70] sm:$0xff]
        %v2376 = vld [vmem:[#allocation4 + $0x78] sm:$0xff]
        %v2377 = vld [vmem:[#allocation4 + $0x80] sm:$0xff]
        %v2378 = vld [vmem:[#allocation4 + $0x88] sm:$0xff]
        %v2379 = vld [vmem:[#allocation4 + $0x90] sm:$0xff]
        %v2380 = vld [vmem:[#allocation4 + $0x98] sm:$0xff]
        %v2381 = vld [vmem:[#allocation4 + $0xa0] sm:$0xff]
        %v2382 = vld [vmem:[#allocation4 + $0xa8] sm:$0xff]
        %v2383 = vld [vmem:[#allocation4 + $0xb0] sm:$0xff]
        %v2384 = vld [vmem:[#allocation4 + $0xb8] sm:$0xff]
        %v2385 = vld [vmem:[#allocation4 + $0xc0] sm:$0xff]
        %v2386 = vld [vmem:[#allocation4 + $0xc8] sm:$0xff]
        %v2387 = vld [vmem:[#allocation4 + $0xd0] sm:$0xff]
        %v2388 = vld [vmem:[#allocation4 + $0xd8] sm:$0xff]
        %v2389 = vld [vmem:[#allocation4 + $0xe0] sm:$0xff]
        %v2390 = vld [vmem:[#allocation4 + $0xe8] sm:$0xff]
        %v2391 = vld [vmem:[#allocation4 + $0xf0] sm:$0xff]
        %v2392 = vld [vmem:[#allocation4 + $0xf8] sm:$0xff]
        %v2393 = vld [vmem:[#allocation4 + $0x100] sm:$0xff]
        %v2394 = vld [vmem:[#allocation4 + $0x108] sm:$0xff]
        %v2395 = vld [vmem:[#allocation4 + $0x110] sm:$0xff]
        %v2396 = vld [vmem:[#allocation4 + $0x118] sm:$0xff]
        %v2397 = vld [vmem:[#allocation4 + $0x120] sm:$0xff]
        %v2398 = vld [vmem:[#allocation4 + $0x128] sm:$0xff]
        %v2399 = vld [vmem:[#allocation4 + $0x130] sm:$0xff]
        %v2400 = vld [vmem:[#allocation4 + $0x138] sm:$0xff]
        %v2401 = vld [vmem:[#allocation4 + $0x140] sm:$0xff]
        %v2402 = vld [vmem:[#allocation4 + $0x148] sm:$0xff]
        %v2403 = vld [vmem:[#allocation4 + $0x150] sm:$0xff]
        %v2404 = vld [vmem:[#allocation4 + $0x158] sm:$0xff]
        %v2405 = vld [vmem:[#allocation4 + $0x160] sm:$0xff]
        %v2406 = vld [vmem:[#allocation4 + $0x168] sm:$0xff]
        %v2407 = vld [vmem:[#allocation4 + $0x170] sm:$0xff]
        %v2408 = vld [vmem:[#allocation4 + $0x178] sm:$0xff]
        %v2409 = vld [vmem:[#allocation4 + $0x180] sm:$0xff]
        %v2410 = vld [vmem:[#allocation4 + $0x188] sm:$0xff]
        %v2411 = vld [vmem:[#allocation4 + $0x190] sm:$0xff]
        %v2412 = vld [vmem:[#allocation4 + $0x198] sm:$0xff]
        %v2413 = vld [vmem:[#allocation4 + $0x1a0] sm:$0xff]
        %v2414 = vld [vmem:[#allocation4 + $0x1a8] sm:$0xff]
        %v2415 = vld [vmem:[#allocation4 + $0x1b0] sm:$0xff]
        %v2416 = vld [vmem:[#allocation4 + $0x1b8] sm:$0xff]
        %v2417 = vld [vmem:[#allocation4 + $0x1c0] sm:$0xff]
        %v2418 = vld [vmem:[#allocation4 + $0x1c8] sm:$0xff]
        %v2419 = vld [vmem:[#allocation4 + $0x1d0] sm:$0xff]
        %v2420 = vld [vmem:[#allocation4 + $0x1d8] sm:$0xff]
        %v2421 = vld [vmem:[#allocation4 + $0x1e0] sm:$0xff]
        %v2422 = vld [vmem:[#allocation4 + $0x1e8] sm:$0xff]
        %v2423 = vld [vmem:[#allocation4 + $0x1f0] sm:$0xff]
        %v2424 = vld [vmem:[#allocation4 + $0x1f8] sm:$0xff]
        %v2425 = vld [vmem:[%s5] sm:$0x3]
        %v2427 = vlaneseq
        %v2428 = vshrl.u32 %v2427, 7
        %v2429 = vsub.s32 0, %v2428
        %v2430 = vrot.slane %v2425, %v2429
        %v2431 = vlaneseq
        %v2432 = vshrl.u32 %v2431, 7
        %v2433 = vsub.s32 1, %v2432
        %v2434 = vrot.slane %v2425, %v2433
        %v2501 = vunpack.c.l.b16 %v2361
        %v2502 = vunpack.c.h.b16 %v2361
        %v2503 = vunpack.c.l.b16 %v2362
        %v2504 = vunpack.c.h.b16 %v2362
        %v2505 = vunpack.c.l.b16 %v2363
        %v2506 = vunpack.c.h.b16 %v2363
        %v2507 = vunpack.c.l.b16 %v2364
        %v2508 = vunpack.c.h.b16 %v2364
        %v2509 = vunpack.c.l.b16 %v2365
        %v2510 = vunpack.c.h.b16 %v2365
        %v2511 = vunpack.c.l.b16 %v2366
        %v2512 = vunpack.c.h.b16 %v2366
        %v2513 = vunpack.c.l.b16 %v2367
        %v2514 = vunpack.c.h.b16 %v2367
        %v2515 = vunpack.c.l.b16 %v2368
        %v2516 = vunpack.c.h.b16 %v2368
        %v2517 = vunpack.c.l.b16 %v2369
        %v2518 = vunpack.c.h.b16 %v2369
        %v2519 = vunpack.c.l.b16 %v2370
        %v2520 = vunpack.c.h.b16 %v2370
        %v2521 = vunpack.c.l.b16 %v2371
        %v2522 = vunpack.c.h.b16 %v2371
        %v2523 = vunpack.c.l.b16 %v2372
        %v2524 = vunpack.c.h.b16 %v2372
        %v2525 = vunpack.c.l.b16 %v2373
        %v2526 = vunpack.c.h.b16 %v2373
        %v2527 = vunpack.c.l.b16 %v2374
        %v2528 = vunpack.c.h.b16 %v2374
        %v2529 = vunpack.c.l.b16 %v2375
        %v2530 = vunpack.c.h.b16 %v2375
        %v2531 = vunpack.c.l.b16 %v2376
        %v2532 = vunpack.c.h.b16 %v2376
        %v2533 = vunpack.c.l.b16 %v2377
        %v2534 = vunpack.c.h.b16 %v2377
        %v2535 = vunpack.c.l.b16 %v2378
        %v2536 = vunpack.c.h.b16 %v2378
        %v2537 = vunpack.c.l.b16 %v2379
        %v2538 = vunpack.c.h.b16 %v2379
        %v2539 = vunpack.c.l.b16 %v2380
        %v2540 = vunpack.c.h.b16 %v2380
        %v2541 = vunpack.c.l.b16 %v2381
        %v2542 = vunpack.c.h.b16 %v2381
        %v2543 = vunpack.c.l.b16 %v2382
        %v2544 = vunpack.c.h.b16 %v2382
        %v2545 = vunpack.c.l.b16 %v2383
        %v2546 = vunpack.c.h.b16 %v2383
        %v2547 = vunpack.c.l.b16 %v2384
        %v2548 = vunpack.c.h.b16 %v2384
        %v2549 = vunpack.c.l.b16 %v2385
        %v2550 = vunpack.c.h.b16 %v2385
        %v2551 = vunpack.c.l.b16 %v2386
        %v2552 = vunpack.c.h.b16 %v2386
        %v2553 = vunpack.c.l.b16 %v2387
        %v2554 = vunpack.c.h.b16 %v2387
        %v2555 = vunpack.c.l.b16 %v2388
        %v2556 = vunpack.c.h.b16 %v2388
        %v2557 = vunpack.c.l.b16 %v2389
        %v2558 = vunpack.c.h.b16 %v2389
        %v2559 = vunpack.c.l.b16 %v2390
        %v2560 = vunpack.c.h.b16 %v2390
        %v2561 = vunpack.c.l.b16 %v2391
        %v2562 = vunpack.c.h.b16 %v2391
        %v2563 = vunpack.c.l.b16 %v2392
        %v2564 = vunpack.c.h.b16 %v2392
        %v2565 = vunpack.c.l.b16 %v2393
        %v2566 = vunpack.c.h.b16 %v2393
        %v2567 = vunpack.c.l.b16 %v2394
        %v2568 = vunpack.c.h.b16 %v2394
        %v2569 = vunpack.c.l.b16 %v2395
        %v2570 = vunpack.c.h.b16 %v2395
        %v2571 = vunpack.c.l.b16 %v2396
        %v2572 = vunpack.c.h.b16 %v2396
        %v2573 = vunpack.c.l.b16 %v2397
        %v2574 = vunpack.c.h.b16 %v2397
        %v2575 = vunpack.c.l.b16 %v2398
        %v2576 = vunpack.c.h.b16 %v2398
        %v2577 = vunpack.c.l.b16 %v2399
        %v2578 = vunpack.c.h.b16 %v2399
        %v2579 = vunpack.c.l.b16 %v2400
        %v2580 = vunpack.c.h.b16 %v2400
        %v2581 = vunpack.c.l.b16 %v2401
        %v2582 = vunpack.c.h.b16 %v2401
        %v2583 = vunpack.c.l.b16 %v2402
        %v2584 = vunpack.c.h.b16 %v2402
        %v2585 = vunpack.c.l.b16 %v2403
        %v2586 = vunpack.c.h.b16 %v2403
        %v2587 = vunpack.c.l.b16 %v2404
        %v2588 = vunpack.c.h.b16 %v2404
        %v2589 = vunpack.c.l.b16 %v2405
        %v2590 = vunpack.c.h.b16 %v2405
        %v2591 = vunpack.c.l.b16 %v2406
        %v2592 = vunpack.c.h.b16 %v2406
        %v2593 = vunpack.c.l.b16 %v2407
        %v2594 = vunpack.c.h.b16 %v2407
        %v2595 = vunpack.c.l.b16 %v2408
        %v2596 = vunpack.c.h.b16 %v2408
        %v2597 = vunpack.c.l.b16 %v2409
        %v2598 = vunpack.c.h.b16 %v2409
        %v2599 = vunpack.c.l.b16 %v2410
        %v2600 = vunpack.c.h.b16 %v2410
        %v2601 = vunpack.c.l.b16 %v2411
        %v2602 = vunpack.c.h.b16 %v2411
        %v2603 = vunpack.c.l.b16 %v2412
        %v2604 = vunpack.c.h.b16 %v2412
        %v2605 = vunpack.c.l.b16 %v2413
        %v2606 = vunpack.c.h.b16 %v2413
        %v2607 = vunpack.c.l.b16 %v2414
        %v2608 = vunpack.c.h.b16 %v2414
        %v2609 = vunpack.c.l.b16 %v2415
        %v2610 = vunpack.c.h.b16 %v2415
        %v2611 = vunpack.c.l.b16 %v2416
        %v2612 = vunpack.c.h.b16 %v2416
        %v2613 = vunpack.c.l.b16 %v2417
        %v2614 = vunpack.c.h.b16 %v2417
        %v2615 = vunpack.c.l.b16 %v2418
        %v2616 = vunpack.c.h.b16 %v2418
        %v2617 = vunpack.c.l.b16 %v2419
        %v2618 = vunpack.c.h.b16 %v2419
        %v2619 = vunpack.c.l.b16 %v2420
        %v2620 = vunpack.c.h.b16 %v2420
        %v2621 = vunpack.c.l.b16 %v2421
        %v2622 = vunpack.c.h.b16 %v2421
        %v2623 = vunpack.c.l.b16 %v2422
        %v2624 = vunpack.c.h.b16 %v2422
        %v2625 = vunpack.c.l.b16 %v2423
        %v2626 = vunpack.c.h.b16 %v2423
        %v2627 = vunpack.c.l.b16 %v2424
        %v2628 = vunpack.c.h.b16 %v2424
        %v2629 = vpack.c.b16 %v2503, %v2501
        %v2630 = vpack.c.b16 %v2504, %v2502
        %v2631 = vpack.c.b16 %v2507, %v2505
        %v2632 = vpack.c.b16 %v2508, %v2506
        %v2633 = vpack.c.b16 %v2511, %v2509
        %v2634 = vpack.c.b16 %v2512, %v2510
        %v2635 = vpack.c.b16 %v2515, %v2513
        %v2636 = vpack.c.b16 %v2516, %v2514
        %v2637 = vpack.c.b16 %v2519, %v2517
        %v2638 = vpack.c.b16 %v2520, %v2518
        %v2639 = vpack.c.b16 %v2523, %v2521
        %v2640 = vpack.c.b16 %v2524, %v2522
        %v2641 = vpack.c.b16 %v2527, %v2525
        %v2642 = vpack.c.b16 %v2528, %v2526
        %v2643 = vpack.c.b16 %v2531, %v2529
        %v2644 = vpack.c.b16 %v2532, %v2530
        %v2645 = vpack.c.b16 %v2535, %v2533
        %v2646 = vpack.c.b16 %v2536, %v2534
        %v2647 = vpack.c.b16 %v2539, %v2537
        %v2648 = vpack.c.b16 %v2540, %v2538
        %v2649 = vpack.c.b16 %v2543, %v2541
        %v2650 = vpack.c.b16 %v2544, %v2542
        %v2651 = vpack.c.b16 %v2547, %v2545
        %v2652 = vpack.c.b16 %v2548, %v2546
        %v2653 = vpack.c.b16 %v2551, %v2549
        %v2654 = vpack.c.b16 %v2552, %v2550
        %v2655 = vpack.c.b16 %v2555, %v2553
        %v2656 = vpack.c.b16 %v2556, %v2554
        %v2657 = vpack.c.b16 %v2559, %v2557
        %v2658 = vpack.c.b16 %v2560, %v2558
        %v2659 = vpack.c.b16 %v2563, %v2561
        %v2660 = vpack.c.b16 %v2564, %v2562
        %v2661 = vpack.c.b16 %v2567, %v2565
        %v2662 = vpack.c.b16 %v2568, %v2566
        %v2663 = vpack.c.b16 %v2571, %v2569
        %v2664 = vpack.c.b16 %v2572, %v2570
        %v2665 = vpack.c.b16 %v2575, %v2573
        %v2666 = vpack.c.b16 %v2576, %v2574
        %v2667 = vpack.c.b16 %v2579, %v2577
        %v2668 = vpack.c.b16 %v2580, %v2578
        %v2669 = vpack.c.b16 %v2583, %v2581
        %v2670 = vpack.c.b16 %v2584, %v2582
        %v2671 = vpack.c.b16 %v2587, %v2585
        %v2672 = vpack.c.b16 %v2588, %v2586
        %v2673 = vpack.c.b16 %v2591, %v2589
        %v2674 = vpack.c.b16 %v2592, %v2590
        %v2675 = vpack.c.b16 %v2595, %v2593
        %v2676 = vpack.c.b16 %v2596, %v2594
        %v2677 = vpack.c.b16 %v2599, %v2597
        %v2678 = vpack.c.b16 %v2600, %v2598
        %v2679 = vpack.c.b16 %v2603, %v2601
        %v2680 = vpack.c.b16 %v2604, %v2602
        %v2681 = vpack.c.b16 %v2607, %v2605
        %v2682 = vpack.c.b16 %v2608, %v2606
        %v2683 = vpack.c.b16 %v2611, %v2609
        %v2684 = vpack.c.b16 %v2612, %v2610
        %v2685 = vpack.c.b16 %v2615, %v2613
        %v2686 = vpack.c.b16 %v2616, %v2614
        %v2687 = vpack.c.b16 %v2619, %v2617
        %v2688 = vpack.c.b16 %v2620, %v2618
        %v2689 = vpack.c.b16 %v2623, %v2621
        %v2690 = vpack.c.b16 %v2624, %v2622
        %v2691 = vpack.c.b16 %v2627, %v2625
        %v2692 = vpack.c.b16 %v2628, %v2626
        %2757 = vmatprep.subr.bf16.mxu0 %v2644
        %2758 = vmatpush1.bf16.msra.mxu0 %v2643
        %2759 = vmatprep.subr.bf16.mxu0 %v2642
        %2760 = vmatpush1.bf16.msra.mxu0 %v2641
        %2761 = vmatprep.subr.bf16.mxu0 %v2640
        %2762 = vmatpush1.bf16.msra.mxu0 %v2639
        %2763 = vmatprep.subr.bf16.mxu0 %v2638
        %2764 = vmatpush1.bf16.msra.mxu0 %v2637
        %2765 = vmatprep.subr.bf16.mxu0 %v2636
        %2766 = vmatpush1.bf16.msra.mxu0 %v2635
        %2767 = vmatprep.subr.bf16.mxu0 %v2634
        %2768 = vmatpush1.bf16.msra.mxu0 %v2633
        %2769 = vmatprep.subr.bf16.mxu0 %v2632
        %2770 = vmatpush1.bf16.msra.mxu0 %v2631
        %2771 = vmatprep.subr.bf16.mxu0 %v2630
        %2772 = vmatpush1.bf16.msra.mxu0 %v2629
        %2773 = vmatprep.subr.bf16.mxu0 %v2660
        %2774 = vmatpush2.bf16.msra.mxu0 %v2659
        %2775 = vmatprep.subr.bf16.mxu0 %v2658
        %2776 = vmatpush2.bf16.msra.mxu0 %v2657
        %2777 = vmatprep.subr.bf16.mxu0 %v2656
        %2778 = vmatpush2.bf16.msra.mxu0 %v2655
        %2779 = vmatprep.subr.bf16.mxu0 %v2654
        %2780 = vmatpush2.bf16.msra.mxu0 %v2653
        %2781 = vmatprep.subr.bf16.mxu0 %v2652
        %2782 = vmatpush2.bf16.msra.mxu0 %v2651
        %2783 = vmatprep.subr.bf16.mxu0 %v2650
        %2784 = vmatpush2.bf16.msra.mxu0 %v2649
        %2785 = vmatprep.subr.bf16.mxu0 %v2648
        %2786 = vmatpush2.bf16.msra.mxu0 %v2647
        %2787 = vmatprep.subr.bf16.mxu0 %v2646
        %2788 = vmatpush2.bf16.msra.mxu0 %v2645
        %2789 = vmatprep.mubr.bf16.mxu0 %v2358
        %2790 = vmatmul.mubr.bf16.gmra.mxu0 %v2357
        %v2791 = vpop.f32.mrf.mxu0
        %v2792 = vadd.f32 %v2430, %v2791
        %v2793 = vpop.f32.mrf.mxu0
        %v2794 = vadd.f32 %v2434, %v2793
        %v2795 = vpop.f32.mrf.mxu0
        %v2796 = vadd.f32 %v2430, %v2795
        %v2797 = vpop.f32.mrf.mxu0
        %v2798 = vadd.f32 %v2434, %v2797
        %2799 = vdwg.mxu0
        %2800 = vmatprep.subr.bf16.mxu0 %v2676
        %2801 = vmatpush1.bf16.msra.mxu0 %v2675
        %2802 = vmatprep.subr.bf16.mxu0 %v2674
        %2803 = vmatpush1.bf16.msra.mxu0 %v2673
        %2804 = vmatprep.subr.bf16.mxu0 %v2672
        %2805 = vmatpush1.bf16.msra.mxu0 %v2671
        %2806 = vmatprep.subr.bf16.mxu0 %v2670
        %2807 = vmatpush1.bf16.msra.mxu0 %v2669
        %2808 = vmatprep.subr.bf16.mxu0 %v2668
        %2809 = vmatpush1.bf16.msra.mxu0 %v2667
        %2810 = vmatprep.subr.bf16.mxu0 %v2666
        %2811 = vmatpush1.bf16.msra.mxu0 %v2665
        %2812 = vmatprep.subr.bf16.mxu0 %v2664
        %2813 = vmatpush1.bf16.msra.mxu0 %v2663
        %2814 = vmatprep.subr.bf16.mxu0 %v2662
        %2815 = vmatpush1.bf16.msra.mxu0 %v2661
        %2816 = vmatprep.subr.bf16.mxu0 %v2692
        %2817 = vmatpush2.bf16.msra.mxu0 %v2691
        %2818 = vmatprep.subr.bf16.mxu0 %v2690
        %2819 = vmatpush2.bf16.msra.mxu0 %v2689
        %2820 = vmatprep.subr.bf16.mxu0 %v2688
        %2821 = vmatpush2.bf16.msra.mxu0 %v2687
        %2822 = vmatprep.subr.bf16.mxu0 %v2686
        %2823 = vmatpush2.bf16.msra.mxu0 %v2685
        %2824 = vmatprep.subr.bf16.mxu0 %v2684
        %2825 = vmatpush2.bf16.msra.mxu0 %v2683
        %2826 = vmatprep.subr.bf16.mxu0 %v2682
        %2827 = vmatpush2.bf16.msra.mxu0 %v2681
        %2828 = vmatprep.subr.bf16.mxu0 %v2680
        %2829 = vmatpush2.bf16.msra.mxu0 %v2679
        %2830 = vmatprep.subr.bf16.mxu0 %v2678
        %2831 = vmatpush2.bf16.msra.mxu0 %v2677
        %2832 = vmatprep.mubr.bf16.mxu0 %v2360
        %2833 = vmatmul.mubr.bf16.gmra.mxu0 %v2359
        %v2834 = vpop.f32.mrf.mxu0
        %v2835 = vadd.f32 %v2792, %v2834
        %v2836 = vpop.f32.mrf.mxu0
        %v2837 = vadd.f32 %v2794, %v2836
        %v2838 = vpop.f32.mrf.mxu0
        %v2839 = vadd.f32 %v2796, %v2838
        %v2840 = vpop.f32.mrf.mxu0
        %v2841 = vadd.f32 %v2798, %v2840
        %2842 = vdwg.mxu0
        %v2843 = vmax.f32 %v2835, 0.0
        %v2844 = vmax.f32 %v2837, 0.0
        %v2845 = vmax.f32 %v2839, 0.0
        %v2846 = vmax.f32 %v2841, 0.0
        %v2847 = vld [vmem:[%s6] sm:$0xff]
        %v2848 = vld [vmem:[%s6 + $0x8] sm:$0xff]
        %v2849 = vld [vmem:[%s6 + $0x10] sm:$0xff]
        %v2850 = vld [vmem:[%s6 + $0x18] sm:$0xff]
        %v2851 = vld [vmem:[%s6 + $0x20] sm:$0xff]
        %v2852 = vld [vmem:[%s6 + $0x28] sm:$0xff]
        %v2853 = vld [vmem:[%s6 + $0x30] sm:$0xff]
        %v2854 = vld [vmem:[%s6 + $0x38] sm:$0xff]
        %v2855 = vld [vmem:[%s6 + $0x40] sm:$0xff]
        %v2856 = vld [vmem:[%s6 + $0x48] sm:$0xff]
        %v2857 = vld [vmem:[%s6 + $0x50] sm:$0xff]
        %v2858 = vld [vmem:[%s6 + $0x58] sm:$0xff]
        %v2859 = vld [vmem:[%s6 + $0x60] sm:$0xff]
        %v2860 = vld [vmem:[%s6 + $0x68] sm:$0xff]
        %v2861 = vld [vmem:[%s6 + $0x70] sm:$0xff]
        %v2862 = vld [vmem:[%s6 + $0x78] sm:$0xff]
        %v2863 = vld [vmem:[%s6 + $0x80] sm:$0xff]
        %v2864 = vld [vmem:[%s6 + $0x88] sm:$0xff]
        %v2865 = vld [vmem:[%s6 + $0x90] sm:$0xff]
        %v2866 = vld [vmem:[%s6 + $0x98] sm:$0xff]
        %v2867 = vld [vmem:[%s6 + $0xa0] sm:$0xff]
        %v2868 = vld [vmem:[%s6 + $0xa8] sm:$0xff]
        %v2869 = vld [vmem:[%s6 + $0xb0] sm:$0xff]
        %v2870 = vld [vmem:[%s6 + $0xb8] sm:$0xff]
        %v2871 = vld [vmem:[%s6 + $0xc0] sm:$0xff]
        %v2872 = vld [vmem:[%s6 + $0xc8] sm:$0xff]
        %v2873 = vld [vmem:[%s6 + $0xd0] sm:$0xff]
        %v2874 = vld [vmem:[%s6 + $0xd8] sm:$0xff]
        %v2875 = vld [vmem:[%s6 + $0xe0] sm:$0xff]
        %v2876 = vld [vmem:[%s6 + $0xe8] sm:$0xff]
        %v2877 = vld [vmem:[%s6 + $0xf0] sm:$0xff]
        %v2878 = vld [vmem:[%s6 + $0xf8] sm:$0xff]
        %v2879 = vld [vmem:[%s7] sm:$0x1]
        %v2881 = vlaneseq
        %v2882 = vshrl.u32 %v2881, 7
        %v2883 = vsub.s32 0, %v2882
        %v2884 = vrot.slane %v2879, %v2883
        %2886 = vmatprep.subr.mxu0 0.0
        %2887 = vmatpush1.msra.mxu0 %v2862
        %2888 = vmatprep.subr.mxu0 0.0
        %2889 = vmatpush1.msra.mxu0 %v2861
        %2890 = vmatprep.subr.mxu0 0.0
        %2891 = vmatpush1.msra.mxu0 %v2860
        %2892 = vmatprep.subr.mxu0 0.0
        %2893 = vmatpush1.msra.mxu0 %v2859
        %2894 = vmatprep.subr.mxu0 0.0
        %2895 = vmatpush1.msra.mxu0 %v2858
        %2896 = vmatprep.subr.mxu0 0.0
        %2897 = vmatpush1.msra.mxu0 %v2857
        %2898 = vmatprep.subr.mxu0 0.0
        %2899 = vmatpush1.msra.mxu0 %v2856
        %2900 = vmatprep.subr.mxu0 0.0
        %2901 = vmatpush1.msra.mxu0 %v2855
        %2902 = vmatprep.subr.mxu0 0.0
        %2903 = vmatpush1.msra.mxu0 %v2854
        %2904 = vmatprep.subr.mxu0 0.0
        %2905 = vmatpush1.msra.mxu0 %v2853
        %2906 = vmatprep.subr.mxu0 0.0
        %2907 = vmatpush1.msra.mxu0 %v2852
        %2908 = vmatprep.subr.mxu0 0.0
        %2909 = vmatpush1.msra.mxu0 %v2851
        %2910 = vmatprep.subr.mxu0 0.0
        %2911 = vmatpush1.msra.mxu0 %v2850
        %2912 = vmatprep.subr.mxu0 0.0
        %2913 = vmatpush1.msra.mxu0 %v2849
        %2914 = vmatprep.subr.mxu0 0.0
        %2915 = vmatpush1.msra.mxu0 %v2848
        %2916 = vmatprep.subr.mxu0 0.0
        %2917 = vmatpush1.msra.mxu0 %v2847
        %2918 = vmatprep.subr.mxu0 0.0
        %2919 = vmatpush2.msra.mxu0 %v2878
        %2920 = vmatprep.subr.mxu0 0.0
        %2921 = vmatpush2.msra.mxu0 %v2877
        %2922 = vmatprep.subr.mxu0 0.0
        %2923 = vmatpush2.msra.mxu0 %v2876
        %2924 = vmatprep.subr.mxu0 0.0
        %2925 = vmatpush2.msra.mxu0 %v2875
        %2926 = vmatprep.subr.mxu0 0.0
        %2927 = vmatpush2.msra.mxu0 %v2874
        %2928 = vmatprep.subr.mxu0 0.0
        %2929 = vmatpush2.msra.mxu0 %v2873
        %2930 = vmatprep.subr.mxu0 0.0
        %2931 = vmatpush2.msra.mxu0 %v2872
        %2932 = vmatprep.subr.mxu0 0.0
        %2933 = vmatpush2.msra.mxu0 %v2871
        %2934 = vmatprep.subr.mxu0 0.0
        %2935 = vmatpush2.msra.mxu0 %v2870
        %2936 = vmatprep.subr.mxu0 0.0
        %2937 = vmatpush2.msra.mxu0 %v2869
        %2938 = vmatprep.subr.mxu0 0.0
        %2939 = vmatpush2.msra.mxu0 %v2868
        %2940 = vmatprep.subr.mxu0 0.0
        %2941 = vmatpush2.msra.mxu0 %v2867
        %2942 = vmatprep.subr.mxu0 0.0
        %2943 = vmatpush2.msra.mxu0 %v2866
        %2944 = vmatprep.subr.mxu0 0.0
        %2945 = vmatpush2.msra.mxu0 %v2865
        %2946 = vmatprep.subr.mxu0 0.0
        %2947 = vmatpush2.msra.mxu0 %v2864
        %2948 = vmatprep.subr.mxu0 0.0
        %2949 = vmatpush2.msra.mxu0 %v2863
        %2950 = vmatprep.mubr.f32.mxu0 %v2844
        %2951 = vmatmul.mubr.f32.gmra.mxu0 %v2843
        %v2952 = vpop.f32.mrf.mxu0
        %v2953 = vadd.f32 %v2884, %v2952
        %v2954 = vpop.f32.mrf.mxu0
        %2955 = vmatprep.mubr.f32.mxu0 %v2846
        %2956 = vmatmul.mubr.f32.gmra.mxu0 %v2845
        %v2957 = vpop.f32.mrf.mxu0
        %v2958 = vadd.f32 %v2884, %v2957
        %v2959 = vpop.f32.mrf.mxu0
        %2960 = vdwg.mxu0
        %2961 = vst [vmem:[%s596] sm:$0xff] %v2953
        %2962 = vst [vmem:[%s596 + $0x8] sm:$0xff] %v2958
        %v2963 = vld [vmem:[%s583] sm:$0xff]
        %v2964 = vld [vmem:[%s583 + $0x8] sm:$0xff]
        %v2965 = vmul.f32 %v2953, 0.5
        %v2966 = vmul.f32 %v2958, 0.5
        %v2967 = vmul.f32 %v2965, 1.442695
        %v2968 = vpow.pop %v2967
        %v2969 = vmul.f32 %v2966, 1.442695
        %v2970 = vpow.pop %v2969
        %2973 = vrot.lane.b32.xlu0 %v2968, 126
        %v2974 = vpop.permute.xlu0 %2973
        %2975 = vrot.lane.b32.xlu0 %v2970, 126
        %v2976 = vpop.permute.xlu0 %2975
        %v2979 = vmul.f32 %v2963, %v2974
        %v2980 = vmul.f32 %v2964, %v2976
        %v2981 = vadd.f32 %v2953, %v2979
        %v2982 = vadd.f32 %v2958, %v2980
        %v2983 = vld [vmem:[%s8] sm:$0xf]
        %v2984 = vld [vmem:[%s9] sm:$0x3]
        %2986 = vset.pattern.permute.xlu0 0
        %2987 = vperm.xlu0 %2986, %v2981
        %v2988 = vpop.permute.xlu0 %2987
        %2991 = vset.pattern.permute.xlu0 0
        %2992 = vperm.xlu0 %2991, %v2982
        %v2993 = vpop.permute.xlu0 %2992
        %v2996 = vlaneseq
        %v2997 = vshrl.u32 %v2996, 7
        %v2998 = vsub.s32 0, %v2997
        %v2999 = vrot.slane %v2983, %v2998
        %v3000 = vlaneseq
        %v3001 = vshrl.u32 %v3000, 7
        %v3002 = vsub.s32 2, %v3001
        %v3003 = vrot.slane %v2983, %v3002
        %v3006 = vlaneseq
        %v3007 = vshrl.u32 %v3006, 7
        %v3008 = vsub.s32 0, %v3007
        %v3009 = vrot.slane %v2999, %v3008
        %v3010 = vlaneseq
        %v3011 = vshrl.u32 %v3010, 7
        %v3012 = vsub.s32 0, %v3011
        %v3013 = vrot.slane %v3003, %v3012
        %v3014 = vmul.f32 %v2988, %v3009
        %v3015 = vmul.f32 %v2988, %v3013
        %v3016 = vmul.f32 %v2993, %v3009
        %v3017 = vmul.f32 %v2993, %v3013
        %v3019 = vlaneseq
        %v3020 = vshrl.u32 %v3019, 7
        %v3021 = vsub.s32 0, %v3020
        %v3022 = vrot.slane %v2984, %v3021
        %v3023 = vlaneseq
        %v3024 = vshrl.u32 %v3023, 7
        %v3025 = vsub.s32 1, %v3024
        %v3026 = vrot.slane %v2984, %v3025
        %v3029 = vadd.f32 %v3022, %v3014
        %v3030 = vadd.f32 %v3026, %v3015
        %v3031 = vadd.f32 %v3022, %v3016
        %v3032 = vadd.f32 %v3026, %v3017
        %3033 = vset.pattern.permute.xlu0 1
        %3034 = vperm.xlu0 %3033, %v2981
        %v3035 = vpop.permute.xlu0 %3034
        %3037 = vset.pattern.permute.xlu0 1
        %3038 = vperm.xlu0 %3037, %v2982
        %v3039 = vpop.permute.xlu0 %3038
        %v3041 = vlaneseq
        %v3042 = vshrl.u32 %v3041, 7
        %v3043 = vsub.s32 1, %v3042
        %v3044 = vrot.slane %v2983, %v3043
        %v3045 = vlaneseq
        %v3046 = vshrl.u32 %v3045, 7
        %v3047 = vsub.s32 3, %v3046
        %v3048 = vrot.slane %v2983, %v3047
        %v3051 = vlaneseq
        %v3052 = vshrl.u32 %v3051, 7
        %v3053 = vsub.s32 1, %v3052
        %v3054 = vrot.slane %v3044, %v3053
        %v3055 = vlaneseq
        %v3056 = vshrl.u32 %v3055, 7
        %v3057 = vsub.s32 1, %v3056
        %v3058 = vrot.slane %v3048, %v3057
        %v3059 = vmul.f32 %v3035, %v3054
        %v3060 = vmul.f32 %v3035, %v3058
        %v3061 = vmul.f32 %v3039, %v3054
        %v3062 = vmul.f32 %v3039, %v3058
        %v3063 = vadd.f32 %v3029, %v3059
        %v3064 = vadd.f32 %v3030, %v3060
        %v3065 = vadd.f32 %v3031, %v3061
        %v3066 = vadd.f32 %v3032, %v3062
        %v3067 = vpack.c.bf16 %v3065, %v3063
        %v3068 = vpack.c.bf16 %v3066, %v3064
        %v3069 = vmax.bf16 %v3067, 0
        %v3070 = vmax.bf16 %v3068, 0
        %v3071 = vld [vmem:[#allocation6] sm:$0xff]
        %v3072 = vld [vmem:[#allocation6 + $0x8] sm:$0xff]
        %v3073 = vld [vmem:[#allocation6 + $0x10] sm:$0xff]
        %v3074 = vld [vmem:[#allocation6 + $0x18] sm:$0xff]
        %v3075 = vld [vmem:[#allocation6 + $0x20] sm:$0xff]
        %v3076 = vld [vmem:[#allocation6 + $0x28] sm:$0xff]
        %v3077 = vld [vmem:[#allocation6 + $0x30] sm:$0xff]
        %v3078 = vld [vmem:[#allocation6 + $0x38] sm:$0xff]
        %v3079 = vld [vmem:[#allocation6 + $0x40] sm:$0xff]
        %v3080 = vld [vmem:[#allocation6 + $0x48] sm:$0xff]
        %v3081 = vld [vmem:[#allocation6 + $0x50] sm:$0xff]
        %v3082 = vld [vmem:[#allocation6 + $0x58] sm:$0xff]
        %v3083 = vld [vmem:[#allocation6 + $0x60] sm:$0xff]
        %v3084 = vld [vmem:[#allocation6 + $0x68] sm:$0xff]
        %v3085 = vld [vmem:[#allocation6 + $0x70] sm:$0xff]
        %v3086 = vld [vmem:[#allocation6 + $0x78] sm:$0xff]
        %v3087 = vld [vmem:[#allocation6 + $0x80] sm:$0xff]
        %v3088 = vld [vmem:[#allocation6 + $0x88] sm:$0xff]
        %v3089 = vld [vmem:[#allocation6 + $0x90] sm:$0xff]
        %v3090 = vld [vmem:[#allocation6 + $0x98] sm:$0xff]
        %v3091 = vld [vmem:[#allocation6 + $0xa0] sm:$0xff]
        %v3092 = vld [vmem:[#allocation6 + $0xa8] sm:$0xff]
        %v3093 = vld [vmem:[#allocation6 + $0xb0] sm:$0xff]
        %v3094 = vld [vmem:[#allocation6 + $0xb8] sm:$0xff]
        %v3095 = vld [vmem:[#allocation6 + $0xc0] sm:$0xff]
        %v3096 = vld [vmem:[#allocation6 + $0xc8] sm:$0xff]
        %v3097 = vld [vmem:[#allocation6 + $0xd0] sm:$0xff]
        %v3098 = vld [vmem:[#allocation6 + $0xd8] sm:$0xff]
        %v3099 = vld [vmem:[#allocation6 + $0xe0] sm:$0xff]
        %v3100 = vld [vmem:[#allocation6 + $0xe8] sm:$0xff]
        %v3101 = vld [vmem:[#allocation6 + $0xf0] sm:$0xff]
        %v3102 = vld [vmem:[#allocation6 + $0xf8] sm:$0xff]
        %v3103 = vld [vmem:[#allocation6 + $0x100] sm:$0xff]
        %v3104 = vld [vmem:[#allocation6 + $0x108] sm:$0xff]
        %v3105 = vld [vmem:[#allocation6 + $0x110] sm:$0xff]
        %v3106 = vld [vmem:[#allocation6 + $0x118] sm:$0xff]
        %v3107 = vld [vmem:[#allocation6 + $0x120] sm:$0xff]
        %v3108 = vld [vmem:[#allocation6 + $0x128] sm:$0xff]
        %v3109 = vld [vmem:[#allocation6 + $0x130] sm:$0xff]
        %v3110 = vld [vmem:[#allocation6 + $0x138] sm:$0xff]
        %v3111 = vld [vmem:[#allocation6 + $0x140] sm:$0xff]
        %v3112 = vld [vmem:[#allocation6 + $0x148] sm:$0xff]
        %v3113 = vld [vmem:[#allocation6 + $0x150] sm:$0xff]
        %v3114 = vld [vmem:[#allocation6 + $0x158] sm:$0xff]
        %v3115 = vld [vmem:[#allocation6 + $0x160] sm:$0xff]
        %v3116 = vld [vmem:[#allocation6 + $0x168] sm:$0xff]
        %v3117 = vld [vmem:[#allocation6 + $0x170] sm:$0xff]
        %v3118 = vld [vmem:[#allocation6 + $0x178] sm:$0xff]
        %v3119 = vld [vmem:[#allocation6 + $0x180] sm:$0xff]
        %v3120 = vld [vmem:[#allocation6 + $0x188] sm:$0xff]
        %v3121 = vld [vmem:[#allocation6 + $0x190] sm:$0xff]
        %v3122 = vld [vmem:[#allocation6 + $0x198] sm:$0xff]
        %v3123 = vld [vmem:[#allocation6 + $0x1a0] sm:$0xff]
        %v3124 = vld [vmem:[#allocation6 + $0x1a8] sm:$0xff]
        %v3125 = vld [vmem:[#allocation6 + $0x1b0] sm:$0xff]
        %v3126 = vld [vmem:[#allocation6 + $0x1b8] sm:$0xff]
        %v3127 = vld [vmem:[#allocation6 + $0x1c0] sm:$0xff]
        %v3128 = vld [vmem:[#allocation6 + $0x1c8] sm:$0xff]
        %v3129 = vld [vmem:[#allocation6 + $0x1d0] sm:$0xff]
        %v3130 = vld [vmem:[#allocation6 + $0x1d8] sm:$0xff]
        %v3131 = vld [vmem:[#allocation6 + $0x1e0] sm:$0xff]
        %v3132 = vld [vmem:[#allocation6 + $0x1e8] sm:$0xff]
        %v3133 = vld [vmem:[#allocation6 + $0x1f0] sm:$0xff]
        %v3134 = vld [vmem:[#allocation6 + $0x1f8] sm:$0xff]
        %v3135 = vld [vmem:[%s11] sm:$0xf]
        %v3137 = vlaneseq
        %v3138 = vshrl.u32 %v3137, 7
        %v3139 = vsub.s32 0, %v3138
        %v3140 = vrot.slane %v3135, %v3139
        %v3141 = vlaneseq
        %v3142 = vshrl.u32 %v3141, 7
        %v3143 = vsub.s32 1, %v3142
        %v3144 = vrot.slane %v3135, %v3143
        %v3145 = vlaneseq
        %v3146 = vshrl.u32 %v3145, 7
        %v3147 = vsub.s32 2, %v3146
        %v3148 = vrot.slane %v3135, %v3147
        %v3149 = vlaneseq
        %v3150 = vshrl.u32 %v3149, 7
        %v3151 = vsub.s32 3, %v3150
        %v3152 = vrot.slane %v3135, %v3151
        %v3221 = vunpack.c.l.b16 %v3071
        %v3222 = vunpack.c.h.b16 %v3071
        %v3223 = vunpack.c.l.b16 %v3072
        %v3224 = vunpack.c.h.b16 %v3072
        %v3225 = vunpack.c.l.b16 %v3073
        %v3226 = vunpack.c.h.b16 %v3073
        %v3227 = vunpack.c.l.b16 %v3074
        %v3228 = vunpack.c.h.b16 %v3074
        %v3229 = vunpack.c.l.b16 %v3075
        %v3230 = vunpack.c.h.b16 %v3075
        %v3231 = vunpack.c.l.b16 %v3076
        %v3232 = vunpack.c.h.b16 %v3076
        %v3233 = vunpack.c.l.b16 %v3077
        %v3234 = vunpack.c.h.b16 %v3077
        %v3235 = vunpack.c.l.b16 %v3078
        %v3236 = vunpack.c.h.b16 %v3078
        %v3237 = vunpack.c.l.b16 %v3079
        %v3238 = vunpack.c.h.b16 %v3079
        %v3239 = vunpack.c.l.b16 %v3080
        %v3240 = vunpack.c.h.b16 %v3080
        %v3241 = vunpack.c.l.b16 %v3081
        %v3242 = vunpack.c.h.b16 %v3081
        %v3243 = vunpack.c.l.b16 %v3082
        %v3244 = vunpack.c.h.b16 %v3082
        %v3245 = vunpack.c.l.b16 %v3083
        %v3246 = vunpack.c.h.b16 %v3083
        %v3247 = vunpack.c.l.b16 %v3084
        %v3248 = vunpack.c.h.b16 %v3084
        %v3249 = vunpack.c.l.b16 %v3085
        %v3250 = vunpack.c.h.b16 %v3085
        %v3251 = vunpack.c.l.b16 %v3086
        %v3252 = vunpack.c.h.b16 %v3086
        %v3253 = vunpack.c.l.b16 %v3087
        %v3254 = vunpack.c.h.b16 %v3087
        %v3255 = vunpack.c.l.b16 %v3088
        %v3256 = vunpack.c.h.b16 %v3088
        %v3257 = vunpack.c.l.b16 %v3089
        %v3258 = vunpack.c.h.b16 %v3089
        %v3259 = vunpack.c.l.b16 %v3090
        %v3260 = vunpack.c.h.b16 %v3090
        %v3261 = vunpack.c.l.b16 %v3091
        %v3262 = vunpack.c.h.b16 %v3091
        %v3263 = vunpack.c.l.b16 %v3092
        %v3264 = vunpack.c.h.b16 %v3092
        %v3265 = vunpack.c.l.b16 %v3093
        %v3266 = vunpack.c.h.b16 %v3093
        %v3267 = vunpack.c.l.b16 %v3094
        %v3268 = vunpack.c.h.b16 %v3094
        %v3269 = vunpack.c.l.b16 %v3095
        %v3270 = vunpack.c.h.b16 %v3095
        %v3271 = vunpack.c.l.b16 %v3096
        %v3272 = vunpack.c.h.b16 %v3096
        %v3273 = vunpack.c.l.b16 %v3097
        %v3274 = vunpack.c.h.b16 %v3097
        %v3275 = vunpack.c.l.b16 %v3098
        %v3276 = vunpack.c.h.b16 %v3098
        %v3277 = vunpack.c.l.b16 %v3099
        %v3278 = vunpack.c.h.b16 %v3099
        %v3279 = vunpack.c.l.b16 %v3100
        %v3280 = vunpack.c.h.b16 %v3100
        %v3281 = vunpack.c.l.b16 %v3101
        %v3282 = vunpack.c.h.b16 %v3101
        %v3283 = vunpack.c.l.b16 %v3102
        %v3284 = vunpack.c.h.b16 %v3102
        %v3285 = vunpack.c.l.b16 %v3103
        %v3286 = vunpack.c.h.b16 %v3103
        %v3287 = vunpack.c.l.b16 %v3104
        %v3288 = vunpack.c.h.b16 %v3104
        %v3289 = vunpack.c.l.b16 %v3105
        %v3290 = vunpack.c.h.b16 %v3105
        %v3291 = vunpack.c.l.b16 %v3106
        %v3292 = vunpack.c.h.b16 %v3106
        %v3293 = vunpack.c.l.b16 %v3107
        %v3294 = vunpack.c.h.b16 %v3107
        %v3295 = vunpack.c.l.b16 %v3108
        %v3296 = vunpack.c.h.b16 %v3108
        %v3297 = vunpack.c.l.b16 %v3109
        %v3298 = vunpack.c.h.b16 %v3109
        %v3299 = vunpack.c.l.b16 %v3110
        %v3300 = vunpack.c.h.b16 %v3110
        %v3301 = vunpack.c.l.b16 %v3111
        %v3302 = vunpack.c.h.b16 %v3111
        %v3303 = vunpack.c.l.b16 %v3112
        %v3304 = vunpack.c.h.b16 %v3112
        %v3305 = vunpack.c.l.b16 %v3113
        %v3306 = vunpack.c.h.b16 %v3113
        %v3307 = vunpack.c.l.b16 %v3114
        %v3308 = vunpack.c.h.b16 %v3114
        %v3309 = vunpack.c.l.b16 %v3115
        %v3310 = vunpack.c.h.b16 %v3115
        %v3311 = vunpack.c.l.b16 %v3116
        %v3312 = vunpack.c.h.b16 %v3116
        %v3313 = vunpack.c.l.b16 %v3117
        %v3314 = vunpack.c.h.b16 %v3117
        %v3315 = vunpack.c.l.b16 %v3118
        %v3316 = vunpack.c.h.b16 %v3118
        %v3317 = vunpack.c.l.b16 %v3119
        %v3318 = vunpack.c.h.b16 %v3119
        %v3319 = vunpack.c.l.b16 %v3120
        %v3320 = vunpack.c.h.b16 %v3120
        %v3321 = vunpack.c.l.b16 %v3121
        %v3322 = vunpack.c.h.b16 %v3121
        %v3323 = vunpack.c.l.b16 %v3122
        %v3324 = vunpack.c.h.b16 %v3122
        %v3325 = vunpack.c.l.b16 %v3123
        %v3326 = vunpack.c.h.b16 %v3123
        %v3327 = vunpack.c.l.b16 %v3124
        %v3328 = vunpack.c.h.b16 %v3124
        %v3329 = vunpack.c.l.b16 %v3125
        %v3330 = vunpack.c.h.b16 %v3125
        %v3331 = vunpack.c.l.b16 %v3126
        %v3332 = vunpack.c.h.b16 %v3126
        %v3333 = vunpack.c.l.b16 %v3127
        %v3334 = vunpack.c.h.b16 %v3127
        %v3335 = vunpack.c.l.b16 %v3128
        %v3336 = vunpack.c.h.b16 %v3128
        %v3337 = vunpack.c.l.b16 %v3129
        %v3338 = vunpack.c.h.b16 %v3129
        %v3339 = vunpack.c.l.b16 %v3130
        %v3340 = vunpack.c.h.b16 %v3130
        %v3341 = vunpack.c.l.b16 %v3131
        %v3342 = vunpack.c.h.b16 %v3131
        %v3343 = vunpack.c.l.b16 %v3132
        %v3344 = vunpack.c.h.b16 %v3132
        %v3345 = vunpack.c.l.b16 %v3133
        %v3346 = vunpack.c.h.b16 %v3133
        %v3347 = vunpack.c.l.b16 %v3134
        %v3348 = vunpack.c.h.b16 %v3134
        %v3349 = vpack.c.b16 %v3225, %v3221
        %v3350 = vpack.c.b16 %v3226, %v3222
        %v3351 = vpack.c.b16 %v3227, %v3223
        %v3352 = vpack.c.b16 %v3228, %v3224
        %v3353 = vpack.c.b16 %v3233, %v3229
        %v3354 = vpack.c.b16 %v3234, %v3230
        %v3355 = vpack.c.b16 %v3235, %v3231
        %v3356 = vpack.c.b16 %v3236, %v3232
        %v3357 = vpack.c.b16 %v3241, %v3237
        %v3358 = vpack.c.b16 %v3242, %v3238
        %v3359 = vpack.c.b16 %v3243, %v3239
        %v3360 = vpack.c.b16 %v3244, %v3240
        %v3361 = vpack.c.b16 %v3249, %v3245
        %v3362 = vpack.c.b16 %v3250, %v3246
        %v3363 = vpack.c.b16 %v3251, %v3247
        %v3364 = vpack.c.b16 %v3252, %v3248
        %v3365 = vpack.c.b16 %v3257, %v3253
        %v3366 = vpack.c.b16 %v3258, %v3254
        %v3367 = vpack.c.b16 %v3259, %v3255
        %v3368 = vpack.c.b16 %v3260, %v3256
        %v3369 = vpack.c.b16 %v3265, %v3261
        %v3370 = vpack.c.b16 %v3266, %v3262
        %v3371 = vpack.c.b16 %v3267, %v3263
        %v3372 = vpack.c.b16 %v3268, %v3264
        %v3373 = vpack.c.b16 %v3273, %v3269
        %v3374 = vpack.c.b16 %v3274, %v3270
        %v3375 = vpack.c.b16 %v3275, %v3271
        %v3376 = vpack.c.b16 %v3276, %v3272
        %v3377 = vpack.c.b16 %v3281, %v3277
        %v3378 = vpack.c.b16 %v3282, %v3278
        %v3379 = vpack.c.b16 %v3283, %v3279
        %v3380 = vpack.c.b16 %v3284, %v3280
        %v3381 = vpack.c.b16 %v3289, %v3285
        %v3382 = vpack.c.b16 %v3290, %v3286
        %v3383 = vpack.c.b16 %v3291, %v3287
        %v3384 = vpack.c.b16 %v3292, %v3288
        %v3385 = vpack.c.b16 %v3297, %v3293
        %v3386 = vpack.c.b16 %v3298, %v3294
        %v3387 = vpack.c.b16 %v3299, %v3295
        %v3388 = vpack.c.b16 %v3300, %v3296
        %v3389 = vpack.c.b16 %v3305, %v3301
        %v3390 = vpack.c.b16 %v3306, %v3302
        %v3391 = vpack.c.b16 %v3307, %v3303
        %v3392 = vpack.c.b16 %v3308, %v3304
        %v3393 = vpack.c.b16 %v3313, %v3309
        %v3394 = vpack.c.b16 %v3314, %v3310
        %v3395 = vpack.c.b16 %v3315, %v3311
        %v3396 = vpack.c.b16 %v3316, %v3312
        %v3397 = vpack.c.b16 %v3321, %v3317
        %v3398 = vpack.c.b16 %v3322, %v3318
        %v3399 = vpack.c.b16 %v3323, %v3319
        %v3400 = vpack.c.b16 %v3324, %v3320
        %v3401 = vpack.c.b16 %v3329, %v3325
        %v3402 = vpack.c.b16 %v3330, %v3326
        %v3403 = vpack.c.b16 %v3331, %v3327
        %v3404 = vpack.c.b16 %v3332, %v3328
        %v3405 = vpack.c.b16 %v3337, %v3333
        %v3406 = vpack.c.b16 %v3338, %v3334
        %v3407 = vpack.c.b16 %v3339, %v3335
        %v3408 = vpack.c.b16 %v3340, %v3336
        %v3409 = vpack.c.b16 %v3345, %v3341
        %v3410 = vpack.c.b16 %v3346, %v3342
        %v3411 = vpack.c.b16 %v3347, %v3343
        %v3412 = vpack.c.b16 %v3348, %v3344
        %3477 = vmatprep.subr.bf16.mxu0 %v3378
        %3478 = vmatpush1.bf16.msra.mxu0 %v3377
        %3479 = vmatprep.subr.bf16.mxu0 %v3374
        %3480 = vmatpush1.bf16.msra.mxu0 %v3373
        %3481 = vmatprep.subr.bf16.mxu0 %v3370
        %3482 = vmatpush1.bf16.msra.mxu0 %v3369
        %3483 = vmatprep.subr.bf16.mxu0 %v3366
        %3484 = vmatpush1.bf16.msra.mxu0 %v3365
        %3485 = vmatprep.subr.bf16.mxu0 %v3362
        %3486 = vmatpush1.bf16.msra.mxu0 %v3361
        %3487 = vmatprep.subr.bf16.mxu0 %v3358
        %3488 = vmatpush1.bf16.msra.mxu0 %v3357
        %3489 = vmatprep.subr.bf16.mxu0 %v3354
        %3490 = vmatpush1.bf16.msra.mxu0 %v3353
        %3491 = vmatprep.subr.bf16.mxu0 %v3350
        %3492 = vmatpush1.bf16.msra.mxu0 %v3349
        %3493 = vmatprep.subr.bf16.mxu0 %v3410
        %3494 = vmatpush2.bf16.msra.mxu0 %v3409
        %3495 = vmatprep.subr.bf16.mxu0 %v3406
        %3496 = vmatpush2.bf16.msra.mxu0 %v3405
        %3497 = vmatprep.subr.bf16.mxu0 %v3402
        %3498 = vmatpush2.bf16.msra.mxu0 %v3401
        %3499 = vmatprep.subr.bf16.mxu0 %v3398
        %3500 = vmatpush2.bf16.msra.mxu0 %v3397
        %3501 = vmatprep.subr.bf16.mxu0 %v3394
        %3502 = vmatpush2.bf16.msra.mxu0 %v3393
        %3503 = vmatprep.subr.bf16.mxu0 %v3390
        %3504 = vmatpush2.bf16.msra.mxu0 %v3389
        %3505 = vmatprep.subr.bf16.mxu0 %v3386
        %3506 = vmatpush2.bf16.msra.mxu0 %v3385
        %3507 = vmatprep.subr.bf16.mxu0 %v3382
        %3508 = vmatpush2.bf16.msra.mxu0 %v3381
        %3509 = vmatprep.mubr.bf16.mxu0 %v3070
        %3510 = vmatmul.mubr.bf16.gmra.mxu0 %v3069
        %v3511 = vpop.f32.mrf.mxu0
        %v3512 = vadd.f32 %v3140, %v3511
        %v3513 = vpop.f32.mrf.mxu0
        %v3514 = vadd.f32 %v3144, %v3513
        %v3515 = vpop.f32.mrf.mxu0
        %v3516 = vadd.f32 %v3140, %v3515
        %v3517 = vpop.f32.mrf.mxu0
        %v3518 = vadd.f32 %v3144, %v3517
        %3519 = vdwg.mxu0
        %3520 = vmatprep.subr.bf16.mxu0 %v3380
        %3521 = vmatpush1.bf16.msra.mxu0 %v3379
        %3522 = vmatprep.subr.bf16.mxu0 %v3376
        %3523 = vmatpush1.bf16.msra.mxu0 %v3375
        %3524 = vmatprep.subr.bf16.mxu0 %v3372
        %3525 = vmatpush1.bf16.msra.mxu0 %v3371
        %3526 = vmatprep.subr.bf16.mxu0 %v3368
        %3527 = vmatpush1.bf16.msra.mxu0 %v3367
        %3528 = vmatprep.subr.bf16.mxu0 %v3364
        %3529 = vmatpush1.bf16.msra.mxu0 %v3363
        %3530 = vmatprep.subr.bf16.mxu0 %v3360
        %3531 = vmatpush1.bf16.msra.mxu0 %v3359
        %3532 = vmatprep.subr.bf16.mxu0 %v3356
        %3533 = vmatpush1.bf16.msra.mxu0 %v3355
        %3534 = vmatprep.subr.bf16.mxu0 %v3352
        %3535 = vmatpush1.bf16.msra.mxu0 %v3351
        %3536 = vmatprep.subr.bf16.mxu0 %v3412
        %3537 = vmatpush2.bf16.msra.mxu0 %v3411
        %3538 = vmatprep.subr.bf16.mxu0 %v3408
        %3539 = vmatpush2.bf16.msra.mxu0 %v3407
        %3540 = vmatprep.subr.bf16.mxu0 %v3404
        %3541 = vmatpush2.bf16.msra.mxu0 %v3403
        %3542 = vmatprep.subr.bf16.mxu0 %v3400
        %3543 = vmatpush2.bf16.msra.mxu0 %v3399
        %3544 = vmatprep.subr.bf16.mxu0 %v3396
        %3545 = vmatpush2.bf16.msra.mxu0 %v3395
        %3546 = vmatprep.subr.bf16.mxu0 %v3392
        %3547 = vmatpush2.bf16.msra.mxu0 %v3391
        %3548 = vmatprep.subr.bf16.mxu0 %v3388
        %3549 = vmatpush2.bf16.msra.mxu0 %v3387
        %3550 = vmatprep.subr.bf16.mxu0 %v3384
        %3551 = vmatpush2.bf16.msra.mxu0 %v3383
        %3552 = vmatprep.mubr.bf16.mxu0 %v3070
        %3553 = vmatmul.mubr.bf16.gmra.mxu0 %v3069
        %v3554 = vpop.f32.mrf.mxu0
        %v3555 = vadd.f32 %v3148, %v3554
        %v3556 = vpop.f32.mrf.mxu0
        %v3557 = vadd.f32 %v3152, %v3556
        %v3558 = vpop.f32.mrf.mxu0
        %v3559 = vadd.f32 %v3148, %v3558
        %v3560 = vpop.f32.mrf.mxu0
        %v3561 = vadd.f32 %v3152, %v3560
        %3562 = vdwg.mxu0
        %v3563 = vpack.c.bf16 %v3516, %v3512
        %v3564 = vpack.c.bf16 %v3518, %v3514
        %v3565 = vpack.c.bf16 %v3559, %v3555
        %v3566 = vpack.c.bf16 %v3561, %v3557
        %v3567 = vmax.bf16 %v3563, 0
        %v3568 = vmax.bf16 %v3564, 0
        %v3569 = vmax.bf16 %v3565, 0
        %v3570 = vmax.bf16 %v3566, 0
        %v3571 = vld [vmem:[#allocation7] sm:$0xff]
        %v3572 = vld [vmem:[#allocation7 + $0x8] sm:$0xff]
        %v3573 = vld [vmem:[#allocation7 + $0x10] sm:$0xff]
        %v3574 = vld [vmem:[#allocation7 + $0x18] sm:$0xf]
        %v3575 = vld [vmem:[#allocation7 + $0x1c] sm:$0xff]
        %v3576 = vld [vmem:[#allocation7 + $0x24] sm:$0xff]
        %v3577 = vld [vmem:[#allocation7 + $0x2c] sm:$0xff]
        %v3578 = vld [vmem:[#allocation7 + $0x34] sm:$0xf]
        %v3579 = vld [vmem:[#allocation7 + $0x38] sm:$0xff]
        %v3580 = vld [vmem:[#allocation7 + $0x40] sm:$0xff]
        %v3581 = vld [vmem:[#allocation7 + $0x48] sm:$0xff]
        %v3582 = vld [vmem:[#allocation7 + $0x50] sm:$0xf]
        %v3583 = vld [vmem:[#allocation7 + $0x54] sm:$0xff]
        %v3584 = vld [vmem:[#allocation7 + $0x5c] sm:$0xff]
        %v3585 = vld [vmem:[#allocation7 + $0x64] sm:$0xff]
        %v3586 = vld [vmem:[#allocation7 + $0x6c] sm:$0xf]
        %v3587 = vld [vmem:[#allocation7 + $0x70] sm:$0xff]
        %v3588 = vld [vmem:[#allocation7 + $0x78] sm:$0xff]
        %v3589 = vld [vmem:[#allocation7 + $0x80] sm:$0xff]
        %v3590 = vld [vmem:[#allocation7 + $0x88] sm:$0xf]
        %v3591 = vld [vmem:[#allocation7 + $0x8c] sm:$0xff]
        %v3592 = vld [vmem:[#allocation7 + $0x94] sm:$0xff]
        %v3593 = vld [vmem:[#allocation7 + $0x9c] sm:$0xff]
        %v3594 = vld [vmem:[#allocation7 + $0xa4] sm:$0xf]
        %v3595 = vld [vmem:[#allocation7 + $0xa8] sm:$0xff]
        %v3596 = vld [vmem:[#allocation7 + $0xb0] sm:$0xff]
        %v3597 = vld [vmem:[#allocation7 + $0xb8] sm:$0xff]
        %v3598 = vld [vmem:[#allocation7 + $0xc0] sm:$0xf]
        %v3599 = vld [vmem:[#allocation7 + $0xc4] sm:$0xff]
        %v3600 = vld [vmem:[#allocation7 + $0xcc] sm:$0xff]
        %v3601 = vld [vmem:[#allocation7 + $0xd4] sm:$0xff]
        %v3602 = vld [vmem:[#allocation7 + $0xdc] sm:$0xf]
        %v3603 = vld [vmem:[#allocation7 + $0xe0] sm:$0xff]
        %v3604 = vld [vmem:[#allocation7 + $0xe8] sm:$0xff]
        %v3605 = vld [vmem:[#allocation7 + $0xf0] sm:$0xff]
        %v3606 = vld [vmem:[#allocation7 + $0xf8] sm:$0xf]
        %v3607 = vld [vmem:[#allocation7 + $0xfc] sm:$0xff]
        %v3608 = vld [vmem:[#allocation7 + $0x104] sm:$0xff]
        %v3609 = vld [vmem:[#allocation7 + $0x10c] sm:$0xff]
        %v3610 = vld [vmem:[#allocation7 + $0x114] sm:$0xf]
        %v3611 = vld [vmem:[#allocation7 + $0x118] sm:$0xff]
        %v3612 = vld [vmem:[#allocation7 + $0x120] sm:$0xff]
        %v3613 = vld [vmem:[#allocation7 + $0x128] sm:$0xff]
        %v3614 = vld [vmem:[#allocation7 + $0x130] sm:$0xf]
        %v3615 = vld [vmem:[#allocation7 + $0x134] sm:$0xff]
        %v3616 = vld [vmem:[#allocation7 + $0x13c] sm:$0xff]
        %v3617 = vld [vmem:[#allocation7 + $0x144] sm:$0xff]
        %v3618 = vld [vmem:[#allocation7 + $0x14c] sm:$0xf]
        %v3619 = vld [vmem:[#allocation7 + $0x150] sm:$0xff]
        %v3620 = vld [vmem:[#allocation7 + $0x158] sm:$0xff]
        %v3621 = vld [vmem:[#allocation7 + $0x160] sm:$0xff]
        %v3622 = vld [vmem:[#allocation7 + $0x168] sm:$0xf]
        %v3623 = vld [vmem:[#allocation7 + $0x16c] sm:$0xff]
        %v3624 = vld [vmem:[#allocation7 + $0x174] sm:$0xff]
        %v3625 = vld [vmem:[#allocation7 + $0x17c] sm:$0xff]
        %v3626 = vld [vmem:[#allocation7 + $0x184] sm:$0xf]
        %v3627 = vld [vmem:[#allocation7 + $0x188] sm:$0xff]
        %v3628 = vld [vmem:[#allocation7 + $0x190] sm:$0xff]
        %v3629 = vld [vmem:[#allocation7 + $0x198] sm:$0xff]
        %v3630 = vld [vmem:[#allocation7 + $0x1a0] sm:$0xf]
        %v3631 = vld [vmem:[#allocation7 + $0x1a4] sm:$0xff]
        %v3632 = vld [vmem:[#allocation7 + $0x1ac] sm:$0xff]
        %v3633 = vld [vmem:[#allocation7 + $0x1b4] sm:$0xff]
        %v3634 = vld [vmem:[#allocation7 + $0x1bc] sm:$0xf]
        %v3635 = vld [vmem:[#allocation7 + $0x1c0] sm:$0xff]
        %v3636 = vld [vmem:[#allocation7 + $0x1c8] sm:$0xff]
        %v3637 = vld [vmem:[#allocation7 + $0x1d0] sm:$0xff]
        %v3638 = vld [vmem:[#allocation7 + $0x1d8] sm:$0xf]
        %v3639 = vld [vmem:[#allocation7 + $0x1dc] sm:$0xff]
        %v3640 = vld [vmem:[#allocation7 + $0x1e4] sm:$0xff]
        %v3641 = vld [vmem:[#allocation7 + $0x1ec] sm:$0xff]
        %v3642 = vld [vmem:[#allocation7 + $0x1f4] sm:$0xf]
        %v3643 = vld [vmem:[#allocation7 + $0x1f8] sm:$0xff]
        %v3644 = vld [vmem:[#allocation7 + $0x200] sm:$0xff]
        %v3645 = vld [vmem:[#allocation7 + $0x208] sm:$0xff]
        %v3646 = vld [vmem:[#allocation7 + $0x210] sm:$0xf]
        %v3647 = vld [vmem:[#allocation7 + $0x214] sm:$0xff]
        %v3648 = vld [vmem:[#allocation7 + $0x21c] sm:$0xff]
        %v3649 = vld [vmem:[#allocation7 + $0x224] sm:$0xff]
        %v3650 = vld [vmem:[#allocation7 + $0x22c] sm:$0xf]
        %v3651 = vld [vmem:[#allocation7 + $0x230] sm:$0xff]
        %v3652 = vld [vmem:[#allocation7 + $0x238] sm:$0xff]
        %v3653 = vld [vmem:[#allocation7 + $0x240] sm:$0xff]
        %v3654 = vld [vmem:[#allocation7 + $0x248] sm:$0xf]
        %v3655 = vld [vmem:[#allocation7 + $0x24c] sm:$0xff]
        %v3656 = vld [vmem:[#allocation7 + $0x254] sm:$0xff]
        %v3657 = vld [vmem:[#allocation7 + $0x25c] sm:$0xff]
        %v3658 = vld [vmem:[#allocation7 + $0x264] sm:$0xf]
        %v3659 = vld [vmem:[#allocation7 + $0x268] sm:$0xff]
        %v3660 = vld [vmem:[#allocation7 + $0x270] sm:$0xff]
        %v3661 = vld [vmem:[#allocation7 + $0x278] sm:$0xff]
        %v3662 = vld [vmem:[#allocation7 + $0x280] sm:$0xf]
        %v3663 = vld [vmem:[#allocation7 + $0x284] sm:$0xff]
        %v3664 = vld [vmem:[#allocation7 + $0x28c] sm:$0xff]
        %v3665 = vld [vmem:[#allocation7 + $0x294] sm:$0xff]
        %v3666 = vld [vmem:[#allocation7 + $0x29c] sm:$0xf]
        %v3667 = vld [vmem:[#allocation7 + $0x2a0] sm:$0xff]
        %v3668 = vld [vmem:[#allocation7 + $0x2a8] sm:$0xff]
        %v3669 = vld [vmem:[#allocation7 + $0x2b0] sm:$0xff]
        %v3670 = vld [vmem:[#allocation7 + $0x2b8] sm:$0xf]
        %v3671 = vld [vmem:[#allocation7 + $0x2bc] sm:$0xff]
        %v3672 = vld [vmem:[#allocation7 + $0x2c4] sm:$0xff]
        %v3673 = vld [vmem:[#allocation7 + $0x2cc] sm:$0xff]
        %v3674 = vld [vmem:[#allocation7 + $0x2d4] sm:$0xf]
        %v3675 = vld [vmem:[#allocation7 + $0x2d8] sm:$0xff]
        %v3676 = vld [vmem:[#allocation7 + $0x2e0] sm:$0xff]
        %v3677 = vld [vmem:[#allocation7 + $0x2e8] sm:$0xff]
        %v3678 = vld [vmem:[#allocation7 + $0x2f0] sm:$0xf]
        %v3679 = vld [vmem:[#allocation7 + $0x2f4] sm:$0xff]
        %v3680 = vld [vmem:[#allocation7 + $0x2fc] sm:$0xff]
        %v3681 = vld [vmem:[#allocation7 + $0x304] sm:$0xff]
        %v3682 = vld [vmem:[#allocation7 + $0x30c] sm:$0xf]
        %v3683 = vld [vmem:[#allocation7 + $0x310] sm:$0xff]
        %v3684 = vld [vmem:[#allocation7 + $0x318] sm:$0xff]
        %v3685 = vld [vmem:[#allocation7 + $0x320] sm:$0xff]
        %v3686 = vld [vmem:[#allocation7 + $0x328] sm:$0xf]
        %v3687 = vld [vmem:[#allocation7 + $0x32c] sm:$0xff]
        %v3688 = vld [vmem:[#allocation7 + $0x334] sm:$0xff]
        %v3689 = vld [vmem:[#allocation7 + $0x33c] sm:$0xff]
        %v3690 = vld [vmem:[#allocation7 + $0x344] sm:$0xf]
        %v3691 = vld [vmem:[#allocation7 + $0x348] sm:$0xff]
        %v3692 = vld [vmem:[#allocation7 + $0x350] sm:$0xff]
        %v3693 = vld [vmem:[#allocation7 + $0x358] sm:$0xff]
        %v3694 = vld [vmem:[#allocation7 + $0x360] sm:$0xf]
        %v3695 = vld [vmem:[#allocation7 + $0x364] sm:$0xff]
        %v3696 = vld [vmem:[#allocation7 + $0x36c] sm:$0xff]
        %v3697 = vld [vmem:[#allocation7 + $0x374] sm:$0xff]
        %v3698 = vld [vmem:[#allocation7 + $0x37c] sm:$0xf]
        %v3699 = vld [vmem:[#allocation7 + $0x380] sm:$0xff]
        %v3700 = vld [vmem:[#allocation7 + $0x388] sm:$0xff]
        %v3701 = vld [vmem:[#allocation7 + $0x390] sm:$0xff]
        %v3702 = vld [vmem:[#allocation7 + $0x398] sm:$0xf]
        %v3703 = vld [vmem:[#allocation7 + $0x39c] sm:$0xff]
        %v3704 = vld [vmem:[#allocation7 + $0x3a4] sm:$0xff]
        %v3705 = vld [vmem:[#allocation7 + $0x3ac] sm:$0xff]
        %v3706 = vld [vmem:[#allocation7 + $0x3b4] sm:$0xf]
        %v3707 = vld [vmem:[#allocation7 + $0x3b8] sm:$0xff]
        %v3708 = vld [vmem:[#allocation7 + $0x3c0] sm:$0xff]
        %v3709 = vld [vmem:[#allocation7 + $0x3c8] sm:$0xff]
        %v3710 = vld [vmem:[#allocation7 + $0x3d0] sm:$0xf]
        %v3711 = vld [vmem:[#allocation7 + $0x3d4] sm:$0xff]
        %v3712 = vld [vmem:[#allocation7 + $0x3dc] sm:$0xff]
        %v3713 = vld [vmem:[#allocation7 + $0x3e4] sm:$0xff]
        %v3714 = vld [vmem:[#allocation7 + $0x3ec] sm:$0xf]
        %v3715 = vld [vmem:[#allocation7 + $0x3f0] sm:$0xff]
        %v3716 = vld [vmem:[#allocation7 + $0x3f8] sm:$0xff]
        %v3717 = vld [vmem:[#allocation7 + $0x400] sm:$0xff]
        %v3718 = vld [vmem:[#allocation7 + $0x408] sm:$0xf]
        %v3719 = vld [vmem:[#allocation7 + $0x40c] sm:$0xff]
        %v3720 = vld [vmem:[#allocation7 + $0x414] sm:$0xff]
        %v3721 = vld [vmem:[#allocation7 + $0x41c] sm:$0xff]
        %v3722 = vld [vmem:[#allocation7 + $0x424] sm:$0xf]
        %v3723 = vld [vmem:[#allocation7 + $0x428] sm:$0xff]
        %v3724 = vld [vmem:[#allocation7 + $0x430] sm:$0xff]
        %v3725 = vld [vmem:[#allocation7 + $0x438] sm:$0xff]
        %v3726 = vld [vmem:[#allocation7 + $0x440] sm:$0xf]
        %v3727 = vld [vmem:[#allocation7 + $0x444] sm:$0xff]
        %v3728 = vld [vmem:[#allocation7 + $0x44c] sm:$0xff]
        %v3729 = vld [vmem:[#allocation7 + $0x454] sm:$0xff]
        %v3730 = vld [vmem:[#allocation7 + $0x45c] sm:$0xf]
        %v3731 = vld [vmem:[#allocation7 + $0x460] sm:$0xff]
        %v3732 = vld [vmem:[#allocation7 + $0x468] sm:$0xff]
        %v3733 = vld [vmem:[#allocation7 + $0x470] sm:$0xff]
        %v3734 = vld [vmem:[#allocation7 + $0x478] sm:$0xf]
        %v3735 = vld [vmem:[#allocation7 + $0x47c] sm:$0xff]
        %v3736 = vld [vmem:[#allocation7 + $0x484] sm:$0xff]
        %v3737 = vld [vmem:[#allocation7 + $0x48c] sm:$0xff]
        %v3738 = vld [vmem:[#allocation7 + $0x494] sm:$0xf]
        %v3739 = vld [vmem:[#allocation7 + $0x498] sm:$0xff]
        %v3740 = vld [vmem:[#allocation7 + $0x4a0] sm:$0xff]
        %v3741 = vld [vmem:[#allocation7 + $0x4a8] sm:$0xff]
        %v3742 = vld [vmem:[#allocation7 + $0x4b0] sm:$0xf]
        %v3743 = vld [vmem:[#allocation7 + $0x4b4] sm:$0xff]
        %v3744 = vld [vmem:[#allocation7 + $0x4bc] sm:$0xff]
        %v3745 = vld [vmem:[#allocation7 + $0x4c4] sm:$0xff]
        %v3746 = vld [vmem:[#allocation7 + $0x4cc] sm:$0xf]
        %v3747 = vld [vmem:[#allocation7 + $0x4d0] sm:$0xff]
        %v3748 = vld [vmem:[#allocation7 + $0x4d8] sm:$0xff]
        %v3749 = vld [vmem:[#allocation7 + $0x4e0] sm:$0xff]
        %v3750 = vld [vmem:[#allocation7 + $0x4e8] sm:$0xf]
        %v3751 = vld [vmem:[#allocation7 + $0x4ec] sm:$0xff]
        %v3752 = vld [vmem:[#allocation7 + $0x4f4] sm:$0xff]
        %v3753 = vld [vmem:[#allocation7 + $0x4fc] sm:$0xff]
        %v3754 = vld [vmem:[#allocation7 + $0x504] sm:$0xf]
        %v3755 = vld [vmem:[#allocation7 + $0x508] sm:$0xff]
        %v3756 = vld [vmem:[#allocation7 + $0x510] sm:$0xff]
        %v3757 = vld [vmem:[#allocation7 + $0x518] sm:$0xff]
        %v3758 = vld [vmem:[#allocation7 + $0x520] sm:$0xf]
        %v3759 = vld [vmem:[#allocation7 + $0x524] sm:$0xff]
        %v3760 = vld [vmem:[#allocation7 + $0x52c] sm:$0xff]
        %v3761 = vld [vmem:[#allocation7 + $0x534] sm:$0xff]
        %v3762 = vld [vmem:[#allocation7 + $0x53c] sm:$0xf]
        %v3763 = vld [vmem:[#allocation7 + $0x540] sm:$0xff]
        %v3764 = vld [vmem:[#allocation7 + $0x548] sm:$0xff]
        %v3765 = vld [vmem:[#allocation7 + $0x550] sm:$0xff]
        %v3766 = vld [vmem:[#allocation7 + $0x558] sm:$0xf]
        %v3767 = vld [vmem:[#allocation7 + $0x55c] sm:$0xff]
        %v3768 = vld [vmem:[#allocation7 + $0x564] sm:$0xff]
        %v3769 = vld [vmem:[#allocation7 + $0x56c] sm:$0xff]
        %v3770 = vld [vmem:[#allocation7 + $0x574] sm:$0xf]
        %v3771 = vld [vmem:[#allocation7 + $0x578] sm:$0xff]
        %v3772 = vld [vmem:[#allocation7 + $0x580] sm:$0xff]
        %v3773 = vld [vmem:[#allocation7 + $0x588] sm:$0xff]
        %v3774 = vld [vmem:[#allocation7 + $0x590] sm:$0xf]
        %v3775 = vld [vmem:[#allocation7 + $0x594] sm:$0xff]
        %v3776 = vld [vmem:[#allocation7 + $0x59c] sm:$0xff]
        %v3777 = vld [vmem:[#allocation7 + $0x5a4] sm:$0xff]
        %v3778 = vld [vmem:[#allocation7 + $0x5ac] sm:$0xf]
        %v3779 = vld [vmem:[#allocation7 + $0x5b0] sm:$0xff]
        %v3780 = vld [vmem:[#allocation7 + $0x5b8] sm:$0xff]
        %v3781 = vld [vmem:[#allocation7 + $0x5c0] sm:$0xff]
        %v3782 = vld [vmem:[#allocation7 + $0x5c8] sm:$0xf]
        %v3783 = vld [vmem:[#allocation7 + $0x5cc] sm:$0xff]
        %v3784 = vld [vmem:[#allocation7 + $0x5d4] sm:$0xff]
        %v3785 = vld [vmem:[#allocation7 + $0x5dc] sm:$0xff]
        %v3786 = vld [vmem:[#allocation7 + $0x5e4] sm:$0xf]
        %v3787 = vld [vmem:[#allocation7 + $0x5e8] sm:$0xff]
        %v3788 = vld [vmem:[#allocation7 + $0x5f0] sm:$0xff]
        %v3789 = vld [vmem:[#allocation7 + $0x5f8] sm:$0xff]
        %v3790 = vld [vmem:[#allocation7 + $0x600] sm:$0xf]
        %v3791 = vld [vmem:[#allocation7 + $0x604] sm:$0xff]
        %v3792 = vld [vmem:[#allocation7 + $0x60c] sm:$0xff]
        %v3793 = vld [vmem:[#allocation7 + $0x614] sm:$0xff]
        %v3794 = vld [vmem:[#allocation7 + $0x61c] sm:$0xf]
        %v3795 = vld [vmem:[#allocation7 + $0x620] sm:$0xff]
        %v3796 = vld [vmem:[#allocation7 + $0x628] sm:$0xff]
        %v3797 = vld [vmem:[#allocation7 + $0x630] sm:$0xff]
        %v3798 = vld [vmem:[#allocation7 + $0x638] sm:$0xf]
        %v3799 = vld [vmem:[#allocation7 + $0x63c] sm:$0xff]
        %v3800 = vld [vmem:[#allocation7 + $0x644] sm:$0xff]
        %v3801 = vld [vmem:[#allocation7 + $0x64c] sm:$0xff]
        %v3802 = vld [vmem:[#allocation7 + $0x654] sm:$0xf]
        %v3803 = vld [vmem:[#allocation7 + $0x658] sm:$0xff]
        %v3804 = vld [vmem:[#allocation7 + $0x660] sm:$0xff]
        %v3805 = vld [vmem:[#allocation7 + $0x668] sm:$0xff]
        %v3806 = vld [vmem:[#allocation7 + $0x670] sm:$0xf]
        %v3807 = vld [vmem:[#allocation7 + $0x674] sm:$0xff]
        %v3808 = vld [vmem:[#allocation7 + $0x67c] sm:$0xff]
        %v3809 = vld [vmem:[#allocation7 + $0x684] sm:$0xff]
        %v3810 = vld [vmem:[#allocation7 + $0x68c] sm:$0xf]
        %v3811 = vld [vmem:[#allocation7 + $0x690] sm:$0xff]
        %v3812 = vld [vmem:[#allocation7 + $0x698] sm:$0xff]
        %v3813 = vld [vmem:[#allocation7 + $0x6a0] sm:$0xff]
        %v3814 = vld [vmem:[#allocation7 + $0x6a8] sm:$0xf]
        %v3815 = vld [vmem:[#allocation7 + $0x6ac] sm:$0xff]
        %v3816 = vld [vmem:[#allocation7 + $0x6b4] sm:$0xff]
        %v3817 = vld [vmem:[#allocation7 + $0x6bc] sm:$0xff]
        %v3818 = vld [vmem:[#allocation7 + $0x6c4] sm:$0xf]
        %v3819 = vld [vmem:[#allocation7 + $0x6c8] sm:$0xff]
        %v3820 = vld [vmem:[#allocation7 + $0x6d0] sm:$0xff]
        %v3821 = vld [vmem:[#allocation7 + $0x6d8] sm:$0xff]
        %v3822 = vld [vmem:[#allocation7 + $0x6e0] sm:$0xf]
        %v3823 = vld [vmem:[#allocation7 + $0x6e4] sm:$0xff]
        %v3824 = vld [vmem:[#allocation7 + $0x6ec] sm:$0xff]
        %v3825 = vld [vmem:[#allocation7 + $0x6f4] sm:$0xff]
        %v3826 = vld [vmem:[#allocation7 + $0x6fc] sm:$0xf]
        %v3827 = vld [vmem:[%s13] sm:$0xff]
        %v3829 = vlaneseq
        %v3830 = vshrl.u32 %v3829, 7
        %v3831 = vsub.s32 0, %v3830
        %v3832 = vrot.slane %v3827, %v3831
        %v3833 = vlaneseq
        %v3834 = vshrl.u32 %v3833, 7
        %v3835 = vsub.s32 1, %v3834
        %v3836 = vrot.slane %v3827, %v3835
        %v3837 = vlaneseq
        %v3838 = vshrl.u32 %v3837, 7
        %v3839 = vsub.s32 2, %v3838
        %v3840 = vrot.slane %v3827, %v3839
        %v3841 = vlaneseq
        %v3842 = vshrl.u32 %v3841, 7
        %v3843 = vsub.s32 3, %v3842
        %v3844 = vrot.slane %v3827, %v3843
        %v3845 = vlaneseq
        %v3846 = vshrl.u32 %v3845, 7
        %v3847 = vsub.s32 4, %v3846
        %v3848 = vrot.slane %v3827, %v3847
        %v3849 = vlaneseq
        %v3850 = vshrl.u32 %v3849, 7
        %v3851 = vsub.s32 5, %v3850
        %v3852 = vrot.slane %v3827, %v3851
        %v3853 = vlaneseq
        %v3854 = vshrl.u32 %v3853, 7
        %v3855 = vsub.s32 6, %v3854
        %v3856 = vrot.slane %v3827, %v3855
        %v4120 = vunpack.c.l.b16 %v3571
        %v4121 = vunpack.c.h.b16 %v3571
        %v4122 = vunpack.c.l.b16 %v3572
        %v4123 = vunpack.c.h.b16 %v3572
        %v4124 = vunpack.c.l.b16 %v3573
        %v4125 = vunpack.c.h.b16 %v3573
        %v4126 = vunpack.c.l.b16 %v3574
        %v4127 = vunpack.c.l.b16 %v3575
        %v4128 = vunpack.c.h.b16 %v3575
        %v4129 = vunpack.c.l.b16 %v3576
        %v4130 = vunpack.c.h.b16 %v3576
        %v4131 = vunpack.c.l.b16 %v3577
        %v4132 = vunpack.c.h.b16 %v3577
        %v4133 = vunpack.c.l.b16 %v3578
        %v4134 = vunpack.c.l.b16 %v3579
        %v4135 = vunpack.c.h.b16 %v3579
        %v4136 = vunpack.c.l.b16 %v3580
        %v4137 = vunpack.c.h.b16 %v3580
        %v4138 = vunpack.c.l.b16 %v3581
        %v4139 = vunpack.c.h.b16 %v3581
        %v4140 = vunpack.c.l.b16 %v3582
        %v4141 = vunpack.c.l.b16 %v3583
        %v4142 = vunpack.c.h.b16 %v3583
        %v4143 = vunpack.c.l.b16 %v3584
        %v4144 = vunpack.c.h.b16 %v3584
        %v4145 = vunpack.c.l.b16 %v3585
        %v4146 = vunpack.c.h.b16 %v3585
        %v4147 = vunpack.c.l.b16 %v3586
        %v4148 = vunpack.c.l.b16 %v3587
        %v4149 = vunpack.c.h.b16 %v3587
        %v4150 = vunpack.c.l.b16 %v3588
        %v4151 = vunpack.c.h.b16 %v3588
        %v4152 = vunpack.c.l.b16 %v3589
        %v4153 = vunpack.c.h.b16 %v3589
        %v4154 = vunpack.c.l.b16 %v3590
        %v4155 = vunpack.c.l.b16 %v3591
        %v4156 = vunpack.c.h.b16 %v3591
        %v4157 = vunpack.c.l.b16 %v3592
        %v4158 = vunpack.c.h.b16 %v3592
        %v4159 = vunpack.c.l.b16 %v3593
        %v4160 = vunpack.c.h.b16 %v3593
        %v4161 = vunpack.c.l.b16 %v3594
        %v4162 = vunpack.c.l.b16 %v3595
        %v4163 = vunpack.c.h.b16 %v3595
        %v4164 = vunpack.c.l.b16 %v3596
        %v4165 = vunpack.c.h.b16 %v3596
        %v4166 = vunpack.c.l.b16 %v3597
        %v4167 = vunpack.c.h.b16 %v3597
        %v4168 = vunpack.c.l.b16 %v3598
        %v4169 = vunpack.c.l.b16 %v3599
        %v4170 = vunpack.c.h.b16 %v3599
        %v4171 = vunpack.c.l.b16 %v3600
        %v4172 = vunpack.c.h.b16 %v3600
        %v4173 = vunpack.c.l.b16 %v3601
        %v4174 = vunpack.c.h.b16 %v3601
        %v4175 = vunpack.c.l.b16 %v3602
        %v4176 = vunpack.c.l.b16 %v3603
        %v4177 = vunpack.c.h.b16 %v3603
        %v4178 = vunpack.c.l.b16 %v3604
        %v4179 = vunpack.c.h.b16 %v3604
        %v4180 = vunpack.c.l.b16 %v3605
        %v4181 = vunpack.c.h.b16 %v3605
        %v4182 = vunpack.c.l.b16 %v3606
        %v4183 = vunpack.c.l.b16 %v3607
        %v4184 = vunpack.c.h.b16 %v3607
        %v4185 = vunpack.c.l.b16 %v3608
        %v4186 = vunpack.c.h.b16 %v3608
        %v4187 = vunpack.c.l.b16 %v3609
        %v4188 = vunpack.c.h.b16 %v3609
        %v4189 = vunpack.c.l.b16 %v3610
        %v4190 = vunpack.c.l.b16 %v3611
        %v4191 = vunpack.c.h.b16 %v3611
        %v4192 = vunpack.c.l.b16 %v3612
        %v4193 = vunpack.c.h.b16 %v3612
        %v4194 = vunpack.c.l.b16 %v3613
        %v4195 = vunpack.c.h.b16 %v3613
        %v4196 = vunpack.c.l.b16 %v3614
        %v4197 = vunpack.c.l.b16 %v3615
        %v4198 = vunpack.c.h.b16 %v3615
        %v4199 = vunpack.c.l.b16 %v3616
        %v4200 = vunpack.c.h.b16 %v3616
        %v4201 = vunpack.c.l.b16 %v3617
        %v4202 = vunpack.c.h.b16 %v3617
        %v4203 = vunpack.c.l.b16 %v3618
        %v4204 = vunpack.c.l.b16 %v3619
        %v4205 = vunpack.c.h.b16 %v3619
        %v4206 = vunpack.c.l.b16 %v3620
        %v4207 = vunpack.c.h.b16 %v3620
        %v4208 = vunpack.c.l.b16 %v3621
        %v4209 = vunpack.c.h.b16 %v3621
        %v4210 = vunpack.c.l.b16 %v3622
        %v4211 = vunpack.c.l.b16 %v3623
        %v4212 = vunpack.c.h.b16 %v3623
        %v4213 = vunpack.c.l.b16 %v3624
        %v4214 = vunpack.c.h.b16 %v3624
        %v4215 = vunpack.c.l.b16 %v3625
        %v4216 = vunpack.c.h.b16 %v3625
        %v4217 = vunpack.c.l.b16 %v3626
        %v4218 = vunpack.c.l.b16 %v3627
        %v4219 = vunpack.c.h.b16 %v3627
        %v4220 = vunpack.c.l.b16 %v3628
        %v4221 = vunpack.c.h.b16 %v3628
        %v4222 = vunpack.c.l.b16 %v3629
        %v4223 = vunpack.c.h.b16 %v3629
        %v4224 = vunpack.c.l.b16 %v3630
        %v4225 = vunpack.c.l.b16 %v3631
        %v4226 = vunpack.c.h.b16 %v3631
        %v4227 = vunpack.c.l.b16 %v3632
        %v4228 = vunpack.c.h.b16 %v3632
        %v4229 = vunpack.c.l.b16 %v3633
        %v4230 = vunpack.c.h.b16 %v3633
        %v4231 = vunpack.c.l.b16 %v3634
        %v4232 = vunpack.c.l.b16 %v3635
        %v4233 = vunpack.c.h.b16 %v3635
        %v4234 = vunpack.c.l.b16 %v3636
        %v4235 = vunpack.c.h.b16 %v3636
        %v4236 = vunpack.c.l.b16 %v3637
        %v4237 = vunpack.c.h.b16 %v3637
        %v4238 = vunpack.c.l.b16 %v3638
        %v4239 = vunpack.c.l.b16 %v3639
        %v4240 = vunpack.c.h.b16 %v3639
        %v4241 = vunpack.c.l.b16 %v3640
        %v4242 = vunpack.c.h.b16 %v3640
        %v4243 = vunpack.c.l.b16 %v3641
        %v4244 = vunpack.c.h.b16 %v3641
        %v4245 = vunpack.c.l.b16 %v3642
        %v4246 = vunpack.c.l.b16 %v3643
        %v4247 = vunpack.c.h.b16 %v3643
        %v4248 = vunpack.c.l.b16 %v3644
        %v4249 = vunpack.c.h.b16 %v3644
        %v4250 = vunpack.c.l.b16 %v3645
        %v4251 = vunpack.c.h.b16 %v3645
        %v4252 = vunpack.c.l.b16 %v3646
        %v4253 = vunpack.c.l.b16 %v3647
        %v4254 = vunpack.c.h.b16 %v3647
        %v4255 = vunpack.c.l.b16 %v3648
        %v4256 = vunpack.c.h.b16 %v3648
        %v4257 = vunpack.c.l.b16 %v3649
        %v4258 = vunpack.c.h.b16 %v3649
        %v4259 = vunpack.c.l.b16 %v3650
        %v4260 = vunpack.c.l.b16 %v3651
        %v4261 = vunpack.c.h.b16 %v3651
        %v4262 = vunpack.c.l.b16 %v3652
        %v4263 = vunpack.c.h.b16 %v3652
        %v4264 = vunpack.c.l.b16 %v3653
        %v4265 = vunpack.c.h.b16 %v3653
        %v4266 = vunpack.c.l.b16 %v3654
        %v4267 = vunpack.c.l.b16 %v3655
        %v4268 = vunpack.c.h.b16 %v3655
        %v4269 = vunpack.c.l.b16 %v3656
        %v4270 = vunpack.c.h.b16 %v3656
        %v4271 = vunpack.c.l.b16 %v3657
        %v4272 = vunpack.c.h.b16 %v3657
        %v4273 = vunpack.c.l.b16 %v3658
        %v4274 = vunpack.c.l.b16 %v3659
        %v4275 = vunpack.c.h.b16 %v3659
        %v4276 = vunpack.c.l.b16 %v3660
        %v4277 = vunpack.c.h.b16 %v3660
        %v4278 = vunpack.c.l.b16 %v3661
        %v4279 = vunpack.c.h.b16 %v3661
        %v4280 = vunpack.c.l.b16 %v3662
        %v4281 = vunpack.c.l.b16 %v3663
        %v4282 = vunpack.c.h.b16 %v3663
        %v4283 = vunpack.c.l.b16 %v3664
        %v4284 = vunpack.c.h.b16 %v3664
        %v4285 = vunpack.c.l.b16 %v3665
        %v4286 = vunpack.c.h.b16 %v3665
        %v4287 = vunpack.c.l.b16 %v3666
        %v4288 = vunpack.c.l.b16 %v3667
        %v4289 = vunpack.c.h.b16 %v3667
        %v4290 = vunpack.c.l.b16 %v3668
        %v4291 = vunpack.c.h.b16 %v3668
        %v4292 = vunpack.c.l.b16 %v3669
        %v4293 = vunpack.c.h.b16 %v3669
        %v4294 = vunpack.c.l.b16 %v3670
        %v4295 = vunpack.c.l.b16 %v3671
        %v4296 = vunpack.c.h.b16 %v3671
        %v4297 = vunpack.c.l.b16 %v3672
        %v4298 = vunpack.c.h.b16 %v3672
        %v4299 = vunpack.c.l.b16 %v3673
        %v4300 = vunpack.c.h.b16 %v3673
        %v4301 = vunpack.c.l.b16 %v3674
        %v4302 = vunpack.c.l.b16 %v3675
        %v4303 = vunpack.c.h.b16 %v3675
        %v4304 = vunpack.c.l.b16 %v3676
        %v4305 = vunpack.c.h.b16 %v3676
        %v4306 = vunpack.c.l.b16 %v3677
        %v4307 = vunpack.c.h.b16 %v3677
        %v4308 = vunpack.c.l.b16 %v3678
        %v4309 = vunpack.c.l.b16 %v3679
        %v4310 = vunpack.c.h.b16 %v3679
        %v4311 = vunpack.c.l.b16 %v3680
        %v4312 = vunpack.c.h.b16 %v3680
        %v4313 = vunpack.c.l.b16 %v3681
        %v4314 = vunpack.c.h.b16 %v3681
        %v4315 = vunpack.c.l.b16 %v3682
        %v4316 = vunpack.c.l.b16 %v3683
        %v4317 = vunpack.c.h.b16 %v3683
        %v4318 = vunpack.c.l.b16 %v3684
        %v4319 = vunpack.c.h.b16 %v3684
        %v4320 = vunpack.c.l.b16 %v3685
        %v4321 = vunpack.c.h.b16 %v3685
        %v4322 = vunpack.c.l.b16 %v3686
        %v4323 = vunpack.c.l.b16 %v3687
        %v4324 = vunpack.c.h.b16 %v3687
        %v4325 = vunpack.c.l.b16 %v3688
        %v4326 = vunpack.c.h.b16 %v3688
        %v4327 = vunpack.c.l.b16 %v3689
        %v4328 = vunpack.c.h.b16 %v3689
        %v4329 = vunpack.c.l.b16 %v3690
        %v4330 = vunpack.c.l.b16 %v3691
        %v4331 = vunpack.c.h.b16 %v3691
        %v4332 = vunpack.c.l.b16 %v3692
        %v4333 = vunpack.c.h.b16 %v3692
        %v4334 = vunpack.c.l.b16 %v3693
        %v4335 = vunpack.c.h.b16 %v3693
        %v4336 = vunpack.c.l.b16 %v3694
        %v4337 = vunpack.c.l.b16 %v3695
        %v4338 = vunpack.c.h.b16 %v3695
        %v4339 = vunpack.c.l.b16 %v3696
        %v4340 = vunpack.c.h.b16 %v3696
        %v4341 = vunpack.c.l.b16 %v3697
        %v4342 = vunpack.c.h.b16 %v3697
        %v4343 = vunpack.c.l.b16 %v3698
        %v4344 = vunpack.c.l.b16 %v3699
        %v4345 = vunpack.c.h.b16 %v3699
        %v4346 = vunpack.c.l.b16 %v3700
        %v4347 = vunpack.c.h.b16 %v3700
        %v4348 = vunpack.c.l.b16 %v3701
        %v4349 = vunpack.c.h.b16 %v3701
        %v4350 = vunpack.c.l.b16 %v3702
        %v4351 = vunpack.c.l.b16 %v3703
        %v4352 = vunpack.c.h.b16 %v3703
        %v4353 = vunpack.c.l.b16 %v3704
        %v4354 = vunpack.c.h.b16 %v3704
        %v4355 = vunpack.c.l.b16 %v3705
        %v4356 = vunpack.c.h.b16 %v3705
        %v4357 = vunpack.c.l.b16 %v3706
        %v4358 = vunpack.c.l.b16 %v3707
        %v4359 = vunpack.c.h.b16 %v3707
        %v4360 = vunpack.c.l.b16 %v3708
        %v4361 = vunpack.c.h.b16 %v3708
        %v4362 = vunpack.c.l.b16 %v3709
        %v4363 = vunpack.c.h.b16 %v3709
        %v4364 = vunpack.c.l.b16 %v3710
        %v4365 = vunpack.c.l.b16 %v3711
        %v4366 = vunpack.c.h.b16 %v3711
        %v4367 = vunpack.c.l.b16 %v3712
        %v4368 = vunpack.c.h.b16 %v3712
        %v4369 = vunpack.c.l.b16 %v3713
        %v4370 = vunpack.c.h.b16 %v3713
        %v4371 = vunpack.c.l.b16 %v3714
        %v4372 = vunpack.c.l.b16 %v3715
        %v4373 = vunpack.c.h.b16 %v3715
        %v4374 = vunpack.c.l.b16 %v3716
        %v4375 = vunpack.c.h.b16 %v3716
        %v4376 = vunpack.c.l.b16 %v3717
        %v4377 = vunpack.c.h.b16 %v3717
        %v4378 = vunpack.c.l.b16 %v3718
        %v4379 = vunpack.c.l.b16 %v3719
        %v4380 = vunpack.c.h.b16 %v3719
        %v4381 = vunpack.c.l.b16 %v3720
        %v4382 = vunpack.c.h.b16 %v3720
        %v4383 = vunpack.c.l.b16 %v3721
        %v4384 = vunpack.c.h.b16 %v3721
        %v4385 = vunpack.c.l.b16 %v3722
        %v4386 = vunpack.c.l.b16 %v3723
        %v4387 = vunpack.c.h.b16 %v3723
        %v4388 = vunpack.c.l.b16 %v3724
        %v4389 = vunpack.c.h.b16 %v3724
        %v4390 = vunpack.c.l.b16 %v3725
        %v4391 = vunpack.c.h.b16 %v3725
        %v4392 = vunpack.c.l.b16 %v3726
        %v4393 = vunpack.c.l.b16 %v3727
        %v4394 = vunpack.c.h.b16 %v3727
        %v4395 = vunpack.c.l.b16 %v3728
        %v4396 = vunpack.c.h.b16 %v3728
        %v4397 = vunpack.c.l.b16 %v3729
        %v4398 = vunpack.c.h.b16 %v3729
        %v4399 = vunpack.c.l.b16 %v3730
        %v4400 = vunpack.c.l.b16 %v3731
        %v4401 = vunpack.c.h.b16 %v3731
        %v4402 = vunpack.c.l.b16 %v3732
        %v4403 = vunpack.c.h.b16 %v3732
        %v4404 = vunpack.c.l.b16 %v3733
        %v4405 = vunpack.c.h.b16 %v3733
        %v4406 = vunpack.c.l.b16 %v3734
        %v4407 = vunpack.c.l.b16 %v3735
        %v4408 = vunpack.c.h.b16 %v3735
        %v4409 = vunpack.c.l.b16 %v3736
        %v4410 = vunpack.c.h.b16 %v3736
        %v4411 = vunpack.c.l.b16 %v3737
        %v4412 = vunpack.c.h.b16 %v3737
        %v4413 = vunpack.c.l.b16 %v3738
        %v4414 = vunpack.c.l.b16 %v3739
        %v4415 = vunpack.c.h.b16 %v3739
        %v4416 = vunpack.c.l.b16 %v3740
        %v4417 = vunpack.c.h.b16 %v3740
        %v4418 = vunpack.c.l.b16 %v3741
        %v4419 = vunpack.c.h.b16 %v3741
        %v4420 = vunpack.c.l.b16 %v3742
        %v4421 = vunpack.c.l.b16 %v3743
        %v4422 = vunpack.c.h.b16 %v3743
        %v4423 = vunpack.c.l.b16 %v3744
        %v4424 = vunpack.c.h.b16 %v3744
        %v4425 = vunpack.c.l.b16 %v3745
        %v4426 = vunpack.c.h.b16 %v3745
        %v4427 = vunpack.c.l.b16 %v3746
        %v4428 = vunpack.c.l.b16 %v3747
        %v4429 = vunpack.c.h.b16 %v3747
        %v4430 = vunpack.c.l.b16 %v3748
        %v4431 = vunpack.c.h.b16 %v3748
        %v4432 = vunpack.c.l.b16 %v3749
        %v4433 = vunpack.c.h.b16 %v3749
        %v4434 = vunpack.c.l.b16 %v3750
        %v4435 = vunpack.c.l.b16 %v3751
        %v4436 = vunpack.c.h.b16 %v3751
        %v4437 = vunpack.c.l.b16 %v3752
        %v4438 = vunpack.c.h.b16 %v3752
        %v4439 = vunpack.c.l.b16 %v3753
        %v4440 = vunpack.c.h.b16 %v3753
        %v4441 = vunpack.c.l.b16 %v3754
        %v4442 = vunpack.c.l.b16 %v3755
        %v4443 = vunpack.c.h.b16 %v3755
        %v4444 = vunpack.c.l.b16 %v3756
        %v4445 = vunpack.c.h.b16 %v3756
        %v4446 = vunpack.c.l.b16 %v3757
        %v4447 = vunpack.c.h.b16 %v3757
        %v4448 = vunpack.c.l.b16 %v3758
        %v4449 = vunpack.c.l.b16 %v3759
        %v4450 = vunpack.c.h.b16 %v3759
        %v4451 = vunpack.c.l.b16 %v3760
        %v4452 = vunpack.c.h.b16 %v3760
        %v4453 = vunpack.c.l.b16 %v3761
        %v4454 = vunpack.c.h.b16 %v3761
        %v4455 = vunpack.c.l.b16 %v3762
        %v4456 = vunpack.c.l.b16 %v3763
        %v4457 = vunpack.c.h.b16 %v3763
        %v4458 = vunpack.c.l.b16 %v3764
        %v4459 = vunpack.c.h.b16 %v3764
        %v4460 = vunpack.c.l.b16 %v3765
        %v4461 = vunpack.c.h.b16 %v3765
        %v4462 = vunpack.c.l.b16 %v3766
        %v4463 = vunpack.c.l.b16 %v3767
        %v4464 = vunpack.c.h.b16 %v3767
        %v4465 = vunpack.c.l.b16 %v3768
        %v4466 = vunpack.c.h.b16 %v3768
        %v4467 = vunpack.c.l.b16 %v3769
        %v4468 = vunpack.c.h.b16 %v3769
        %v4469 = vunpack.c.l.b16 %v3770
        %v4470 = vunpack.c.l.b16 %v3771
        %v4471 = vunpack.c.h.b16 %v3771
        %v4472 = vunpack.c.l.b16 %v3772
        %v4473 = vunpack.c.h.b16 %v3772
        %v4474 = vunpack.c.l.b16 %v3773
        %v4475 = vunpack.c.h.b16 %v3773
        %v4476 = vunpack.c.l.b16 %v3774
        %v4477 = vunpack.c.l.b16 %v3775
        %v4478 = vunpack.c.h.b16 %v3775
        %v4479 = vunpack.c.l.b16 %v3776
        %v4480 = vunpack.c.h.b16 %v3776
        %v4481 = vunpack.c.l.b16 %v3777
        %v4482 = vunpack.c.h.b16 %v3777
        %v4483 = vunpack.c.l.b16 %v3778
        %v4484 = vunpack.c.l.b16 %v3779
        %v4485 = vunpack.c.h.b16 %v3779
        %v4486 = vunpack.c.l.b16 %v3780
        %v4487 = vunpack.c.h.b16 %v3780
        %v4488 = vunpack.c.l.b16 %v3781
        %v4489 = vunpack.c.h.b16 %v3781
        %v4490 = vunpack.c.l.b16 %v3782
        %v4491 = vunpack.c.l.b16 %v3783
        %v4492 = vunpack.c.h.b16 %v3783
        %v4493 = vunpack.c.l.b16 %v3784
        %v4494 = vunpack.c.h.b16 %v3784
        %v4495 = vunpack.c.l.b16 %v3785
        %v4496 = vunpack.c.h.b16 %v3785
        %v4497 = vunpack.c.l.b16 %v3786
        %v4498 = vunpack.c.l.b16 %v3787
        %v4499 = vunpack.c.h.b16 %v3787
        %v4500 = vunpack.c.l.b16 %v3788
        %v4501 = vunpack.c.h.b16 %v3788
        %v4502 = vunpack.c.l.b16 %v3789
        %v4503 = vunpack.c.h.b16 %v3789
        %v4504 = vunpack.c.l.b16 %v3790
        %v4505 = vunpack.c.l.b16 %v3791
        %v4506 = vunpack.c.h.b16 %v3791
        %v4507 = vunpack.c.l.b16 %v3792
        %v4508 = vunpack.c.h.b16 %v3792
        %v4509 = vunpack.c.l.b16 %v3793
        %v4510 = vunpack.c.h.b16 %v3793
        %v4511 = vunpack.c.l.b16 %v3794
        %v4512 = vunpack.c.l.b16 %v3795
        %v4513 = vunpack.c.h.b16 %v3795
        %v4514 = vunpack.c.l.b16 %v3796
        %v4515 = vunpack.c.h.b16 %v3796
        %v4516 = vunpack.c.l.b16 %v3797
        %v4517 = vunpack.c.h.b16 %v3797
        %v4518 = vunpack.c.l.b16 %v3798
        %v4519 = vunpack.c.l.b16 %v3799
        %v4520 = vunpack.c.h.b16 %v3799
        %v4521 = vunpack.c.l.b16 %v3800
        %v4522 = vunpack.c.h.b16 %v3800
        %v4523 = vunpack.c.l.b16 %v3801
        %v4524 = vunpack.c.h.b16 %v3801
        %v4525 = vunpack.c.l.b16 %v3802
        %v4526 = vunpack.c.l.b16 %v3803
        %v4527 = vunpack.c.h.b16 %v3803
        %v4528 = vunpack.c.l.b16 %v3804
        %v4529 = vunpack.c.h.b16 %v3804
        %v4530 = vunpack.c.l.b16 %v3805
        %v4531 = vunpack.c.h.b16 %v3805
        %v4532 = vunpack.c.l.b16 %v3806
        %v4533 = vunpack.c.l.b16 %v3807
        %v4534 = vunpack.c.h.b16 %v3807
        %v4535 = vunpack.c.l.b16 %v3808
        %v4536 = vunpack.c.h.b16 %v3808
        %v4537 = vunpack.c.l.b16 %v3809
        %v4538 = vunpack.c.h.b16 %v3809
        %v4539 = vunpack.c.l.b16 %v3810
        %v4540 = vunpack.c.l.b16 %v3811
        %v4541 = vunpack.c.h.b16 %v3811
        %v4542 = vunpack.c.l.b16 %v3812
        %v4543 = vunpack.c.h.b16 %v3812
        %v4544 = vunpack.c.l.b16 %v3813
        %v4545 = vunpack.c.h.b16 %v3813
        %v4546 = vunpack.c.l.b16 %v3814
        %v4547 = vunpack.c.l.b16 %v3815
        %v4548 = vunpack.c.h.b16 %v3815
        %v4549 = vunpack.c.l.b16 %v3816
        %v4550 = vunpack.c.h.b16 %v3816
        %v4551 = vunpack.c.l.b16 %v3817
        %v4552 = vunpack.c.h.b16 %v3817
        %v4553 = vunpack.c.l.b16 %v3818
        %v4554 = vunpack.c.l.b16 %v3819
        %v4555 = vunpack.c.h.b16 %v3819
        %v4556 = vunpack.c.l.b16 %v3820
        %v4557 = vunpack.c.h.b16 %v3820
        %v4558 = vunpack.c.l.b16 %v3821
        %v4559 = vunpack.c.h.b16 %v3821
        %v4560 = vunpack.c.l.b16 %v3822
        %v4561 = vunpack.c.l.b16 %v3823
        %v4562 = vunpack.c.h.b16 %v3823
        %v4563 = vunpack.c.l.b16 %v3824
        %v4564 = vunpack.c.h.b16 %v3824
        %v4565 = vunpack.c.l.b16 %v3825
        %v4566 = vunpack.c.h.b16 %v3825
        %v4567 = vunpack.c.l.b16 %v3826
        %v4568 = vpack.c.b16 %v4127, %v4120
        %v4569 = vpack.c.b16 %v4128, %v4121
        %v4570 = vpack.c.b16 %v4129, %v4122
        %v4571 = vpack.c.b16 %v4130, %v4123
        %v4572 = vpack.c.b16 %v4131, %v4124
        %v4573 = vpack.c.b16 %v4132, %v4125
        %v4574 = vpack.c.b16 %v4133, %v4126
        %v4575 = vpack.c.b16 %v4141, %v4134
        %v4576 = vpack.c.b16 %v4142, %v4135
        %v4577 = vpack.c.b16 %v4143, %v4136
        %v4578 = vpack.c.b16 %v4144, %v4137
        %v4579 = vpack.c.b16 %v4145, %v4138
        %v4580 = vpack.c.b16 %v4146, %v4139
        %v4581 = vpack.c.b16 %v4147, %v4140
        %v4582 = vpack.c.b16 %v4155, %v4148
        %v4583 = vpack.c.b16 %v4156, %v4149
        %v4584 = vpack.c.b16 %v4157, %v4150
        %v4585 = vpack.c.b16 %v4158, %v4151
        %v4586 = vpack.c.b16 %v4159, %v4152
        %v4587 = vpack.c.b16 %v4160, %v4153
        %v4588 = vpack.c.b16 %v4161, %v4154
        %v4589 = vpack.c.b16 %v4169, %v4162
        %v4590 = vpack.c.b16 %v4170, %v4163
        %v4591 = vpack.c.b16 %v4171, %v4164
        %v4592 = vpack.c.b16 %v4172, %v4165
        %v4593 = vpack.c.b16 %v4173, %v4166
        %v4594 = vpack.c.b16 %v4174, %v4167
        %v4595 = vpack.c.b16 %v4175, %v4168
        %v4596 = vpack.c.b16 %v4183, %v4176
        %v4597 = vpack.c.b16 %v4184, %v4177
        %v4598 = vpack.c.b16 %v4185, %v4178
        %v4599 = vpack.c.b16 %v4186, %v4179
        %v4600 = vpack.c.b16 %v4187, %v4180
        %v4601 = vpack.c.b16 %v4188, %v4181
        %v4602 = vpack.c.b16 %v4189, %v4182
        %v4603 = vpack.c.b16 %v4197, %v4190
        %v4604 = vpack.c.b16 %v4198, %v4191
        %v4605 = vpack.c.b16 %v4199, %v4192
        %v4606 = vpack.c.b16 %v4200, %v4193
        %v4607 = vpack.c.b16 %v4201, %v4194
        %v4608 = vpack.c.b16 %v4202, %v4195
        %v4609 = vpack.c.b16 %v4203, %v4196
        %v4610 = vpack.c.b16 %v4211, %v4204
        %v4611 = vpack.c.b16 %v4212, %v4205
        %v4612 = vpack.c.b16 %v4213, %v4206
        %v4613 = vpack.c.b16 %v4214, %v4207
        %v4614 = vpack.c.b16 %v4215, %v4208
        %v4615 = vpack.c.b16 %v4216, %v4209
        %v4616 = vpack.c.b16 %v4217, %v4210
        %v4617 = vpack.c.b16 %v4225, %v4218
        %v4618 = vpack.c.b16 %v4226, %v4219
        %v4619 = vpack.c.b16 %v4227, %v4220
        %v4620 = vpack.c.b16 %v4228, %v4221
        %v4621 = vpack.c.b16 %v4229, %v4222
        %v4622 = vpack.c.b16 %v4230, %v4223
        %v4623 = vpack.c.b16 %v4231, %v4224
        %v4624 = vpack.c.b16 %v4239, %v4232
        %v4625 = vpack.c.b16 %v4240, %v4233
        %v4626 = vpack.c.b16 %v4241, %v4234
        %v4627 = vpack.c.b16 %v4242, %v4235
        %v4628 = vpack.c.b16 %v4243, %v4236
        %v4629 = vpack.c.b16 %v4244, %v4237
        %v4630 = vpack.c.b16 %v4245, %v4238
        %v4631 = vpack.c.b16 %v4253, %v4246
        %v4632 = vpack.c.b16 %v4254, %v4247
        %v4633 = vpack.c.b16 %v4255, %v4248
        %v4634 = vpack.c.b16 %v4256, %v4249
        %v4635 = vpack.c.b16 %v4257, %v4250
        %v4636 = vpack.c.b16 %v4258, %v4251
        %v4637 = vpack.c.b16 %v4259, %v4252
        %v4638 = vpack.c.b16 %v4267, %v4260
        %v4639 = vpack.c.b16 %v4268, %v4261
        %v4640 = vpack.c.b16 %v4269, %v4262
        %v4641 = vpack.c.b16 %v4270, %v4263
        %v4642 = vpack.c.b16 %v4271, %v4264
        %v4643 = vpack.c.b16 %v4272, %v4265
        %v4644 = vpack.c.b16 %v4273, %v4266
        %v4645 = vpack.c.b16 %v4281, %v4274
        %v4646 = vpack.c.b16 %v4282, %v4275
        %v4647 = vpack.c.b16 %v4283, %v4276
        %v4648 = vpack.c.b16 %v4284, %v4277
        %v4649 = vpack.c.b16 %v4285, %v4278
        %v4650 = vpack.c.b16 %v4286, %v4279
        %v4651 = vpack.c.b16 %v4287, %v4280
        %v4652 = vpack.c.b16 %v4295, %v4288
        %v4653 = vpack.c.b16 %v4296, %v4289
        %v4654 = vpack.c.b16 %v4297, %v4290
        %v4655 = vpack.c.b16 %v4298, %v4291
        %v4656 = vpack.c.b16 %v4299, %v4292
        %v4657 = vpack.c.b16 %v4300, %v4293
        %v4658 = vpack.c.b16 %v4301, %v4294
        %v4659 = vpack.c.b16 %v4309, %v4302
        %v4660 = vpack.c.b16 %v4310, %v4303
        %v4661 = vpack.c.b16 %v4311, %v4304
        %v4662 = vpack.c.b16 %v4312, %v4305
        %v4663 = vpack.c.b16 %v4313, %v4306
        %v4664 = vpack.c.b16 %v4314, %v4307
        %v4665 = vpack.c.b16 %v4315, %v4308
        %v4666 = vpack.c.b16 %v4323, %v4316
        %v4667 = vpack.c.b16 %v4324, %v4317
        %v4668 = vpack.c.b16 %v4325, %v4318
        %v4669 = vpack.c.b16 %v4326, %v4319
        %v4670 = vpack.c.b16 %v4327, %v4320
        %v4671 = vpack.c.b16 %v4328, %v4321
        %v4672 = vpack.c.b16 %v4329, %v4322
        %v4673 = vpack.c.b16 %v4337, %v4330
        %v4674 = vpack.c.b16 %v4338, %v4331
        %v4675 = vpack.c.b16 %v4339, %v4332
        %v4676 = vpack.c.b16 %v4340, %v4333
        %v4677 = vpack.c.b16 %v4341, %v4334
        %v4678 = vpack.c.b16 %v4342, %v4335
        %v4679 = vpack.c.b16 %v4343, %v4336
        %v4680 = vpack.c.b16 %v4351, %v4344
        %v4681 = vpack.c.b16 %v4352, %v4345
        %v4682 = vpack.c.b16 %v4353, %v4346
        %v4683 = vpack.c.b16 %v4354, %v4347
        %v4684 = vpack.c.b16 %v4355, %v4348
        %v4685 = vpack.c.b16 %v4356, %v4349
        %v4686 = vpack.c.b16 %v4357, %v4350
        %v4687 = vpack.c.b16 %v4365, %v4358
        %v4688 = vpack.c.b16 %v4366, %v4359
        %v4689 = vpack.c.b16 %v4367, %v4360
        %v4690 = vpack.c.b16 %v4368, %v4361
        %v4691 = vpack.c.b16 %v4369, %v4362
        %v4692 = vpack.c.b16 %v4370, %v4363
        %v4693 = vpack.c.b16 %v4371, %v4364
        %v4694 = vpack.c.b16 %v4379, %v4372
        %v4695 = vpack.c.b16 %v4380, %v4373
        %v4696 = vpack.c.b16 %v4381, %v4374
        %v4697 = vpack.c.b16 %v4382, %v4375
        %v4698 = vpack.c.b16 %v4383, %v4376
        %v4699 = vpack.c.b16 %v4384, %v4377
        %v4700 = vpack.c.b16 %v4385, %v4378
        %v4701 = vpack.c.b16 %v4393, %v4386
        %v4702 = vpack.c.b16 %v4394, %v4387
        %v4703 = vpack.c.b16 %v4395, %v4388
        %v4704 = vpack.c.b16 %v4396, %v4389
        %v4705 = vpack.c.b16 %v4397, %v4390
        %v4706 = vpack.c.b16 %v4398, %v4391
        %v4707 = vpack.c.b16 %v4399, %v4392
        %v4708 = vpack.c.b16 %v4407, %v4400
        %v4709 = vpack.c.b16 %v4408, %v4401
        %v4710 = vpack.c.b16 %v4409, %v4402
        %v4711 = vpack.c.b16 %v4410, %v4403
        %v4712 = vpack.c.b16 %v4411, %v4404
        %v4713 = vpack.c.b16 %v4412, %v4405
        %v4714 = vpack.c.b16 %v4413, %v4406
        %v4715 = vpack.c.b16 %v4421, %v4414
        %v4716 = vpack.c.b16 %v4422, %v4415
        %v4717 = vpack.c.b16 %v4423, %v4416
        %v4718 = vpack.c.b16 %v4424, %v4417
        %v4719 = vpack.c.b16 %v4425, %v4418
        %v4720 = vpack.c.b16 %v4426, %v4419
        %v4721 = vpack.c.b16 %v4427, %v4420
        %v4722 = vpack.c.b16 %v4435, %v4428
        %v4723 = vpack.c.b16 %v4436, %v4429
        %v4724 = vpack.c.b16 %v4437, %v4430
        %v4725 = vpack.c.b16 %v4438, %v4431
        %v4726 = vpack.c.b16 %v4439, %v4432
        %v4727 = vpack.c.b16 %v4440, %v4433
        %v4728 = vpack.c.b16 %v4441, %v4434
        %v4729 = vpack.c.b16 %v4449, %v4442
        %v4730 = vpack.c.b16 %v4450, %v4443
        %v4731 = vpack.c.b16 %v4451, %v4444
        %v4732 = vpack.c.b16 %v4452, %v4445
        %v4733 = vpack.c.b16 %v4453, %v4446
        %v4734 = vpack.c.b16 %v4454, %v4447
        %v4735 = vpack.c.b16 %v4455, %v4448
        %v4736 = vpack.c.b16 %v4463, %v4456
        %v4737 = vpack.c.b16 %v4464, %v4457
        %v4738 = vpack.c.b16 %v4465, %v4458
        %v4739 = vpack.c.b16 %v4466, %v4459
        %v4740 = vpack.c.b16 %v4467, %v4460
        %v4741 = vpack.c.b16 %v4468, %v4461
        %v4742 = vpack.c.b16 %v4469, %v4462
        %v4743 = vpack.c.b16 %v4477, %v4470
        %v4744 = vpack.c.b16 %v4478, %v4471
        %v4745 = vpack.c.b16 %v4479, %v4472
        %v4746 = vpack.c.b16 %v4480, %v4473
        %v4747 = vpack.c.b16 %v4481, %v4474
        %v4748 = vpack.c.b16 %v4482, %v4475
        %v4749 = vpack.c.b16 %v4483, %v4476
        %v4750 = vpack.c.b16 %v4491, %v4484
        %v4751 = vpack.c.b16 %v4492, %v4485
        %v4752 = vpack.c.b16 %v4493, %v4486
        %v4753 = vpack.c.b16 %v4494, %v4487
        %v4754 = vpack.c.b16 %v4495, %v4488
        %v4755 = vpack.c.b16 %v4496, %v4489
        %v4756 = vpack.c.b16 %v4497, %v4490
        %v4757 = vpack.c.b16 %v4505, %v4498
        %v4758 = vpack.c.b16 %v4506, %v4499
        %v4759 = vpack.c.b16 %v4507, %v4500
        %v4760 = vpack.c.b16 %v4508, %v4501
        %v4761 = vpack.c.b16 %v4509, %v4502
        %v4762 = vpack.c.b16 %v4510, %v4503
        %v4763 = vpack.c.b16 %v4511, %v4504
        %v4764 = vpack.c.b16 %v4519, %v4512
        %v4765 = vpack.c.b16 %v4520, %v4513
        %v4766 = vpack.c.b16 %v4521, %v4514
        %v4767 = vpack.c.b16 %v4522, %v4515
        %v4768 = vpack.c.b16 %v4523, %v4516
        %v4769 = vpack.c.b16 %v4524, %v4517
        %v4770 = vpack.c.b16 %v4525, %v4518
        %v4771 = vpack.c.b16 %v4533, %v4526
        %v4772 = vpack.c.b16 %v4534, %v4527
        %v4773 = vpack.c.b16 %v4535, %v4528
        %v4774 = vpack.c.b16 %v4536, %v4529
        %v4775 = vpack.c.b16 %v4537, %v4530
        %v4776 = vpack.c.b16 %v4538, %v4531
        %v4777 = vpack.c.b16 %v4539, %v4532
        %v4778 = vpack.c.b16 %v4547, %v4540
        %v4779 = vpack.c.b16 %v4548, %v4541
        %v4780 = vpack.c.b16 %v4549, %v4542
        %v4781 = vpack.c.b16 %v4550, %v4543
        %v4782 = vpack.c.b16 %v4551, %v4544
        %v4783 = vpack.c.b16 %v4552, %v4545
        %v4784 = vpack.c.b16 %v4553, %v4546
        %v4785 = vpack.c.b16 %v4561, %v4554
        %v4786 = vpack.c.b16 %v4562, %v4555
        %v4787 = vpack.c.b16 %v4563, %v4556
        %v4788 = vpack.c.b16 %v4564, %v4557
        %v4789 = vpack.c.b16 %v4565, %v4558
        %v4790 = vpack.c.b16 %v4566, %v4559
        %v4791 = vpack.c.b16 %v4567, %v4560
        %5016 = vmatprep.subr.bf16.mxu0 %v4618
        %5017 = vmatpush1.bf16.msra.mxu0 %v4617
        %5018 = vmatprep.subr.bf16.mxu0 %v4611
        %5019 = vmatpush1.bf16.msra.mxu0 %v4610
        %5020 = vmatprep.subr.bf16.mxu0 %v4604
        %5021 = vmatpush1.bf16.msra.mxu0 %v4603
        %5022 = vmatprep.subr.bf16.mxu0 %v4597
        %5023 = vmatpush1.bf16.msra.mxu0 %v4596
        %5024 = vmatprep.subr.bf16.mxu0 %v4590
        %5025 = vmatpush1.bf16.msra.mxu0 %v4589
        %5026 = vmatprep.subr.bf16.mxu0 %v4583
        %5027 = vmatpush1.bf16.msra.mxu0 %v4582
        %5028 = vmatprep.subr.bf16.mxu0 %v4576
        %5029 = vmatpush1.bf16.msra.mxu0 %v4575
        %5030 = vmatprep.subr.bf16.mxu0 %v4569
        %5031 = vmatpush1.bf16.msra.mxu0 %v4568
        %5032 = vmatprep.subr.bf16.mxu0 %v4674
        %5033 = vmatpush2.bf16.msra.mxu0 %v4673
        %5034 = vmatprep.subr.bf16.mxu0 %v4667
        %5035 = vmatpush2.bf16.msra.mxu0 %v4666
        %5036 = vmatprep.subr.bf16.mxu0 %v4660
        %5037 = vmatpush2.bf16.msra.mxu0 %v4659
        %5038 = vmatprep.subr.bf16.mxu0 %v4653
        %5039 = vmatpush2.bf16.msra.mxu0 %v4652
        %5040 = vmatprep.subr.bf16.mxu0 %v4646
        %5041 = vmatpush2.bf16.msra.mxu0 %v4645
        %5042 = vmatprep.subr.bf16.mxu0 %v4639
        %5043 = vmatpush2.bf16.msra.mxu0 %v4638
        %5044 = vmatprep.subr.bf16.mxu0 %v4632
        %5045 = vmatpush2.bf16.msra.mxu0 %v4631
        %5046 = vmatprep.subr.bf16.mxu0 %v4625
        %5047 = vmatpush2.bf16.msra.mxu0 %v4624
        %5048 = vmatprep.mubr.bf16.mxu0 %v3568
        %5049 = vmatmul.mubr.bf16.gmra.mxu0 %v3567
        %v5050 = vpop.f32.mrf.mxu0
        %v5051 = vadd.f32 %v3832, %v5050
        %v5052 = vpop.f32.mrf.mxu0
        %v5053 = vadd.f32 %v3836, %v5052
        %v5054 = vpop.f32.mrf.mxu0
        %v5055 = vadd.f32 %v3832, %v5054
        %v5056 = vpop.f32.mrf.mxu0
        %v5057 = vadd.f32 %v3836, %v5056
        %5058 = vdwg.mxu0
        %5059 = vmatprep.subr.bf16.mxu0 %v4730
        %5060 = vmatpush1.bf16.msra.mxu0 %v4729
        %5061 = vmatprep.subr.bf16.mxu0 %v4723
        %5062 = vmatpush1.bf16.msra.mxu0 %v4722
        %5063 = vmatprep.subr.bf16.mxu0 %v4716
        %5064 = vmatpush1.bf16.msra.mxu0 %v4715
        %5065 = vmatprep.subr.bf16.mxu0 %v4709
        %5066 = vmatpush1.bf16.msra.mxu0 %v4708
        %5067 = vmatprep.subr.bf16.mxu0 %v4702
        %5068 = vmatpush1.bf16.msra.mxu0 %v4701
        %5069 = vmatprep.subr.bf16.mxu0 %v4695
        %5070 = vmatpush1.bf16.msra.mxu0 %v4694
        %5071 = vmatprep.subr.bf16.mxu0 %v4688
        %5072 = vmatpush1.bf16.msra.mxu0 %v4687
        %5073 = vmatprep.subr.bf16.mxu0 %v4681
        %5074 = vmatpush1.bf16.msra.mxu0 %v4680
        %5075 = vmatprep.subr.bf16.mxu0 %v4786
        %5076 = vmatpush2.bf16.msra.mxu0 %v4785
        %5077 = vmatprep.subr.bf16.mxu0 %v4779
        %5078 = vmatpush2.bf16.msra.mxu0 %v4778
        %5079 = vmatprep.subr.bf16.mxu0 %v4772
        %5080 = vmatpush2.bf16.msra.mxu0 %v4771
        %5081 = vmatprep.subr.bf16.mxu0 %v4765
        %5082 = vmatpush2.bf16.msra.mxu0 %v4764
        %5083 = vmatprep.subr.bf16.mxu0 %v4758
        %5084 = vmatpush2.bf16.msra.mxu0 %v4757
        %5085 = vmatprep.subr.bf16.mxu0 %v4751
        %5086 = vmatpush2.bf16.msra.mxu0 %v4750
        %5087 = vmatprep.subr.bf16.mxu0 %v4744
        %5088 = vmatpush2.bf16.msra.mxu0 %v4743
        %5089 = vmatprep.subr.bf16.mxu0 %v4737
        %5090 = vmatpush2.bf16.msra.mxu0 %v4736
        %5091 = vmatprep.mubr.bf16.mxu0 %v3570
        %5092 = vmatmul.mubr.bf16.gmra.mxu0 %v3569
        %v5093 = vpop.f32.mrf.mxu0
        %v5094 = vadd.f32 %v5051, %v5093
        %v5095 = vpop.f32.mrf.mxu0
        %v5096 = vadd.f32 %v5053, %v5095
        %v5097 = vpop.f32.mrf.mxu0
        %v5098 = vadd.f32 %v5055, %v5097
        %v5099 = vpop.f32.mrf.mxu0
        %v5100 = vadd.f32 %v5057, %v5099
        %5101 = vdwg.mxu0
        %5102 = vmatprep.subr.bf16.mxu0 %v4620
        %5103 = vmatpush1.bf16.msra.mxu0 %v4619
        %5104 = vmatprep.subr.bf16.mxu0 %v4613
        %5105 = vmatpush1.bf16.msra.mxu0 %v4612
        %5106 = vmatprep.subr.bf16.mxu0 %v4606
        %5107 = vmatpush1.bf16.msra.mxu0 %v4605
        %5108 = vmatprep.subr.bf16.mxu0 %v4599
        %5109 = vmatpush1.bf16.msra.mxu0 %v4598
        %5110 = vmatprep.subr.bf16.mxu0 %v4592
        %5111 = vmatpush1.bf16.msra.mxu0 %v4591
        %5112 = vmatprep.subr.bf16.mxu0 %v4585
        %5113 = vmatpush1.bf16.msra.mxu0 %v4584
        %5114 = vmatprep.subr.bf16.mxu0 %v4578
        %5115 = vmatpush1.bf16.msra.mxu0 %v4577
        %5116 = vmatprep.subr.bf16.mxu0 %v4571
        %5117 = vmatpush1.bf16.msra.mxu0 %v4570
        %5118 = vmatprep.subr.bf16.mxu0 %v4676
        %5119 = vmatpush2.bf16.msra.mxu0 %v4675
        %5120 = vmatprep.subr.bf16.mxu0 %v4669
        %5121 = vmatpush2.bf16.msra.mxu0 %v4668
        %5122 = vmatprep.subr.bf16.mxu0 %v4662
        %5123 = vmatpush2.bf16.msra.mxu0 %v4661
        %5124 = vmatprep.subr.bf16.mxu0 %v4655
        %5125 = vmatpush2.bf16.msra.mxu0 %v4654
        %5126 = vmatprep.subr.bf16.mxu0 %v4648
        %5127 = vmatpush2.bf16.msra.mxu0 %v4647
        %5128 = vmatprep.subr.bf16.mxu0 %v4641
        %5129 = vmatpush2.bf16.msra.mxu0 %v4640
        %5130 = vmatprep.subr.bf16.mxu0 %v4634
        %5131 = vmatpush2.bf16.msra.mxu0 %v4633
        %5132 = vmatprep.subr.bf16.mxu0 %v4627
        %5133 = vmatpush2.bf16.msra.mxu0 %v4626
        %5134 = vmatprep.mubr.bf16.mxu0 %v3568
        %5135 = vmatmul.mubr.bf16.gmra.mxu0 %v3567
        %v5136 = vpop.f32.mrf.mxu0
        %v5137 = vadd.f32 %v3840, %v5136
        %v5138 = vpop.f32.mrf.mxu0
        %v5139 = vadd.f32 %v3844, %v5138
        %v5140 = vpop.f32.mrf.mxu0
        %v5141 = vadd.f32 %v3840, %v5140
        %v5142 = vpop.f32.mrf.mxu0
        %v5143 = vadd.f32 %v3844, %v5142
        %5144 = vdwg.mxu0
        %5145 = vmatprep.subr.bf16.mxu0 %v4732
        %5146 = vmatpush1.bf16.msra.mxu0 %v4731
        %5147 = vmatprep.subr.bf16.mxu0 %v4725
        %5148 = vmatpush1.bf16.msra.mxu0 %v4724
        %5149 = vmatprep.subr.bf16.mxu0 %v4718
        %5150 = vmatpush1.bf16.msra.mxu0 %v4717
        %5151 = vmatprep.subr.bf16.mxu0 %v4711
        %5152 = vmatpush1.bf16.msra.mxu0 %v4710
        %5153 = vmatprep.subr.bf16.mxu0 %v4704
        %5154 = vmatpush1.bf16.msra.mxu0 %v4703
        %5155 = vmatprep.subr.bf16.mxu0 %v4697
        %5156 = vmatpush1.bf16.msra.mxu0 %v4696
        %5157 = vmatprep.subr.bf16.mxu0 %v4690
        %5158 = vmatpush1.bf16.msra.mxu0 %v4689
        %5159 = vmatprep.subr.bf16.mxu0 %v4683
        %5160 = vmatpush1.bf16.msra.mxu0 %v4682
        %5161 = vmatprep.subr.bf16.mxu0 %v4788
        %5162 = vmatpush2.bf16.msra.mxu0 %v4787
        %5163 = vmatprep.subr.bf16.mxu0 %v4781
        %5164 = vmatpush2.bf16.msra.mxu0 %v4780
        %5165 = vmatprep.subr.bf16.mxu0 %v4774
        %5166 = vmatpush2.bf16.msra.mxu0 %v4773
        %5167 = vmatprep.subr.bf16.mxu0 %v4767
        %5168 = vmatpush2.bf16.msra.mxu0 %v4766
        %5169 = vmatprep.subr.bf16.mxu0 %v4760
        %5170 = vmatpush2.bf16.msra.mxu0 %v4759
        %5171 = vmatprep.subr.bf16.mxu0 %v4753
        %5172 = vmatpush2.bf16.msra.mxu0 %v4752
        %5173 = vmatprep.subr.bf16.mxu0 %v4746
        %5174 = vmatpush2.bf16.msra.mxu0 %v4745
        %5175 = vmatprep.subr.bf16.mxu0 %v4739
        %5176 = vmatpush2.bf16.msra.mxu0 %v4738
        %5177 = vmatprep.mubr.bf16.mxu0 %v3570
        %5178 = vmatmul.mubr.bf16.gmra.mxu0 %v3569
        %v5179 = vpop.f32.mrf.mxu0
        %v5180 = vadd.f32 %v5137, %v5179
        %v5181 = vpop.f32.mrf.mxu0
        %v5182 = vadd.f32 %v5139, %v5181
        %v5183 = vpop.f32.mrf.mxu0
        %v5184 = vadd.f32 %v5141, %v5183
        %v5185 = vpop.f32.mrf.mxu0
        %v5186 = vadd.f32 %v5143, %v5185
        %5187 = vdwg.mxu0
        %5188 = vmatprep.subr.bf16.mxu0 %v4622
        %5189 = vmatpush1.bf16.msra.mxu0 %v4621
        %5190 = vmatprep.subr.bf16.mxu0 %v4615
        %5191 = vmatpush1.bf16.msra.mxu0 %v4614
        %5192 = vmatprep.subr.bf16.mxu0 %v4608
        %5193 = vmatpush1.bf16.msra.mxu0 %v4607
        %5194 = vmatprep.subr.bf16.mxu0 %v4601
        %5195 = vmatpush1.bf16.msra.mxu0 %v4600
        %5196 = vmatprep.subr.bf16.mxu0 %v4594
        %5197 = vmatpush1.bf16.msra.mxu0 %v4593
        %5198 = vmatprep.subr.bf16.mxu0 %v4587
        %5199 = vmatpush1.bf16.msra.mxu0 %v4586
        %5200 = vmatprep.subr.bf16.mxu0 %v4580
        %5201 = vmatpush1.bf16.msra.mxu0 %v4579
        %5202 = vmatprep.subr.bf16.mxu0 %v4573
        %5203 = vmatpush1.bf16.msra.mxu0 %v4572
        %5204 = vmatprep.subr.bf16.mxu0 %v4678
        %5205 = vmatpush2.bf16.msra.mxu0 %v4677
        %5206 = vmatprep.subr.bf16.mxu0 %v4671
        %5207 = vmatpush2.bf16.msra.mxu0 %v4670
        %5208 = vmatprep.subr.bf16.mxu0 %v4664
        %5209 = vmatpush2.bf16.msra.mxu0 %v4663
        %5210 = vmatprep.subr.bf16.mxu0 %v4657
        %5211 = vmatpush2.bf16.msra.mxu0 %v4656
        %5212 = vmatprep.subr.bf16.mxu0 %v4650
        %5213 = vmatpush2.bf16.msra.mxu0 %v4649
        %5214 = vmatprep.subr.bf16.mxu0 %v4643
        %5215 = vmatpush2.bf16.msra.mxu0 %v4642
        %5216 = vmatprep.subr.bf16.mxu0 %v4636
        %5217 = vmatpush2.bf16.msra.mxu0 %v4635
        %5218 = vmatprep.subr.bf16.mxu0 %v4629
        %5219 = vmatpush2.bf16.msra.mxu0 %v4628
        %5220 = vmatprep.mubr.bf16.mxu0 %v3568
        %5221 = vmatmul.mubr.bf16.gmra.mxu0 %v3567
        %v5222 = vpop.f32.mrf.mxu0
        %v5223 = vadd.f32 %v3848, %v5222
        %v5224 = vpop.f32.mrf.mxu0
        %v5225 = vadd.f32 %v3852, %v5224
        %v5226 = vpop.f32.mrf.mxu0
        %v5227 = vadd.f32 %v3848, %v5226
        %v5228 = vpop.f32.mrf.mxu0
        %v5229 = vadd.f32 %v3852, %v5228
        %5230 = vdwg.mxu0
        %5231 = vmatprep.subr.bf16.mxu0 %v4734
        %5232 = vmatpush1.bf16.msra.mxu0 %v4733
        %5233 = vmatprep.subr.bf16.mxu0 %v4727
        %5234 = vmatpush1.bf16.msra.mxu0 %v4726
        %5235 = vmatprep.subr.bf16.mxu0 %v4720
        %5236 = vmatpush1.bf16.msra.mxu0 %v4719
        %5237 = vmatprep.subr.bf16.mxu0 %v4713
        %5238 = vmatpush1.bf16.msra.mxu0 %v4712
        %5239 = vmatprep.subr.bf16.mxu0 %v4706
        %5240 = vmatpush1.bf16.msra.mxu0 %v4705
        %5241 = vmatprep.subr.bf16.mxu0 %v4699
        %5242 = vmatpush1.bf16.msra.mxu0 %v4698
        %5243 = vmatprep.subr.bf16.mxu0 %v4692
        %5244 = vmatpush1.bf16.msra.mxu0 %v4691
        %5245 = vmatprep.subr.bf16.mxu0 %v4685
        %5246 = vmatpush1.bf16.msra.mxu0 %v4684
        %5247 = vmatprep.subr.bf16.mxu0 %v4790
        %5248 = vmatpush2.bf16.msra.mxu0 %v4789
        %5249 = vmatprep.subr.bf16.mxu0 %v4783
        %5250 = vmatpush2.bf16.msra.mxu0 %v4782
        %5251 = vmatprep.subr.bf16.mxu0 %v4776
        %5252 = vmatpush2.bf16.msra.mxu0 %v4775
        %5253 = vmatprep.subr.bf16.mxu0 %v4769
        %5254 = vmatpush2.bf16.msra.mxu0 %v4768
        %5255 = vmatprep.subr.bf16.mxu0 %v4762
        %5256 = vmatpush2.bf16.msra.mxu0 %v4761
        %5257 = vmatprep.subr.bf16.mxu0 %v4755
        %5258 = vmatpush2.bf16.msra.mxu0 %v4754
        %5259 = vmatprep.subr.bf16.mxu0 %v4748
        %5260 = vmatpush2.bf16.msra.mxu0 %v4747
        %5261 = vmatprep.subr.bf16.mxu0 %v4741
        %5262 = vmatpush2.bf16.msra.mxu0 %v4740
        %5263 = vmatprep.mubr.bf16.mxu0 %v3570
        %5264 = vmatmul.mubr.bf16.gmra.mxu0 %v3569
        %v5265 = vpop.f32.mrf.mxu0
        %v5266 = vadd.f32 %v5223, %v5265
        %v5267 = vpop.f32.mrf.mxu0
        %v5268 = vadd.f32 %v5225, %v5267
        %v5269 = vpop.f32.mrf.mxu0
        %v5270 = vadd.f32 %v5227, %v5269
        %v5271 = vpop.f32.mrf.mxu0
        %v5272 = vadd.f32 %v5229, %v5271
        %5273 = vdwg.mxu0
        %5274 = vmatprep.subr.bf16.mxu0 0
        %5275 = vmatpush1.bf16.msra.mxu0 %v4623
        %5276 = vmatprep.subr.bf16.mxu0 0
        %5277 = vmatpush1.bf16.msra.mxu0 %v4616
        %5278 = vmatprep.subr.bf16.mxu0 0
        %5279 = vmatpush1.bf16.msra.mxu0 %v4609
        %5280 = vmatprep.subr.bf16.mxu0 0
        %5281 = vmatpush1.bf16.msra.mxu0 %v4602
        %5282 = vmatprep.subr.bf16.mxu0 0
        %5283 = vmatpush1.bf16.msra.mxu0 %v4595
        %5284 = vmatprep.subr.bf16.mxu0 0
        %5285 = vmatpush1.bf16.msra.mxu0 %v4588
        %5286 = vmatprep.subr.bf16.mxu0 0
        %5287 = vmatpush1.bf16.msra.mxu0 %v4581
        %5288 = vmatprep.subr.bf16.mxu0 0
        %5289 = vmatpush1.bf16.msra.mxu0 %v4574
        %5290 = vmatprep.subr.bf16.mxu0 0
        %5291 = vmatpush2.bf16.msra.mxu0 %v4679
        %5292 = vmatprep.subr.bf16.mxu0 0
        %5293 = vmatpush2.bf16.msra.mxu0 %v4672
        %5294 = vmatprep.subr.bf16.mxu0 0
        %5295 = vmatpush2.bf16.msra.mxu0 %v4665
        %5296 = vmatprep.subr.bf16.mxu0 0
        %5297 = vmatpush2.bf16.msra.mxu0 %v4658
        %5298 = vmatprep.subr.bf16.mxu0 0
        %5299 = vmatpush2.bf16.msra.mxu0 %v4651
        %5300 = vmatprep.subr.bf16.mxu0 0
        %5301 = vmatpush2.bf16.msra.mxu0 %v4644
        %5302 = vmatprep.subr.bf16.mxu0 0
        %5303 = vmatpush2.bf16.msra.mxu0 %v4637
        %5304 = vmatprep.subr.bf16.mxu0 0
        %5305 = vmatpush2.bf16.msra.mxu0 %v4630
        %5306 = vmatprep.mubr.bf16.mxu0 %v3568
        %5307 = vmatmul.mubr.bf16.gmra.mxu0 %v3567
        %v5308 = vpop.f32.mrf.mxu0
        %v5309 = vadd.f32 %v3856, %v5308
        %v5310 = vpop.f32.mrf.mxu0
        %v5311 = vpop.f32.mrf.mxu0
        %v5312 = vadd.f32 %v3856, %v5311
        %v5313 = vpop.f32.mrf.mxu0
        %5314 = vdwg.mxu0
        %5315 = vmatprep.subr.bf16.mxu0 0
        %5316 = vmatpush1.bf16.msra.mxu0 %v4735
        %5317 = vmatprep.subr.bf16.mxu0 0
        %5318 = vmatpush1.bf16.msra.mxu0 %v4728
        %5319 = vmatprep.subr.bf16.mxu0 0
        %5320 = vmatpush1.bf16.msra.mxu0 %v4721
        %5321 = vmatprep.subr.bf16.mxu0 0
        %5322 = vmatpush1.bf16.msra.mxu0 %v4714
        %5323 = vmatprep.subr.bf16.mxu0 0
        %5324 = vmatpush1.bf16.msra.mxu0 %v4707
        %5325 = vmatprep.subr.bf16.mxu0 0
        %5326 = vmatpush1.bf16.msra.mxu0 %v4700
        %5327 = vmatprep.subr.bf16.mxu0 0
        %5328 = vmatpush1.bf16.msra.mxu0 %v4693
        %5329 = vmatprep.subr.bf16.mxu0 0
        %5330 = vmatpush1.bf16.msra.mxu0 %v4686
        %5331 = vmatprep.subr.bf16.mxu0 0
        %5332 = vmatpush2.bf16.msra.mxu0 %v4791
        %5333 = vmatprep.subr.bf16.mxu0 0
        %5334 = vmatpush2.bf16.msra.mxu0 %v4784
        %5335 = vmatprep.subr.bf16.mxu0 0
        %5336 = vmatpush2.bf16.msra.mxu0 %v4777
        %5337 = vmatprep.subr.bf16.mxu0 0
        %5338 = vmatpush2.bf16.msra.mxu0 %v4770
        %5339 = vmatprep.subr.bf16.mxu0 0
        %5340 = vmatpush2.bf16.msra.mxu0 %v4763
        %5341 = vmatprep.subr.bf16.mxu0 0
        %5342 = vmatpush2.bf16.msra.mxu0 %v4756
        %5343 = vmatprep.subr.bf16.mxu0 0
        %5344 = vmatpush2.bf16.msra.mxu0 %v4749
        %5345 = vmatprep.subr.bf16.mxu0 0
        %5346 = vmatpush2.bf16.msra.mxu0 %v4742
        %5347 = vmatprep.mubr.bf16.mxu0 %v3570
        %5348 = vmatmul.mubr.bf16.gmra.mxu0 %v3569
        %v5349 = vpop.f32.mrf.mxu0
        %v5350 = vadd.f32 %v5309, %v5349
        %v5351 = vpop.f32.mrf.mxu0
        %v5352 = vpop.f32.mrf.mxu0
        %v5353 = vadd.f32 %v5312, %v5352
        %v5354 = vpop.f32.mrf.mxu0
        %5355 = vdwg.mxu0
        %v5356 = vxor.u32 %v5094, 2147483648
        %v5357 = vxor.u32 %v5096, 2147483648
        %v5358 = vxor.u32 %v5180, 2147483648
        %v5359 = vxor.u32 %v5182, 2147483648
        %v5360 = vxor.u32 %v5266, 2147483648
        %v5361 = vxor.u32 %v5268, 2147483648
        %v5362 = vxor.u32 %v5350, 2147483648
        %v5363 = vxor.u32 %v5098, 2147483648
        %v5364 = vxor.u32 %v5100, 2147483648
        %v5365 = vxor.u32 %v5184, 2147483648
        %v5366 = vxor.u32 %v5186, 2147483648
        %v5367 = vxor.u32 %v5270, 2147483648
        %v5368 = vxor.u32 %v5272, 2147483648
        %v5369 = vxor.u32 %v5353, 2147483648
        %v5370 = vmul.f32 %v5356, 1.442695
        %v5371 = vpow.pop %v5370
        %v5372 = vmul.f32 %v5357, 1.442695
        %v5373 = vpow.pop %v5372
        %v5374 = vmul.f32 %v5358, 1.442695
        %v5375 = vpow.pop %v5374
        %v5376 = vmul.f32 %v5359, 1.442695
        %v5377 = vpow.pop %v5376
        %v5378 = vmul.f32 %v5360, 1.442695
        %v5379 = vpow.pop %v5378
        %v5380 = vmul.f32 %v5361, 1.442695
        %v5381 = vpow.pop %v5380
        %v5382 = vmul.f32 %v5362, 1.442695
        %v5383 = vpow.pop %v5382
        %v5384 = vmul.f32 %v5363, 1.442695
        %v5385 = vpow.pop %v5384
        %v5386 = vmul.f32 %v5364, 1.442695
        %v5387 = vpow.pop %v5386
        %v5388 = vmul.f32 %v5365, 1.442695
        %v5389 = vpow.pop %v5388
        %v5390 = vmul.f32 %v5366, 1.442695
        %v5391 = vpow.pop %v5390
        %v5392 = vmul.f32 %v5367, 1.442695
        %v5393 = vpow.pop %v5392
        %v5394 = vmul.f32 %v5368, 1.442695
        %v5395 = vpow.pop %v5394
        %v5396 = vmul.f32 %v5369, 1.442695
        %v5397 = vpow.pop %v5396
        %v5398 = vadd.f32 %v5371, 1.0
        %v5399 = vadd.f32 %v5373, 1.0
        %v5400 = vadd.f32 %v5375, 1.0
        %v5401 = vadd.f32 %v5377, 1.0
        %v5402 = vadd.f32 %v5379, 1.0
        %v5403 = vadd.f32 %v5381, 1.0
        %v5404 = vadd.f32 %v5383, 1.0
        %v5405 = vadd.f32 %v5385, 1.0
        %v5406 = vadd.f32 %v5387, 1.0
        %v5407 = vadd.f32 %v5389, 1.0
        %v5408 = vadd.f32 %v5391, 1.0
        %v5409 = vadd.f32 %v5393, 1.0
        %v5410 = vadd.f32 %v5395, 1.0
        %v5411 = vadd.f32 %v5397, 1.0
        %v5412 = vrcp.pop %v5398
        %v5413 = vmul.f32 1.0, %v5412
        %v5414 = vrcp.pop %v5399
        %v5415 = vmul.f32 1.0, %v5414
        %v5416 = vrcp.pop %v5400
        %v5417 = vmul.f32 1.0, %v5416
        %v5418 = vrcp.pop %v5401
        %v5419 = vmul.f32 1.0, %v5418
        %v5420 = vrcp.pop %v5402
        %v5421 = vmul.f32 1.0, %v5420
        %v5422 = vrcp.pop %v5403
        %v5423 = vmul.f32 1.0, %v5422
        %v5424 = vrcp.pop %v5404
        %v5425 = vmul.f32 1.0, %v5424
        %v5426 = vrcp.pop %v5405
        %v5427 = vmul.f32 1.0, %v5426
        %v5428 = vrcp.pop %v5406
        %v5429 = vmul.f32 1.0, %v5428
        %v5430 = vrcp.pop %v5407
        %v5431 = vmul.f32 1.0, %v5430
        %v5432 = vrcp.pop %v5408
        %v5433 = vmul.f32 1.0, %v5432
        %v5434 = vrcp.pop %v5409
        %v5435 = vmul.f32 1.0, %v5434
        %v5436 = vrcp.pop %v5410
        %v5437 = vmul.f32 1.0, %v5436
        %v5438 = vrcp.pop %v5411
        %v5439 = vmul.f32 1.0, %v5438
        %v5440 = vpack.c.bf16 %v5427, %v5413
        %v5441 = vpack.c.bf16 %v5429, %v5415
        %v5442 = vpack.c.bf16 %v5431, %v5417
        %v5443 = vpack.c.bf16 %v5433, %v5419
        %v5444 = vpack.c.bf16 %v5435, %v5421
        %v5445 = vpack.c.bf16 %v5437, %v5423
        %v5446 = vpack.c.bf16 %v5439, %v5425
        %v5454 = vunpack.c.l.b16 %v5440
        %v5455 = vunpack.c.l.b16 %v5441
        %v5456 = vunpack.c.l.b16 %v5442
        %v5457 = vunpack.c.l.b16 %v5443
        %v5458 = vunpack.c.l.b16 %v5444
        %v5459 = vunpack.c.l.b16 %v5445
        %v5460 = vunpack.c.l.b16 %v5446
        %v5461 = vunpack.c.h.b16 %v5440
        %v5462 = vunpack.c.h.b16 %v5441
        %v5463 = vunpack.c.h.b16 %v5442
        %v5464 = vunpack.c.h.b16 %v5443
        %v5465 = vunpack.c.h.b16 %v5444
        %v5466 = vunpack.c.h.b16 %v5445
        %v5467 = vunpack.c.h.b16 %v5446
        %v5468 = vpack.c.b16 %v5455, %v5454
        %v5469 = vpack.c.b16 %v5457, %v5456
        %v5470 = vpack.c.b16 %v5459, %v5458
        %v5471 = vpack.c.b16 %v5460, %v5460
        %v5472 = vpack.c.b16 %v5462, %v5461
        %v5473 = vpack.c.b16 %v5464, %v5463
        %v5474 = vpack.c.b16 %v5466, %v5465
        %v5475 = vpack.c.b16 %v5467, %v5467
        %5484 = vst [vmem:[%s590] sm:$0xff] %v5468
        %5485 = vst [vmem:[%s590 + $0x8] sm:$0xff] %v5469
        %5486 = vst [vmem:[%s590 + $0x10] sm:$0xff] %v5470
        %5487 = vst [vmem:[%s590 + $0x18] sm:$0xf] %v5471
        %5488 = vst [vmem:[%s590 + $0x1c] sm:$0xff] %v5472
        %5489 = vst [vmem:[%s590 + $0x24] sm:$0xff] %v5473
        %5490 = vst [vmem:[%s590 + $0x2c] sm:$0xff] %v5474
        %5491 = vst [vmem:[%s590 + $0x34] sm:$0xf] %v5475
        %s5492 = smul.u32 2, %s30
        %p5493 = scmp.lt.s32.totalorder %s5492, 3
        %s5494 = scalar_select %p5493, %s5492, 3
        %s5495 = smul.addr %s5494, 7
        %s5496 = smul.addr %s5495, 4
        %s5497 = scalar_lea.vmem %s14, %s5496
        %s5498 = smul.u32 2, %s30
        %p5499 = scmp.lt.s32.totalorder %s5498, 3
        %s5500 = scalar_select %p5499, %s5498, 3
        %s5501 = smul.addr %s5500, 8
        %s5502 = scalar_lea.vmem %s15, %s5501
        // Predicated region
        $region93: #{_vae_forward_impl.1} parent=75 // pred_check
          %p5503 = pneg %p352
        $region94: #{_vae_forward_impl.1} parent=75 // pred_check_branch
          %5505 = sbr.rel (%p5503) target = $region96
        $region95: #{_vae_forward_impl.1} parent=75 // pred_region
          %s5506 = smul.u32 2, %s30
        $region96: #{_vae_forward_impl.1} parent=75 // pred_fallthru
          _
        // Predicated region
        $region97: #{_vae_forward_impl.1} parent=75 // pred_check
          %p5507 = pneg %p378
        $region98: #{_vae_forward_impl.1} parent=75 // pred_check_branch
          %5509 = sbr.rel (%p5507) target = $region100
        $region99: #{_vae_forward_impl.1} parent=75 // pred_region
          %s5510 = smul.u32 2, %s30
        $region100: #{_vae_forward_impl.1} parent=75 // pred_fallthru
          _
      $region76: #{_vae_forward_impl.1} parent=5 // pred_fallthru
        _
      %p5511 = scmp.le.s32.totalorder 2, %s25
      // Predicated region
      $region101: #{_vae_forward_impl.1} parent=5 // pred_check
        %p5512 = pneg %p5511
      $region102: #{_vae_forward_impl.1} parent=5 // pred_check_branch
        %5514 = sbr.rel (%p5512) target = $region104
      $region103: #{_vae_forward_impl.1} parent=5 // pred_region
        %s5515 = ssub.s32 %s25, 2
        // Predicated region
        $region105: #{_vae_forward_impl.1} parent=103 // pred_check
          %p5516 = pneg %p358
        $region106: #{_vae_forward_impl.1} parent=103 // pred_check_branch
          %5518 = sbr.rel (%p5516) target = $region108
        $region107: #{_vae_forward_impl.1} parent=103 // pred_region
          %s5519 = smul.u32 2, %s31
          %p5520 = scmp.lt.s32.totalorder %s5519, 3
          %s5521 = scalar_select %p5520, %s5519, 3
          %s5522 = smul.addr %s5521, 7
          %s5523 = smul.addr %s5522, 4
          %s5524 = scalar_lea.vmem %s14, %s5523
        $region108: #{_vae_forward_impl.1} parent=103 // pred_fallthru
          _
        // Predicated region
        $region109: #{_vae_forward_impl.1} parent=103 // pred_check
          %p5525 = pneg %p384
        $region110: #{_vae_forward_impl.1} parent=103 // pred_check_branch
          %5527 = sbr.rel (%p5525) target = $region112
        $region111: #{_vae_forward_impl.1} parent=103 // pred_region
          %s5528 = smul.u32 2, %s31
          %p5529 = scmp.lt.s32.totalorder %s5528, 3
          %s5530 = scalar_select %p5529, %s5528, 3
          %s5531 = smul.addr %s5530, 8
          %s5532 = scalar_lea.vmem %s15, %s5531
        $region112: #{_vae_forward_impl.1} parent=103 // pred_fallthru
          _
      $region104: #{_vae_forward_impl.1} parent=5 // pred_fallthru
        _
    $region6: #{_vae_forward_impl.1} parent=1 // loop_footer
      %s29 = sadd.s32 1, %s25
    $region7: #{_vae_forward_impl.1} parent=1 // loop_footer_branch
      %24 = sbr.rel target = $region3
    $region8: #{_vae_forward_impl.1} parent=1 // loop_exit
      _
    %5533 = vsyncpa [#allocation3], 1
    %s5534 = scalar_lea.sflag [#allocation3], 1
    %5535 = vsyncpa %s5534, 1
    %5536 = vsyncpa [#allocation5], 1
    %5537 = vsyncpa [#allocation8], 1

// kernel: _vae_forward_impl.1
$region0: #{_vae_forward_impl.1}
  #allocation0 [shape = 'u32[]', space=smem, size = 0x4, offset = 0x4, fixed_abs, tag = 'smem constant byte address 0x4 - core index']
  #allocation1 [shape = 'u32[144,128]{1,0:T(1,128)}', space=vmem, size = 0x12000, scoped, tag = 'internal scratch']
  %s0 = inlined_call_operand.vmem [shape: bf16[32,896], index: 0, kind: input, shape index: {}]
  %s1 = inlined_call_operand.vmem [shape: f32[32,2], index: 1, kind: input, shape index: {}]
  %s2 = inlined_call_operand.hbm [shape: bf16[896,512], index: 2, kind: input, shape index: {}]
  %s3 = inlined_call_operand.vmem [shape: f32[1,512], index: 3, kind: input, shape index: {}]
  %s4 = inlined_call_operand.hbm [shape: bf16[512,256], index: 4, kind: input, shape index: {}]
  %s5 = inlined_call_operand.vmem [shape: f32[1,256], index: 5, kind: input, shape index: {}]
  %s6 = inlined_call_operand.vmem [shape: f32[256,128], index: 6, kind: input, shape index: {}]
  %s7 = inlined_call_operand.vmem [shape: f32[1,128], index: 7, kind: input, shape index: {}]
  %s8 = inlined_call_operand.vmem [shape: f32[2,256], index: 8, kind: input, shape index: {}]
  %s9 = inlined_call_operand.vmem [shape: f32[1,256], index: 9, kind: input, shape index: {}]
  %s10 = inlined_call_operand.hbm [shape: bf16[256,512], index: 10, kind: input, shape index: {}]
  %s11 = inlined_call_operand.vmem [shape: f32[1,512], index: 11, kind: input, shape index: {}]
  %s12 = inlined_call_operand.hbm [shape: bf16[512,896], index: 12, kind: input, shape index: {}]
  %s13 = inlined_call_operand.vmem [shape: f32[1,896], index: 13, kind: input, shape index: {}]
  %s14 = inlined_call_operand.vmem [shape: bf16[32,896], index: 14, kind: output, shape index: {0}]
  %s15 = inlined_call_operand.vmem [shape: f32[32,128], index: 15, kind: output, shape index: {1}]
  %16 = xla_tuple %s14, %s15
  %s17 = sld [smem:[#allocation0]]
  $region113: #{_vae_forward_impl.1} parent=0
    _
  %s19 = ssub.s32 1, %s17
  %s20 = scalar_select 0, %s19, %s17
  $region1: #{_vae_forward_impl.1} parent=0
    #allocation2 [shape = 'u8[917504]{0}', space=vmem, size = 0xe0000, scoped, tag = 'input window, operand 2, single buffered']
    #allocation3 [shape = 's32[2]{0}', space=sflag, size = 0x8, scoped, tag = 'scoped memory for _vae_forward_impl.1']
    #allocation4 [shape = 'u8[262144]{0}', space=vmem, size = 0x40000, scoped, tag = 'input window, operand 4, single buffered']
    #allocation5 [shape = 's32[1]{0}', space=sflag, size = 0x4, scoped, tag = 'scoped memory for _vae_forward_impl.1']
    #allocation6 [shape = 'u8[262144]{0}', space=vmem, size = 0x40000, scoped, tag = 'input window, operand 10, single buffered']
    #allocation7 [shape = 'u8[917504]{0}', space=vmem, size = 0xe0000, scoped, tag = 'input window, operand 12, single buffered']
    #allocation8 [shape = 's32[1]{0}', space=sflag, size = 0x4, scoped, tag = 'scoped memory for _vae_forward_impl.1']
    %21 = vsyncpa [#allocation3], 0
    %22 = vsyncpa [#allocation5], 0
    %23 = vsyncpa [#allocation8], 0
    loop: start=0, step=1, limit=4
    $region2: #{_vae_forward_impl.1} parent=1 // loop_pre_header
      _
    $region3: #{_vae_forward_impl.1} parent=1 // loop_header
      %s25 = sphi 0, %s29
      %p26 = scmp.ge.s32.totalorder %s25, 4
      %s35 = sphi 0, %s37
      %s38 = sphi 0, %s35
      %s39 = sphi 0, %s38
      %s55 = sphi 0, %s39
      %s61 = sphi 0, %s63
      %s64 = sphi 0, %s61
      %s65 = sphi 0, %s64
      %s81 = sphi 0, %s65
      %s85 = sphi 0, %s85
      %s87 = sphi 0, %s85
      %s88 = sphi 0, %s87
      %s102 = sphi 0, %s88
      %s106 = sphi 0, %s106
      %s108 = sphi 0, %s106
      %s109 = sphi 0, %s108
      %s123 = sphi 0, %s109
      %s127 = sphi 0, %s127
      %s129 = sphi 0, %s127
      %s130 = sphi 0, %s129
      %s144 = sphi 0, %s130
      %s148 = sphi 0, %s148
      %s150 = sphi 0, %s148
      %s151 = sphi 0, %s150
      %s165 = sphi 0, %s151
      %s169 = sphi 0, %s169
      %s171 = sphi 0, %s169
      %s172 = sphi 0, %s171
      %s186 = sphi 0, %s172
      %s190 = sphi 0, %s190
      %s192 = sphi 0, %s190
      %s193 = sphi 0, %s192
      %s207 = sphi 0, %s193
      %s211 = sphi 0, %s211
      %s213 = sphi 0, %s211
      %s214 = sphi 0, %s213
      %s228 = sphi 0, %s214
      %s232 = sphi 0, %s232
      %s234 = sphi 0, %s232
      %s235 = sphi 0, %s234
      %s249 = sphi 0, %s235
      %s253 = sphi 0, %s253
      %s255 = sphi 0, %s253
      %s256 = sphi 0, %s255
      %s270 = sphi 0, %s256
      %s274 = sphi 0, %s274
      %s276 = sphi 0, %s274
      %s277 = sphi 0, %s276
      %s291 = sphi 0, %s277
      %s295 = sphi 0, %s295
      %s297 = sphi 0, %s295
      %s298 = sphi 0, %s297
      %s312 = sphi 0, %s298
      %s316 = sphi 0, %s316
      %s318 = sphi 0, %s316
      %s319 = sphi 0, %s318
      %s333 = sphi 0, %s319
      %s339 = sphi 0, %s341
      %s342 = sphi 0, %s339
      %s343 = sphi 0, %s342
      %s359 = sphi 0, %s343
      %s365 = sphi 0, %s367
      %s368 = sphi 0, %s365
      %s369 = sphi 0, %s368
      %s385 = sphi 0, %s369
    $region4: #{_vae_forward_impl.1} parent=1 // loop_header_branch
      %28 = sbr.rel (%p26) target = $region8
    $region5: #{_vae_forward_impl.1} parent=1 // loop_body
      %s30 = ssub.s32 %s25, 1
      %s31 = ssub.s32 %s25, 2
      %s32 = sadd.s32 %s25, 1
      %s33 = ssub.s32 %s25, %s32
      %p34 = scmp.eq.s32.totalorder %s33, 0
      %s36 = sadd.s32 %s35, 1
      %s37 = scalar_select %p34, %s35, %s36
      %p40 = pneg %p34
      %p41 = scmp.eq.s32.totalorder %s25, 1
      %p42 = por %p40, %p41
      %p43 = scmp.ne.s32.totalorder %s35, %s38
      %p44 = scmp.eq.s32.totalorder %s25, 0
      %p45 = por %p43, %p44
      %p46 = scmp.ne.s32.totalorder %s35, %s38
      %p47 = scmp.eq.s32.totalorder %s30, 1
      %p48 = por %p46, %p47
      %p49 = scmp.ne.s32.totalorder %s38, %s39
      %p50 = scmp.eq.s32.totalorder %s30, 0
      %p51 = por %p49, %p50
      %p52 = scmp.ne.s32.totalorder %s38, %s39
      %p53 = scmp.eq.s32.totalorder %s31, 1
      %p54 = por %p52, %p53
      %p56 = scmp.ne.s32.totalorder %s39, %s55
      %p57 = scmp.eq.s32.totalorder %s31, 0
      %p58 = por %p56, %p57
      %s59 = ssub.s32 %s25, %s32
      %p60 = scmp.eq.s32.totalorder %s59, 0
      %s62 = sadd.s32 %s61, 1
      %s63 = scalar_select %p60, %s61, %s62
      %p66 = pneg %p60
      %p67 = scmp.eq.s32.totalorder %s25, 1
      %p68 = por %p66, %p67
      %p69 = scmp.ne.s32.totalorder %s61, %s64
      %p70 = scmp.eq.s32.totalorder %s25, 0
      %p71 = por %p69, %p70
      %p72 = scmp.ne.s32.totalorder %s61, %s64
      %p73 = scmp.eq.s32.totalorder %s30, 1
      %p74 = por %p72, %p73
      %p75 = scmp.ne.s32.totalorder %s64, %s65
      %p76 = scmp.eq.s32.totalorder %s30, 0
      %p77 = por %p75, %p76
      %p78 = scmp.ne.s32.totalorder %s64, %s65
      %p79 = scmp.eq.s32.totalorder %s31, 1
      %p80 = por %p78, %p79
      %p82 = scmp.ne.s32.totalorder %s65, %s81
      %p83 = scmp.eq.s32.totalorder %s31, 0
      %p84 = por %p82, %p83
      %s86 = sadd.s32 %s85, 1
      %p89 = scmp.eq.s32.totalorder %s25, 1
      %p90 = scmp.ne.s32.totalorder %s85, %s87
      %p91 = scmp.eq.s32.totalorder %s25, 0
      %p92 = por %p90, %p91
      %p93 = scmp.ne.s32.totalorder %s85, %s87
      %p94 = scmp.eq.s32.totalorder %s30, 1
      %p95 = por %p93, %p94
      %p96 = scmp.ne.s32.totalorder %s87, %s88
      %p97 = scmp.eq.s32.totalorder %s30, 0
      %p98 = por %p96, %p97
      %p99 = scmp.ne.s32.totalorder %s87, %s88
      %p100 = scmp.eq.s32.totalorder %s31, 1
      %p101 = por %p99, %p100
      %p103 = scmp.ne.s32.totalorder %s88, %s102
      %p104 = scmp.eq.s32.totalorder %s31, 0
      %p105 = por %p103, %p104
      %s107 = sadd.s32 %s106, 1
      %p110 = scmp.eq.s32.totalorder %s25, 1
      %p111 = scmp.ne.s32.totalorder %s106, %s108
      %p112 = scmp.eq.s32.totalorder %s25, 0
      %p113 = por %p111, %p112
      %p114 = scmp.ne.s32.totalorder %s106, %s108
      %p115 = scmp.eq.s32.totalorder %s30, 1
      %p116 = por %p114, %p115
      %p117 = scmp.ne.s32.totalorder %s108, %s109
      %p118 = scmp.eq.s32.totalorder %s30, 0
      %p119 = por %p117, %p118
      %p120 = scmp.ne.s32.totalorder %s108, %s109
      %p121 = scmp.eq.s32.totalorder %s31, 1
      %p122 = por %p120, %p121
      %p124 = scmp.ne.s32.totalorder %s109, %s123
      %p125 = scmp.eq.s32.totalorder %s31, 0
      %p126 = por %p124, %p125
      %s128 = sadd.s32 %s127, 1
      %p131 = scmp.eq.s32.totalorder %s25, 1
      %p132 = scmp.ne.s32.totalorder %s127, %s129
      %p133 = scmp.eq.s32.totalorder %s25, 0
      %p134 = por %p132, %p133
      %p135 = scmp.ne.s32.totalorder %s127, %s129
      %p136 = scmp.eq.s32.totalorder %s30, 1
      %p137 = por %p135, %p136
      %p138 = scmp.ne.s32.totalorder %s129, %s130
      %p139 = scmp.eq.s32.totalorder %s30, 0
      %p140 = por %p138, %p139
      %p141 = scmp.ne.s32.totalorder %s129, %s130
      %p142 = scmp.eq.s32.totalorder %s31, 1
      %p143 = por %p141, %p142
      %p145 = scmp.ne.s32.totalorder %s130, %s144
      %p146 = scmp.eq.s32.totalorder %s31, 0
      %p147 = por %p145, %p146
      %s149 = sadd.s32 %s148, 1
      %p152 = scmp.eq.s32.totalorder %s25, 1
      %p153 = scmp.ne.s32.totalorder %s148, %s150
      %p154 = scmp.eq.s32.totalorder %s25, 0
      %p155 = por %p153, %p154
      %p156 = scmp.ne.s32.totalorder %s148, %s150
      %p157 = scmp.eq.s32.totalorder %s30, 1
      %p158 = por %p156, %p157
      %p159 = scmp.ne.s32.totalorder %s150, %s151
      %p160 = scmp.eq.s32.totalorder %s30, 0
      %p161 = por %p159, %p160
      %p162 = scmp.ne.s32.totalorder %s150, %s151
      %p163 = scmp.eq.s32.totalorder %s31, 1
      %p164 = por %p162, %p163
      %p166 = scmp.ne.s32.totalorder %s151, %s165
      %p167 = scmp.eq.s32.totalorder %s31, 0
      %p168 = por %p166, %p167
      %s170 = sadd.s32 %s169, 1
      %p173 = scmp.eq.s32.totalorder %s25, 1
      %p174 = scmp.ne.s32.totalorder %s169, %s171
      %p175 = scmp.eq.s32.totalorder %s25, 0
      %p176 = por %p174, %p175
      %p177 = scmp.ne.s32.totalorder %s169, %s171
      %p178 = scmp.eq.s32.totalorder %s30, 1
      %p179 = por %p177, %p178
      %p180 = scmp.ne.s32.totalorder %s171, %s172
      %p181 = scmp.eq.s32.totalorder %s30, 0
      %p182 = por %p180, %p181
      %p183 = scmp.ne.s32.totalorder %s171, %s172
      %p184 = scmp.eq.s32.totalorder %s31, 1
      %p185 = por %p183, %p184
      %p187 = scmp.ne.s32.totalorder %s172, %s186
      %p188 = scmp.eq.s32.totalorder %s31, 0
      %p189 = por %p187, %p188
      %s191 = sadd.s32 %s190, 1
      %p194 = scmp.eq.s32.totalorder %s25, 1
      %p195 = scmp.ne.s32.totalorder %s190, %s192
      %p196 = scmp.eq.s32.totalorder %s25, 0
      %p197 = por %p195, %p196
      %p198 = scmp.ne.s32.totalorder %s190, %s192
      %p199 = scmp.eq.s32.totalorder %s30, 1
      %p200 = por %p198, %p199
      %p201 = scmp.ne.s32.totalorder %s192, %s193
      %p202 = scmp.eq.s32.totalorder %s30, 0
      %p203 = por %p201, %p202
      %p204 = scmp.ne.s32.totalorder %s192, %s193
      %p205 = scmp.eq.s32.totalorder %s31, 1
      %p206 = por %p204, %p205
      %p208 = scmp.ne.s32.totalorder %s193, %s207
      %p209 = scmp.eq.s32.totalorder %s31, 0
      %p210 = por %p208, %p209
      %s212 = sadd.s32 %s211, 1
      %p215 = scmp.eq.s32.totalorder %s25, 1
      %p216 = scmp.ne.s32.totalorder %s211, %s213
      %p217 = scmp.eq.s32.totalorder %s25, 0
      %p218 = por %p216, %p217
      %p219 = scmp.ne.s32.totalorder %s211, %s213
      %p220 = scmp.eq.s32.totalorder %s30, 1
      %p221 = por %p219, %p220
      %p222 = scmp.ne.s32.totalorder %s213, %s214
      %p223 = scmp.eq.s32.totalorder %s30, 0
      %p224 = por %p222, %p223
      %p225 = scmp.ne.s32.totalorder %s213, %s214
      %p226 = scmp.eq.s32.totalorder %s31, 1
      %p227 = por %p225, %p226
      %p229 = scmp.ne.s32.totalorder %s214, %s228
      %p230 = scmp.eq.s32.totalorder %s31, 0
      %p231 = por %p229, %p230
      %s233 = sadd.s32 %s232, 1
      %p236 = scmp.eq.s32.totalorder %s25, 1
      %p237 = scmp.ne.s32.totalorder %s232, %s234
      %p238 = scmp.eq.s32.totalorder %s25, 0
      %p239 = por %p237, %p238
      %p240 = scmp.ne.s32.totalorder %s232, %s234
      %p241 = scmp.eq.s32.totalorder %s30, 1
      %p242 = por %p240, %p241
      %p243 = scmp.ne.s32.totalorder %s234, %s235
      %p244 = scmp.eq.s32.totalorder %s30, 0
      %p245 = por %p243, %p244
      %p246 = scmp.ne.s32.totalorder %s234, %s235
      %p247 = scmp.eq.s32.totalorder %s31, 1
      %p248 = por %p246, %p247
      %p250 = scmp.ne.s32.totalorder %s235, %s249
      %p251 = scmp.eq.s32.totalorder %s31, 0
      %p252 = por %p250, %p251
      %s254 = sadd.s32 %s253, 1
      %p257 = scmp.eq.s32.totalorder %s25, 1
      %p258 = scmp.ne.s32.totalorder %s253, %s255
      %p259 = scmp.eq.s32.totalorder %s25, 0
      %p260 = por %p258, %p259
      %p261 = scmp.ne.s32.totalorder %s253, %s255
      %p262 = scmp.eq.s32.totalorder %s30, 1
      %p263 = por %p261, %p262
      %p264 = scmp.ne.s32.totalorder %s255, %s256
      %p265 = scmp.eq.s32.totalorder %s30, 0
      %p266 = por %p264, %p265
      %p267 = scmp.ne.s32.totalorder %s255, %s256
      %p268 = scmp.eq.s32.totalorder %s31, 1
      %p269 = por %p267, %p268
      %p271 = scmp.ne.s32.totalorder %s256, %s270
      %p272 = scmp.eq.s32.totalorder %s31, 0
      %p273 = por %p271, %p272
      %s275 = sadd.s32 %s274, 1
      %p278 = scmp.eq.s32.totalorder %s25, 1
      %p279 = scmp.ne.s32.totalorder %s274, %s276
      %p280 = scmp.eq.s32.totalorder %s25, 0
      %p281 = por %p279, %p280
      %p282 = scmp.ne.s32.totalorder %s274, %s276
      %p283 = scmp.eq.s32.totalorder %s30, 1
      %p284 = por %p282, %p283
      %p285 = scmp.ne.s32.totalorder %s276, %s277
      %p286 = scmp.eq.s32.totalorder %s30, 0
      %p287 = por %p285, %p286
      %p288 = scmp.ne.s32.totalorder %s276, %s277
      %p289 = scmp.eq.s32.totalorder %s31, 1
      %p290 = por %p288, %p289
      %p292 = scmp.ne.s32.totalorder %s277, %s291
      %p293 = scmp.eq.s32.totalorder %s31, 0
      %p294 = por %p292, %p293
      %s296 = sadd.s32 %s295, 1
      %p299 = scmp.eq.s32.totalorder %s25, 1
      %p300 = scmp.ne.s32.totalorder %s295, %s297
      %p301 = scmp.eq.s32.totalorder %s25, 0
      %p302 = por %p300, %p301
      %p303 = scmp.ne.s32.totalorder %s295, %s297
      %p304 = scmp.eq.s32.totalorder %s30, 1
      %p305 = por %p303, %p304
      %p306 = scmp.ne.s32.totalorder %s297, %s298
      %p307 = scmp.eq.s32.totalorder %s30, 0
      %p308 = por %p306, %p307
      %p309 = scmp.ne.s32.totalorder %s297, %s298
      %p310 = scmp.eq.s32.totalorder %s31, 1
      %p311 = por %p309, %p310
      %p313 = scmp.ne.s32.totalorder %s298, %s312
      %p314 = scmp.eq.s32.totalorder %s31, 0
      %p315 = por %p313, %p314
      %s317 = sadd.s32 %s316, 1
      %p320 = scmp.eq.s32.totalorder %s25, 1
      %p321 = scmp.ne.s32.totalorder %s316, %s318
      %p322 = scmp.eq.s32.totalorder %s25, 0
      %p323 = por %p321, %p322
      %p324 = scmp.ne.s32.totalorder %s316, %s318
      %p325 = scmp.eq.s32.totalorder %s30, 1
      %p326 = por %p324, %p325
      %p327 = scmp.ne.s32.totalorder %s318, %s319
      %p328 = scmp.eq.s32.totalorder %s30, 0
      %p329 = por %p327, %p328
      %p330 = scmp.ne.s32.totalorder %s318, %s319
      %p331 = scmp.eq.s32.totalorder %s31, 1
      %p332 = por %p330, %p331
      %p334 = scmp.ne.s32.totalorder %s319, %s333
      %p335 = scmp.eq.s32.totalorder %s31, 0
      %p336 = por %p334, %p335
      %s337 = ssub.s32 %s25, %s32
      %p338 = scmp.eq.s32.totalorder %s337, 0
      %s340 = sadd.s32 %s339, 1
      %s341 = scalar_select %p338, %s339, %s340
      %p344 = pneg %p338
      %p345 = scmp.eq.s32.totalorder %s25, 1
      %p346 = por %p344, %p345
      %p347 = scmp.ne.s32.totalorder %s339, %s342
      %p348 = scmp.eq.s32.totalorder %s25, 0
      %p349 = por %p347, %p348
      %p350 = scmp.ne.s32.totalorder %s339, %s342
      %p351 = scmp.eq.s32.totalorder %s30, 1
      %p352 = por %p350, %p351
      %p353 = scmp.ne.s32.totalorder %s342, %s343
      %p354 = scmp.eq.s32.totalorder %s30, 0
      %p355 = por %p353, %p354
      %p356 = scmp.ne.s32.totalorder %s342, %s343
      %p357 = scmp.eq.s32.totalorder %s31, 1
      %p358 = por %p356, %p357
      %p360 = scmp.ne.s32.totalorder %s343, %s359
      %p361 = scmp.eq.s32.totalorder %s31, 0
      %p362 = por %p360, %p361
      %s363 = ssub.s32 %s25, %s32
      %p364 = scmp.eq.s32.totalorder %s363, 0
      %s366 = sadd.s32 %s365, 1
      %s367 = scalar_select %p364, %s365, %s366
      %p370 = pneg %p364
      %p371 = scmp.eq.s32.totalorder %s25, 1
      %p372 = por %p370, %p371
      %p373 = scmp.ne.s32.totalorder %s365, %s368
      %p374 = scmp.eq.s32.totalorder %s25, 0
      %p375 = por %p373, %p374
      %p376 = scmp.ne.s32.totalorder %s365, %s368
      %p377 = scmp.eq.s32.totalorder %s30, 1
      %p378 = por %p376, %p377
      %p379 = scmp.ne.s32.totalorder %s368, %s369
      %p380 = scmp.eq.s32.totalorder %s30, 0
      %p381 = por %p379, %p380
      %p382 = scmp.ne.s32.totalorder %s368, %s369
      %p383 = scmp.eq.s32.totalorder %s31, 1
      %p384 = por %p382, %p383
      %p386 = scmp.ne.s32.totalorder %s369, %s385
      %p387 = scmp.eq.s32.totalorder %s31, 0
      %p388 = por %p386, %p387
      %p389 = scmp.le.s32.totalorder 1, %s25
      %p390 = scmp.lt.s32.totalorder %s25, 3
      %p391 = pnand %p389, %p390
      %p392 = pneg %p391
      // Predicated region
      $region9: #{_vae_forward_impl.1} parent=5 // pred_check
        _
      $region10: #{_vae_forward_impl.1} parent=5 // pred_check_branch
        %394 = sbr.rel (%p391) target = $region12
      $region11: #{_vae_forward_impl.1} parent=5 // pred_region
        %s395 = ssub.s32 %s25, 1
        // Predicated region
        $region13: #{_vae_forward_impl.1} parent=11 // pred_check
          %p396 = pneg %p98
        $region14: #{_vae_forward_impl.1} parent=11 // pred_check_branch
          %398 = sbr.rel (%p396) target = $region16
        $region15: #{_vae_forward_impl.1} parent=11 // pred_region
          %s400 = ssub.s32 28672, 28672
          %401 = vsyncadd [#allocation3], %s400
          %s402 = sshll.u32 [#allocation2], 4
          %s403 = int_to_ptr.vmem [resolvable:$true] %s402
          %408 = dma.hbm_to_vmem [thread:$0]  %s2, 28672, %s403, [#allocation3], 256, 256, 16
        $region16: #{_vae_forward_impl.1} parent=11 // pred_fallthru
          _
        // Predicated region
        $region17: #{_vae_forward_impl.1} parent=11 // pred_check
          %p409 = pneg %p119
        $region18: #{_vae_forward_impl.1} parent=11 // pred_check_branch
          %411 = sbr.rel (%p409) target = $region20
        $region19: #{_vae_forward_impl.1} parent=11 // pred_region
          _
        $region20: #{_vae_forward_impl.1} parent=11 // pred_fallthru
          _
        // Predicated region
        $region21: #{_vae_forward_impl.1} parent=11 // pred_check
          %p412 = pneg %p140
        $region22: #{_vae_forward_impl.1} parent=11 // pred_check_branch
          %414 = sbr.rel (%p412) target = $region24
        $region23: #{_vae_forward_impl.1} parent=11 // pred_region
          %s416 = ssub.s32 8192, 8192
          %417 = vsyncadd [#allocation5], %s416
          %s418 = sshll.u32 [#allocation4], 4
          %s419 = int_to_ptr.vmem [resolvable:$true] %s418
          %424 = dma.hbm_to_vmem [thread:$0]  %s4, 8192, %s419, [#allocation5], 128, 128, 8
        $region24: #{_vae_forward_impl.1} parent=11 // pred_fallthru
          _
        // Predicated region
        $region25: #{_vae_forward_impl.1} parent=11 // pred_check
          %p425 = pneg %p161
        $region26: #{_vae_forward_impl.1} parent=11 // pred_check_branch
          %427 = sbr.rel (%p425) target = $region28
        $region27: #{_vae_forward_impl.1} parent=11 // pred_region
          _
        $region28: #{_vae_forward_impl.1} parent=11 // pred_fallthru
          _
        // Predicated region
        $region29: #{_vae_forward_impl.1} parent=11 // pred_check
          %p428 = pneg %p182
        $region30: #{_vae_forward_impl.1} parent=11 // pred_check_branch
          %430 = sbr.rel (%p428) target = $region32
        $region31: #{_vae_forward_impl.1} parent=11 // pred_region
          _
        $region32: #{_vae_forward_impl.1} parent=11 // pred_fallthru
          _
        // Predicated region
        $region33: #{_vae_forward_impl.1} parent=11 // pred_check
          %p431 = pneg %p203
        $region34: #{_vae_forward_impl.1} parent=11 // pred_check_branch
          %433 = sbr.rel (%p431) target = $region36
        $region35: #{_vae_forward_impl.1} parent=11 // pred_region
          _
        $region36: #{_vae_forward_impl.1} parent=11 // pred_fallthru
          _
        // Predicated region
        $region37: #{_vae_forward_impl.1} parent=11 // pred_check
          %p434 = pneg %p224
        $region38: #{_vae_forward_impl.1} parent=11 // pred_check_branch
          %436 = sbr.rel (%p434) target = $region40
        $region39: #{_vae_forward_impl.1} parent=11 // pred_region
          _
        $region40: #{_vae_forward_impl.1} parent=11 // pred_fallthru
          _
        // Predicated region
        $region41: #{_vae_forward_impl.1} parent=11 // pred_check
          %p437 = pneg %p245
        $region42: #{_vae_forward_impl.1} parent=11 // pred_check_branch
          %439 = sbr.rel (%p437) target = $region44
        $region43: #{_vae_forward_impl.1} parent=11 // pred_region
          _
        $region44: #{_vae_forward_impl.1} parent=11 // pred_fallthru
          _
        // Predicated region
        $region45: #{_vae_forward_impl.1} parent=11 // pred_check
          %p440 = pneg %p266
        $region46: #{_vae_forward_impl.1} parent=11 // pred_check_branch
          %442 = sbr.rel (%p440) target = $region48
        $region47: #{_vae_forward_impl.1} parent=11 // pred_region
          %s444 = ssub.s32 8192, 8192
          %445 = vsyncadd [#allocation5], %s444
          %s446 = sshll.u32 [#allocation6], 4
          %s447 = int_to_ptr.vmem [resolvable:$true] %s446
          %452 = dma.hbm_to_vmem [thread:$0]  %s10, 8192, %s447, [#allocation5], 256, 256, 16
        $region48: #{_vae_forward_impl.1} parent=11 // pred_fallthru
          _
        // Predicated region
        $region49: #{_vae_forward_impl.1} parent=11 // pred_check
          %p453 = pneg %p287
        $region50: #{_vae_forward_impl.1} parent=11 // pred_check_branch
          %455 = sbr.rel (%p453) target = $region52
        $region51: #{_vae_forward_impl.1} parent=11 // pred_region
          _
        $region52: #{_vae_forward_impl.1} parent=11 // pred_fallthru
          _
        // Predicated region
        $region53: #{_vae_forward_impl.1} parent=11 // pred_check
          %p456 = pneg %p308
        $region54: #{_vae_forward_impl.1} parent=11 // pred_check_branch
          %458 = sbr.rel (%p456) target = $region56
        $region55: #{_vae_forward_impl.1} parent=11 // pred_region
          %s460 = ssub.s32 28672, 28672
          %461 = vsyncadd [#allocation8], %s460
          %s462 = sshll.u32 [#allocation7], 4
          %s463 = int_to_ptr.vmem [resolvable:$true] %s462
          %468 = dma.hbm_to_vmem [thread:$0]  %s12, 28672, %s463, [#allocation8], 448, 448, 28
        $region56: #{_vae_forward_impl.1} parent=11 // pred_fallthru
          _
        // Predicated region
        $region57: #{_vae_forward_impl.1} parent=11 // pred_check
          %p469 = pneg %p329
        $region58: #{_vae_forward_impl.1} parent=11 // pred_check_branch
          %471 = sbr.rel (%p469) target = $region60
        $region59: #{_vae_forward_impl.1} parent=11 // pred_region
          _
        $region60: #{_vae_forward_impl.1} parent=11 // pred_fallthru
          _
      $region12: #{_vae_forward_impl.1} parent=5 // pred_fallthru
        _
      %p472 = scmp.lt.s32.totalorder %s25, 2
      // Predicated region
      $region61: #{_vae_forward_impl.1} parent=5 // pred_check
        %p473 = pneg %p472
      $region62: #{_vae_forward_impl.1} parent=5 // pred_check_branch
        %475 = sbr.rel (%p473) target = $region64
      $region63: #{_vae_forward_impl.1} parent=5 // pred_region
        // Predicated region
        $region65: #{_vae_forward_impl.1} parent=63 // pred_check
          %p476 = pneg %p45
        $region66: #{_vae_forward_impl.1} parent=63 // pred_check_branch
          %478 = sbr.rel (%p476) target = $region68
        $region67: #{_vae_forward_impl.1} parent=63 // pred_region
          %s479 = smul.u32 2, %s25
          %p480 = scmp.lt.s32.totalorder %s479, 3
          %s481 = scalar_select %p480, %s479, 3
          %s482 = smul.addr %s481, 7
          %s483 = smul.addr %s482, 4
          %s484 = scalar_lea.vmem %s0, %s483
          %s485 = smul.u32 2, %s25
        $region68: #{_vae_forward_impl.1} parent=63 // pred_fallthru
          _
        // Predicated region
        $region69: #{_vae_forward_impl.1} parent=63 // pred_check
          %p486 = pneg %p71
        $region70: #{_vae_forward_impl.1} parent=63 // pred_check_branch
          %488 = sbr.rel (%p486) target = $region72
        $region71: #{_vae_forward_impl.1} parent=63 // pred_region
          %s489 = smul.u32 2, %s25
          %p490 = scmp.lt.s32.totalorder %s489, 3
          %s491 = scalar_select %p490, %s489, 3
          %s492 = smul.addr %s491, 8
          %s493 = scalar_lea.vmem %s1, %s492
          %s494 = smul.u32 2, %s25
        $region72: #{_vae_forward_impl.1} parent=63 // pred_fallthru
          _
      $region64: #{_vae_forward_impl.1} parent=5 // pred_fallthru
        _
      %p495 = scmp.le.s32.totalorder 1, %s25
      %p496 = scmp.lt.s32.totalorder %s25, 3
      %p497 = pnand %p495, %p496
      %p498 = pneg %p497
      // Predicated region
      $region73: #{_vae_forward_impl.1} parent=5 // pred_check
        _
      $region74: #{_vae_forward_impl.1} parent=5 // pred_check_branch
        %500 = sbr.rel (%p497) target = $region76
      $region75: #{_vae_forward_impl.1} parent=5 // pred_region
        %s501 = ssub.s32 %s25, 1
        // Predicated region
        $region77: #{_vae_forward_impl.1} parent=75 // pred_check
          %p502 = pneg %p98
        $region78: #{_vae_forward_impl.1} parent=75 // pred_check_branch
          %504 = sbr.rel (%p502) target = $region80
        $region79: #{_vae_forward_impl.1} parent=75 // pred_region
          %505 = dma.done [#allocation3], 28672
        $region80: #{_vae_forward_impl.1} parent=75 // pred_fallthru
          _
        // Predicated region
        $region81: #{_vae_forward_impl.1} parent=75 // pred_check
          %p506 = pneg %p140
        $region82: #{_vae_forward_impl.1} parent=75 // pred_check_branch
          %508 = sbr.rel (%p506) target = $region84
        $region83: #{_vae_forward_impl.1} parent=75 // pred_region
          %509 = dma.done [#allocation5], 8192
        $region84: #{_vae_forward_impl.1} parent=75 // pred_fallthru
          _
        // Predicated region
        $region85: #{_vae_forward_impl.1} parent=75 // pred_check
          %p510 = pneg %p266
        $region86: #{_vae_forward_impl.1} parent=75 // pred_check_branch
          %512 = sbr.rel (%p510) target = $region88
        $region87: #{_vae_forward_impl.1} parent=75 // pred_region
          %513 = dma.done [#allocation5], 8192
        $region88: #{_vae_forward_impl.1} parent=75 // pred_fallthru
          _
        // Predicated region
        $region89: #{_vae_forward_impl.1} parent=75 // pred_check
          %p514 = pneg %p308
        $region90: #{_vae_forward_impl.1} parent=75 // pred_check_branch
          %516 = sbr.rel (%p514) target = $region92
        $region91: #{_vae_forward_impl.1} parent=75 // pred_region
          %517 = dma.done [#allocation8], 28672
        $region92: #{_vae_forward_impl.1} parent=75 // pred_fallthru
          _
        %s518 = smul.u32 2, %s30
        %p519 = scmp.lt.s32.totalorder %s518, 3
        %s520 = scalar_select %p519, %s518, 3
        %s521 = smul.addr %s520, 7
        %s522 = smul.addr %s521, 4
        %s523 = scalar_lea.vmem %s0, %s522
        %p524 = pneg %p51
        %p525 = pneg %p48
        %s526 = smul.u32 2, %s30
        %p527 = scmp.lt.s32.totalorder %s526, 3
        %s528 = scalar_select %p527, %s526, 3
        %s529 = smul.addr %s528, 8
        %s530 = scalar_lea.vmem %s1, %s529
        %p531 = pneg %p77
        %p532 = pneg %p74
        %p533 = pneg %p98
        %p534 = pneg %p95
        %p535 = pneg %p119
        %p536 = pneg %p116
        %p537 = pneg %p140
        %p538 = pneg %p137
        %p539 = pneg %p161
        %p540 = pneg %p158
        %p541 = pneg %p182
        %p542 = pneg %p179
        %p543 = pneg %p203
        %p544 = pneg %p200
        %p545 = pneg %p224
        %p546 = pneg %p221
        %p547 = pneg %p245
        %p548 = pneg %p242
        %p549 = pneg %p266
        %p550 = pneg %p263
        %p551 = pneg %p287
        %p552 = pneg %p284
        %p553 = pneg %p308
        %p554 = pneg %p305
        %p555 = pneg %p329
        %p556 = pneg %p326
        %p557 = pneg %p355
        %p558 = pneg %p352
        %s559 = smul.u32 2, %s30
        %p560 = scmp.lt.s32.totalorder %s559, 3
        %s561 = scalar_select %p560, %s559, 3
        %s562 = smul.addr %s561, 7
        %s563 = smul.addr %s562, 4
        %s564 = scalar_lea.vmem %s14, %s563
        %p565 = pneg %p381
        %p566 = pneg %p378
        %s567 = smul.u32 2, %s30
        %p568 = scmp.lt.s32.totalorder %s567, 3
        %s569 = scalar_select %p568, %s567, 3
        %s570 = smul.addr %s569, 8
        %s571 = scalar_lea.vmem %s15, %s570
        %s572 = smul.u32 2, %s30
        %p573 = scmp.lt.s32.totalorder %s572, 3
        %s574 = scalar_select %p573, %s572, 3
        %s575 = smul.addr %s574, 7
        %s576 = smul.addr %s575, 4
        %s577 = scalar_lea.vmem %s0, %s576
        %s578 = smul.u32 2, %s30
        %s579 = smul.u32 2, %s30
        %p580 = scmp.lt.s32.totalorder %s579, 3
        %s581 = scalar_select %p580, %s579, 3
        %s582 = smul.addr %s581, 8
        %s583 = scalar_lea.vmem %s1, %s582
        %s584 = smul.u32 2, %s30
        %s585 = smul.u32 2, %s30
        %p586 = scmp.lt.s32.totalorder %s585, 3
        %s587 = scalar_select %p586, %s585, 3
        %s588 = smul.addr %s587, 7
        %s589 = smul.addr %s588, 4
        %s590 = scalar_lea.vmem %s14, %s589
        %s591 = smul.u32 2, %s30
        %s592 = smul.u32 2, %s30
        %p593 = scmp.lt.s32.totalorder %s592, 3
        %s594 = scalar_select %p593, %s592, 3
        %s595 = smul.addr %s594, 8
        %s596 = scalar_lea.vmem %s15, %s595
        %s597 = smul.u32 2, %s30
        %v599 = vld [vmem:[%s577] sm:$0xff]
        %v600 = vld [vmem:[%s577 + $0x8] sm:$0xff]
        %v601 = vld [vmem:[%s577 + $0x10] sm:$0xff]
        %v602 = vld [vmem:[%s577 + $0x18] sm:$0xf]
        %v603 = vld [vmem:[%s577 + $0x1c] sm:$0xff]
        %v604 = vld [vmem:[%s577 + $0x24] sm:$0xff]
        %v605 = vld [vmem:[%s577 + $0x2c] sm:$0xff]
        %v606 = vld [vmem:[%s577 + $0x34] sm:$0xf]
        %v607 = vld [vmem:[#allocation2] sm:$0xff]
        %v608 = vld [vmem:[#allocation2 + $0x8] sm:$0xff]
        %v609 = vld [vmem:[#allocation2 + $0x10] sm:$0xff]
        %v610 = vld [vmem:[#allocation2 + $0x18] sm:$0xff]
        %v611 = vld [vmem:[#allocation2 + $0x20] sm:$0xff]
        %v612 = vld [vmem:[#allocation2 + $0x28] sm:$0xff]
        %v613 = vld [vmem:[#allocation2 + $0x30] sm:$0xff]
        %v614 = vld [vmem:[#allocation2 + $0x38] sm:$0xff]
        %v615 = vld [vmem:[#allocation2 + $0x40] sm:$0xff]
        %v616 = vld [vmem:[#allocation2 + $0x48] sm:$0xff]
        %v617 = vld [vmem:[#allocation2 + $0x50] sm:$0xff]
        %v618 = vld [vmem:[#allocation2 + $0x58] sm:$0xff]
        %v619 = vld [vmem:[#allocation2 + $0x60] sm:$0xff]
        %v620 = vld [vmem:[#allocation2 + $0x68] sm:$0xff]
        %v621 = vld [vmem:[#allocation2 + $0x70] sm:$0xff]
        %v622 = vld [vmem:[#allocation2 + $0x78] sm:$0xff]
        %v623 = vld [vmem:[#allocation2 + $0x80] sm:$0xff]
        %v624 = vld [vmem:[#allocation2 + $0x88] sm:$0xff]
        %v625 = vld [vmem:[#allocation2 + $0x90] sm:$0xff]
        %v626 = vld [vmem:[#allocation2 + $0x98] sm:$0xff]
        %v627 = vld [vmem:[#allocation2 + $0xa0] sm:$0xff]
        %v628 = vld [vmem:[#allocation2 + $0xa8] sm:$0xff]
        %v629 = vld [vmem:[#allocation2 + $0xb0] sm:$0xff]
        %v630 = vld [vmem:[#allocation2 + $0xb8] sm:$0xff]
        %v631 = vld [vmem:[#allocation2 + $0xc0] sm:$0xff]
        %v632 = vld [vmem:[#allocation2 + $0xc8] sm:$0xff]
        %v633 = vld [vmem:[#allocation2 + $0xd0] sm:$0xff]
        %v634 = vld [vmem:[#allocation2 + $0xd8] sm:$0xff]
        %v635 = vld [vmem:[#allocation2 + $0xe0] sm:$0xff]
        %v636 = vld [vmem:[#allocation2 + $0xe8] sm:$0xff]
        %v637 = vld [vmem:[#allocation2 + $0xf0] sm:$0xff]
        %v638 = vld [vmem:[#allocation2 + $0xf8] sm:$0xff]
        %v639 = vld [vmem:[#allocation2 + $0x100] sm:$0xff]
        %v640 = vld [vmem:[#allocation2 + $0x108] sm:$0xff]
        %v641 = vld [vmem:[#allocation2 + $0x110] sm:$0xff]
        %v642 = vld [vmem:[#allocation2 + $0x118] sm:$0xff]
        %v643 = vld [vmem:[#allocation2 + $0x120] sm:$0xff]
        %v644 = vld [vmem:[#allocation2 + $0x128] sm:$0xff]
        %v645 = vld [vmem:[#allocation2 + $0x130] sm:$0xff]
        %v646 = vld [vmem:[#allocation2 + $0x138] sm:$0xff]
        %v647 = vld [vmem:[#allocation2 + $0x140] sm:$0xff]
        %v648 = vld [vmem:[#allocation2 + $0x148] sm:$0xff]
        %v649 = vld [vmem:[#allocation2 + $0x150] sm:$0xff]
        %v650 = vld [vmem:[#allocation2 + $0x158] sm:$0xff]
        %v651 = vld [vmem:[#allocation2 + $0x160] sm:$0xff]
        %v652 = vld [vmem:[#allocation2 + $0x168] sm:$0xff]
        %v653 = vld [vmem:[#allocation2 + $0x170] sm:$0xff]
        %v654 = vld [vmem:[#allocation2 + $0x178] sm:$0xff]
        %v655 = vld [vmem:[#allocation2 + $0x180] sm:$0xff]
        %v656 = vld [vmem:[#allocation2 + $0x188] sm:$0xff]
        %v657 = vld [vmem:[#allocation2 + $0x190] sm:$0xff]
        %v658 = vld [vmem:[#allocation2 + $0x198] sm:$0xff]
        %v659 = vld [vmem:[#allocation2 + $0x1a0] sm:$0xff]
        %v660 = vld [vmem:[#allocation2 + $0x1a8] sm:$0xff]
        %v661 = vld [vmem:[#allocation2 + $0x1b0] sm:$0xff]
        %v662 = vld [vmem:[#allocation2 + $0x1b8] sm:$0xff]
        %v663 = vld [vmem:[#allocation2 + $0x1c0] sm:$0xff]
        %v664 = vld [vmem:[#allocation2 + $0x1c8] sm:$0xff]
        %v665 = vld [vmem:[#allocation2 + $0x1d0] sm:$0xff]
        %v666 = vld [vmem:[#allocation2 + $0x1d8] sm:$0xff]
        %v667 = vld [vmem:[#allocation2 + $0x1e0] sm:$0xff]
        %v668 = vld [vmem:[#allocation2 + $0x1e8] sm:$0xff]
        %v669 = vld [vmem:[#allocation2 + $0x1f0] sm:$0xff]
        %v670 = vld [vmem:[#allocation2 + $0x1f8] sm:$0xff]
        %v671 = vld [vmem:[#allocation2 + $0x200] sm:$0xff]
        %v672 = vld [vmem:[#allocation2 + $0x208] sm:$0xff]
        %v673 = vld [vmem:[#allocation2 + $0x210] sm:$0xff]
        %v674 = vld [vmem:[#allocation2 + $0x218] sm:$0xff]
        %v675 = vld [vmem:[#allocation2 + $0x220] sm:$0xff]
        %v676 = vld [vmem:[#allocation2 + $0x228] sm:$0xff]
        %v677 = vld [vmem:[#allocation2 + $0x230] sm:$0xff]
        %v678 = vld [vmem:[#allocation2 + $0x238] sm:$0xff]
        %v679 = vld [vmem:[#allocation2 + $0x240] sm:$0xff]
        %v680 = vld [vmem:[#allocation2 + $0x248] sm:$0xff]
        %v681 = vld [vmem:[#allocation2 + $0x250] sm:$0xff]
        %v682 = vld [vmem:[#allocation2 + $0x258] sm:$0xff]
        %v683 = vld [vmem:[#allocation2 + $0x260] sm:$0xff]
        %v684 = vld [vmem:[#allocation2 + $0x268] sm:$0xff]
        %v685 = vld [vmem:[#allocation2 + $0x270] sm:$0xff]
        %v686 = vld [vmem:[#allocation2 + $0x278] sm:$0xff]
        %v687 = vld [vmem:[#allocation2 + $0x280] sm:$0xff]
        %v688 = vld [vmem:[#allocation2 + $0x288] sm:$0xff]
        %v689 = vld [vmem:[#allocation2 + $0x290] sm:$0xff]
        %v690 = vld [vmem:[#allocation2 + $0x298] sm:$0xff]
        %v691 = vld [vmem:[#allocation2 + $0x2a0] sm:$0xff]
        %v692 = vld [vmem:[#allocation2 + $0x2a8] sm:$0xff]
        %v693 = vld [vmem:[#allocation2 + $0x2b0] sm:$0xff]
        %v694 = vld [vmem:[#allocation2 + $0x2b8] sm:$0xff]
        %v695 = vld [vmem:[#allocation2 + $0x2c0] sm:$0xff]
        %v696 = vld [vmem:[#allocation2 + $0x2c8] sm:$0xff]
        %v697 = vld [vmem:[#allocation2 + $0x2d0] sm:$0xff]
        %v698 = vld [vmem:[#allocation2 + $0x2d8] sm:$0xff]
        %v699 = vld [vmem:[#allocation2 + $0x2e0] sm:$0xff]
        %v700 = vld [vmem:[#allocation2 + $0x2e8] sm:$0xff]
        %v701 = vld [vmem:[#allocation2 + $0x2f0] sm:$0xff]
        %v702 = vld [vmem:[#allocation2 + $0x2f8] sm:$0xff]
        %v703 = vld [vmem:[#allocation2 + $0x300] sm:$0xff]
        %v704 = vld [vmem:[#allocation2 + $0x308] sm:$0xff]
        %v705 = vld [vmem:[#allocation2 + $0x310] sm:$0xff]
        %v706 = vld [vmem:[#allocation2 + $0x318] sm:$0xff]
        %v707 = vld [vmem:[#allocation2 + $0x320] sm:$0xff]
        %v708 = vld [vmem:[#allocation2 + $0x328] sm:$0xff]
        %v709 = vld [vmem:[#allocation2 + $0x330] sm:$0xff]
        %v710 = vld [vmem:[#allocation2 + $0x338] sm:$0xff]
        %v711 = vld [vmem:[#allocation2 + $0x340] sm:$0xff]
        %v712 = vld [vmem:[#allocation2 + $0x348] sm:$0xff]
        %v713 = vld [vmem:[#allocation2 + $0x350] sm:$0xff]
        %v714 = vld [vmem:[#allocation2 + $0x358] sm:$0xff]
        %v715 = vld [vmem:[#allocation2 + $0x360] sm:$0xff]
        %v716 = vld [vmem:[#allocation2 + $0x368] sm:$0xff]
        %v717 = vld [vmem:[#allocation2 + $0x370] sm:$0xff]
        %v718 = vld [vmem:[#allocation2 + $0x378] sm:$0xff]
        %v719 = vld [vmem:[#allocation2 + $0x380] sm:$0xff]
        %v720 = vld [vmem:[#allocation2 + $0x388] sm:$0xff]
        %v721 = vld [vmem:[#allocation2 + $0x390] sm:$0xff]
        %v722 = vld [vmem:[#allocation2 + $0x398] sm:$0xff]
        %v723 = vld [vmem:[#allocation2 + $0x3a0] sm:$0xff]
        %v724 = vld [vmem:[#allocation2 + $0x3a8] sm:$0xff]
        %v725 = vld [vmem:[#allocation2 + $0x3b0] sm:$0xff]
        %v726 = vld [vmem:[#allocation2 + $0x3b8] sm:$0xff]
        %v727 = vld [vmem:[#allocation2 + $0x3c0] sm:$0xff]
        %v728 = vld [vmem:[#allocation2 + $0x3c8] sm:$0xff]
        %v729 = vld [vmem:[#allocation2 + $0x3d0] sm:$0xff]
        %v730 = vld [vmem:[#allocation2 + $0x3d8] sm:$0xff]
        %v731 = vld [vmem:[#allocation2 + $0x3e0] sm:$0xff]
        %v732 = vld [vmem:[#allocation2 + $0x3e8] sm:$0xff]
        %v733 = vld [vmem:[#allocation2 + $0x3f0] sm:$0xff]
        %v734 = vld [vmem:[#allocation2 + $0x3f8] sm:$0xff]
        %v735 = vld [vmem:[#allocation2 + $0x400] sm:$0xff]
        %v736 = vld [vmem:[#allocation2 + $0x408] sm:$0xff]
        %v737 = vld [vmem:[#allocation2 + $0x410] sm:$0xff]
        %v738 = vld [vmem:[#allocation2 + $0x418] sm:$0xff]
        %v739 = vld [vmem:[#allocation2 + $0x420] sm:$0xff]
        %v740 = vld [vmem:[#allocation2 + $0x428] sm:$0xff]
        %v741 = vld [vmem:[#allocation2 + $0x430] sm:$0xff]
        %v742 = vld [vmem:[#allocation2 + $0x438] sm:$0xff]
        %v743 = vld [vmem:[#allocation2 + $0x440] sm:$0xff]
        %v744 = vld [vmem:[#allocation2 + $0x448] sm:$0xff]
        %v745 = vld [vmem:[#allocation2 + $0x450] sm:$0xff]
        %v746 = vld [vmem:[#allocation2 + $0x458] sm:$0xff]
        %v747 = vld [vmem:[#allocation2 + $0x460] sm:$0xff]
        %v748 = vld [vmem:[#allocation2 + $0x468] sm:$0xff]
        %v749 = vld [vmem:[#allocation2 + $0x470] sm:$0xff]
        %v750 = vld [vmem:[#allocation2 + $0x478] sm:$0xff]
        %v751 = vld [vmem:[#allocation2 + $0x480] sm:$0xff]
        %v752 = vld [vmem:[#allocation2 + $0x488] sm:$0xff]
        %v753 = vld [vmem:[#allocation2 + $0x490] sm:$0xff]
        %v754 = vld [vmem:[#allocation2 + $0x498] sm:$0xff]
        %v755 = vld [vmem:[#allocation2 + $0x4a0] sm:$0xff]
        %v756 = vld [vmem:[#allocation2 + $0x4a8] sm:$0xff]
        %v757 = vld [vmem:[#allocation2 + $0x4b0] sm:$0xff]
        %v758 = vld [vmem:[#allocation2 + $0x4b8] sm:$0xff]
        %v759 = vld [vmem:[#allocation2 + $0x4c0] sm:$0xff]
        %v760 = vld [vmem:[#allocation2 + $0x4c8] sm:$0xff]
        %v761 = vld [vmem:[#allocation2 + $0x4d0] sm:$0xff]
        %v762 = vld [vmem:[#allocation2 + $0x4d8] sm:$0xff]
        %v763 = vld [vmem:[#allocation2 + $0x4e0] sm:$0xff]
        %v764 = vld [vmem:[#allocation2 + $0x4e8] sm:$0xff]
        %v765 = vld [vmem:[#allocation2 + $0x4f0] sm:$0xff]
        %v766 = vld [vmem:[#allocation2 + $0x4f8] sm:$0xff]
        %v767 = vld [vmem:[#allocation2 + $0x500] sm:$0xff]
        %v768 = vld [vmem:[#allocation2 + $0x508] sm:$0xff]
        %v769 = vld [vmem:[#allocation2 + $0x510] sm:$0xff]
        %v770 = vld [vmem:[#allocation2 + $0x518] sm:$0xff]
        %v771 = vld [vmem:[#allocation2 + $0x520] sm:$0xff]
        %v772 = vld [vmem:[#allocation2 + $0x528] sm:$0xff]
        %v773 = vld [vmem:[#allocation2 + $0x530] sm:$0xff]
        %v774 = vld [vmem:[#allocation2 + $0x538] sm:$0xff]
        %v775 = vld [vmem:[#allocation2 + $0x540] sm:$0xff]
        %v776 = vld [vmem:[#allocation2 + $0x548] sm:$0xff]
        %v777 = vld [vmem:[#allocation2 + $0x550] sm:$0xff]
        %v778 = vld [vmem:[#allocation2 + $0x558] sm:$0xff]
        %v779 = vld [vmem:[#allocation2 + $0x560] sm:$0xff]
        %v780 = vld [vmem:[#allocation2 + $0x568] sm:$0xff]
        %v781 = vld [vmem:[#allocation2 + $0x570] sm:$0xff]
        %v782 = vld [vmem:[#allocation2 + $0x578] sm:$0xff]
        %v783 = vld [vmem:[#allocation2 + $0x580] sm:$0xff]
        %v784 = vld [vmem:[#allocation2 + $0x588] sm:$0xff]
        %v785 = vld [vmem:[#allocation2 + $0x590] sm:$0xff]
        %v786 = vld [vmem:[#allocation2 + $0x598] sm:$0xff]
        %v787 = vld [vmem:[#allocation2 + $0x5a0] sm:$0xff]
        %v788 = vld [vmem:[#allocation2 + $0x5a8] sm:$0xff]
        %v789 = vld [vmem:[#allocation2 + $0x5b0] sm:$0xff]
        %v790 = vld [vmem:[#allocation2 + $0x5b8] sm:$0xff]
        %v791 = vld [vmem:[#allocation2 + $0x5c0] sm:$0xff]
        %v792 = vld [vmem:[#allocation2 + $0x5c8] sm:$0xff]
        %v793 = vld [vmem:[#allocation2 + $0x5d0] sm:$0xff]
        %v794 = vld [vmem:[#allocation2 + $0x5d8] sm:$0xff]
        %v795 = vld [vmem:[#allocation2 + $0x5e0] sm:$0xff]
        %v796 = vld [vmem:[#allocation2 + $0x5e8] sm:$0xff]
        %v797 = vld [vmem:[#allocation2 + $0x5f0] sm:$0xff]
        %v798 = vld [vmem:[#allocation2 + $0x5f8] sm:$0xff]
        %v799 = vld [vmem:[#allocation2 + $0x600] sm:$0xff]
        %v800 = vld [vmem:[#allocation2 + $0x608] sm:$0xff]
        %v801 = vld [vmem:[#allocation2 + $0x610] sm:$0xff]
        %v802 = vld [vmem:[#allocation2 + $0x618] sm:$0xff]
        %v803 = vld [vmem:[#allocation2 + $0x620] sm:$0xff]
        %v804 = vld [vmem:[#allocation2 + $0x628] sm:$0xff]
        %v805 = vld [vmem:[#allocation2 + $0x630] sm:$0xff]
        %v806 = vld [vmem:[#allocation2 + $0x638] sm:$0xff]
        %v807 = vld [vmem:[#allocation2 + $0x640] sm:$0xff]
        %v808 = vld [vmem:[#allocation2 + $0x648] sm:$0xff]
        %v809 = vld [vmem:[#allocation2 + $0x650] sm:$0xff]
        %v810 = vld [vmem:[#allocation2 + $0x658] sm:$0xff]
        %v811 = vld [vmem:[#allocation2 + $0x660] sm:$0xff]
        %v812 = vld [vmem:[#allocation2 + $0x668] sm:$0xff]
        %v813 = vld [vmem:[#allocation2 + $0x670] sm:$0xff]
        %v814 = vld [vmem:[#allocation2 + $0x678] sm:$0xff]
        %v815 = vld [vmem:[#allocation2 + $0x680] sm:$0xff]
        %v816 = vld [vmem:[#allocation2 + $0x688] sm:$0xff]
        %v817 = vld [vmem:[#allocation2 + $0x690] sm:$0xff]
        %v818 = vld [vmem:[#allocation2 + $0x698] sm:$0xff]
        %v819 = vld [vmem:[#allocation2 + $0x6a0] sm:$0xff]
        %v820 = vld [vmem:[#allocation2 + $0x6a8] sm:$0xff]
        %v821 = vld [vmem:[#allocation2 + $0x6b0] sm:$0xff]
        %v822 = vld [vmem:[#allocation2 + $0x6b8] sm:$0xff]
        %v823 = vld [vmem:[#allocation2 + $0x6c0] sm:$0xff]
        %v824 = vld [vmem:[#allocation2 + $0x6c8] sm:$0xff]
        %v825 = vld [vmem:[#allocation2 + $0x6d0] sm:$0xff]
        %v826 = vld [vmem:[#allocation2 + $0x6d8] sm:$0xff]
        %v827 = vld [vmem:[#allocation2 + $0x6e0] sm:$0xff]
        %v828 = vld [vmem:[#allocation2 + $0x6e8] sm:$0xff]
        %v829 = vld [vmem:[#allocation2 + $0x6f0] sm:$0xff]
        %v830 = vld [vmem:[#allocation2 + $0x6f8] sm:$0xff]
        %v831 = vld [vmem:[%s3] sm:$0xf]
        %v833 = vlaneseq
        %v834 = vshrl.u32 %v833, 7
        %v835 = vsub.s32 0, %v834
        %v836 = vrot.slane %v831, %v835
        %v837 = vlaneseq
        %v838 = vshrl.u32 %v837, 7
        %v839 = vsub.s32 1, %v838
        %v840 = vrot.slane %v831, %v839
        %v841 = vlaneseq
        %v842 = vshrl.u32 %v841, 7
        %v843 = vsub.s32 2, %v842
        %v844 = vrot.slane %v831, %v843
        %v845 = vlaneseq
        %v846 = vshrl.u32 %v845, 7
        %v847 = vsub.s32 3, %v846
        %v848 = vrot.slane %v831, %v847
        %v861 = vunpack.c.l.b16 %v599
        %v862 = vunpack.c.h.b16 %v599
        %v863 = vunpack.c.l.b16 %v600
        %v864 = vunpack.c.h.b16 %v600
        %v865 = vunpack.c.l.b16 %v601
        %v866 = vunpack.c.h.b16 %v601
        %v867 = vunpack.c.l.b16 %v602
        %v868 = vunpack.c.l.b16 %v603
        %v869 = vunpack.c.h.b16 %v603
        %v870 = vunpack.c.l.b16 %v604
        %v871 = vunpack.c.h.b16 %v604
        %v872 = vunpack.c.l.b16 %v605
        %v873 = vunpack.c.h.b16 %v605
        %v874 = vunpack.c.l.b16 %v606
        %v875 = vpack.c.b16 %v868, %v861
        %v876 = vpack.c.b16 %v869, %v862
        %v877 = vpack.c.b16 %v870, %v863
        %v878 = vpack.c.b16 %v871, %v864
        %v879 = vpack.c.b16 %v872, %v865
        %v880 = vpack.c.b16 %v873, %v866
        %v881 = vpack.c.b16 %v874, %v867
        %v1113 = vunpack.c.l.b16 %v607
        %v1114 = vunpack.c.h.b16 %v607
        %v1115 = vunpack.c.l.b16 %v608
        %v1116 = vunpack.c.h.b16 %v608
        %v1117 = vunpack.c.l.b16 %v609
        %v1118 = vunpack.c.h.b16 %v609
        %v1119 = vunpack.c.l.b16 %v610
        %v1120 = vunpack.c.h.b16 %v610
        %v1121 = vunpack.c.l.b16 %v611
        %v1122 = vunpack.c.h.b16 %v611
        %v1123 = vunpack.c.l.b16 %v612
        %v1124 = vunpack.c.h.b16 %v612
        %v1125 = vunpack.c.l.b16 %v613
        %v1126 = vunpack.c.h.b16 %v613
        %v1127 = vunpack.c.l.b16 %v614
        %v1128 = vunpack.c.h.b16 %v614
        %v1129 = vunpack.c.l.b16 %v615
        %v1130 = vunpack.c.h.b16 %v615
        %v1131 = vunpack.c.l.b16 %v616
        %v1132 = vunpack.c.h.b16 %v616
        %v1133 = vunpack.c.l.b16 %v617
        %v1134 = vunpack.c.h.b16 %v617
        %v1135 = vunpack.c.l.b16 %v618
        %v1136 = vunpack.c.h.b16 %v618
        %v1137 = vunpack.c.l.b16 %v619
        %v1138 = vunpack.c.h.b16 %v619
        %v1139 = vunpack.c.l.b16 %v620
        %v1140 = vunpack.c.h.b16 %v620
        %v1141 = vunpack.c.l.b16 %v621
        %v1142 = vunpack.c.h.b16 %v621
        %v1143 = vunpack.c.l.b16 %v622
        %v1144 = vunpack.c.h.b16 %v622
        %v1145 = vunpack.c.l.b16 %v623
        %v1146 = vunpack.c.h.b16 %v623
        %v1147 = vunpack.c.l.b16 %v624
        %v1148 = vunpack.c.h.b16 %v624
        %v1149 = vunpack.c.l.b16 %v625
        %v1150 = vunpack.c.h.b16 %v625
        %v1151 = vunpack.c.l.b16 %v626
        %v1152 = vunpack.c.h.b16 %v626
        %v1153 = vunpack.c.l.b16 %v627
        %v1154 = vunpack.c.h.b16 %v627
        %v1155 = vunpack.c.l.b16 %v628
        %v1156 = vunpack.c.h.b16 %v628
        %v1157 = vunpack.c.l.b16 %v629
        %v1158 = vunpack.c.h.b16 %v629
        %v1159 = vunpack.c.l.b16 %v630
        %v1160 = vunpack.c.h.b16 %v630
        %v1161 = vunpack.c.l.b16 %v631
        %v1162 = vunpack.c.h.b16 %v631
        %v1163 = vunpack.c.l.b16 %v632
        %v1164 = vunpack.c.h.b16 %v632
        %v1165 = vunpack.c.l.b16 %v633
        %v1166 = vunpack.c.h.b16 %v633
        %v1167 = vunpack.c.l.b16 %v634
        %v1168 = vunpack.c.h.b16 %v634
        %v1169 = vunpack.c.l.b16 %v635
        %v1170 = vunpack.c.h.b16 %v635
        %v1171 = vunpack.c.l.b16 %v636
        %v1172 = vunpack.c.h.b16 %v636
        %v1173 = vunpack.c.l.b16 %v637
        %v1174 = vunpack.c.h.b16 %v637
        %v1175 = vunpack.c.l.b16 %v638
        %v1176 = vunpack.c.h.b16 %v638
        %v1177 = vunpack.c.l.b16 %v639
        %v1178 = vunpack.c.h.b16 %v639
        %v1179 = vunpack.c.l.b16 %v640
        %v1180 = vunpack.c.h.b16 %v640
        %v1181 = vunpack.c.l.b16 %v641
        %v1182 = vunpack.c.h.b16 %v641
        %v1183 = vunpack.c.l.b16 %v642
        %v1184 = vunpack.c.h.b16 %v642
        %v1185 = vunpack.c.l.b16 %v643
        %v1186 = vunpack.c.h.b16 %v643
        %v1187 = vunpack.c.l.b16 %v644
        %v1188 = vunpack.c.h.b16 %v644
        %v1189 = vunpack.c.l.b16 %v645
        %v1190 = vunpack.c.h.b16 %v645
        %v1191 = vunpack.c.l.b16 %v646
        %v1192 = vunpack.c.h.b16 %v646
        %v1193 = vunpack.c.l.b16 %v647
        %v1194 = vunpack.c.h.b16 %v647
        %v1195 = vunpack.c.l.b16 %v648
        %v1196 = vunpack.c.h.b16 %v648
        %v1197 = vunpack.c.l.b16 %v649
        %v1198 = vunpack.c.h.b16 %v649
        %v1199 = vunpack.c.l.b16 %v650
        %v1200 = vunpack.c.h.b16 %v650
        %v1201 = vunpack.c.l.b16 %v651
        %v1202 = vunpack.c.h.b16 %v651
        %v1203 = vunpack.c.l.b16 %v652
        %v1204 = vunpack.c.h.b16 %v652
        %v1205 = vunpack.c.l.b16 %v653
        %v1206 = vunpack.c.h.b16 %v653
        %v1207 = vunpack.c.l.b16 %v654
        %v1208 = vunpack.c.h.b16 %v654
        %v1209 = vunpack.c.l.b16 %v655
        %v1210 = vunpack.c.h.b16 %v655
        %v1211 = vunpack.c.l.b16 %v656
        %v1212 = vunpack.c.h.b16 %v656
        %v1213 = vunpack.c.l.b16 %v657
        %v1214 = vunpack.c.h.b16 %v657
        %v1215 = vunpack.c.l.b16 %v658
        %v1216 = vunpack.c.h.b16 %v658
        %v1217 = vunpack.c.l.b16 %v659
        %v1218 = vunpack.c.h.b16 %v659
        %v1219 = vunpack.c.l.b16 %v660
        %v1220 = vunpack.c.h.b16 %v660
        %v1221 = vunpack.c.l.b16 %v661
        %v1222 = vunpack.c.h.b16 %v661
        %v1223 = vunpack.c.l.b16 %v662
        %v1224 = vunpack.c.h.b16 %v662
        %v1225 = vunpack.c.l.b16 %v663
        %v1226 = vunpack.c.h.b16 %v663
        %v1227 = vunpack.c.l.b16 %v664
        %v1228 = vunpack.c.h.b16 %v664
        %v1229 = vunpack.c.l.b16 %v665
        %v1230 = vunpack.c.h.b16 %v665
        %v1231 = vunpack.c.l.b16 %v666
        %v1232 = vunpack.c.h.b16 %v666
        %v1233 = vunpack.c.l.b16 %v667
        %v1234 = vunpack.c.h.b16 %v667
        %v1235 = vunpack.c.l.b16 %v668
        %v1236 = vunpack.c.h.b16 %v668
        %v1237 = vunpack.c.l.b16 %v669
        %v1238 = vunpack.c.h.b16 %v669
        %v1239 = vunpack.c.l.b16 %v670
        %v1240 = vunpack.c.h.b16 %v670
        %v1241 = vunpack.c.l.b16 %v671
        %v1242 = vunpack.c.h.b16 %v671
        %v1243 = vunpack.c.l.b16 %v672
        %v1244 = vunpack.c.h.b16 %v672
        %v1245 = vunpack.c.l.b16 %v673
        %v1246 = vunpack.c.h.b16 %v673
        %v1247 = vunpack.c.l.b16 %v674
        %v1248 = vunpack.c.h.b16 %v674
        %v1249 = vunpack.c.l.b16 %v675
        %v1250 = vunpack.c.h.b16 %v675
        %v1251 = vunpack.c.l.b16 %v676
        %v1252 = vunpack.c.h.b16 %v676
        %v1253 = vunpack.c.l.b16 %v677
        %v1254 = vunpack.c.h.b16 %v677
        %v1255 = vunpack.c.l.b16 %v678
        %v1256 = vunpack.c.h.b16 %v678
        %v1257 = vunpack.c.l.b16 %v679
        %v1258 = vunpack.c.h.b16 %v679
        %v1259 = vunpack.c.l.b16 %v680
        %v1260 = vunpack.c.h.b16 %v680
        %v1261 = vunpack.c.l.b16 %v681
        %v1262 = vunpack.c.h.b16 %v681
        %v1263 = vunpack.c.l.b16 %v682
        %v1264 = vunpack.c.h.b16 %v682
        %v1265 = vunpack.c.l.b16 %v683
        %v1266 = vunpack.c.h.b16 %v683
        %v1267 = vunpack.c.l.b16 %v684
        %v1268 = vunpack.c.h.b16 %v684
        %v1269 = vunpack.c.l.b16 %v685
        %v1270 = vunpack.c.h.b16 %v685
        %v1271 = vunpack.c.l.b16 %v686
        %v1272 = vunpack.c.h.b16 %v686
        %v1273 = vunpack.c.l.b16 %v687
        %v1274 = vunpack.c.h.b16 %v687
        %v1275 = vunpack.c.l.b16 %v688
        %v1276 = vunpack.c.h.b16 %v688
        %v1277 = vunpack.c.l.b16 %v689
        %v1278 = vunpack.c.h.b16 %v689
        %v1279 = vunpack.c.l.b16 %v690
        %v1280 = vunpack.c.h.b16 %v690
        %v1281 = vunpack.c.l.b16 %v691
        %v1282 = vunpack.c.h.b16 %v691
        %v1283 = vunpack.c.l.b16 %v692
        %v1284 = vunpack.c.h.b16 %v692
        %v1285 = vunpack.c.l.b16 %v693
        %v1286 = vunpack.c.h.b16 %v693
        %v1287 = vunpack.c.l.b16 %v694
        %v1288 = vunpack.c.h.b16 %v694
        %v1289 = vunpack.c.l.b16 %v695
        %v1290 = vunpack.c.h.b16 %v695
        %v1291 = vunpack.c.l.b16 %v696
        %v1292 = vunpack.c.h.b16 %v696
        %v1293 = vunpack.c.l.b16 %v697
        %v1294 = vunpack.c.h.b16 %v697
        %v1295 = vunpack.c.l.b16 %v698
        %v1296 = vunpack.c.h.b16 %v698
        %v1297 = vunpack.c.l.b16 %v699
        %v1298 = vunpack.c.h.b16 %v699
        %v1299 = vunpack.c.l.b16 %v700
        %v1300 = vunpack.c.h.b16 %v700
        %v1301 = vunpack.c.l.b16 %v701
        %v1302 = vunpack.c.h.b16 %v701
        %v1303 = vunpack.c.l.b16 %v702
        %v1304 = vunpack.c.h.b16 %v702
        %v1305 = vunpack.c.l.b16 %v703
        %v1306 = vunpack.c.h.b16 %v703
        %v1307 = vunpack.c.l.b16 %v704
        %v1308 = vunpack.c.h.b16 %v704
        %v1309 = vunpack.c.l.b16 %v705
        %v1310 = vunpack.c.h.b16 %v705
        %v1311 = vunpack.c.l.b16 %v706
        %v1312 = vunpack.c.h.b16 %v706
        %v1313 = vunpack.c.l.b16 %v707
        %v1314 = vunpack.c.h.b16 %v707
        %v1315 = vunpack.c.l.b16 %v708
        %v1316 = vunpack.c.h.b16 %v708
        %v1317 = vunpack.c.l.b16 %v709
        %v1318 = vunpack.c.h.b16 %v709
        %v1319 = vunpack.c.l.b16 %v710
        %v1320 = vunpack.c.h.b16 %v710
        %v1321 = vunpack.c.l.b16 %v711
        %v1322 = vunpack.c.h.b16 %v711
        %v1323 = vunpack.c.l.b16 %v712
        %v1324 = vunpack.c.h.b16 %v712
        %v1325 = vunpack.c.l.b16 %v713
        %v1326 = vunpack.c.h.b16 %v713
        %v1327 = vunpack.c.l.b16 %v714
        %v1328 = vunpack.c.h.b16 %v714
        %v1329 = vunpack.c.l.b16 %v715
        %v1330 = vunpack.c.h.b16 %v715
        %v1331 = vunpack.c.l.b16 %v716
        %v1332 = vunpack.c.h.b16 %v716
        %v1333 = vunpack.c.l.b16 %v717
        %v1334 = vunpack.c.h.b16 %v717
        %v1335 = vunpack.c.l.b16 %v718
        %v1336 = vunpack.c.h.b16 %v718
        %v1337 = vunpack.c.l.b16 %v719
        %v1338 = vunpack.c.h.b16 %v719
        %v1339 = vunpack.c.l.b16 %v720
        %v1340 = vunpack.c.h.b16 %v720
        %v1341 = vunpack.c.l.b16 %v721
        %v1342 = vunpack.c.h.b16 %v721
        %v1343 = vunpack.c.l.b16 %v722
        %v1344 = vunpack.c.h.b16 %v722
        %v1345 = vunpack.c.l.b16 %v723
        %v1346 = vunpack.c.h.b16 %v723
        %v1347 = vunpack.c.l.b16 %v724
        %v1348 = vunpack.c.h.b16 %v724
        %v1349 = vunpack.c.l.b16 %v725
        %v1350 = vunpack.c.h.b16 %v725
        %v1351 = vunpack.c.l.b16 %v726
        %v1352 = vunpack.c.h.b16 %v726
        %v1353 = vunpack.c.l.b16 %v727
        %v1354 = vunpack.c.h.b16 %v727
        %v1355 = vunpack.c.l.b16 %v728
        %v1356 = vunpack.c.h.b16 %v728
        %v1357 = vunpack.c.l.b16 %v729
        %v1358 = vunpack.c.h.b16 %v729
        %v1359 = vunpack.c.l.b16 %v730
        %v1360 = vunpack.c.h.b16 %v730
        %v1361 = vunpack.c.l.b16 %v731
        %v1362 = vunpack.c.h.b16 %v731
        %v1363 = vunpack.c.l.b16 %v732
        %v1364 = vunpack.c.h.b16 %v732
        %v1365 = vunpack.c.l.b16 %v733
        %v1366 = vunpack.c.h.b16 %v733
        %v1367 = vunpack.c.l.b16 %v734
        %v1368 = vunpack.c.h.b16 %v734
        %v1369 = vunpack.c.l.b16 %v735
        %v1370 = vunpack.c.h.b16 %v735
        %v1371 = vunpack.c.l.b16 %v736
        %v1372 = vunpack.c.h.b16 %v736
        %v1373 = vunpack.c.l.b16 %v737
        %v1374 = vunpack.c.h.b16 %v737
        %v1375 = vunpack.c.l.b16 %v738
        %v1376 = vunpack.c.h.b16 %v738
        %v1377 = vunpack.c.l.b16 %v739
        %v1378 = vunpack.c.h.b16 %v739
        %v1379 = vunpack.c.l.b16 %v740
        %v1380 = vunpack.c.h.b16 %v740
        %v1381 = vunpack.c.l.b16 %v741
        %v1382 = vunpack.c.h.b16 %v741
        %v1383 = vunpack.c.l.b16 %v742
        %v1384 = vunpack.c.h.b16 %v742
        %v1385 = vunpack.c.l.b16 %v743
        %v1386 = vunpack.c.h.b16 %v743
        %v1387 = vunpack.c.l.b16 %v744
        %v1388 = vunpack.c.h.b16 %v744
        %v1389 = vunpack.c.l.b16 %v745
        %v1390 = vunpack.c.h.b16 %v745
        %v1391 = vunpack.c.l.b16 %v746
        %v1392 = vunpack.c.h.b16 %v746
        %v1393 = vunpack.c.l.b16 %v747
        %v1394 = vunpack.c.h.b16 %v747
        %v1395 = vunpack.c.l.b16 %v748
        %v1396 = vunpack.c.h.b16 %v748
        %v1397 = vunpack.c.l.b16 %v749
        %v1398 = vunpack.c.h.b16 %v749
        %v1399 = vunpack.c.l.b16 %v750
        %v1400 = vunpack.c.h.b16 %v750
        %v1401 = vunpack.c.l.b16 %v751
        %v1402 = vunpack.c.h.b16 %v751
        %v1403 = vunpack.c.l.b16 %v752
        %v1404 = vunpack.c.h.b16 %v752
        %v1405 = vunpack.c.l.b16 %v753
        %v1406 = vunpack.c.h.b16 %v753
        %v1407 = vunpack.c.l.b16 %v754
        %v1408 = vunpack.c.h.b16 %v754
        %v1409 = vunpack.c.l.b16 %v755
        %v1410 = vunpack.c.h.b16 %v755
        %v1411 = vunpack.c.l.b16 %v756
        %v1412 = vunpack.c.h.b16 %v756
        %v1413 = vunpack.c.l.b16 %v757
        %v1414 = vunpack.c.h.b16 %v757
        %v1415 = vunpack.c.l.b16 %v758
        %v1416 = vunpack.c.h.b16 %v758
        %v1417 = vunpack.c.l.b16 %v759
        %v1418 = vunpack.c.h.b16 %v759
        %v1419 = vunpack.c.l.b16 %v760
        %v1420 = vunpack.c.h.b16 %v760
        %v1421 = vunpack.c.l.b16 %v761
        %v1422 = vunpack.c.h.b16 %v761
        %v1423 = vunpack.c.l.b16 %v762
        %v1424 = vunpack.c.h.b16 %v762
        %v1425 = vunpack.c.l.b16 %v763
        %v1426 = vunpack.c.h.b16 %v763
        %v1427 = vunpack.c.l.b16 %v764
        %v1428 = vunpack.c.h.b16 %v764
        %v1429 = vunpack.c.l.b16 %v765
        %v1430 = vunpack.c.h.b16 %v765
        %v1431 = vunpack.c.l.b16 %v766
        %v1432 = vunpack.c.h.b16 %v766
        %v1433 = vunpack.c.l.b16 %v767
        %v1434 = vunpack.c.h.b16 %v767
        %v1435 = vunpack.c.l.b16 %v768
        %v1436 = vunpack.c.h.b16 %v768
        %v1437 = vunpack.c.l.b16 %v769
        %v1438 = vunpack.c.h.b16 %v769
        %v1439 = vunpack.c.l.b16 %v770
        %v1440 = vunpack.c.h.b16 %v770
        %v1441 = vunpack.c.l.b16 %v771
        %v1442 = vunpack.c.h.b16 %v771
        %v1443 = vunpack.c.l.b16 %v772
        %v1444 = vunpack.c.h.b16 %v772
        %v1445 = vunpack.c.l.b16 %v773
        %v1446 = vunpack.c.h.b16 %v773
        %v1447 = vunpack.c.l.b16 %v774
        %v1448 = vunpack.c.h.b16 %v774
        %v1449 = vunpack.c.l.b16 %v775
        %v1450 = vunpack.c.h.b16 %v775
        %v1451 = vunpack.c.l.b16 %v776
        %v1452 = vunpack.c.h.b16 %v776
        %v1453 = vunpack.c.l.b16 %v777
        %v1454 = vunpack.c.h.b16 %v777
        %v1455 = vunpack.c.l.b16 %v778
        %v1456 = vunpack.c.h.b16 %v778
        %v1457 = vunpack.c.l.b16 %v779
        %v1458 = vunpack.c.h.b16 %v779
        %v1459 = vunpack.c.l.b16 %v780
        %v1460 = vunpack.c.h.b16 %v780
        %v1461 = vunpack.c.l.b16 %v781
        %v1462 = vunpack.c.h.b16 %v781
        %v1463 = vunpack.c.l.b16 %v782
        %v1464 = vunpack.c.h.b16 %v782
        %v1465 = vunpack.c.l.b16 %v783
        %v1466 = vunpack.c.h.b16 %v783
        %v1467 = vunpack.c.l.b16 %v784
        %v1468 = vunpack.c.h.b16 %v784
        %v1469 = vunpack.c.l.b16 %v785
        %v1470 = vunpack.c.h.b16 %v785
        %v1471 = vunpack.c.l.b16 %v786
        %v1472 = vunpack.c.h.b16 %v786
        %v1473 = vunpack.c.l.b16 %v787
        %v1474 = vunpack.c.h.b16 %v787
        %v1475 = vunpack.c.l.b16 %v788
        %v1476 = vunpack.c.h.b16 %v788
        %v1477 = vunpack.c.l.b16 %v789
        %v1478 = vunpack.c.h.b16 %v789
        %v1479 = vunpack.c.l.b16 %v790
        %v1480 = vunpack.c.h.b16 %v790
        %v1481 = vunpack.c.l.b16 %v791
        %v1482 = vunpack.c.h.b16 %v791
        %v1483 = vunpack.c.l.b16 %v792
        %v1484 = vunpack.c.h.b16 %v792
        %v1485 = vunpack.c.l.b16 %v793
        %v1486 = vunpack.c.h.b16 %v793
        %v1487 = vunpack.c.l.b16 %v794
        %v1488 = vunpack.c.h.b16 %v794
        %v1489 = vunpack.c.l.b16 %v795
        %v1490 = vunpack.c.h.b16 %v795
        %v1491 = vunpack.c.l.b16 %v796
        %v1492 = vunpack.c.h.b16 %v796
        %v1493 = vunpack.c.l.b16 %v797
        %v1494 = vunpack.c.h.b16 %v797
        %v1495 = vunpack.c.l.b16 %v798
        %v1496 = vunpack.c.h.b16 %v798
        %v1497 = vunpack.c.l.b16 %v799
        %v1498 = vunpack.c.h.b16 %v799
        %v1499 = vunpack.c.l.b16 %v800
        %v1500 = vunpack.c.h.b16 %v800
        %v1501 = vunpack.c.l.b16 %v801
        %v1502 = vunpack.c.h.b16 %v801
        %v1503 = vunpack.c.l.b16 %v802
        %v1504 = vunpack.c.h.b16 %v802
        %v1505 = vunpack.c.l.b16 %v803
        %v1506 = vunpack.c.h.b16 %v803
        %v1507 = vunpack.c.l.b16 %v804
        %v1508 = vunpack.c.h.b16 %v804
        %v1509 = vunpack.c.l.b16 %v805
        %v1510 = vunpack.c.h.b16 %v805
        %v1511 = vunpack.c.l.b16 %v806
        %v1512 = vunpack.c.h.b16 %v806
        %v1513 = vunpack.c.l.b16 %v807
        %v1514 = vunpack.c.h.b16 %v807
        %v1515 = vunpack.c.l.b16 %v808
        %v1516 = vunpack.c.h.b16 %v808
        %v1517 = vunpack.c.l.b16 %v809
        %v1518 = vunpack.c.h.b16 %v809
        %v1519 = vunpack.c.l.b16 %v810
        %v1520 = vunpack.c.h.b16 %v810
        %v1521 = vunpack.c.l.b16 %v811
        %v1522 = vunpack.c.h.b16 %v811
        %v1523 = vunpack.c.l.b16 %v812
        %v1524 = vunpack.c.h.b16 %v812
        %v1525 = vunpack.c.l.b16 %v813
        %v1526 = vunpack.c.h.b16 %v813
        %v1527 = vunpack.c.l.b16 %v814
        %v1528 = vunpack.c.h.b16 %v814
        %v1529 = vunpack.c.l.b16 %v815
        %v1530 = vunpack.c.h.b16 %v815
        %v1531 = vunpack.c.l.b16 %v816
        %v1532 = vunpack.c.h.b16 %v816
        %v1533 = vunpack.c.l.b16 %v817
        %v1534 = vunpack.c.h.b16 %v817
        %v1535 = vunpack.c.l.b16 %v818
        %v1536 = vunpack.c.h.b16 %v818
        %v1537 = vunpack.c.l.b16 %v819
        %v1538 = vunpack.c.h.b16 %v819
        %v1539 = vunpack.c.l.b16 %v820
        %v1540 = vunpack.c.h.b16 %v820
        %v1541 = vunpack.c.l.b16 %v821
        %v1542 = vunpack.c.h.b16 %v821
        %v1543 = vunpack.c.l.b16 %v822
        %v1544 = vunpack.c.h.b16 %v822
        %v1545 = vunpack.c.l.b16 %v823
        %v1546 = vunpack.c.h.b16 %v823
        %v1547 = vunpack.c.l.b16 %v824
        %v1548 = vunpack.c.h.b16 %v824
        %v1549 = vunpack.c.l.b16 %v825
        %v1550 = vunpack.c.h.b16 %v825
        %v1551 = vunpack.c.l.b16 %v826
        %v1552 = vunpack.c.h.b16 %v826
        %v1553 = vunpack.c.l.b16 %v827
        %v1554 = vunpack.c.h.b16 %v827
        %v1555 = vunpack.c.l.b16 %v828
        %v1556 = vunpack.c.h.b16 %v828
        %v1557 = vunpack.c.l.b16 %v829
        %v1558 = vunpack.c.h.b16 %v829
        %v1559 = vunpack.c.l.b16 %v830
        %v1560 = vunpack.c.h.b16 %v830
        %v1561 = vpack.c.b16 %v1117, %v1113
        %v1562 = vpack.c.b16 %v1118, %v1114
        %v1563 = vpack.c.b16 %v1119, %v1115
        %v1564 = vpack.c.b16 %v1120, %v1116
        %v1565 = vpack.c.b16 %v1125, %v1121
        %v1566 = vpack.c.b16 %v1126, %v1122
        %v1567 = vpack.c.b16 %v1127, %v1123
        %v1568 = vpack.c.b16 %v1128, %v1124
        %v1569 = vpack.c.b16 %v1133, %v1129
        %v1570 = vpack.c.b16 %v1134, %v1130
        %v1571 = vpack.c.b16 %v1135, %v1131
        %v1572 = vpack.c.b16 %v1136, %v1132
        %v1573 = vpack.c.b16 %v1141, %v1137
        %v1574 = vpack.c.b16 %v1142, %v1138
        %v1575 = vpack.c.b16 %v1143, %v1139
        %v1576 = vpack.c.b16 %v1144, %v1140
        %v1577 = vpack.c.b16 %v1149, %v1145
        %v1578 = vpack.c.b16 %v1150, %v1146
        %v1579 = vpack.c.b16 %v1151, %v1147
        %v1580 = vpack.c.b16 %v1152, %v1148
        %v1581 = vpack.c.b16 %v1157, %v1153
        %v1582 = vpack.c.b16 %v1158, %v1154
        %v1583 = vpack.c.b16 %v1159, %v1155
        %v1584 = vpack.c.b16 %v1160, %v1156
        %v1585 = vpack.c.b16 %v1165, %v1161
        %v1586 = vpack.c.b16 %v1166, %v1162
        %v1587 = vpack.c.b16 %v1167, %v1163
        %v1588 = vpack.c.b16 %v1168, %v1164
        %v1589 = vpack.c.b16 %v1173, %v1169
        %v1590 = vpack.c.b16 %v1174, %v1170
        %v1591 = vpack.c.b16 %v1175, %v1171
        %v1592 = vpack.c.b16 %v1176, %v1172
        %v1593 = vpack.c.b16 %v1181, %v1177
        %v1594 = vpack.c.b16 %v1182, %v1178
        %v1595 = vpack.c.b16 %v1183, %v1179
        %v1596 = vpack.c.b16 %v1184, %v1180
        %v1597 = vpack.c.b16 %v1189, %v1185
        %v1598 = vpack.c.b16 %v1190, %v1186
        %v1599 = vpack.c.b16 %v1191, %v1187
        %v1600 = vpack.c.b16 %v1192, %v1188
        %v1601 = vpack.c.b16 %v1197, %v1193
        %v1602 = vpack.c.b16 %v1198, %v1194
        %v1603 = vpack.c.b16 %v1199, %v1195
        %v1604 = vpack.c.b16 %v1200, %v1196
        %v1605 = vpack.c.b16 %v1205, %v1201
        %v1606 = vpack.c.b16 %v1206, %v1202
        %v1607 = vpack.c.b16 %v1207, %v1203
        %v1608 = vpack.c.b16 %v1208, %v1204
        %v1609 = vpack.c.b16 %v1213, %v1209
        %v1610 = vpack.c.b16 %v1214, %v1210
        %v1611 = vpack.c.b16 %v1215, %v1211
        %v1612 = vpack.c.b16 %v1216, %v1212
        %v1613 = vpack.c.b16 %v1221, %v1217
        %v1614 = vpack.c.b16 %v1222, %v1218
        %v1615 = vpack.c.b16 %v1223, %v1219
        %v1616 = vpack.c.b16 %v1224, %v1220
        %v1617 = vpack.c.b16 %v1229, %v1225
        %v1618 = vpack.c.b16 %v1230, %v1226
        %v1619 = vpack.c.b16 %v1231, %v1227
        %v1620 = vpack.c.b16 %v1232, %v1228
        %v1621 = vpack.c.b16 %v1237, %v1233
        %v1622 = vpack.c.b16 %v1238, %v1234
        %v1623 = vpack.c.b16 %v1239, %v1235
        %v1624 = vpack.c.b16 %v1240, %v1236
        %v1625 = vpack.c.b16 %v1245, %v1241
        %v1626 = vpack.c.b16 %v1246, %v1242
        %v1627 = vpack.c.b16 %v1247, %v1243
        %v1628 = vpack.c.b16 %v1248, %v1244
        %v1629 = vpack.c.b16 %v1253, %v1249
        %v1630 = vpack.c.b16 %v1254, %v1250
        %v1631 = vpack.c.b16 %v1255, %v1251
        %v1632 = vpack.c.b16 %v1256, %v1252
        %v1633 = vpack.c.b16 %v1261, %v1257
        %v1634 = vpack.c.b16 %v1262, %v1258
        %v1635 = vpack.c.b16 %v1263, %v1259
        %v1636 = vpack.c.b16 %v1264, %v1260
        %v1637 = vpack.c.b16 %v1269, %v1265
        %v1638 = vpack.c.b16 %v1270, %v1266
        %v1639 = vpack.c.b16 %v1271, %v1267
        %v1640 = vpack.c.b16 %v1272, %v1268
        %v1641 = vpack.c.b16 %v1277, %v1273
        %v1642 = vpack.c.b16 %v1278, %v1274
        %v1643 = vpack.c.b16 %v1279, %v1275
        %v1644 = vpack.c.b16 %v1280, %v1276
        %v1645 = vpack.c.b16 %v1285, %v1281
        %v1646 = vpack.c.b16 %v1286, %v1282
        %v1647 = vpack.c.b16 %v1287, %v1283
        %v1648 = vpack.c.b16 %v1288, %v1284
        %v1649 = vpack.c.b16 %v1293, %v1289
        %v1650 = vpack.c.b16 %v1294, %v1290
        %v1651 = vpack.c.b16 %v1295, %v1291
        %v1652 = vpack.c.b16 %v1296, %v1292
        %v1653 = vpack.c.b16 %v1301, %v1297
        %v1654 = vpack.c.b16 %v1302, %v1298
        %v1655 = vpack.c.b16 %v1303, %v1299
        %v1656 = vpack.c.b16 %v1304, %v1300
        %v1657 = vpack.c.b16 %v1309, %v1305
        %v1658 = vpack.c.b16 %v1310, %v1306
        %v1659 = vpack.c.b16 %v1311, %v1307
        %v1660 = vpack.c.b16 %v1312, %v1308
        %v1661 = vpack.c.b16 %v1317, %v1313
        %v1662 = vpack.c.b16 %v1318, %v1314
        %v1663 = vpack.c.b16 %v1319, %v1315
        %v1664 = vpack.c.b16 %v1320, %v1316
        %v1665 = vpack.c.b16 %v1325, %v1321
        %v1666 = vpack.c.b16 %v1326, %v1322
        %v1667 = vpack.c.b16 %v1327, %v1323
        %v1668 = vpack.c.b16 %v1328, %v1324
        %v1669 = vpack.c.b16 %v1333, %v1329
        %v1670 = vpack.c.b16 %v1334, %v1330
        %v1671 = vpack.c.b16 %v1335, %v1331
        %v1672 = vpack.c.b16 %v1336, %v1332
        %v1673 = vpack.c.b16 %v1341, %v1337
        %v1674 = vpack.c.b16 %v1342, %v1338
        %v1675 = vpack.c.b16 %v1343, %v1339
        %v1676 = vpack.c.b16 %v1344, %v1340
        %v1677 = vpack.c.b16 %v1349, %v1345
        %v1678 = vpack.c.b16 %v1350, %v1346
        %v1679 = vpack.c.b16 %v1351, %v1347
        %v1680 = vpack.c.b16 %v1352, %v1348
        %v1681 = vpack.c.b16 %v1357, %v1353
        %v1682 = vpack.c.b16 %v1358, %v1354
        %v1683 = vpack.c.b16 %v1359, %v1355
        %v1684 = vpack.c.b16 %v1360, %v1356
        %v1685 = vpack.c.b16 %v1365, %v1361
        %v1686 = vpack.c.b16 %v1366, %v1362
        %v1687 = vpack.c.b16 %v1367, %v1363
        %v1688 = vpack.c.b16 %v1368, %v1364
        %v1689 = vpack.c.b16 %v1373, %v1369
        %v1690 = vpack.c.b16 %v1374, %v1370
        %v1691 = vpack.c.b16 %v1375, %v1371
        %v1692 = vpack.c.b16 %v1376, %v1372
        %v1693 = vpack.c.b16 %v1381, %v1377
        %v1694 = vpack.c.b16 %v1382, %v1378
        %v1695 = vpack.c.b16 %v1383, %v1379
        %v1696 = vpack.c.b16 %v1384, %v1380
        %v1697 = vpack.c.b16 %v1389, %v1385
        %v1698 = vpack.c.b16 %v1390, %v1386
        %v1699 = vpack.c.b16 %v1391, %v1387
        %v1700 = vpack.c.b16 %v1392, %v1388
        %v1701 = vpack.c.b16 %v1397, %v1393
        %v1702 = vpack.c.b16 %v1398, %v1394
        %v1703 = vpack.c.b16 %v1399, %v1395
        %v1704 = vpack.c.b16 %v1400, %v1396
        %v1705 = vpack.c.b16 %v1405, %v1401
        %v1706 = vpack.c.b16 %v1406, %v1402
        %v1707 = vpack.c.b16 %v1407, %v1403
        %v1708 = vpack.c.b16 %v1408, %v1404
        %v1709 = vpack.c.b16 %v1413, %v1409
        %v1710 = vpack.c.b16 %v1414, %v1410
        %v1711 = vpack.c.b16 %v1415, %v1411
        %v1712 = vpack.c.b16 %v1416, %v1412
        %v1713 = vpack.c.b16 %v1421, %v1417
        %v1714 = vpack.c.b16 %v1422, %v1418
        %v1715 = vpack.c.b16 %v1423, %v1419
        %v1716 = vpack.c.b16 %v1424, %v1420
        %v1717 = vpack.c.b16 %v1429, %v1425
        %v1718 = vpack.c.b16 %v1430, %v1426
        %v1719 = vpack.c.b16 %v1431, %v1427
        %v1720 = vpack.c.b16 %v1432, %v1428
        %v1721 = vpack.c.b16 %v1437, %v1433
        %v1722 = vpack.c.b16 %v1438, %v1434
        %v1723 = vpack.c.b16 %v1439, %v1435
        %v1724 = vpack.c.b16 %v1440, %v1436
        %v1725 = vpack.c.b16 %v1445, %v1441
        %v1726 = vpack.c.b16 %v1446, %v1442
        %v1727 = vpack.c.b16 %v1447, %v1443
        %v1728 = vpack.c.b16 %v1448, %v1444
        %v1729 = vpack.c.b16 %v1453, %v1449
        %v1730 = vpack.c.b16 %v1454, %v1450
        %v1731 = vpack.c.b16 %v1455, %v1451
        %v1732 = vpack.c.b16 %v1456, %v1452
        %v1733 = vpack.c.b16 %v1461, %v1457
        %v1734 = vpack.c.b16 %v1462, %v1458
        %v1735 = vpack.c.b16 %v1463, %v1459
        %v1736 = vpack.c.b16 %v1464, %v1460
        %v1737 = vpack.c.b16 %v1469, %v1465
        %v1738 = vpack.c.b16 %v1470, %v1466
        %v1739 = vpack.c.b16 %v1471, %v1467
        %v1740 = vpack.c.b16 %v1472, %v1468
        %v1741 = vpack.c.b16 %v1477, %v1473
        %v1742 = vpack.c.b16 %v1478, %v1474
        %v1743 = vpack.c.b16 %v1479, %v1475
        %v1744 = vpack.c.b16 %v1480, %v1476
        %v1745 = vpack.c.b16 %v1485, %v1481
        %v1746 = vpack.c.b16 %v1486, %v1482
        %v1747 = vpack.c.b16 %v1487, %v1483
        %v1748 = vpack.c.b16 %v1488, %v1484
        %v1749 = vpack.c.b16 %v1493, %v1489
        %v1750 = vpack.c.b16 %v1494, %v1490
        %v1751 = vpack.c.b16 %v1495, %v1491
        %v1752 = vpack.c.b16 %v1496, %v1492
        %v1753 = vpack.c.b16 %v1501, %v1497
        %v1754 = vpack.c.b16 %v1502, %v1498
        %v1755 = vpack.c.b16 %v1503, %v1499
        %v1756 = vpack.c.b16 %v1504, %v1500
        %v1757 = vpack.c.b16 %v1509, %v1505
        %v1758 = vpack.c.b16 %v1510, %v1506
        %v1759 = vpack.c.b16 %v1511, %v1507
        %v1760 = vpack.c.b16 %v1512, %v1508
        %v1761 = vpack.c.b16 %v1517, %v1513
        %v1762 = vpack.c.b16 %v1518, %v1514
        %v1763 = vpack.c.b16 %v1519, %v1515
        %v1764 = vpack.c.b16 %v1520, %v1516
        %v1765 = vpack.c.b16 %v1525, %v1521
        %v1766 = vpack.c.b16 %v1526, %v1522
        %v1767 = vpack.c.b16 %v1527, %v1523
        %v1768 = vpack.c.b16 %v1528, %v1524
        %v1769 = vpack.c.b16 %v1533, %v1529
        %v1770 = vpack.c.b16 %v1534, %v1530
        %v1771 = vpack.c.b16 %v1535, %v1531
        %v1772 = vpack.c.b16 %v1536, %v1532
        %v1773 = vpack.c.b16 %v1541, %v1537
        %v1774 = vpack.c.b16 %v1542, %v1538
        %v1775 = vpack.c.b16 %v1543, %v1539
        %v1776 = vpack.c.b16 %v1544, %v1540
        %v1777 = vpack.c.b16 %v1549, %v1545
        %v1778 = vpack.c.b16 %v1550, %v1546
        %v1779 = vpack.c.b16 %v1551, %v1547
        %v1780 = vpack.c.b16 %v1552, %v1548
        %v1781 = vpack.c.b16 %v1557, %v1553
        %v1782 = vpack.c.b16 %v1558, %v1554
        %v1783 = vpack.c.b16 %v1559, %v1555
        %v1784 = vpack.c.b16 %v1560, %v1556
        %2009 = vmatprep.subr.bf16.mxu0 %v1590
        %2010 = vmatpush1.bf16.msra.mxu0 %v1589
        %2011 = vmatprep.subr.bf16.mxu0 %v1586
        %2012 = vmatpush1.bf16.msra.mxu0 %v1585
        %2013 = vmatprep.subr.bf16.mxu0 %v1582
        %2014 = vmatpush1.bf16.msra.mxu0 %v1581
        %2015 = vmatprep.subr.bf16.mxu0 %v1578
        %2016 = vmatpush1.bf16.msra.mxu0 %v1577
        %2017 = vmatprep.subr.bf16.mxu0 %v1574
        %2018 = vmatpush1.bf16.msra.mxu0 %v1573
        %2019 = vmatprep.subr.bf16.mxu0 %v1570
        %2020 = vmatpush1.bf16.msra.mxu0 %v1569
        %2021 = vmatprep.subr.bf16.mxu0 %v1566
        %2022 = vmatpush1.bf16.msra.mxu0 %v1565
        %2023 = vmatprep.subr.bf16.mxu0 %v1562
        %2024 = vmatpush1.bf16.msra.mxu0 %v1561
        %2025 = vmatprep.subr.bf16.mxu0 %v1622
        %2026 = vmatpush2.bf16.msra.mxu0 %v1621
        %2027 = vmatprep.subr.bf16.mxu0 %v1618
        %2028 = vmatpush2.bf16.msra.mxu0 %v1617
        %2029 = vmatprep.subr.bf16.mxu0 %v1614
        %2030 = vmatpush2.bf16.msra.mxu0 %v1613
        %2031 = vmatprep.subr.bf16.mxu0 %v1610
        %2032 = vmatpush2.bf16.msra.mxu0 %v1609
        %2033 = vmatprep.subr.bf16.mxu0 %v1606
        %2034 = vmatpush2.bf16.msra.mxu0 %v1605
        %2035 = vmatprep.subr.bf16.mxu0 %v1602
        %2036 = vmatpush2.bf16.msra.mxu0 %v1601
        %2037 = vmatprep.subr.bf16.mxu0 %v1598
        %2038 = vmatpush2.bf16.msra.mxu0 %v1597
        %2039 = vmatprep.subr.bf16.mxu0 %v1594
        %2040 = vmatpush2.bf16.msra.mxu0 %v1593
        %2041 = vmatprep.mubr.bf16.mxu0 %v876
        %2042 = vmatmul.mubr.bf16.gmra.mxu0 %v875
        %v2043 = vpop.f32.mrf.mxu0
        %v2044 = vadd.f32 %v836, %v2043
        %v2045 = vpop.f32.mrf.mxu0
        %v2046 = vadd.f32 %v840, %v2045
        %v2047 = vpop.f32.mrf.mxu0
        %v2048 = vadd.f32 %v836, %v2047
        %v2049 = vpop.f32.mrf.mxu0
        %v2050 = vadd.f32 %v840, %v2049
        %2051 = vdwg.mxu0
        %2052 = vmatprep.subr.bf16.mxu0 %v1654
        %2053 = vmatpush1.bf16.msra.mxu0 %v1653
        %2054 = vmatprep.subr.bf16.mxu0 %v1650
        %2055 = vmatpush1.bf16.msra.mxu0 %v1649
        %2056 = vmatprep.subr.bf16.mxu0 %v1646
        %2057 = vmatpush1.bf16.msra.mxu0 %v1645
        %2058 = vmatprep.subr.bf16.mxu0 %v1642
        %2059 = vmatpush1.bf16.msra.mxu0 %v1641
        %2060 = vmatprep.subr.bf16.mxu0 %v1638
        %2061 = vmatpush1.bf16.msra.mxu0 %v1637
        %2062 = vmatprep.subr.bf16.mxu0 %v1634
        %2063 = vmatpush1.bf16.msra.mxu0 %v1633
        %2064 = vmatprep.subr.bf16.mxu0 %v1630
        %2065 = vmatpush1.bf16.msra.mxu0 %v1629
        %2066 = vmatprep.subr.bf16.mxu0 %v1626
        %2067 = vmatpush1.bf16.msra.mxu0 %v1625
        %2068 = vmatprep.subr.bf16.mxu0 %v1686
        %2069 = vmatpush2.bf16.msra.mxu0 %v1685
        %2070 = vmatprep.subr.bf16.mxu0 %v1682
        %2071 = vmatpush2.bf16.msra.mxu0 %v1681
        %2072 = vmatprep.subr.bf16.mxu0 %v1678
        %2073 = vmatpush2.bf16.msra.mxu0 %v1677
        %2074 = vmatprep.subr.bf16.mxu0 %v1674
        %2075 = vmatpush2.bf16.msra.mxu0 %v1673
        %2076 = vmatprep.subr.bf16.mxu0 %v1670
        %2077 = vmatpush2.bf16.msra.mxu0 %v1669
        %2078 = vmatprep.subr.bf16.mxu0 %v1666
        %2079 = vmatpush2.bf16.msra.mxu0 %v1665
        %2080 = vmatprep.subr.bf16.mxu0 %v1662
        %2081 = vmatpush2.bf16.msra.mxu0 %v1661
        %2082 = vmatprep.subr.bf16.mxu0 %v1658
        %2083 = vmatpush2.bf16.msra.mxu0 %v1657
        %2084 = vmatprep.mubr.bf16.mxu0 %v878
        %2085 = vmatmul.mubr.bf16.gmra.mxu0 %v877
        %v2086 = vpop.f32.mrf.mxu0
        %v2087 = vadd.f32 %v2044, %v2086
        %v2088 = vpop.f32.mrf.mxu0
        %v2089 = vadd.f32 %v2046, %v2088
        %v2090 = vpop.f32.mrf.mxu0
        %v2091 = vadd.f32 %v2048, %v2090
        %v2092 = vpop.f32.mrf.mxu0
        %v2093 = vadd.f32 %v2050, %v2092
        %2094 = vdwg.mxu0
        %2095 = vmatprep.subr.bf16.mxu0 %v1718
        %2096 = vmatpush1.bf16.msra.mxu0 %v1717
        %2097 = vmatprep.subr.bf16.mxu0 %v1714
        %2098 = vmatpush1.bf16.msra.mxu0 %v1713
        %2099 = vmatprep.subr.bf16.mxu0 %v1710
        %2100 = vmatpush1.bf16.msra.mxu0 %v1709
        %2101 = vmatprep.subr.bf16.mxu0 %v1706
        %2102 = vmatpush1.bf16.msra.mxu0 %v1705
        %2103 = vmatprep.subr.bf16.mxu0 %v1702
        %2104 = vmatpush1.bf16.msra.mxu0 %v1701
        %2105 = vmatprep.subr.bf16.mxu0 %v1698
        %2106 = vmatpush1.bf16.msra.mxu0 %v1697
        %2107 = vmatprep.subr.bf16.mxu0 %v1694
        %2108 = vmatpush1.bf16.msra.mxu0 %v1693
        %2109 = vmatprep.subr.bf16.mxu0 %v1690
        %2110 = vmatpush1.bf16.msra.mxu0 %v1689
        %2111 = vmatprep.subr.bf16.mxu0 %v1750
        %2112 = vmatpush2.bf16.msra.mxu0 %v1749
        %2113 = vmatprep.subr.bf16.mxu0 %v1746
        %2114 = vmatpush2.bf16.msra.mxu0 %v1745
        %2115 = vmatprep.subr.bf16.mxu0 %v1742
        %2116 = vmatpush2.bf16.msra.mxu0 %v1741
        %2117 = vmatprep.subr.bf16.mxu0 %v1738
        %2118 = vmatpush2.bf16.msra.mxu0 %v1737
        %2119 = vmatprep.subr.bf16.mxu0 %v1734
        %2120 = vmatpush2.bf16.msra.mxu0 %v1733
        %2121 = vmatprep.subr.bf16.mxu0 %v1730
        %2122 = vmatpush2.bf16.msra.mxu0 %v1729
        %2123 = vmatprep.subr.bf16.mxu0 %v1726
        %2124 = vmatpush2.bf16.msra.mxu0 %v1725
        %2125 = vmatprep.subr.bf16.mxu0 %v1722
        %2126 = vmatpush2.bf16.msra.mxu0 %v1721
        %2127 = vmatprep.mubr.bf16.mxu0 %v880
        %2128 = vmatmul.mubr.bf16.gmra.mxu0 %v879
        %v2129 = vpop.f32.mrf.mxu0
        %v2130 = vadd.f32 %v2087, %v2129
        %v2131 = vpop.f32.mrf.mxu0
        %v2132 = vadd.f32 %v2089, %v2131
        %v2133 = vpop.f32.mrf.mxu0
        %v2134 = vadd.f32 %v2091, %v2133
        %v2135 = vpop.f32.mrf.mxu0
        %v2136 = vadd.f32 %v2093, %v2135
        %2137 = vdwg.mxu0
        %2138 = vmatprep.subr.bf16.mxu0 %v1782
        %2139 = vmatpush1.bf16.msra.mxu0 %v1781
        %2140 = vmatprep.subr.bf16.mxu0 %v1778
        %2141 = vmatpush1.bf16.msra.mxu0 %v1777
        %2142 = vmatprep.subr.bf16.mxu0 %v1774
        %2143 = vmatpush1.bf16.msra.mxu0 %v1773
        %2144 = vmatprep.subr.bf16.mxu0 %v1770
        %2145 = vmatpush1.bf16.msra.mxu0 %v1769
        %2146 = vmatprep.subr.bf16.mxu0 %v1766
        %2147 = vmatpush1.bf16.msra.mxu0 %v1765
        %2148 = vmatprep.subr.bf16.mxu0 %v1762
        %2149 = vmatpush1.bf16.msra.mxu0 %v1761
        %2150 = vmatprep.subr.bf16.mxu0 %v1758
        %2151 = vmatpush1.bf16.msra.mxu0 %v1757
        %2152 = vmatprep.subr.bf16.mxu0 %v1754
        %2153 = vmatpush1.bf16.msra.mxu0 %v1753
        %2154 = vmatprep.subr.bf16.mxu0 0
        %2155 = vmatpush2.bf16.msra.mxu0 0
        %2156 = vmatprep.subr.bf16.mxu0 0
        %2157 = vmatpush2.bf16.msra.mxu0 0
        %2158 = vmatprep.subr.bf16.mxu0 0
        %2159 = vmatpush2.bf16.msra.mxu0 0
        %2160 = vmatprep.subr.bf16.mxu0 0
        %2161 = vmatpush2.bf16.msra.mxu0 0
        %2162 = vmatprep.subr.bf16.mxu0 0
        %2163 = vmatpush2.bf16.msra.mxu0 0
        %2164 = vmatprep.subr.bf16.mxu0 0
        %2165 = vmatpush2.bf16.msra.mxu0 0
        %2166 = vmatprep.subr.bf16.mxu0 0
        %2167 = vmatpush2.bf16.msra.mxu0 0
        %2168 = vmatprep.subr.bf16.mxu0 0
        %2169 = vmatpush2.bf16.msra.mxu0 0
        %2170 = vmatprep.mubr.bf16.mxu0 0
        %2171 = vmatmul.mubr.bf16.gmra.mxu0 %v881
        %v2172 = vpop.f32.mrf.mxu0
        %v2173 = vadd.f32 %v2130, %v2172
        %v2174 = vpop.f32.mrf.mxu0
        %v2175 = vadd.f32 %v2132, %v2174
        %v2176 = vpop.f32.mrf.mxu0
        %v2177 = vadd.f32 %v2134, %v2176
        %v2178 = vpop.f32.mrf.mxu0
        %v2179 = vadd.f32 %v2136, %v2178
        %2180 = vdwg.mxu0
        %2181 = vmatprep.subr.bf16.mxu0 %v1592
        %2182 = vmatpush1.bf16.msra.mxu0 %v1591
        %2183 = vmatprep.subr.bf16.mxu0 %v1588
        %2184 = vmatpush1.bf16.msra.mxu0 %v1587
        %2185 = vmatprep.subr.bf16.mxu0 %v1584
        %2186 = vmatpush1.bf16.msra.mxu0 %v1583
        %2187 = vmatprep.subr.bf16.mxu0 %v1580
        %2188 = vmatpush1.bf16.msra.mxu0 %v1579
        %2189 = vmatprep.subr.bf16.mxu0 %v1576
        %2190 = vmatpush1.bf16.msra.mxu0 %v1575
        %2191 = vmatprep.subr.bf16.mxu0 %v1572
        %2192 = vmatpush1.bf16.msra.mxu0 %v1571
        %2193 = vmatprep.subr.bf16.mxu0 %v1568
        %2194 = vmatpush1.bf16.msra.mxu0 %v1567
        %2195 = vmatprep.subr.bf16.mxu0 %v1564
        %2196 = vmatpush1.bf16.msra.mxu0 %v1563
        %2197 = vmatprep.subr.bf16.mxu0 %v1624
        %2198 = vmatpush2.bf16.msra.mxu0 %v1623
        %2199 = vmatprep.subr.bf16.mxu0 %v1620
        %2200 = vmatpush2.bf16.msra.mxu0 %v1619
        %2201 = vmatprep.subr.bf16.mxu0 %v1616
        %2202 = vmatpush2.bf16.msra.mxu0 %v1615
        %2203 = vmatprep.subr.bf16.mxu0 %v1612
        %2204 = vmatpush2.bf16.msra.mxu0 %v1611
        %2205 = vmatprep.subr.bf16.mxu0 %v1608
        %2206 = vmatpush2.bf16.msra.mxu0 %v1607
        %2207 = vmatprep.subr.bf16.mxu0 %v1604
        %2208 = vmatpush2.bf16.msra.mxu0 %v1603
        %2209 = vmatprep.subr.bf16.mxu0 %v1600
        %2210 = vmatpush2.bf16.msra.mxu0 %v1599
        %2211 = vmatprep.subr.bf16.mxu0 %v1596
        %2212 = vmatpush2.bf16.msra.mxu0 %v1595
        %2213 = vmatprep.mubr.bf16.mxu0 %v876
        %2214 = vmatmul.mubr.bf16.gmra.mxu0 %v875
        %v2215 = vpop.f32.mrf.mxu0
        %v2216 = vadd.f32 %v844, %v2215
        %v2217 = vpop.f32.mrf.mxu0
        %v2218 = vadd.f32 %v848, %v2217
        %v2219 = vpop.f32.mrf.mxu0
        %v2220 = vadd.f32 %v844, %v2219
        %v2221 = vpop.f32.mrf.mxu0
        %v2222 = vadd.f32 %v848, %v2221
        %2223 = vdwg.mxu0
        %2224 = vmatprep.subr.bf16.mxu0 %v1656
        %2225 = vmatpush1.bf16.msra.mxu0 %v1655
        %2226 = vmatprep.subr.bf16.mxu0 %v1652
        %2227 = vmatpush1.bf16.msra.mxu0 %v1651
        %2228 = vmatprep.subr.bf16.mxu0 %v1648
        %2229 = vmatpush1.bf16.msra.mxu0 %v1647
        %2230 = vmatprep.subr.bf16.mxu0 %v1644
        %2231 = vmatpush1.bf16.msra.mxu0 %v1643
        %2232 = vmatprep.subr.bf16.mxu0 %v1640
        %2233 = vmatpush1.bf16.msra.mxu0 %v1639
        %2234 = vmatprep.subr.bf16.mxu0 %v1636
        %2235 = vmatpush1.bf16.msra.mxu0 %v1635
        %2236 = vmatprep.subr.bf16.mxu0 %v1632
        %2237 = vmatpush1.bf16.msra.mxu0 %v1631
        %2238 = vmatprep.subr.bf16.mxu0 %v1628
        %2239 = vmatpush1.bf16.msra.mxu0 %v1627
        %2240 = vmatprep.subr.bf16.mxu0 %v1688
        %2241 = vmatpush2.bf16.msra.mxu0 %v1687
        %2242 = vmatprep.subr.bf16.mxu0 %v1684
        %2243 = vmatpush2.bf16.msra.mxu0 %v1683
        %2244 = vmatprep.subr.bf16.mxu0 %v1680
        %2245 = vmatpush2.bf16.msra.mxu0 %v1679
        %2246 = vmatprep.subr.bf16.mxu0 %v1676
        %2247 = vmatpush2.bf16.msra.mxu0 %v1675
        %2248 = vmatprep.subr.bf16.mxu0 %v1672
        %2249 = vmatpush2.bf16.msra.mxu0 %v1671
        %2250 = vmatprep.subr.bf16.mxu0 %v1668
        %2251 = vmatpush2.bf16.msra.mxu0 %v1667
        %2252 = vmatprep.subr.bf16.mxu0 %v1664
        %2253 = vmatpush2.bf16.msra.mxu0 %v1663
        %2254 = vmatprep.subr.bf16.mxu0 %v1660
        %2255 = vmatpush2.bf16.msra.mxu0 %v1659
        %2256 = vmatprep.mubr.bf16.mxu0 %v878
        %2257 = vmatmul.mubr.bf16.gmra.mxu0 %v877
        %v2258 = vpop.f32.mrf.mxu0
        %v2259 = vadd.f32 %v2216, %v2258
        %v2260 = vpop.f32.mrf.mxu0
        %v2261 = vadd.f32 %v2218, %v2260
        %v2262 = vpop.f32.mrf.mxu0
        %v2263 = vadd.f32 %v2220, %v2262
        %v2264 = vpop.f32.mrf.mxu0
        %v2265 = vadd.f32 %v2222, %v2264
        %2266 = vdwg.mxu0
        %2267 = vmatprep.subr.bf16.mxu0 %v1720
        %2268 = vmatpush1.bf16.msra.mxu0 %v1719
        %2269 = vmatprep.subr.bf16.mxu0 %v1716
        %2270 = vmatpush1.bf16.msra.mxu0 %v1715
        %2271 = vmatprep.subr.bf16.mxu0 %v1712
        %2272 = vmatpush1.bf16.msra.mxu0 %v1711
        %2273 = vmatprep.subr.bf16.mxu0 %v1708
        %2274 = vmatpush1.bf16.msra.mxu0 %v1707
        %2275 = vmatprep.subr.bf16.mxu0 %v1704
        %2276 = vmatpush1.bf16.msra.mxu0 %v1703
        %2277 = vmatprep.subr.bf16.mxu0 %v1700
        %2278 = vmatpush1.bf16.msra.mxu0 %v1699
        %2279 = vmatprep.subr.bf16.mxu0 %v1696
        %2280 = vmatpush1.bf16.msra.mxu0 %v1695
        %2281 = vmatprep.subr.bf16.mxu0 %v1692
        %2282 = vmatpush1.bf16.msra.mxu0 %v1691
        %2283 = vmatprep.subr.bf16.mxu0 %v1752
        %2284 = vmatpush2.bf16.msra.mxu0 %v1751
        %2285 = vmatprep.subr.bf16.mxu0 %v1748
        %2286 = vmatpush2.bf16.msra.mxu0 %v1747
        %2287 = vmatprep.subr.bf16.mxu0 %v1744
        %2288 = vmatpush2.bf16.msra.mxu0 %v1743
        %2289 = vmatprep.subr.bf16.mxu0 %v1740
        %2290 = vmatpush2.bf16.msra.mxu0 %v1739
        %2291 = vmatprep.subr.bf16.mxu0 %v1736
        %2292 = vmatpush2.bf16.msra.mxu0 %v1735
        %2293 = vmatprep.subr.bf16.mxu0 %v1732
        %2294 = vmatpush2.bf16.msra.mxu0 %v1731
        %2295 = vmatprep.subr.bf16.mxu0 %v1728
        %2296 = vmatpush2.bf16.msra.mxu0 %v1727
        %2297 = vmatprep.subr.bf16.mxu0 %v1724
        %2298 = vmatpush2.bf16.msra.mxu0 %v1723
        %2299 = vmatprep.mubr.bf16.mxu0 %v880
        %2300 = vmatmul.mubr.bf16.gmra.mxu0 %v879
        %v2301 = vpop.f32.mrf.mxu0
        %v2302 = vadd.f32 %v2259, %v2301
        %v2303 = vpop.f32.mrf.mxu0
        %v2304 = vadd.f32 %v2261, %v2303
        %v2305 = vpop.f32.mrf.mxu0
        %v2306 = vadd.f32 %v2263, %v2305
        %v2307 = vpop.f32.mrf.mxu0
        %v2308 = vadd.f32 %v2265, %v2307
        %2309 = vdwg.mxu0
        %2310 = vmatprep.subr.bf16.mxu0 %v1784
        %2311 = vmatpush1.bf16.msra.mxu0 %v1783
        %2312 = vmatprep.subr.bf16.mxu0 %v1780
        %2313 = vmatpush1.bf16.msra.mxu0 %v1779
        %2314 = vmatprep.subr.bf16.mxu0 %v1776
        %2315 = vmatpush1.bf16.msra.mxu0 %v1775
        %2316 = vmatprep.subr.bf16.mxu0 %v1772
        %2317 = vmatpush1.bf16.msra.mxu0 %v1771
        %2318 = vmatprep.subr.bf16.mxu0 %v1768
        %2319 = vmatpush1.bf16.msra.mxu0 %v1767
        %2320 = vmatprep.subr.bf16.mxu0 %v1764
        %2321 = vmatpush1.bf16.msra.mxu0 %v1763
        %2322 = vmatprep.subr.bf16.mxu0 %v1760
        %2323 = vmatpush1.bf16.msra.mxu0 %v1759
        %2324 = vmatprep.subr.bf16.mxu0 %v1756
        %2325 = vmatpush1.bf16.msra.mxu0 %v1755
        %2326 = vmatprep.subr.bf16.mxu0 0
        %2327 = vmatpush2.bf16.msra.mxu0 0
        %2328 = vmatprep.subr.bf16.mxu0 0
        %2329 = vmatpush2.bf16.msra.mxu0 0
        %2330 = vmatprep.subr.bf16.mxu0 0
        %2331 = vmatpush2.bf16.msra.mxu0 0
        %2332 = vmatprep.subr.bf16.mxu0 0
        %2333 = vmatpush2.bf16.msra.mxu0 0
        %2334 = vmatprep.subr.bf16.mxu0 0
        %2335 = vmatpush2.bf16.msra.mxu0 0
        %2336 = vmatprep.subr.bf16.mxu0 0
        %2337 = vmatpush2.bf16.msra.mxu0 0
        %2338 = vmatprep.subr.bf16.mxu0 0
        %2339 = vmatpush2.bf16.msra.mxu0 0
        %2340 = vmatprep.subr.bf16.mxu0 0
        %2341 = vmatpush2.bf16.msra.mxu0 0
        %2342 = vmatprep.mubr.bf16.mxu0 0
        %2343 = vmatmul.mubr.bf16.gmra.mxu0 %v881
        %v2344 = vpop.f32.mrf.mxu0
        %v2345 = vadd.f32 %v2302, %v2344
        %v2346 = vpop.f32.mrf.mxu0
        %v2347 = vadd.f32 %v2304, %v2346
        %v2348 = vpop.f32.mrf.mxu0
        %v2349 = vadd.f32 %v2306, %v2348
        %v2350 = vpop.f32.mrf.mxu0
        %v2351 = vadd.f32 %v2308, %v2350
        %2352 = vdwg.mxu0
        %v2353 = vpack.c.bf16 %v2177, %v2173
        %v2354 = vpack.c.bf16 %v2179, %v2175
        %v2355 = vpack.c.bf16 %v2349, %v2345
        %v2356 = vpack.c.bf16 %v2351, %v2347
        %v2357 = vmax.bf16 %v2353, 0
        %v2358 = vmax.bf16 %v2354, 0
        %v2359 = vmax.bf16 %v2355, 0
        %v2360 = vmax.bf16 %v2356, 0
        %v2361 = vld [vmem:[#allocation4] sm:$0xff]
        %v2362 = vld [vmem:[#allocation4 + $0x8] sm:$0xff]
        %v2363 = vld [vmem:[#allocation4 + $0x10] sm:$0xff]
        %v2364 = vld [vmem:[#allocation4 + $0x18] sm:$0xff]
        %v2365 = vld [vmem:[#allocation4 + $0x20] sm:$0xff]
        %v2366 = vld [vmem:[#allocation4 + $0x28] sm:$0xff]
        %v2367 = vld [vmem:[#allocation4 + $0x30] sm:$0xff]
        %v2368 = vld [vmem:[#allocation4 + $0x38] sm:$0xff]
        %v2369 = vld [vmem:[#allocation4 + $0x40] sm:$0xff]
        %v2370 = vld [vmem:[#allocation4 + $0x48] sm:$0xff]
        %v2371 = vld [vmem:[#allocation4 + $0x50] sm:$0xff]
        %v2372 = vld [vmem:[#allocation4 + $0x58] sm:$0xff]
        %v2373 = vld [vmem:[#allocation4 + $0x60] sm:$0xff]
        %v2374 = vld [vmem:[#allocation4 + $0x68] sm:$0xff]
        %v2375 = vld [vmem:[#allocation4 + $0x70] sm:$0xff]
        %v2376 = vld [vmem:[#allocation4 + $0x78] sm:$0xff]
        %v2377 = vld [vmem:[#allocation4 + $0x80] sm:$0xff]
        %v2378 = vld [vmem:[#allocation4 + $0x88] sm:$0xff]
        %v2379 = vld [vmem:[#allocation4 + $0x90] sm:$0xff]
        %v2380 = vld [vmem:[#allocation4 + $0x98] sm:$0xff]
        %v2381 = vld [vmem:[#allocation4 + $0xa0] sm:$0xff]
        %v2382 = vld [vmem:[#allocation4 + $0xa8] sm:$0xff]
        %v2383 = vld [vmem:[#allocation4 + $0xb0] sm:$0xff]
        %v2384 = vld [vmem:[#allocation4 + $0xb8] sm:$0xff]
        %v2385 = vld [vmem:[#allocation4 + $0xc0] sm:$0xff]
        %v2386 = vld [vmem:[#allocation4 + $0xc8] sm:$0xff]
        %v2387 = vld [vmem:[#allocation4 + $0xd0] sm:$0xff]
        %v2388 = vld [vmem:[#allocation4 + $0xd8] sm:$0xff]
        %v2389 = vld [vmem:[#allocation4 + $0xe0] sm:$0xff]
        %v2390 = vld [vmem:[#allocation4 + $0xe8] sm:$0xff]
        %v2391 = vld [vmem:[#allocation4 + $0xf0] sm:$0xff]
        %v2392 = vld [vmem:[#allocation4 + $0xf8] sm:$0xff]
        %v2393 = vld [vmem:[#allocation4 + $0x100] sm:$0xff]
        %v2394 = vld [vmem:[#allocation4 + $0x108] sm:$0xff]
        %v2395 = vld [vmem:[#allocation4 + $0x110] sm:$0xff]
        %v2396 = vld [vmem:[#allocation4 + $0x118] sm:$0xff]
        %v2397 = vld [vmem:[#allocation4 + $0x120] sm:$0xff]
        %v2398 = vld [vmem:[#allocation4 + $0x128] sm:$0xff]
        %v2399 = vld [vmem:[#allocation4 + $0x130] sm:$0xff]
        %v2400 = vld [vmem:[#allocation4 + $0x138] sm:$0xff]
        %v2401 = vld [vmem:[#allocation4 + $0x140] sm:$0xff]
        %v2402 = vld [vmem:[#allocation4 + $0x148] sm:$0xff]
        %v2403 = vld [vmem:[#allocation4 + $0x150] sm:$0xff]
        %v2404 = vld [vmem:[#allocation4 + $0x158] sm:$0xff]
        %v2405 = vld [vmem:[#allocation4 + $0x160] sm:$0xff]
        %v2406 = vld [vmem:[#allocation4 + $0x168] sm:$0xff]
        %v2407 = vld [vmem:[#allocation4 + $0x170] sm:$0xff]
        %v2408 = vld [vmem:[#allocation4 + $0x178] sm:$0xff]
        %v2409 = vld [vmem:[#allocation4 + $0x180] sm:$0xff]
        %v2410 = vld [vmem:[#allocation4 + $0x188] sm:$0xff]
        %v2411 = vld [vmem:[#allocation4 + $0x190] sm:$0xff]
        %v2412 = vld [vmem:[#allocation4 + $0x198] sm:$0xff]
        %v2413 = vld [vmem:[#allocation4 + $0x1a0] sm:$0xff]
        %v2414 = vld [vmem:[#allocation4 + $0x1a8] sm:$0xff]
        %v2415 = vld [vmem:[#allocation4 + $0x1b0] sm:$0xff]
        %v2416 = vld [vmem:[#allocation4 + $0x1b8] sm:$0xff]
        %v2417 = vld [vmem:[#allocation4 + $0x1c0] sm:$0xff]
        %v2418 = vld [vmem:[#allocation4 + $0x1c8] sm:$0xff]
        %v2419 = vld [vmem:[#allocation4 + $0x1d0] sm:$0xff]
        %v2420 = vld [vmem:[#allocation4 + $0x1d8] sm:$0xff]
        %v2421 = vld [vmem:[#allocation4 + $0x1e0] sm:$0xff]
        %v2422 = vld [vmem:[#allocation4 + $0x1e8] sm:$0xff]
        %v2423 = vld [vmem:[#allocation4 + $0x1f0] sm:$0xff]
        %v2424 = vld [vmem:[#allocation4 + $0x1f8] sm:$0xff]
        %v2425 = vld [vmem:[%s5] sm:$0x3]
        %v2427 = vlaneseq
        %v2428 = vshrl.u32 %v2427, 7
        %v2429 = vsub.s32 0, %v2428
        %v2430 = vrot.slane %v2425, %v2429
        %v2431 = vlaneseq
        %v2432 = vshrl.u32 %v2431, 7
        %v2433 = vsub.s32 1, %v2432
        %v2434 = vrot.slane %v2425, %v2433
        %v2501 = vunpack.c.l.b16 %v2361
        %v2502 = vunpack.c.h.b16 %v2361
        %v2503 = vunpack.c.l.b16 %v2362
        %v2504 = vunpack.c.h.b16 %v2362
        %v2505 = vunpack.c.l.b16 %v2363
        %v2506 = vunpack.c.h.b16 %v2363
        %v2507 = vunpack.c.l.b16 %v2364
        %v2508 = vunpack.c.h.b16 %v2364
        %v2509 = vunpack.c.l.b16 %v2365
        %v2510 = vunpack.c.h.b16 %v2365
        %v2511 = vunpack.c.l.b16 %v2366
        %v2512 = vunpack.c.h.b16 %v2366
        %v2513 = vunpack.c.l.b16 %v2367
        %v2514 = vunpack.c.h.b16 %v2367
        %v2515 = vunpack.c.l.b16 %v2368
        %v2516 = vunpack.c.h.b16 %v2368
        %v2517 = vunpack.c.l.b16 %v2369
        %v2518 = vunpack.c.h.b16 %v2369
        %v2519 = vunpack.c.l.b16 %v2370
        %v2520 = vunpack.c.h.b16 %v2370
        %v2521 = vunpack.c.l.b16 %v2371
        %v2522 = vunpack.c.h.b16 %v2371
        %v2523 = vunpack.c.l.b16 %v2372
        %v2524 = vunpack.c.h.b16 %v2372
        %v2525 = vunpack.c.l.b16 %v2373
        %v2526 = vunpack.c.h.b16 %v2373
        %v2527 = vunpack.c.l.b16 %v2374
        %v2528 = vunpack.c.h.b16 %v2374
        %v2529 = vunpack.c.l.b16 %v2375
        %v2530 = vunpack.c.h.b16 %v2375
        %v2531 = vunpack.c.l.b16 %v2376
        %v2532 = vunpack.c.h.b16 %v2376
        %v2533 = vunpack.c.l.b16 %v2377
        %v2534 = vunpack.c.h.b16 %v2377
        %v2535 = vunpack.c.l.b16 %v2378
        %v2536 = vunpack.c.h.b16 %v2378
        %v2537 = vunpack.c.l.b16 %v2379
        %v2538 = vunpack.c.h.b16 %v2379
        %v2539 = vunpack.c.l.b16 %v2380
        %v2540 = vunpack.c.h.b16 %v2380
        %v2541 = vunpack.c.l.b16 %v2381
        %v2542 = vunpack.c.h.b16 %v2381
        %v2543 = vunpack.c.l.b16 %v2382
        %v2544 = vunpack.c.h.b16 %v2382
        %v2545 = vunpack.c.l.b16 %v2383
        %v2546 = vunpack.c.h.b16 %v2383
        %v2547 = vunpack.c.l.b16 %v2384
        %v2548 = vunpack.c.h.b16 %v2384
        %v2549 = vunpack.c.l.b16 %v2385
        %v2550 = vunpack.c.h.b16 %v2385
        %v2551 = vunpack.c.l.b16 %v2386
        %v2552 = vunpack.c.h.b16 %v2386
        %v2553 = vunpack.c.l.b16 %v2387
        %v2554 = vunpack.c.h.b16 %v2387
        %v2555 = vunpack.c.l.b16 %v2388
        %v2556 = vunpack.c.h.b16 %v2388
        %v2557 = vunpack.c.l.b16 %v2389
        %v2558 = vunpack.c.h.b16 %v2389
        %v2559 = vunpack.c.l.b16 %v2390
        %v2560 = vunpack.c.h.b16 %v2390
        %v2561 = vunpack.c.l.b16 %v2391
        %v2562 = vunpack.c.h.b16 %v2391
        %v2563 = vunpack.c.l.b16 %v2392
        %v2564 = vunpack.c.h.b16 %v2392
        %v2565 = vunpack.c.l.b16 %v2393
        %v2566 = vunpack.c.h.b16 %v2393
        %v2567 = vunpack.c.l.b16 %v2394
        %v2568 = vunpack.c.h.b16 %v2394
        %v2569 = vunpack.c.l.b16 %v2395
        %v2570 = vunpack.c.h.b16 %v2395
        %v2571 = vunpack.c.l.b16 %v2396
        %v2572 = vunpack.c.h.b16 %v2396
        %v2573 = vunpack.c.l.b16 %v2397
        %v2574 = vunpack.c.h.b16 %v2397
        %v2575 = vunpack.c.l.b16 %v2398
        %v2576 = vunpack.c.h.b16 %v2398
        %v2577 = vunpack.c.l.b16 %v2399
        %v2578 = vunpack.c.h.b16 %v2399
        %v2579 = vunpack.c.l.b16 %v2400
        %v2580 = vunpack.c.h.b16 %v2400
        %v2581 = vunpack.c.l.b16 %v2401
        %v2582 = vunpack.c.h.b16 %v2401
        %v2583 = vunpack.c.l.b16 %v2402
        %v2584 = vunpack.c.h.b16 %v2402
        %v2585 = vunpack.c.l.b16 %v2403
        %v2586 = vunpack.c.h.b16 %v2403
        %v2587 = vunpack.c.l.b16 %v2404
        %v2588 = vunpack.c.h.b16 %v2404
        %v2589 = vunpack.c.l.b16 %v2405
        %v2590 = vunpack.c.h.b16 %v2405
        %v2591 = vunpack.c.l.b16 %v2406
        %v2592 = vunpack.c.h.b16 %v2406
        %v2593 = vunpack.c.l.b16 %v2407
        %v2594 = vunpack.c.h.b16 %v2407
        %v2595 = vunpack.c.l.b16 %v2408
        %v2596 = vunpack.c.h.b16 %v2408
        %v2597 = vunpack.c.l.b16 %v2409
        %v2598 = vunpack.c.h.b16 %v2409
        %v2599 = vunpack.c.l.b16 %v2410
        %v2600 = vunpack.c.h.b16 %v2410
        %v2601 = vunpack.c.l.b16 %v2411
        %v2602 = vunpack.c.h.b16 %v2411
        %v2603 = vunpack.c.l.b16 %v2412
        %v2604 = vunpack.c.h.b16 %v2412
        %v2605 = vunpack.c.l.b16 %v2413
        %v2606 = vunpack.c.h.b16 %v2413
        %v2607 = vunpack.c.l.b16 %v2414
        %v2608 = vunpack.c.h.b16 %v2414
        %v2609 = vunpack.c.l.b16 %v2415
        %v2610 = vunpack.c.h.b16 %v2415
        %v2611 = vunpack.c.l.b16 %v2416
        %v2612 = vunpack.c.h.b16 %v2416
        %v2613 = vunpack.c.l.b16 %v2417
        %v2614 = vunpack.c.h.b16 %v2417
        %v2615 = vunpack.c.l.b16 %v2418
        %v2616 = vunpack.c.h.b16 %v2418
        %v2617 = vunpack.c.l.b16 %v2419
        %v2618 = vunpack.c.h.b16 %v2419
        %v2619 = vunpack.c.l.b16 %v2420
        %v2620 = vunpack.c.h.b16 %v2420
        %v2621 = vunpack.c.l.b16 %v2421
        %v2622 = vunpack.c.h.b16 %v2421
        %v2623 = vunpack.c.l.b16 %v2422
        %v2624 = vunpack.c.h.b16 %v2422
        %v2625 = vunpack.c.l.b16 %v2423
        %v2626 = vunpack.c.h.b16 %v2423
        %v2627 = vunpack.c.l.b16 %v2424
        %v2628 = vunpack.c.h.b16 %v2424
        %v2629 = vpack.c.b16 %v2503, %v2501
        %v2630 = vpack.c.b16 %v2504, %v2502
        %v2631 = vpack.c.b16 %v2507, %v2505
        %v2632 = vpack.c.b16 %v2508, %v2506
        %v2633 = vpack.c.b16 %v2511, %v2509
        %v2634 = vpack.c.b16 %v2512, %v2510
        %v2635 = vpack.c.b16 %v2515, %v2513
        %v2636 = vpack.c.b16 %v2516, %v2514
        %v2637 = vpack.c.b16 %v2519, %v2517
        %v2638 = vpack.c.b16 %v2520, %v2518
        %v2639 = vpack.c.b16 %v2523, %v2521
        %v2640 = vpack.c.b16 %v2524, %v2522
        %v2641 = vpack.c.b16 %v2527, %v2525
        %v2642 = vpack.c.b16 %v2528, %v2526
        %v2643 = vpack.c.b16 %v2531, %v2529
        %v2644 = vpack.c.b16 %v2532, %v2530
        %v2645 = vpack.c.b16 %v2535, %v2533
        %v2646 = vpack.c.b16 %v2536, %v2534
        %v2647 = vpack.c.b16 %v2539, %v2537
        %v2648 = vpack.c.b16 %v2540, %v2538
        %v2649 = vpack.c.b16 %v2543, %v2541
        %v2650 = vpack.c.b16 %v2544, %v2542
        %v2651 = vpack.c.b16 %v2547, %v2545
        %v2652 = vpack.c.b16 %v2548, %v2546
        %v2653 = vpack.c.b16 %v2551, %v2549
        %v2654 = vpack.c.b16 %v2552, %v2550
        %v2655 = vpack.c.b16 %v2555, %v2553
        %v2656 = vpack.c.b16 %v2556, %v2554
        %v2657 = vpack.c.b16 %v2559, %v2557
        %v2658 = vpack.c.b16 %v2560, %v2558
        %v2659 = vpack.c.b16 %v2563, %v2561
        %v2660 = vpack.c.b16 %v2564, %v2562
        %v2661 = vpack.c.b16 %v2567, %v2565
        %v2662 = vpack.c.b16 %v2568, %v2566
        %v2663 = vpack.c.b16 %v2571, %v2569
        %v2664 = vpack.c.b16 %v2572, %v2570
        %v2665 = vpack.c.b16 %v2575, %v2573
        %v2666 = vpack.c.b16 %v2576, %v2574
        %v2667 = vpack.c.b16 %v2579, %v2577
        %v2668 = vpack.c.b16 %v2580, %v2578
        %v2669 = vpack.c.b16 %v2583, %v2581
        %v2670 = vpack.c.b16 %v2584, %v2582
        %v2671 = vpack.c.b16 %v2587, %v2585
        %v2672 = vpack.c.b16 %v2588, %v2586
        %v2673 = vpack.c.b16 %v2591, %v2589
        %v2674 = vpack.c.b16 %v2592, %v2590
        %v2675 = vpack.c.b16 %v2595, %v2593
        %v2676 = vpack.c.b16 %v2596, %v2594
        %v2677 = vpack.c.b16 %v2599, %v2597
        %v2678 = vpack.c.b16 %v2600, %v2598
        %v2679 = vpack.c.b16 %v2603, %v2601
        %v2680 = vpack.c.b16 %v2604, %v2602
        %v2681 = vpack.c.b16 %v2607, %v2605
        %v2682 = vpack.c.b16 %v2608, %v2606
        %v2683 = vpack.c.b16 %v2611, %v2609
        %v2684 = vpack.c.b16 %v2612, %v2610
        %v2685 = vpack.c.b16 %v2615, %v2613
        %v2686 = vpack.c.b16 %v2616, %v2614
        %v2687 = vpack.c.b16 %v2619, %v2617
        %v2688 = vpack.c.b16 %v2620, %v2618
        %v2689 = vpack.c.b16 %v2623, %v2621
        %v2690 = vpack.c.b16 %v2624, %v2622
        %v2691 = vpack.c.b16 %v2627, %v2625
        %v2692 = vpack.c.b16 %v2628, %v2626
        %2757 = vmatprep.subr.bf16.mxu0 %v2644
        %2758 = vmatpush1.bf16.msra.mxu0 %v2643
        %2759 = vmatprep.subr.bf16.mxu0 %v2642
        %2760 = vmatpush1.bf16.msra.mxu0 %v2641
        %2761 = vmatprep.subr.bf16.mxu0 %v2640
        %2762 = vmatpush1.bf16.msra.mxu0 %v2639
        %2763 = vmatprep.subr.bf16.mxu0 %v2638
        %2764 = vmatpush1.bf16.msra.mxu0 %v2637
        %2765 = vmatprep.subr.bf16.mxu0 %v2636
        %2766 = vmatpush1.bf16.msra.mxu0 %v2635
        %2767 = vmatprep.subr.bf16.mxu0 %v2634
        %2768 = vmatpush1.bf16.msra.mxu0 %v2633
        %2769 = vmatprep.subr.bf16.mxu0 %v2632
        %2770 = vmatpush1.bf16.msra.mxu0 %v2631
        %2771 = vmatprep.subr.bf16.mxu0 %v2630
        %2772 = vmatpush1.bf16.msra.mxu0 %v2629
        %2773 = vmatprep.subr.bf16.mxu0 %v2660
        %2774 = vmatpush2.bf16.msra.mxu0 %v2659
        %2775 = vmatprep.subr.bf16.mxu0 %v2658
        %2776 = vmatpush2.bf16.msra.mxu0 %v2657
        %2777 = vmatprep.subr.bf16.mxu0 %v2656
        %2778 = vmatpush2.bf16.msra.mxu0 %v2655
        %2779 = vmatprep.subr.bf16.mxu0 %v2654
        %2780 = vmatpush2.bf16.msra.mxu0 %v2653
        %2781 = vmatprep.subr.bf16.mxu0 %v2652
        %2782 = vmatpush2.bf16.msra.mxu0 %v2651
        %2783 = vmatprep.subr.bf16.mxu0 %v2650
        %2784 = vmatpush2.bf16.msra.mxu0 %v2649
        %2785 = vmatprep.subr.bf16.mxu0 %v2648
        %2786 = vmatpush2.bf16.msra.mxu0 %v2647
        %2787 = vmatprep.subr.bf16.mxu0 %v2646
        %2788 = vmatpush2.bf16.msra.mxu0 %v2645
        %2789 = vmatprep.mubr.bf16.mxu0 %v2358
        %2790 = vmatmul.mubr.bf16.gmra.mxu0 %v2357
        %v2791 = vpop.f32.mrf.mxu0
        %v2792 = vadd.f32 %v2430, %v2791
        %v2793 = vpop.f32.mrf.mxu0
        %v2794 = vadd.f32 %v2434, %v2793
        %v2795 = vpop.f32.mrf.mxu0
        %v2796 = vadd.f32 %v2430, %v2795
        %v2797 = vpop.f32.mrf.mxu0
        %v2798 = vadd.f32 %v2434, %v2797
        %2799 = vdwg.mxu0
        %2800 = vmatprep.subr.bf16.mxu0 %v2676
        %2801 = vmatpush1.bf16.msra.mxu0 %v2675
        %2802 = vmatprep.subr.bf16.mxu0 %v2674
        %2803 = vmatpush1.bf16.msra.mxu0 %v2673
        %2804 = vmatprep.subr.bf16.mxu0 %v2672
        %2805 = vmatpush1.bf16.msra.mxu0 %v2671
        %2806 = vmatprep.subr.bf16.mxu0 %v2670
        %2807 = vmatpush1.bf16.msra.mxu0 %v2669
        %2808 = vmatprep.subr.bf16.mxu0 %v2668
        %2809 = vmatpush1.bf16.msra.mxu0 %v2667
        %2810 = vmatprep.subr.bf16.mxu0 %v2666
        %2811 = vmatpush1.bf16.msra.mxu0 %v2665
        %2812 = vmatprep.subr.bf16.mxu0 %v2664
        %2813 = vmatpush1.bf16.msra.mxu0 %v2663
        %2814 = vmatprep.subr.bf16.mxu0 %v2662
        %2815 = vmatpush1.bf16.msra.mxu0 %v2661
        %2816 = vmatprep.subr.bf16.mxu0 %v2692
        %2817 = vmatpush2.bf16.msra.mxu0 %v2691
        %2818 = vmatprep.subr.bf16.mxu0 %v2690
        %2819 = vmatpush2.bf16.msra.mxu0 %v2689
        %2820 = vmatprep.subr.bf16.mxu0 %v2688
        %2821 = vmatpush2.bf16.msra.mxu0 %v2687
        %2822 = vmatprep.subr.bf16.mxu0 %v2686
        %2823 = vmatpush2.bf16.msra.mxu0 %v2685
        %2824 = vmatprep.subr.bf16.mxu0 %v2684
        %2825 = vmatpush2.bf16.msra.mxu0 %v2683
        %2826 = vmatprep.subr.bf16.mxu0 %v2682
        %2827 = vmatpush2.bf16.msra.mxu0 %v2681
        %2828 = vmatprep.subr.bf16.mxu0 %v2680
        %2829 = vmatpush2.bf16.msra.mxu0 %v2679
        %2830 = vmatprep.subr.bf16.mxu0 %v2678
        %2831 = vmatpush2.bf16.msra.mxu0 %v2677
        %2832 = vmatprep.mubr.bf16.mxu0 %v2360
        %2833 = vmatmul.mubr.bf16.gmra.mxu0 %v2359
        %v2834 = vpop.f32.mrf.mxu0
        %v2835 = vadd.f32 %v2792, %v2834
        %v2836 = vpop.f32.mrf.mxu0
        %v2837 = vadd.f32 %v2794, %v2836
        %v2838 = vpop.f32.mrf.mxu0
        %v2839 = vadd.f32 %v2796, %v2838
        %v2840 = vpop.f32.mrf.mxu0
        %v2841 = vadd.f32 %v2798, %v2840
        %2842 = vdwg.mxu0
        %v2843 = vmax.f32 %v2835, 0.0
        %v2844 = vmax.f32 %v2837, 0.0
        %v2845 = vmax.f32 %v2839, 0.0
        %v2846 = vmax.f32 %v2841, 0.0
        %v2847 = vld [vmem:[%s6] sm:$0xff]
        %v2848 = vld [vmem:[%s6 + $0x8] sm:$0xff]
        %v2849 = vld [vmem:[%s6 + $0x10] sm:$0xff]
        %v2850 = vld [vmem:[%s6 + $0x18] sm:$0xff]
        %v2851 = vld [vmem:[%s6 + $0x20] sm:$0xff]
        %v2852 = vld [vmem:[%s6 + $0x28] sm:$0xff]
        %v2853 = vld [vmem:[%s6 + $0x30] sm:$0xff]
        %v2854 = vld [vmem:[%s6 + $0x38] sm:$0xff]
        %v2855 = vld [vmem:[%s6 + $0x40] sm:$0xff]
        %v2856 = vld [vmem:[%s6 + $0x48] sm:$0xff]
        %v2857 = vld [vmem:[%s6 + $0x50] sm:$0xff]
        %v2858 = vld [vmem:[%s6 + $0x58] sm:$0xff]
        %v2859 = vld [vmem:[%s6 + $0x60] sm:$0xff]
        %v2860 = vld [vmem:[%s6 + $0x68] sm:$0xff]
        %v2861 = vld [vmem:[%s6 + $0x70] sm:$0xff]
        %v2862 = vld [vmem:[%s6 + $0x78] sm:$0xff]
        %v2863 = vld [vmem:[%s6 + $0x80] sm:$0xff]
        %v2864 = vld [vmem:[%s6 + $0x88] sm:$0xff]
        %v2865 = vld [vmem:[%s6 + $0x90] sm:$0xff]
        %v2866 = vld [vmem:[%s6 + $0x98] sm:$0xff]
        %v2867 = vld [vmem:[%s6 + $0xa0] sm:$0xff]
        %v2868 = vld [vmem:[%s6 + $0xa8] sm:$0xff]
        %v2869 = vld [vmem:[%s6 + $0xb0] sm:$0xff]
        %v2870 = vld [vmem:[%s6 + $0xb8] sm:$0xff]
        %v2871 = vld [vmem:[%s6 + $0xc0] sm:$0xff]
        %v2872 = vld [vmem:[%s6 + $0xc8] sm:$0xff]
        %v2873 = vld [vmem:[%s6 + $0xd0] sm:$0xff]
        %v2874 = vld [vmem:[%s6 + $0xd8] sm:$0xff]
        %v2875 = vld [vmem:[%s6 + $0xe0] sm:$0xff]
        %v2876 = vld [vmem:[%s6 + $0xe8] sm:$0xff]
        %v2877 = vld [vmem:[%s6 + $0xf0] sm:$0xff]
        %v2878 = vld [vmem:[%s6 + $0xf8] sm:$0xff]
        %v2879 = vld [vmem:[%s7] sm:$0x1]
        %v2881 = vlaneseq
        %v2882 = vshrl.u32 %v2881, 7
        %v2883 = vsub.s32 0, %v2882
        %v2884 = vrot.slane %v2879, %v2883
        %2886 = vmatprep.subr.mxu0 0.0
        %2887 = vmatpush1.msra.mxu0 %v2862
        %2888 = vmatprep.subr.mxu0 0.0
        %2889 = vmatpush1.msra.mxu0 %v2861
        %2890 = vmatprep.subr.mxu0 0.0
        %2891 = vmatpush1.msra.mxu0 %v2860
        %2892 = vmatprep.subr.mxu0 0.0
        %2893 = vmatpush1.msra.mxu0 %v2859
        %2894 = vmatprep.subr.mxu0 0.0
        %2895 = vmatpush1.msra.mxu0 %v2858
        %2896 = vmatprep.subr.mxu0 0.0
        %2897 = vmatpush1.msra.mxu0 %v2857
        %2898 = vmatprep.subr.mxu0 0.0
        %2899 = vmatpush1.msra.mxu0 %v2856
        %2900 = vmatprep.subr.mxu0 0.0
        %2901 = vmatpush1.msra.mxu0 %v2855
        %2902 = vmatprep.subr.mxu0 0.0
        %2903 = vmatpush1.msra.mxu0 %v2854
        %2904 = vmatprep.subr.mxu0 0.0
        %2905 = vmatpush1.msra.mxu0 %v2853
        %2906 = vmatprep.subr.mxu0 0.0
        %2907 = vmatpush1.msra.mxu0 %v2852
        %2908 = vmatprep.subr.mxu0 0.0
        %2909 = vmatpush1.msra.mxu0 %v2851
        %2910 = vmatprep.subr.mxu0 0.0
        %2911 = vmatpush1.msra.mxu0 %v2850
        %2912 = vmatprep.subr.mxu0 0.0
        %2913 = vmatpush1.msra.mxu0 %v2849
        %2914 = vmatprep.subr.mxu0 0.0
        %2915 = vmatpush1.msra.mxu0 %v2848
        %2916 = vmatprep.subr.mxu0 0.0
        %2917 = vmatpush1.msra.mxu0 %v2847
        %2918 = vmatprep.subr.mxu0 0.0
        %2919 = vmatpush2.msra.mxu0 %v2878
        %2920 = vmatprep.subr.mxu0 0.0
        %2921 = vmatpush2.msra.mxu0 %v2877
        %2922 = vmatprep.subr.mxu0 0.0
        %2923 = vmatpush2.msra.mxu0 %v2876
        %2924 = vmatprep.subr.mxu0 0.0
        %2925 = vmatpush2.msra.mxu0 %v2875
        %2926 = vmatprep.subr.mxu0 0.0
        %2927 = vmatpush2.msra.mxu0 %v2874
        %2928 = vmatprep.subr.mxu0 0.0
        %2929 = vmatpush2.msra.mxu0 %v2873
        %2930 = vmatprep.subr.mxu0 0.0
        %2931 = vmatpush2.msra.mxu0 %v2872
        %2932 = vmatprep.subr.mxu0 0.0
        %2933 = vmatpush2.msra.mxu0 %v2871
        %2934 = vmatprep.subr.mxu0 0.0
        %2935 = vmatpush2.msra.mxu0 %v2870
        %2936 = vmatprep.subr.mxu0 0.0
        %2937 = vmatpush2.msra.mxu0 %v2869
        %2938 = vmatprep.subr.mxu0 0.0
        %2939 = vmatpush2.msra.mxu0 %v2868
        %2940 = vmatprep.subr.mxu0 0.0
        %2941 = vmatpush2.msra.mxu0 %v2867
        %2942 = vmatprep.subr.mxu0 0.0
        %2943 = vmatpush2.msra.mxu0 %v2866
        %2944 = vmatprep.subr.mxu0 0.0
        %2945 = vmatpush2.msra.mxu0 %v2865
        %2946 = vmatprep.subr.mxu0 0.0
        %2947 = vmatpush2.msra.mxu0 %v2864
        %2948 = vmatprep.subr.mxu0 0.0
        %2949 = vmatpush2.msra.mxu0 %v2863
        %2950 = vmatprep.mubr.f32.mxu0 %v2844
        %2951 = vmatmul.mubr.f32.gmra.mxu0 %v2843
        %v2952 = vpop.f32.mrf.mxu0
        %v2953 = vadd.f32 %v2884, %v2952
        %v2954 = vpop.f32.mrf.mxu0
        %2955 = vmatprep.mubr.f32.mxu0 %v2846
        %2956 = vmatmul.mubr.f32.gmra.mxu0 %v2845
        %v2957 = vpop.f32.mrf.mxu0
        %v2958 = vadd.f32 %v2884, %v2957
        %v2959 = vpop.f32.mrf.mxu0
        %2960 = vdwg.mxu0
        %2961 = vst [vmem:[%s596] sm:$0xff] %v2953
        %2962 = vst [vmem:[%s596 + $0x8] sm:$0xff] %v2958
        %v2963 = vld [vmem:[%s583] sm:$0xff]
        %v2964 = vld [vmem:[%s583 + $0x8] sm:$0xff]
        %v2965 = vmul.f32 %v2953, 0.5
        %v2966 = vmul.f32 %v2958, 0.5
        %v2967 = vmul.f32 %v2965, 1.442695
        %v2968 = vpow.pop %v2967
        %v2969 = vmul.f32 %v2966, 1.442695
        %v2970 = vpow.pop %v2969
        %2973 = vrot.lane.b32.xlu0 %v2968, 126
        %v2974 = vpop.permute.xlu0 %2973
        %2975 = vrot.lane.b32.xlu0 %v2970, 126
        %v2976 = vpop.permute.xlu0 %2975
        %v2979 = vmul.f32 %v2963, %v2974
        %v2980 = vmul.f32 %v2964, %v2976
        %v2981 = vadd.f32 %v2953, %v2979
        %v2982 = vadd.f32 %v2958, %v2980
        %v2983 = vld [vmem:[%s8] sm:$0xf]
        %v2984 = vld [vmem:[%s9] sm:$0x3]
        %2986 = vset.pattern.permute.xlu0 0
        %2987 = vperm.xlu0 %2986, %v2981
        %v2988 = vpop.permute.xlu0 %2987
        %2991 = vset.pattern.permute.xlu0 0
        %2992 = vperm.xlu0 %2991, %v2982
        %v2993 = vpop.permute.xlu0 %2992
        %v2996 = vlaneseq
        %v2997 = vshrl.u32 %v2996, 7
        %v2998 = vsub.s32 0, %v2997
        %v2999 = vrot.slane %v2983, %v2998
        %v3000 = vlaneseq
        %v3001 = vshrl.u32 %v3000, 7
        %v3002 = vsub.s32 2, %v3001
        %v3003 = vrot.slane %v2983, %v3002
        %v3006 = vlaneseq
        %v3007 = vshrl.u32 %v3006, 7
        %v3008 = vsub.s32 0, %v3007
        %v3009 = vrot.slane %v2999, %v3008
        %v3010 = vlaneseq
        %v3011 = vshrl.u32 %v3010, 7
        %v3012 = vsub.s32 0, %v3011
        %v3013 = vrot.slane %v3003, %v3012
        %v3014 = vmul.f32 %v2988, %v3009
        %v3015 = vmul.f32 %v2988, %v3013
        %v3016 = vmul.f32 %v2993, %v3009
        %v3017 = vmul.f32 %v2993, %v3013
        %v3019 = vlaneseq
        %v3020 = vshrl.u32 %v3019, 7
        %v3021 = vsub.s32 0, %v3020
        %v3022 = vrot.slane %v2984, %v3021
        %v3023 = vlaneseq
        %v3024 = vshrl.u32 %v3023, 7
        %v3025 = vsub.s32 1, %v3024
        %v3026 = vrot.slane %v2984, %v3025
        %v3029 = vadd.f32 %v3022, %v3014
        %v3030 = vadd.f32 %v3026, %v3015
        %v3031 = vadd.f32 %v3022, %v3016
        %v3032 = vadd.f32 %v3026, %v3017
        %3033 = vset.pattern.permute.xlu0 1
        %3034 = vperm.xlu0 %3033, %v2981
        %v3035 = vpop.permute.xlu0 %3034
        %3037 = vset.pattern.permute.xlu0 1
        %3038 = vperm.xlu0 %3037, %v2982
        %v3039 = vpop.permute.xlu0 %3038
        %v3041 = vlaneseq
        %v3042 = vshrl.u32 %v3041, 7
        %v3043 = vsub.s32 1, %v3042
        %v3044 = vrot.slane %v2983, %v3043
        %v3045 = vlaneseq
        %v3046 = vshrl.u32 %v3045, 7
        %v3047 = vsub.s32 3, %v3046
        %v3048 = vrot.slane %v2983, %v3047
        %v3051 = vlaneseq
        %v3052 = vshrl.u32 %v3051, 7
        %v3053 = vsub.s32 1, %v3052
        %v3054 = vrot.slane %v3044, %v3053
        %v3055 = vlaneseq
        %v3056 = vshrl.u32 %v3055, 7
        %v3057 = vsub.s32 1, %v3056
        %v3058 = vrot.slane %v3048, %v3057
        %v3059 = vmul.f32 %v3035, %v3054
        %v3060 = vmul.f32 %v3035, %v3058
        %v3061 = vmul.f32 %v3039, %v3054
        %v3062 = vmul.f32 %v3039, %v3058
        %v3063 = vadd.f32 %v3029, %v3059
        %v3064 = vadd.f32 %v3030, %v3060
        %v3065 = vadd.f32 %v3031, %v3061
        %v3066 = vadd.f32 %v3032, %v3062
        %v3067 = vpack.c.bf16 %v3065, %v3063
        %v3068 = vpack.c.bf16 %v3066, %v3064
        %v3069 = vmax.bf16 %v3067, 0
        %v3070 = vmax.bf16 %v3068, 0
        %v3071 = vld [vmem:[#allocation6] sm:$0xff]
        %v3072 = vld [vmem:[#allocation6 + $0x8] sm:$0xff]
        %v3073 = vld [vmem:[#allocation6 + $0x10] sm:$0xff]
        %v3074 = vld [vmem:[#allocation6 + $0x18] sm:$0xff]
        %v3075 = vld [vmem:[#allocation6 + $0x20] sm:$0xff]
        %v3076 = vld [vmem:[#allocation6 + $0x28] sm:$0xff]
        %v3077 = vld [vmem:[#allocation6 + $0x30] sm:$0xff]
        %v3078 = vld [vmem:[#allocation6 + $0x38] sm:$0xff]
        %v3079 = vld [vmem:[#allocation6 + $0x40] sm:$0xff]
        %v3080 = vld [vmem:[#allocation6 + $0x48] sm:$0xff]
        %v3081 = vld [vmem:[#allocation6 + $0x50] sm:$0xff]
        %v3082 = vld [vmem:[#allocation6 + $0x58] sm:$0xff]
        %v3083 = vld [vmem:[#allocation6 + $0x60] sm:$0xff]
        %v3084 = vld [vmem:[#allocation6 + $0x68] sm:$0xff]
        %v3085 = vld [vmem:[#allocation6 + $0x70] sm:$0xff]
        %v3086 = vld [vmem:[#allocation6 + $0x78] sm:$0xff]
        %v3087 = vld [vmem:[#allocation6 + $0x80] sm:$0xff]
        %v3088 = vld [vmem:[#allocation6 + $0x88] sm:$0xff]
        %v3089 = vld [vmem:[#allocation6 + $0x90] sm:$0xff]
        %v3090 = vld [vmem:[#allocation6 + $0x98] sm:$0xff]
        %v3091 = vld [vmem:[#allocation6 + $0xa0] sm:$0xff]
        %v3092 = vld [vmem:[#allocation6 + $0xa8] sm:$0xff]
        %v3093 = vld [vmem:[#allocation6 + $0xb0] sm:$0xff]
        %v3094 = vld [vmem:[#allocation6 + $0xb8] sm:$0xff]
        %v3095 = vld [vmem:[#allocation6 + $0xc0] sm:$0xff]
        %v3096 = vld [vmem:[#allocation6 + $0xc8] sm:$0xff]
        %v3097 = vld [vmem:[#allocation6 + $0xd0] sm:$0xff]
        %v3098 = vld [vmem:[#allocation6 + $0xd8] sm:$0xff]
        %v3099 = vld [vmem:[#allocation6 + $0xe0] sm:$0xff]
        %v3100 = vld [vmem:[#allocation6 + $0xe8] sm:$0xff]
        %v3101 = vld [vmem:[#allocation6 + $0xf0] sm:$0xff]
        %v3102 = vld [vmem:[#allocation6 + $0xf8] sm:$0xff]
        %v3103 = vld [vmem:[#allocation6 + $0x100] sm:$0xff]
        %v3104 = vld [vmem:[#allocation6 + $0x108] sm:$0xff]
        %v3105 = vld [vmem:[#allocation6 + $0x110] sm:$0xff]
        %v3106 = vld [vmem:[#allocation6 + $0x118] sm:$0xff]
        %v3107 = vld [vmem:[#allocation6 + $0x120] sm:$0xff]
        %v3108 = vld [vmem:[#allocation6 + $0x128] sm:$0xff]
        %v3109 = vld [vmem:[#allocation6 + $0x130] sm:$0xff]
        %v3110 = vld [vmem:[#allocation6 + $0x138] sm:$0xff]
        %v3111 = vld [vmem:[#allocation6 + $0x140] sm:$0xff]
        %v3112 = vld [vmem:[#allocation6 + $0x148] sm:$0xff]
        %v3113 = vld [vmem:[#allocation6 + $0x150] sm:$0xff]
        %v3114 = vld [vmem:[#allocation6 + $0x158] sm:$0xff]
        %v3115 = vld [vmem:[#allocation6 + $0x160] sm:$0xff]
        %v3116 = vld [vmem:[#allocation6 + $0x168] sm:$0xff]
        %v3117 = vld [vmem:[#allocation6 + $0x170] sm:$0xff]
        %v3118 = vld [vmem:[#allocation6 + $0x178] sm:$0xff]
        %v3119 = vld [vmem:[#allocation6 + $0x180] sm:$0xff]
        %v3120 = vld [vmem:[#allocation6 + $0x188] sm:$0xff]
        %v3121 = vld [vmem:[#allocation6 + $0x190] sm:$0xff]
        %v3122 = vld [vmem:[#allocation6 + $0x198] sm:$0xff]
        %v3123 = vld [vmem:[#allocation6 + $0x1a0] sm:$0xff]
        %v3124 = vld [vmem:[#allocation6 + $0x1a8] sm:$0xff]
        %v3125 = vld [vmem:[#allocation6 + $0x1b0] sm:$0xff]
        %v3126 = vld [vmem:[#allocation6 + $0x1b8] sm:$0xff]
        %v3127 = vld [vmem:[#allocation6 + $0x1c0] sm:$0xff]
        %v3128 = vld [vmem:[#allocation6 + $0x1c8] sm:$0xff]
        %v3129 = vld [vmem:[#allocation6 + $0x1d0] sm:$0xff]
        %v3130 = vld [vmem:[#allocation6 + $0x1d8] sm:$0xff]
        %v3131 = vld [vmem:[#allocation6 + $0x1e0] sm:$0xff]
        %v3132 = vld [vmem:[#allocation6 + $0x1e8] sm:$0xff]
        %v3133 = vld [vmem:[#allocation6 + $0x1f0] sm:$0xff]
        %v3134 = vld [vmem:[#allocation6 + $0x1f8] sm:$0xff]
        %v3135 = vld [vmem:[%s11] sm:$0xf]
        %v3137 = vlaneseq
        %v3138 = vshrl.u32 %v3137, 7
        %v3139 = vsub.s32 0, %v3138
        %v3140 = vrot.slane %v3135, %v3139
        %v3141 = vlaneseq
        %v3142 = vshrl.u32 %v3141, 7
        %v3143 = vsub.s32 1, %v3142
        %v3144 = vrot.slane %v3135, %v3143
        %v3145 = vlaneseq
        %v3146 = vshrl.u32 %v3145, 7
        %v3147 = vsub.s32 2, %v3146
        %v3148 = vrot.slane %v3135, %v3147
        %v3149 = vlaneseq
        %v3150 = vshrl.u32 %v3149, 7
        %v3151 = vsub.s32 3, %v3150
        %v3152 = vrot.slane %v3135, %v3151
        %v3221 = vunpack.c.l.b16 %v3071
        %v3222 = vunpack.c.h.b16 %v3071
        %v3223 = vunpack.c.l.b16 %v3072
        %v3224 = vunpack.c.h.b16 %v3072
        %v3225 = vunpack.c.l.b16 %v3073
        %v3226 = vunpack.c.h.b16 %v3073
        %v3227 = vunpack.c.l.b16 %v3074
        %v3228 = vunpack.c.h.b16 %v3074
        %v3229 = vunpack.c.l.b16 %v3075
        %v3230 = vunpack.c.h.b16 %v3075
        %v3231 = vunpack.c.l.b16 %v3076
        %v3232 = vunpack.c.h.b16 %v3076
        %v3233 = vunpack.c.l.b16 %v3077
        %v3234 = vunpack.c.h.b16 %v3077
        %v3235 = vunpack.c.l.b16 %v3078
        %v3236 = vunpack.c.h.b16 %v3078
        %v3237 = vunpack.c.l.b16 %v3079
        %v3238 = vunpack.c.h.b16 %v3079
        %v3239 = vunpack.c.l.b16 %v3080
        %v3240 = vunpack.c.h.b16 %v3080
        %v3241 = vunpack.c.l.b16 %v3081
        %v3242 = vunpack.c.h.b16 %v3081
        %v3243 = vunpack.c.l.b16 %v3082
        %v3244 = vunpack.c.h.b16 %v3082
        %v3245 = vunpack.c.l.b16 %v3083
        %v3246 = vunpack.c.h.b16 %v3083
        %v3247 = vunpack.c.l.b16 %v3084
        %v3248 = vunpack.c.h.b16 %v3084
        %v3249 = vunpack.c.l.b16 %v3085
        %v3250 = vunpack.c.h.b16 %v3085
        %v3251 = vunpack.c.l.b16 %v3086
        %v3252 = vunpack.c.h.b16 %v3086
        %v3253 = vunpack.c.l.b16 %v3087
        %v3254 = vunpack.c.h.b16 %v3087
        %v3255 = vunpack.c.l.b16 %v3088
        %v3256 = vunpack.c.h.b16 %v3088
        %v3257 = vunpack.c.l.b16 %v3089
        %v3258 = vunpack.c.h.b16 %v3089
        %v3259 = vunpack.c.l.b16 %v3090
        %v3260 = vunpack.c.h.b16 %v3090
        %v3261 = vunpack.c.l.b16 %v3091
        %v3262 = vunpack.c.h.b16 %v3091
        %v3263 = vunpack.c.l.b16 %v3092
        %v3264 = vunpack.c.h.b16 %v3092
        %v3265 = vunpack.c.l.b16 %v3093
        %v3266 = vunpack.c.h.b16 %v3093
        %v3267 = vunpack.c.l.b16 %v3094
        %v3268 = vunpack.c.h.b16 %v3094
        %v3269 = vunpack.c.l.b16 %v3095
        %v3270 = vunpack.c.h.b16 %v3095
        %v3271 = vunpack.c.l.b16 %v3096
        %v3272 = vunpack.c.h.b16 %v3096
        %v3273 = vunpack.c.l.b16 %v3097
        %v3274 = vunpack.c.h.b16 %v3097
        %v3275 = vunpack.c.l.b16 %v3098
        %v3276 = vunpack.c.h.b16 %v3098
        %v3277 = vunpack.c.l.b16 %v3099
        %v3278 = vunpack.c.h.b16 %v3099
        %v3279 = vunpack.c.l.b16 %v3100
        %v3280 = vunpack.c.h.b16 %v3100
        %v3281 = vunpack.c.l.b16 %v3101
        %v3282 = vunpack.c.h.b16 %v3101
        %v3283 = vunpack.c.l.b16 %v3102
        %v3284 = vunpack.c.h.b16 %v3102
        %v3285 = vunpack.c.l.b16 %v3103
        %v3286 = vunpack.c.h.b16 %v3103
        %v3287 = vunpack.c.l.b16 %v3104
        %v3288 = vunpack.c.h.b16 %v3104
        %v3289 = vunpack.c.l.b16 %v3105
        %v3290 = vunpack.c.h.b16 %v3105
        %v3291 = vunpack.c.l.b16 %v3106
        %v3292 = vunpack.c.h.b16 %v3106
        %v3293 = vunpack.c.l.b16 %v3107
        %v3294 = vunpack.c.h.b16 %v3107
        %v3295 = vunpack.c.l.b16 %v3108
        %v3296 = vunpack.c.h.b16 %v3108
        %v3297 = vunpack.c.l.b16 %v3109
        %v3298 = vunpack.c.h.b16 %v3109
        %v3299 = vunpack.c.l.b16 %v3110
        %v3300 = vunpack.c.h.b16 %v3110
        %v3301 = vunpack.c.l.b16 %v3111
        %v3302 = vunpack.c.h.b16 %v3111
        %v3303 = vunpack.c.l.b16 %v3112
        %v3304 = vunpack.c.h.b16 %v3112
        %v3305 = vunpack.c.l.b16 %v3113
        %v3306 = vunpack.c.h.b16 %v3113
        %v3307 = vunpack.c.l.b16 %v3114
        %v3308 = vunpack.c.h.b16 %v3114
        %v3309 = vunpack.c.l.b16 %v3115
        %v3310 = vunpack.c.h.b16 %v3115
        %v3311 = vunpack.c.l.b16 %v3116
        %v3312 = vunpack.c.h.b16 %v3116
        %v3313 = vunpack.c.l.b16 %v3117
        %v3314 = vunpack.c.h.b16 %v3117
        %v3315 = vunpack.c.l.b16 %v3118
        %v3316 = vunpack.c.h.b16 %v3118
        %v3317 = vunpack.c.l.b16 %v3119
        %v3318 = vunpack.c.h.b16 %v3119
        %v3319 = vunpack.c.l.b16 %v3120
        %v3320 = vunpack.c.h.b16 %v3120
        %v3321 = vunpack.c.l.b16 %v3121
        %v3322 = vunpack.c.h.b16 %v3121
        %v3323 = vunpack.c.l.b16 %v3122
        %v3324 = vunpack.c.h.b16 %v3122
        %v3325 = vunpack.c.l.b16 %v3123
        %v3326 = vunpack.c.h.b16 %v3123
        %v3327 = vunpack.c.l.b16 %v3124
        %v3328 = vunpack.c.h.b16 %v3124
        %v3329 = vunpack.c.l.b16 %v3125
        %v3330 = vunpack.c.h.b16 %v3125
        %v3331 = vunpack.c.l.b16 %v3126
        %v3332 = vunpack.c.h.b16 %v3126
        %v3333 = vunpack.c.l.b16 %v3127
        %v3334 = vunpack.c.h.b16 %v3127
        %v3335 = vunpack.c.l.b16 %v3128
        %v3336 = vunpack.c.h.b16 %v3128
        %v3337 = vunpack.c.l.b16 %v3129
        %v3338 = vunpack.c.h.b16 %v3129
        %v3339 = vunpack.c.l.b16 %v3130
        %v3340 = vunpack.c.h.b16 %v3130
        %v3341 = vunpack.c.l.b16 %v3131
        %v3342 = vunpack.c.h.b16 %v3131
        %v3343 = vunpack.c.l.b16 %v3132
        %v3344 = vunpack.c.h.b16 %v3132
        %v3345 = vunpack.c.l.b16 %v3133
        %v3346 = vunpack.c.h.b16 %v3133
        %v3347 = vunpack.c.l.b16 %v3134
        %v3348 = vunpack.c.h.b16 %v3134
        %v3349 = vpack.c.b16 %v3225, %v3221
        %v3350 = vpack.c.b16 %v3226, %v3222
        %v3351 = vpack.c.b16 %v3227, %v3223
        %v3352 = vpack.c.b16 %v3228, %v3224
        %v3353 = vpack.c.b16 %v3233, %v3229
        %v3354 = vpack.c.b16 %v3234, %v3230
        %v3355 = vpack.c.b16 %v3235, %v3231
        %v3356 = vpack.c.b16 %v3236, %v3232
        %v3357 = vpack.c.b16 %v3241, %v3237
        %v3358 = vpack.c.b16 %v3242, %v3238
        %v3359 = vpack.c.b16 %v3243, %v3239
        %v3360 = vpack.c.b16 %v3244, %v3240
        %v3361 = vpack.c.b16 %v3249, %v3245
        %v3362 = vpack.c.b16 %v3250, %v3246
        %v3363 = vpack.c.b16 %v3251, %v3247
        %v3364 = vpack.c.b16 %v3252, %v3248
        %v3365 = vpack.c.b16 %v3257, %v3253
        %v3366 = vpack.c.b16 %v3258, %v3254
        %v3367 = vpack.c.b16 %v3259, %v3255
        %v3368 = vpack.c.b16 %v3260, %v3256
        %v3369 = vpack.c.b16 %v3265, %v3261
        %v3370 = vpack.c.b16 %v3266, %v3262
        %v3371 = vpack.c.b16 %v3267, %v3263
        %v3372 = vpack.c.b16 %v3268, %v3264
        %v3373 = vpack.c.b16 %v3273, %v3269
        %v3374 = vpack.c.b16 %v3274, %v3270
        %v3375 = vpack.c.b16 %v3275, %v3271
        %v3376 = vpack.c.b16 %v3276, %v3272
        %v3377 = vpack.c.b16 %v3281, %v3277
        %v3378 = vpack.c.b16 %v3282, %v3278
        %v3379 = vpack.c.b16 %v3283, %v3279
        %v3380 = vpack.c.b16 %v3284, %v3280
        %v3381 = vpack.c.b16 %v3289, %v3285
        %v3382 = vpack.c.b16 %v3290, %v3286
        %v3383 = vpack.c.b16 %v3291, %v3287
        %v3384 = vpack.c.b16 %v3292, %v3288
        %v3385 = vpack.c.b16 %v3297, %v3293
        %v3386 = vpack.c.b16 %v3298, %v3294
        %v3387 = vpack.c.b16 %v3299, %v3295
        %v3388 = vpack.c.b16 %v3300, %v3296
        %v3389 = vpack.c.b16 %v3305, %v3301
        %v3390 = vpack.c.b16 %v3306, %v3302
        %v3391 = vpack.c.b16 %v3307, %v3303
        %v3392 = vpack.c.b16 %v3308, %v3304
        %v3393 = vpack.c.b16 %v3313, %v3309
        %v3394 = vpack.c.b16 %v3314, %v3310
        %v3395 = vpack.c.b16 %v3315, %v3311
        %v3396 = vpack.c.b16 %v3316, %v3312
        %v3397 = vpack.c.b16 %v3321, %v3317
        %v3398 = vpack.c.b16 %v3322, %v3318
        %v3399 = vpack.c.b16 %v3323, %v3319
        %v3400 = vpack.c.b16 %v3324, %v3320
        %v3401 = vpack.c.b16 %v3329, %v3325
        %v3402 = vpack.c.b16 %v3330, %v3326
        %v3403 = vpack.c.b16 %v3331, %v3327
        %v3404 = vpack.c.b16 %v3332, %v3328
        %v3405 = vpack.c.b16 %v3337, %v3333
        %v3406 = vpack.c.b16 %v3338, %v3334
        %v3407 = vpack.c.b16 %v3339, %v3335
        %v3408 = vpack.c.b16 %v3340, %v3336
        %v3409 = vpack.c.b16 %v3345, %v3341
        %v3410 = vpack.c.b16 %v3346, %v3342
        %v3411 = vpack.c.b16 %v3347, %v3343
        %v3412 = vpack.c.b16 %v3348, %v3344
        %3477 = vmatprep.subr.bf16.mxu0 %v3378
        %3478 = vmatpush1.bf16.msra.mxu0 %v3377
        %3479 = vmatprep.subr.bf16.mxu0 %v3374
        %3480 = vmatpush1.bf16.msra.mxu0 %v3373
        %3481 = vmatprep.subr.bf16.mxu0 %v3370
        %3482 = vmatpush1.bf16.msra.mxu0 %v3369
        %3483 = vmatprep.subr.bf16.mxu0 %v3366
        %3484 = vmatpush1.bf16.msra.mxu0 %v3365
        %3485 = vmatprep.subr.bf16.mxu0 %v3362
        %3486 = vmatpush1.bf16.msra.mxu0 %v3361
        %3487 = vmatprep.subr.bf16.mxu0 %v3358
        %3488 = vmatpush1.bf16.msra.mxu0 %v3357
        %3489 = vmatprep.subr.bf16.mxu0 %v3354
        %3490 = vmatpush1.bf16.msra.mxu0 %v3353
        %3491 = vmatprep.subr.bf16.mxu0 %v3350
        %3492 = vmatpush1.bf16.msra.mxu0 %v3349
        %3493 = vmatprep.subr.bf16.mxu0 %v3410
        %3494 = vmatpush2.bf16.msra.mxu0 %v3409
        %3495 = vmatprep.subr.bf16.mxu0 %v3406
        %3496 = vmatpush2.bf16.msra.mxu0 %v3405
        %3497 = vmatprep.subr.bf16.mxu0 %v3402
        %3498 = vmatpush2.bf16.msra.mxu0 %v3401
        %3499 = vmatprep.subr.bf16.mxu0 %v3398
        %3500 = vmatpush2.bf16.msra.mxu0 %v3397
        %3501 = vmatprep.subr.bf16.mxu0 %v3394
        %3502 = vmatpush2.bf16.msra.mxu0 %v3393
        %3503 = vmatprep.subr.bf16.mxu0 %v3390
        %3504 = vmatpush2.bf16.msra.mxu0 %v3389
        %3505 = vmatprep.subr.bf16.mxu0 %v3386
        %3506 = vmatpush2.bf16.msra.mxu0 %v3385
        %3507 = vmatprep.subr.bf16.mxu0 %v3382
        %3508 = vmatpush2.bf16.msra.mxu0 %v3381
        %3509 = vmatprep.mubr.bf16.mxu0 %v3070
        %3510 = vmatmul.mubr.bf16.gmra.mxu0 %v3069
        %v3511 = vpop.f32.mrf.mxu0
        %v3512 = vadd.f32 %v3140, %v3511
        %v3513 = vpop.f32.mrf.mxu0
        %v3514 = vadd.f32 %v3144, %v3513
        %v3515 = vpop.f32.mrf.mxu0
        %v3516 = vadd.f32 %v3140, %v3515
        %v3517 = vpop.f32.mrf.mxu0
        %v3518 = vadd.f32 %v3144, %v3517
        %3519 = vdwg.mxu0
        %3520 = vmatprep.subr.bf16.mxu0 %v3380
        %3521 = vmatpush1.bf16.msra.mxu0 %v3379
        %3522 = vmatprep.subr.bf16.mxu0 %v3376
        %3523 = vmatpush1.bf16.msra.mxu0 %v3375
        %3524 = vmatprep.subr.bf16.mxu0 %v3372
        %3525 = vmatpush1.bf16.msra.mxu0 %v3371
        %3526 = vmatprep.subr.bf16.mxu0 %v3368
        %3527 = vmatpush1.bf16.msra.mxu0 %v3367
        %3528 = vmatprep.subr.bf16.mxu0 %v3364
        %3529 = vmatpush1.bf16.msra.mxu0 %v3363
        %3530 = vmatprep.subr.bf16.mxu0 %v3360
        %3531 = vmatpush1.bf16.msra.mxu0 %v3359
        %3532 = vmatprep.subr.bf16.mxu0 %v3356
        %3533 = vmatpush1.bf16.msra.mxu0 %v3355
        %3534 = vmatprep.subr.bf16.mxu0 %v3352
        %3535 = vmatpush1.bf16.msra.mxu0 %v3351
        %3536 = vmatprep.subr.bf16.mxu0 %v3412
        %3537 = vmatpush2.bf16.msra.mxu0 %v3411
        %3538 = vmatprep.subr.bf16.mxu0 %v3408
        %3539 = vmatpush2.bf16.msra.mxu0 %v3407
        %3540 = vmatprep.subr.bf16.mxu0 %v3404
        %3541 = vmatpush2.bf16.msra.mxu0 %v3403
        %3542 = vmatprep.subr.bf16.mxu0 %v3400
        %3543 = vmatpush2.bf16.msra.mxu0 %v3399
        %3544 = vmatprep.subr.bf16.mxu0 %v3396
        %3545 = vmatpush2.bf16.msra.mxu0 %v3395
        %3546 = vmatprep.subr.bf16.mxu0 %v3392
        %3547 = vmatpush2.bf16.msra.mxu0 %v3391
        %3548 = vmatprep.subr.bf16.mxu0 %v3388
        %3549 = vmatpush2.bf16.msra.mxu0 %v3387
        %3550 = vmatprep.subr.bf16.mxu0 %v3384
        %3551 = vmatpush2.bf16.msra.mxu0 %v3383
        %3552 = vmatprep.mubr.bf16.mxu0 %v3070
        %3553 = vmatmul.mubr.bf16.gmra.mxu0 %v3069
        %v3554 = vpop.f32.mrf.mxu0
        %v3555 = vadd.f32 %v3148, %v3554
        %v3556 = vpop.f32.mrf.mxu0
        %v3557 = vadd.f32 %v3152, %v3556
        %v3558 = vpop.f32.mrf.mxu0
        %v3559 = vadd.f32 %v3148, %v3558
        %v3560 = vpop.f32.mrf.mxu0
        %v3561 = vadd.f32 %v3152, %v3560
        %3562 = vdwg.mxu0
        %v3563 = vpack.c.bf16 %v3516, %v3512
        %v3564 = vpack.c.bf16 %v3518, %v3514
        %v3565 = vpack.c.bf16 %v3559, %v3555
        %v3566 = vpack.c.bf16 %v3561, %v3557
        %v3567 = vmax.bf16 %v3563, 0
        %v3568 = vmax.bf16 %v3564, 0
        %v3569 = vmax.bf16 %v3565, 0
        %v3570 = vmax.bf16 %v3566, 0
        %v3571 = vld [vmem:[#allocation7] sm:$0xff]
        %v3572 = vld [vmem:[#allocation7 + $0x8] sm:$0xff]
        %v3573 = vld [vmem:[#allocation7 + $0x10] sm:$0xff]
        %v3574 = vld [vmem:[#allocation7 + $0x18] sm:$0xf]
        %v3575 = vld [vmem:[#allocation7 + $0x1c] sm:$0xff]
        %v3576 = vld [vmem:[#allocation7 + $0x24] sm:$0xff]
        %v3577 = vld [vmem:[#allocation7 + $0x2c] sm:$0xff]
        %v3578 = vld [vmem:[#allocation7 + $0x34] sm:$0xf]
        %v3579 = vld [vmem:[#allocation7 + $0x38] sm:$0xff]
        %v3580 = vld [vmem:[#allocation7 + $0x40] sm:$0xff]
        %v3581 = vld [vmem:[#allocation7 + $0x48] sm:$0xff]
        %v3582 = vld [vmem:[#allocation7 + $0x50] sm:$0xf]
        %v3583 = vld [vmem:[#allocation7 + $0x54] sm:$0xff]
        %v3584 = vld [vmem:[#allocation7 + $0x5c] sm:$0xff]
        %v3585 = vld [vmem:[#allocation7 + $0x64] sm:$0xff]
        %v3586 = vld [vmem:[#allocation7 + $0x6c] sm:$0xf]
        %v3587 = vld [vmem:[#allocation7 + $0x70] sm:$0xff]
        %v3588 = vld [vmem:[#allocation7 + $0x78] sm:$0xff]
        %v3589 = vld [vmem:[#allocation7 + $0x80] sm:$0xff]
        %v3590 = vld [vmem:[#allocation7 + $0x88] sm:$0xf]
        %v3591 = vld [vmem:[#allocation7 + $0x8c] sm:$0xff]
        %v3592 = vld [vmem:[#allocation7 + $0x94] sm:$0xff]
        %v3593 = vld [vmem:[#allocation7 + $0x9c] sm:$0xff]
        %v3594 = vld [vmem:[#allocation7 + $0xa4] sm:$0xf]
        %v3595 = vld [vmem:[#allocation7 + $0xa8] sm:$0xff]
        %v3596 = vld [vmem:[#allocation7 + $0xb0] sm:$0xff]
        %v3597 = vld [vmem:[#allocation7 + $0xb8] sm:$0xff]
        %v3598 = vld [vmem:[#allocation7 + $0xc0] sm:$0xf]
        %v3599 = vld [vmem:[#allocation7 + $0xc4] sm:$0xff]
        %v3600 = vld [vmem:[#allocation7 + $0xcc] sm:$0xff]
        %v3601 = vld [vmem:[#allocation7 + $0xd4] sm:$0xff]
        %v3602 = vld [vmem:[#allocation7 + $0xdc] sm:$0xf]
        %v3603 = vld [vmem:[#allocation7 + $0xe0] sm:$0xff]
        %v3604 = vld [vmem:[#allocation7 + $0xe8] sm:$0xff]
        %v3605 = vld [vmem:[#allocation7 + $0xf0] sm:$0xff]
        %v3606 = vld [vmem:[#allocation7 + $0xf8] sm:$0xf]
        %v3607 = vld [vmem:[#allocation7 + $0xfc] sm:$0xff]
        %v3608 = vld [vmem:[#allocation7 + $0x104] sm:$0xff]
        %v3609 = vld [vmem:[#allocation7 + $0x10c] sm:$0xff]
        %v3610 = vld [vmem:[#allocation7 + $0x114] sm:$0xf]
        %v3611 = vld [vmem:[#allocation7 + $0x118] sm:$0xff]
        %v3612 = vld [vmem:[#allocation7 + $0x120] sm:$0xff]
        %v3613 = vld [vmem:[#allocation7 + $0x128] sm:$0xff]
        %v3614 = vld [vmem:[#allocation7 + $0x130] sm:$0xf]
        %v3615 = vld [vmem:[#allocation7 + $0x134] sm:$0xff]
        %v3616 = vld [vmem:[#allocation7 + $0x13c] sm:$0xff]
        %v3617 = vld [vmem:[#allocation7 + $0x144] sm:$0xff]
        %v3618 = vld [vmem:[#allocation7 + $0x14c] sm:$0xf]
        %v3619 = vld [vmem:[#allocation7 + $0x150] sm:$0xff]
        %v3620 = vld [vmem:[#allocation7 + $0x158] sm:$0xff]
        %v3621 = vld [vmem:[#allocation7 + $0x160] sm:$0xff]
        %v3622 = vld [vmem:[#allocation7 + $0x168] sm:$0xf]
        %v3623 = vld [vmem:[#allocation7 + $0x16c] sm:$0xff]
        %v3624 = vld [vmem:[#allocation7 + $0x174] sm:$0xff]
        %v3625 = vld [vmem:[#allocation7 + $0x17c] sm:$0xff]
        %v3626 = vld [vmem:[#allocation7 + $0x184] sm:$0xf]
        %v3627 = vld [vmem:[#allocation7 + $0x188] sm:$0xff]
        %v3628 = vld [vmem:[#allocation7 + $0x190] sm:$0xff]
        %v3629 = vld [vmem:[#allocation7 + $0x198] sm:$0xff]
        %v3630 = vld [vmem:[#allocation7 + $0x1a0] sm:$0xf]
        %v3631 = vld [vmem:[#allocation7 + $0x1a4] sm:$0xff]
        %v3632 = vld [vmem:[#allocation7 + $0x1ac] sm:$0xff]
        %v3633 = vld [vmem:[#allocation7 + $0x1b4] sm:$0xff]
        %v3634 = vld [vmem:[#allocation7 + $0x1bc] sm:$0xf]
        %v3635 = vld [vmem:[#allocation7 + $0x1c0] sm:$0xff]
        %v3636 = vld [vmem:[#allocation7 + $0x1c8] sm:$0xff]
        %v3637 = vld [vmem:[#allocation7 + $0x1d0] sm:$0xff]
        %v3638 = vld [vmem:[#allocation7 + $0x1d8] sm:$0xf]
        %v3639 = vld [vmem:[#allocation7 + $0x1dc] sm:$0xff]
        %v3640 = vld [vmem:[#allocation7 + $0x1e4] sm:$0xff]
        %v3641 = vld [vmem:[#allocation7 + $0x1ec] sm:$0xff]
        %v3642 = vld [vmem:[#allocation7 + $0x1f4] sm:$0xf]
        %v3643 = vld [vmem:[#allocation7 + $0x1f8] sm:$0xff]
        %v3644 = vld [vmem:[#allocation7 + $0x200] sm:$0xff]
        %v3645 = vld [vmem:[#allocation7 + $0x208] sm:$0xff]
        %v3646 = vld [vmem:[#allocation7 + $0x210] sm:$0xf]
        %v3647 = vld [vmem:[#allocation7 + $0x214] sm:$0xff]
        %v3648 = vld [vmem:[#allocation7 + $0x21c] sm:$0xff]
        %v3649 = vld [vmem:[#allocation7 + $0x224] sm:$0xff]
        %v3650 = vld [vmem:[#allocation7 + $0x22c] sm:$0xf]
        %v3651 = vld [vmem:[#allocation7 + $0x230] sm:$0xff]
        %v3652 = vld [vmem:[#allocation7 + $0x238] sm:$0xff]
        %v3653 = vld [vmem:[#allocation7 + $0x240] sm:$0xff]
        %v3654 = vld [vmem:[#allocation7 + $0x248] sm:$0xf]
        %v3655 = vld [vmem:[#allocation7 + $0x24c] sm:$0xff]
        %v3656 = vld [vmem:[#allocation7 + $0x254] sm:$0xff]
        %v3657 = vld [vmem:[#allocation7 + $0x25c] sm:$0xff]
        %v3658 = vld [vmem:[#allocation7 + $0x264] sm:$0xf]
        %v3659 = vld [vmem:[#allocation7 + $0x268] sm:$0xff]
        %v3660 = vld [vmem:[#allocation7 + $0x270] sm:$0xff]
        %v3661 = vld [vmem:[#allocation7 + $0x278] sm:$0xff]
        %v3662 = vld [vmem:[#allocation7 + $0x280] sm:$0xf]
        %v3663 = vld [vmem:[#allocation7 + $0x284] sm:$0xff]
        %v3664 = vld [vmem:[#allocation7 + $0x28c] sm:$0xff]
        %v3665 = vld [vmem:[#allocation7 + $0x294] sm:$0xff]
        %v3666 = vld [vmem:[#allocation7 + $0x29c] sm:$0xf]
        %v3667 = vld [vmem:[#allocation7 + $0x2a0] sm:$0xff]
        %v3668 = vld [vmem:[#allocation7 + $0x2a8] sm:$0xff]
        %v3669 = vld [vmem:[#allocation7 + $0x2b0] sm:$0xff]
        %v3670 = vld [vmem:[#allocation7 + $0x2b8] sm:$0xf]
        %v3671 = vld [vmem:[#allocation7 + $0x2bc] sm:$0xff]
        %v3672 = vld [vmem:[#allocation7 + $0x2c4] sm:$0xff]
        %v3673 = vld [vmem:[#allocation7 + $0x2cc] sm:$0xff]
        %v3674 = vld [vmem:[#allocation7 + $0x2d4] sm:$0xf]
        %v3675 = vld [vmem:[#allocation7 + $0x2d8] sm:$0xff]
        %v3676 = vld [vmem:[#allocation7 + $0x2e0] sm:$0xff]
        %v3677 = vld [vmem:[#allocation7 + $0x2e8] sm:$0xff]
        %v3678 = vld [vmem:[#allocation7 + $0x2f0] sm:$0xf]
        %v3679 = vld [vmem:[#allocation7 + $0x2f4] sm:$0xff]
        %v3680 = vld [vmem:[#allocation7 + $0x2fc] sm:$0xff]
        %v3681 = vld [vmem:[#allocation7 + $0x304] sm:$0xff]
        %v3682 = vld [vmem:[#allocation7 + $0x30c] sm:$0xf]
        %v3683 = vld [vmem:[#allocation7 + $0x310] sm:$0xff]
        %v3684 = vld [vmem:[#allocation7 + $0x318] sm:$0xff]
        %v3685 = vld [vmem:[#allocation7 + $0x320] sm:$0xff]
        %v3686 = vld [vmem:[#allocation7 + $0x328] sm:$0xf]
        %v3687 = vld [vmem:[#allocation7 + $0x32c] sm:$0xff]
        %v3688 = vld [vmem:[#allocation7 + $0x334] sm:$0xff]
        %v3689 = vld [vmem:[#allocation7 + $0x33c] sm:$0xff]
        %v3690 = vld [vmem:[#allocation7 + $0x344] sm:$0xf]
        %v3691 = vld [vmem:[#allocation7 + $0x348] sm:$0xff]
        %v3692 = vld [vmem:[#allocation7 + $0x350] sm:$0xff]
        %v3693 = vld [vmem:[#allocation7 + $0x358] sm:$0xff]
        %v3694 = vld [vmem:[#allocation7 + $0x360] sm:$0xf]
        %v3695 = vld [vmem:[#allocation7 + $0x364] sm:$0xff]
        %v3696 = vld [vmem:[#allocation7 + $0x36c] sm:$0xff]
        %v3697 = vld [vmem:[#allocation7 + $0x374] sm:$0xff]
        %v3698 = vld [vmem:[#allocation7 + $0x37c] sm:$0xf]
        %v3699 = vld [vmem:[#allocation7 + $0x380] sm:$0xff]
        %v3700 = vld [vmem:[#allocation7 + $0x388] sm:$0xff]
        %v3701 = vld [vmem:[#allocation7 + $0x390] sm:$0xff]
        %v3702 = vld [vmem:[#allocation7 + $0x398] sm:$0xf]
        %v3703 = vld [vmem:[#allocation7 + $0x39c] sm:$0xff]
        %v3704 = vld [vmem:[#allocation7 + $0x3a4] sm:$0xff]
        %v3705 = vld [vmem:[#allocation7 + $0x3ac] sm:$0xff]
        %v3706 = vld [vmem:[#allocation7 + $0x3b4] sm:$0xf]
        %v3707 = vld [vmem:[#allocation7 + $0x3b8] sm:$0xff]
        %v3708 = vld [vmem:[#allocation7 + $0x3c0] sm:$0xff]
        %v3709 = vld [vmem:[#allocation7 + $0x3c8] sm:$0xff]
        %v3710 = vld [vmem:[#allocation7 + $0x3d0] sm:$0xf]
        %v3711 = vld [vmem:[#allocation7 + $0x3d4] sm:$0xff]
        %v3712 = vld [vmem:[#allocation7 + $0x3dc] sm:$0xff]
        %v3713 = vld [vmem:[#allocation7 + $0x3e4] sm:$0xff]
        %v3714 = vld [vmem:[#allocation7 + $0x3ec] sm:$0xf]
        %v3715 = vld [vmem:[#allocation7 + $0x3f0] sm:$0xff]
        %v3716 = vld [vmem:[#allocation7 + $0x3f8] sm:$0xff]
        %v3717 = vld [vmem:[#allocation7 + $0x400] sm:$0xff]
        %v3718 = vld [vmem:[#allocation7 + $0x408] sm:$0xf]
        %v3719 = vld [vmem:[#allocation7 + $0x40c] sm:$0xff]
        %v3720 = vld [vmem:[#allocation7 + $0x414] sm:$0xff]
        %v3721 = vld [vmem:[#allocation7 + $0x41c] sm:$0xff]
        %v3722 = vld [vmem:[#allocation7 + $0x424] sm:$0xf]
        %v3723 = vld [vmem:[#allocation7 + $0x428] sm:$0xff]
        %v3724 = vld [vmem:[#allocation7 + $0x430] sm:$0xff]
        %v3725 = vld [vmem:[#allocation7 + $0x438] sm:$0xff]
        %v3726 = vld [vmem:[#allocation7 + $0x440] sm:$0xf]
        %v3727 = vld [vmem:[#allocation7 + $0x444] sm:$0xff]
        %v3728 = vld [vmem:[#allocation7 + $0x44c] sm:$0xff]
        %v3729 = vld [vmem:[#allocation7 + $0x454] sm:$0xff]
        %v3730 = vld [vmem:[#allocation7 + $0x45c] sm:$0xf]
        %v3731 = vld [vmem:[#allocation7 + $0x460] sm:$0xff]
        %v3732 = vld [vmem:[#allocation7 + $0x468] sm:$0xff]
        %v3733 = vld [vmem:[#allocation7 + $0x470] sm:$0xff]
        %v3734 = vld [vmem:[#allocation7 + $0x478] sm:$0xf]
        %v3735 = vld [vmem:[#allocation7 + $0x47c] sm:$0xff]
        %v3736 = vld [vmem:[#allocation7 + $0x484] sm:$0xff]
        %v3737 = vld [vmem:[#allocation7 + $0x48c] sm:$0xff]
        %v3738 = vld [vmem:[#allocation7 + $0x494] sm:$0xf]
        %v3739 = vld [vmem:[#allocation7 + $0x498] sm:$0xff]
        %v3740 = vld [vmem:[#allocation7 + $0x4a0] sm:$0xff]
        %v3741 = vld [vmem:[#allocation7 + $0x4a8] sm:$0xff]
        %v3742 = vld [vmem:[#allocation7 + $0x4b0] sm:$0xf]
        %v3743 = vld [vmem:[#allocation7 + $0x4b4] sm:$0xff]
        %v3744 = vld [vmem:[#allocation7 + $0x4bc] sm:$0xff]
        %v3745 = vld [vmem:[#allocation7 + $0x4c4] sm:$0xff]
        %v3746 = vld [vmem:[#allocation7 + $0x4cc] sm:$0xf]
        %v3747 = vld [vmem:[#allocation7 + $0x4d0] sm:$0xff]
        %v3748 = vld [vmem:[#allocation7 + $0x4d8] sm:$0xff]
        %v3749 = vld [vmem:[#allocation7 + $0x4e0] sm:$0xff]
        %v3750 = vld [vmem:[#allocation7 + $0x4e8] sm:$0xf]
        %v3751 = vld [vmem:[#allocation7 + $0x4ec] sm:$0xff]
        %v3752 = vld [vmem:[#allocation7 + $0x4f4] sm:$0xff]
        %v3753 = vld [vmem:[#allocation7 + $0x4fc] sm:$0xff]
        %v3754 = vld [vmem:[#allocation7 + $0x504] sm:$0xf]
        %v3755 = vld [vmem:[#allocation7 + $0x508] sm:$0xff]
        %v3756 = vld [vmem:[#allocation7 + $0x510] sm:$0xff]
        %v3757 = vld [vmem:[#allocation7 + $0x518] sm:$0xff]
        %v3758 = vld [vmem:[#allocation7 + $0x520] sm:$0xf]
        %v3759 = vld [vmem:[#allocation7 + $0x524] sm:$0xff]
        %v3760 = vld [vmem:[#allocation7 + $0x52c] sm:$0xff]
        %v3761 = vld [vmem:[#allocation7 + $0x534] sm:$0xff]
        %v3762 = vld [vmem:[#allocation7 + $0x53c] sm:$0xf]
        %v3763 = vld [vmem:[#allocation7 + $0x540] sm:$0xff]
        %v3764 = vld [vmem:[#allocation7 + $0x548] sm:$0xff]
        %v3765 = vld [vmem:[#allocation7 + $0x550] sm:$0xff]
        %v3766 = vld [vmem:[#allocation7 + $0x558] sm:$0xf]
        %v3767 = vld [vmem:[#allocation7 + $0x55c] sm:$0xff]
        %v3768 = vld [vmem:[#allocation7 + $0x564] sm:$0xff]
        %v3769 = vld [vmem:[#allocation7 + $0x56c] sm:$0xff]
        %v3770 = vld [vmem:[#allocation7 + $0x574] sm:$0xf]
        %v3771 = vld [vmem:[#allocation7 + $0x578] sm:$0xff]
        %v3772 = vld [vmem:[#allocation7 + $0x580] sm:$0xff]
        %v3773 = vld [vmem:[#allocation7 + $0x588] sm:$0xff]
        %v3774 = vld [vmem:[#allocation7 + $0x590] sm:$0xf]
        %v3775 = vld [vmem:[#allocation7 + $0x594] sm:$0xff]
        %v3776 = vld [vmem:[#allocation7 + $0x59c] sm:$0xff]
        %v3777 = vld [vmem:[#allocation7 + $0x5a4] sm:$0xff]
        %v3778 = vld [vmem:[#allocation7 + $0x5ac] sm:$0xf]
        %v3779 = vld [vmem:[#allocation7 + $0x5b0] sm:$0xff]
        %v3780 = vld [vmem:[#allocation7 + $0x5b8] sm:$0xff]
        %v3781 = vld [vmem:[#allocation7 + $0x5c0] sm:$0xff]
        %v3782 = vld [vmem:[#allocation7 + $0x5c8] sm:$0xf]
        %v3783 = vld [vmem:[#allocation7 + $0x5cc] sm:$0xff]
        %v3784 = vld [vmem:[#allocation7 + $0x5d4] sm:$0xff]
        %v3785 = vld [vmem:[#allocation7 + $0x5dc] sm:$0xff]
        %v3786 = vld [vmem:[#allocation7 + $0x5e4] sm:$0xf]
        %v3787 = vld [vmem:[#allocation7 + $0x5e8] sm:$0xff]
        %v3788 = vld [vmem:[#allocation7 + $0x5f0] sm:$0xff]
        %v3789 = vld [vmem:[#allocation7 + $0x5f8] sm:$0xff]
        %v3790 = vld [vmem:[#allocation7 + $0x600] sm:$0xf]
        %v3791 = vld [vmem:[#allocation7 + $0x604] sm:$0xff]
        %v3792 = vld [vmem:[#allocation7 + $0x60c] sm:$0xff]
        %v3793 = vld [vmem:[#allocation7 + $0x614] sm:$0xff]
        %v3794 = vld [vmem:[#allocation7 + $0x61c] sm:$0xf]
        %v3795 = vld [vmem:[#allocation7 + $0x620] sm:$0xff]
        %v3796 = vld [vmem:[#allocation7 + $0x628] sm:$0xff]
        %v3797 = vld [vmem:[#allocation7 + $0x630] sm:$0xff]
        %v3798 = vld [vmem:[#allocation7 + $0x638] sm:$0xf]
        %v3799 = vld [vmem:[#allocation7 + $0x63c] sm:$0xff]
        %v3800 = vld [vmem:[#allocation7 + $0x644] sm:$0xff]
        %v3801 = vld [vmem:[#allocation7 + $0x64c] sm:$0xff]
        %v3802 = vld [vmem:[#allocation7 + $0x654] sm:$0xf]
        %v3803 = vld [vmem:[#allocation7 + $0x658] sm:$0xff]
        %v3804 = vld [vmem:[#allocation7 + $0x660] sm:$0xff]
        %v3805 = vld [vmem:[#allocation7 + $0x668] sm:$0xff]
        %v3806 = vld [vmem:[#allocation7 + $0x670] sm:$0xf]
        %v3807 = vld [vmem:[#allocation7 + $0x674] sm:$0xff]
        %v3808 = vld [vmem:[#allocation7 + $0x67c] sm:$0xff]
        %v3809 = vld [vmem:[#allocation7 + $0x684] sm:$0xff]
        %v3810 = vld [vmem:[#allocation7 + $0x68c] sm:$0xf]
        %v3811 = vld [vmem:[#allocation7 + $0x690] sm:$0xff]
        %v3812 = vld [vmem:[#allocation7 + $0x698] sm:$0xff]
        %v3813 = vld [vmem:[#allocation7 + $0x6a0] sm:$0xff]
        %v3814 = vld [vmem:[#allocation7 + $0x6a8] sm:$0xf]
        %v3815 = vld [vmem:[#allocation7 + $0x6ac] sm:$0xff]
        %v3816 = vld [vmem:[#allocation7 + $0x6b4] sm:$0xff]
        %v3817 = vld [vmem:[#allocation7 + $0x6bc] sm:$0xff]
        %v3818 = vld [vmem:[#allocation7 + $0x6c4] sm:$0xf]
        %v3819 = vld [vmem:[#allocation7 + $0x6c8] sm:$0xff]
        %v3820 = vld [vmem:[#allocation7 + $0x6d0] sm:$0xff]
        %v3821 = vld [vmem:[#allocation7 + $0x6d8] sm:$0xff]
        %v3822 = vld [vmem:[#allocation7 + $0x6e0] sm:$0xf]
        %v3823 = vld [vmem:[#allocation7 + $0x6e4] sm:$0xff]
        %v3824 = vld [vmem:[#allocation7 + $0x6ec] sm:$0xff]
        %v3825 = vld [vmem:[#allocation7 + $0x6f4] sm:$0xff]
        %v3826 = vld [vmem:[#allocation7 + $0x6fc] sm:$0xf]
        %v3827 = vld [vmem:[%s13] sm:$0xff]
        %v3829 = vlaneseq
        %v3830 = vshrl.u32 %v3829, 7
        %v3831 = vsub.s32 0, %v3830
        %v3832 = vrot.slane %v3827, %v3831
        %v3833 = vlaneseq
        %v3834 = vshrl.u32 %v3833, 7
        %v3835 = vsub.s32 1, %v3834
        %v3836 = vrot.slane %v3827, %v3835
        %v3837 = vlaneseq
        %v3838 = vshrl.u32 %v3837, 7
        %v3839 = vsub.s32 2, %v3838
        %v3840 = vrot.slane %v3827, %v3839
        %v3841 = vlaneseq
        %v3842 = vshrl.u32 %v3841, 7
        %v3843 = vsub.s32 3, %v3842
        %v3844 = vrot.slane %v3827, %v3843
        %v3845 = vlaneseq
        %v3846 = vshrl.u32 %v3845, 7
        %v3847 = vsub.s32 4, %v3846
        %v3848 = vrot.slane %v3827, %v3847
        %v3849 = vlaneseq
        %v3850 = vshrl.u32 %v3849, 7
        %v3851 = vsub.s32 5, %v3850
        %v3852 = vrot.slane %v3827, %v3851
        %v3853 = vlaneseq
        %v3854 = vshrl.u32 %v3853, 7
        %v3855 = vsub.s32 6, %v3854
        %v3856 = vrot.slane %v3827, %v3855
        %v4120 = vunpack.c.l.b16 %v3571
        %v4121 = vunpack.c.h.b16 %v3571
        %v4122 = vunpack.c.l.b16 %v3572
        %v4123 = vunpack.c.h.b16 %v3572
        %v4124 = vunpack.c.l.b16 %v3573
        %v4125 = vunpack.c.h.b16 %v3573
        %v4126 = vunpack.c.l.b16 %v3574
        %v4127 = vunpack.c.l.b16 %v3575
        %v4128 = vunpack.c.h.b16 %v3575
        %v4129 = vunpack.c.l.b16 %v3576
        %v4130 = vunpack.c.h.b16 %v3576
        %v4131 = vunpack.c.l.b16 %v3577
        %v4132 = vunpack.c.h.b16 %v3577
        %v4133 = vunpack.c.l.b16 %v3578
        %v4134 = vunpack.c.l.b16 %v3579
        %v4135 = vunpack.c.h.b16 %v3579
        %v4136 = vunpack.c.l.b16 %v3580
        %v4137 = vunpack.c.h.b16 %v3580
        %v4138 = vunpack.c.l.b16 %v3581
        %v4139 = vunpack.c.h.b16 %v3581
        %v4140 = vunpack.c.l.b16 %v3582
        %v4141 = vunpack.c.l.b16 %v3583
        %v4142 = vunpack.c.h.b16 %v3583
        %v4143 = vunpack.c.l.b16 %v3584
        %v4144 = vunpack.c.h.b16 %v3584
        %v4145 = vunpack.c.l.b16 %v3585
        %v4146 = vunpack.c.h.b16 %v3585
        %v4147 = vunpack.c.l.b16 %v3586
        %v4148 = vunpack.c.l.b16 %v3587
        %v4149 = vunpack.c.h.b16 %v3587
        %v4150 = vunpack.c.l.b16 %v3588
        %v4151 = vunpack.c.h.b16 %v3588
        %v4152 = vunpack.c.l.b16 %v3589
        %v4153 = vunpack.c.h.b16 %v3589
        %v4154 = vunpack.c.l.b16 %v3590
        %v4155 = vunpack.c.l.b16 %v3591
        %v4156 = vunpack.c.h.b16 %v3591
        %v4157 = vunpack.c.l.b16 %v3592
        %v4158 = vunpack.c.h.b16 %v3592
        %v4159 = vunpack.c.l.b16 %v3593
        %v4160 = vunpack.c.h.b16 %v3593
        %v4161 = vunpack.c.l.b16 %v3594
        %v4162 = vunpack.c.l.b16 %v3595
        %v4163 = vunpack.c.h.b16 %v3595
        %v4164 = vunpack.c.l.b16 %v3596
        %v4165 = vunpack.c.h.b16 %v3596
        %v4166 = vunpack.c.l.b16 %v3597
        %v4167 = vunpack.c.h.b16 %v3597
        %v4168 = vunpack.c.l.b16 %v3598
        %v4169 = vunpack.c.l.b16 %v3599
        %v4170 = vunpack.c.h.b16 %v3599
        %v4171 = vunpack.c.l.b16 %v3600
        %v4172 = vunpack.c.h.b16 %v3600
        %v4173 = vunpack.c.l.b16 %v3601
        %v4174 = vunpack.c.h.b16 %v3601
        %v4175 = vunpack.c.l.b16 %v3602
        %v4176 = vunpack.c.l.b16 %v3603
        %v4177 = vunpack.c.h.b16 %v3603
        %v4178 = vunpack.c.l.b16 %v3604
        %v4179 = vunpack.c.h.b16 %v3604
        %v4180 = vunpack.c.l.b16 %v3605
        %v4181 = vunpack.c.h.b16 %v3605
        %v4182 = vunpack.c.l.b16 %v3606
        %v4183 = vunpack.c.l.b16 %v3607
        %v4184 = vunpack.c.h.b16 %v3607
        %v4185 = vunpack.c.l.b16 %v3608
        %v4186 = vunpack.c.h.b16 %v3608
        %v4187 = vunpack.c.l.b16 %v3609
        %v4188 = vunpack.c.h.b16 %v3609
        %v4189 = vunpack.c.l.b16 %v3610
        %v4190 = vunpack.c.l.b16 %v3611
        %v4191 = vunpack.c.h.b16 %v3611
        %v4192 = vunpack.c.l.b16 %v3612
        %v4193 = vunpack.c.h.b16 %v3612
        %v4194 = vunpack.c.l.b16 %v3613
        %v4195 = vunpack.c.h.b16 %v3613
        %v4196 = vunpack.c.l.b16 %v3614
        %v4197 = vunpack.c.l.b16 %v3615
        %v4198 = vunpack.c.h.b16 %v3615
        %v4199 = vunpack.c.l.b16 %v3616
        %v4200 = vunpack.c.h.b16 %v3616
        %v4201 = vunpack.c.l.b16 %v3617
        %v4202 = vunpack.c.h.b16 %v3617
        %v4203 = vunpack.c.l.b16 %v3618
        %v4204 = vunpack.c.l.b16 %v3619
        %v4205 = vunpack.c.h.b16 %v3619
        %v4206 = vunpack.c.l.b16 %v3620
        %v4207 = vunpack.c.h.b16 %v3620
        %v4208 = vunpack.c.l.b16 %v3621
        %v4209 = vunpack.c.h.b16 %v3621
        %v4210 = vunpack.c.l.b16 %v3622
        %v4211 = vunpack.c.l.b16 %v3623
        %v4212 = vunpack.c.h.b16 %v3623
        %v4213 = vunpack.c.l.b16 %v3624
        %v4214 = vunpack.c.h.b16 %v3624
        %v4215 = vunpack.c.l.b16 %v3625
        %v4216 = vunpack.c.h.b16 %v3625
        %v4217 = vunpack.c.l.b16 %v3626
        %v4218 = vunpack.c.l.b16 %v3627
        %v4219 = vunpack.c.h.b16 %v3627
        %v4220 = vunpack.c.l.b16 %v3628
        %v4221 = vunpack.c.h.b16 %v3628
        %v4222 = vunpack.c.l.b16 %v3629
        %v4223 = vunpack.c.h.b16 %v3629
        %v4224 = vunpack.c.l.b16 %v3630
        %v4225 = vunpack.c.l.b16 %v3631
        %v4226 = vunpack.c.h.b16 %v3631
        %v4227 = vunpack.c.l.b16 %v3632
        %v4228 = vunpack.c.h.b16 %v3632
        %v4229 = vunpack.c.l.b16 %v3633
        %v4230 = vunpack.c.h.b16 %v3633
        %v4231 = vunpack.c.l.b16 %v3634
        %v4232 = vunpack.c.l.b16 %v3635
        %v4233 = vunpack.c.h.b16 %v3635
        %v4234 = vunpack.c.l.b16 %v3636
        %v4235 = vunpack.c.h.b16 %v3636
        %v4236 = vunpack.c.l.b16 %v3637
        %v4237 = vunpack.c.h.b16 %v3637
        %v4238 = vunpack.c.l.b16 %v3638
        %v4239 = vunpack.c.l.b16 %v3639
        %v4240 = vunpack.c.h.b16 %v3639
        %v4241 = vunpack.c.l.b16 %v3640
        %v4242 = vunpack.c.h.b16 %v3640
        %v4243 = vunpack.c.l.b16 %v3641
        %v4244 = vunpack.c.h.b16 %v3641
        %v4245 = vunpack.c.l.b16 %v3642
        %v4246 = vunpack.c.l.b16 %v3643
        %v4247 = vunpack.c.h.b16 %v3643
        %v4248 = vunpack.c.l.b16 %v3644
        %v4249 = vunpack.c.h.b16 %v3644
        %v4250 = vunpack.c.l.b16 %v3645
        %v4251 = vunpack.c.h.b16 %v3645
        %v4252 = vunpack.c.l.b16 %v3646
        %v4253 = vunpack.c.l.b16 %v3647
        %v4254 = vunpack.c.h.b16 %v3647
        %v4255 = vunpack.c.l.b16 %v3648
        %v4256 = vunpack.c.h.b16 %v3648
        %v4257 = vunpack.c.l.b16 %v3649
        %v4258 = vunpack.c.h.b16 %v3649
        %v4259 = vunpack.c.l.b16 %v3650
        %v4260 = vunpack.c.l.b16 %v3651
        %v4261 = vunpack.c.h.b16 %v3651
        %v4262 = vunpack.c.l.b16 %v3652
        %v4263 = vunpack.c.h.b16 %v3652
        %v4264 = vunpack.c.l.b16 %v3653
        %v4265 = vunpack.c.h.b16 %v3653
        %v4266 = vunpack.c.l.b16 %v3654
        %v4267 = vunpack.c.l.b16 %v3655
        %v4268 = vunpack.c.h.b16 %v3655
        %v4269 = vunpack.c.l.b16 %v3656
        %v4270 = vunpack.c.h.b16 %v3656
        %v4271 = vunpack.c.l.b16 %v3657
        %v4272 = vunpack.c.h.b16 %v3657
        %v4273 = vunpack.c.l.b16 %v3658
        %v4274 = vunpack.c.l.b16 %v3659
        %v4275 = vunpack.c.h.b16 %v3659
        %v4276 = vunpack.c.l.b16 %v3660
        %v4277 = vunpack.c.h.b16 %v3660
        %v4278 = vunpack.c.l.b16 %v3661
        %v4279 = vunpack.c.h.b16 %v3661
        %v4280 = vunpack.c.l.b16 %v3662
        %v4281 = vunpack.c.l.b16 %v3663
        %v4282 = vunpack.c.h.b16 %v3663
        %v4283 = vunpack.c.l.b16 %v3664
        %v4284 = vunpack.c.h.b16 %v3664
        %v4285 = vunpack.c.l.b16 %v3665
        %v4286 = vunpack.c.h.b16 %v3665
        %v4287 = vunpack.c.l.b16 %v3666
        %v4288 = vunpack.c.l.b16 %v3667
        %v4289 = vunpack.c.h.b16 %v3667
        %v4290 = vunpack.c.l.b16 %v3668
        %v4291 = vunpack.c.h.b16 %v3668
        %v4292 = vunpack.c.l.b16 %v3669
        %v4293 = vunpack.c.h.b16 %v3669
        %v4294 = vunpack.c.l.b16 %v3670
        %v4295 = vunpack.c.l.b16 %v3671
        %v4296 = vunpack.c.h.b16 %v3671
        %v4297 = vunpack.c.l.b16 %v3672
        %v4298 = vunpack.c.h.b16 %v3672
        %v4299 = vunpack.c.l.b16 %v3673
        %v4300 = vunpack.c.h.b16 %v3673
        %v4301 = vunpack.c.l.b16 %v3674
        %v4302 = vunpack.c.l.b16 %v3675
        %v4303 = vunpack.c.h.b16 %v3675
        %v4304 = vunpack.c.l.b16 %v3676
        %v4305 = vunpack.c.h.b16 %v3676
        %v4306 = vunpack.c.l.b16 %v3677
        %v4307 = vunpack.c.h.b16 %v3677
        %v4308 = vunpack.c.l.b16 %v3678
        %v4309 = vunpack.c.l.b16 %v3679
        %v4310 = vunpack.c.h.b16 %v3679
        %v4311 = vunpack.c.l.b16 %v3680
        %v4312 = vunpack.c.h.b16 %v3680
        %v4313 = vunpack.c.l.b16 %v3681
        %v4314 = vunpack.c.h.b16 %v3681
        %v4315 = vunpack.c.l.b16 %v3682
        %v4316 = vunpack.c.l.b16 %v3683
        %v4317 = vunpack.c.h.b16 %v3683
        %v4318 = vunpack.c.l.b16 %v3684
        %v4319 = vunpack.c.h.b16 %v3684
        %v4320 = vunpack.c.l.b16 %v3685
        %v4321 = vunpack.c.h.b16 %v3685
        %v4322 = vunpack.c.l.b16 %v3686
        %v4323 = vunpack.c.l.b16 %v3687
        %v4324 = vunpack.c.h.b16 %v3687
        %v4325 = vunpack.c.l.b16 %v3688
        %v4326 = vunpack.c.h.b16 %v3688
        %v4327 = vunpack.c.l.b16 %v3689
        %v4328 = vunpack.c.h.b16 %v3689
        %v4329 = vunpack.c.l.b16 %v3690
        %v4330 = vunpack.c.l.b16 %v3691
        %v4331 = vunpack.c.h.b16 %v3691
        %v4332 = vunpack.c.l.b16 %v3692
        %v4333 = vunpack.c.h.b16 %v3692
        %v4334 = vunpack.c.l.b16 %v3693
        %v4335 = vunpack.c.h.b16 %v3693
        %v4336 = vunpack.c.l.b16 %v3694
        %v4337 = vunpack.c.l.b16 %v3695
        %v4338 = vunpack.c.h.b16 %v3695
        %v4339 = vunpack.c.l.b16 %v3696
        %v4340 = vunpack.c.h.b16 %v3696
        %v4341 = vunpack.c.l.b16 %v3697
        %v4342 = vunpack.c.h.b16 %v3697
        %v4343 = vunpack.c.l.b16 %v3698
        %v4344 = vunpack.c.l.b16 %v3699
        %v4345 = vunpack.c.h.b16 %v3699
        %v4346 = vunpack.c.l.b16 %v3700
        %v4347 = vunpack.c.h.b16 %v3700
        %v4348 = vunpack.c.l.b16 %v3701
        %v4349 = vunpack.c.h.b16 %v3701
        %v4350 = vunpack.c.l.b16 %v3702
        %v4351 = vunpack.c.l.b16 %v3703
        %v4352 = vunpack.c.h.b16 %v3703
        %v4353 = vunpack.c.l.b16 %v3704
        %v4354 = vunpack.c.h.b16 %v3704
        %v4355 = vunpack.c.l.b16 %v3705
        %v4356 = vunpack.c.h.b16 %v3705
        %v4357 = vunpack.c.l.b16 %v3706
        %v4358 = vunpack.c.l.b16 %v3707
        %v4359 = vunpack.c.h.b16 %v3707
        %v4360 = vunpack.c.l.b16 %v3708
        %v4361 = vunpack.c.h.b16 %v3708
        %v4362 = vunpack.c.l.b16 %v3709
        %v4363 = vunpack.c.h.b16 %v3709
        %v4364 = vunpack.c.l.b16 %v3710
        %v4365 = vunpack.c.l.b16 %v3711
        %v4366 = vunpack.c.h.b16 %v3711
        %v4367 = vunpack.c.l.b16 %v3712
        %v4368 = vunpack.c.h.b16 %v3712
        %v4369 = vunpack.c.l.b16 %v3713
        %v4370 = vunpack.c.h.b16 %v3713
        %v4371 = vunpack.c.l.b16 %v3714
        %v4372 = vunpack.c.l.b16 %v3715
        %v4373 = vunpack.c.h.b16 %v3715
        %v4374 = vunpack.c.l.b16 %v3716
        %v4375 = vunpack.c.h.b16 %v3716
        %v4376 = vunpack.c.l.b16 %v3717
        %v4377 = vunpack.c.h.b16 %v3717
        %v4378 = vunpack.c.l.b16 %v3718
        %v4379 = vunpack.c.l.b16 %v3719
        %v4380 = vunpack.c.h.b16 %v3719
        %v4381 = vunpack.c.l.b16 %v3720
        %v4382 = vunpack.c.h.b16 %v3720
        %v4383 = vunpack.c.l.b16 %v3721
        %v4384 = vunpack.c.h.b16 %v3721
        %v4385 = vunpack.c.l.b16 %v3722
        %v4386 = vunpack.c.l.b16 %v3723
        %v4387 = vunpack.c.h.b16 %v3723
        %v4388 = vunpack.c.l.b16 %v3724
        %v4389 = vunpack.c.h.b16 %v3724
        %v4390 = vunpack.c.l.b16 %v3725
        %v4391 = vunpack.c.h.b16 %v3725
        %v4392 = vunpack.c.l.b16 %v3726
        %v4393 = vunpack.c.l.b16 %v3727
        %v4394 = vunpack.c.h.b16 %v3727
        %v4395 = vunpack.c.l.b16 %v3728
        %v4396 = vunpack.c.h.b16 %v3728
        %v4397 = vunpack.c.l.b16 %v3729
        %v4398 = vunpack.c.h.b16 %v3729
        %v4399 = vunpack.c.l.b16 %v3730
        %v4400 = vunpack.c.l.b16 %v3731
        %v4401 = vunpack.c.h.b16 %v3731
        %v4402 = vunpack.c.l.b16 %v3732
        %v4403 = vunpack.c.h.b16 %v3732
        %v4404 = vunpack.c.l.b16 %v3733
        %v4405 = vunpack.c.h.b16 %v3733
        %v4406 = vunpack.c.l.b16 %v3734
        %v4407 = vunpack.c.l.b16 %v3735
        %v4408 = vunpack.c.h.b16 %v3735
        %v4409 = vunpack.c.l.b16 %v3736
        %v4410 = vunpack.c.h.b16 %v3736
        %v4411 = vunpack.c.l.b16 %v3737
        %v4412 = vunpack.c.h.b16 %v3737
        %v4413 = vunpack.c.l.b16 %v3738
        %v4414 = vunpack.c.l.b16 %v3739
        %v4415 = vunpack.c.h.b16 %v3739
        %v4416 = vunpack.c.l.b16 %v3740
        %v4417 = vunpack.c.h.b16 %v3740
        %v4418 = vunpack.c.l.b16 %v3741
        %v4419 = vunpack.c.h.b16 %v3741
        %v4420 = vunpack.c.l.b16 %v3742
        %v4421 = vunpack.c.l.b16 %v3743
        %v4422 = vunpack.c.h.b16 %v3743
        %v4423 = vunpack.c.l.b16 %v3744
        %v4424 = vunpack.c.h.b16 %v3744
        %v4425 = vunpack.c.l.b16 %v3745
        %v4426 = vunpack.c.h.b16 %v3745
        %v4427 = vunpack.c.l.b16 %v3746
        %v4428 = vunpack.c.l.b16 %v3747
        %v4429 = vunpack.c.h.b16 %v3747
        %v4430 = vunpack.c.l.b16 %v3748
        %v4431 = vunpack.c.h.b16 %v3748
        %v4432 = vunpack.c.l.b16 %v3749
        %v4433 = vunpack.c.h.b16 %v3749
        %v4434 = vunpack.c.l.b16 %v3750
        %v4435 = vunpack.c.l.b16 %v3751
        %v4436 = vunpack.c.h.b16 %v3751
        %v4437 = vunpack.c.l.b16 %v3752
        %v4438 = vunpack.c.h.b16 %v3752
        %v4439 = vunpack.c.l.b16 %v3753
        %v4440 = vunpack.c.h.b16 %v3753
        %v4441 = vunpack.c.l.b16 %v3754
        %v4442 = vunpack.c.l.b16 %v3755
        %v4443 = vunpack.c.h.b16 %v3755
        %v4444 = vunpack.c.l.b16 %v3756
        %v4445 = vunpack.c.h.b16 %v3756
        %v4446 = vunpack.c.l.b16 %v3757
        %v4447 = vunpack.c.h.b16 %v3757
        %v4448 = vunpack.c.l.b16 %v3758
        %v4449 = vunpack.c.l.b16 %v3759
        %v4450 = vunpack.c.h.b16 %v3759
        %v4451 = vunpack.c.l.b16 %v3760
        %v4452 = vunpack.c.h.b16 %v3760
        %v4453 = vunpack.c.l.b16 %v3761
        %v4454 = vunpack.c.h.b16 %v3761
        %v4455 = vunpack.c.l.b16 %v3762
        %v4456 = vunpack.c.l.b16 %v3763
        %v4457 = vunpack.c.h.b16 %v3763
        %v4458 = vunpack.c.l.b16 %v3764
        %v4459 = vunpack.c.h.b16 %v3764
        %v4460 = vunpack.c.l.b16 %v3765
        %v4461 = vunpack.c.h.b16 %v3765
        %v4462 = vunpack.c.l.b16 %v3766
        %v4463 = vunpack.c.l.b16 %v3767
        %v4464 = vunpack.c.h.b16 %v3767
        %v4465 = vunpack.c.l.b16 %v3768
        %v4466 = vunpack.c.h.b16 %v3768
        %v4467 = vunpack.c.l.b16 %v3769
        %v4468 = vunpack.c.h.b16 %v3769
        %v4469 = vunpack.c.l.b16 %v3770
        %v4470 = vunpack.c.l.b16 %v3771
        %v4471 = vunpack.c.h.b16 %v3771
        %v4472 = vunpack.c.l.b16 %v3772
        %v4473 = vunpack.c.h.b16 %v3772
        %v4474 = vunpack.c.l.b16 %v3773
        %v4475 = vunpack.c.h.b16 %v3773
        %v4476 = vunpack.c.l.b16 %v3774
        %v4477 = vunpack.c.l.b16 %v3775
        %v4478 = vunpack.c.h.b16 %v3775
        %v4479 = vunpack.c.l.b16 %v3776
        %v4480 = vunpack.c.h.b16 %v3776
        %v4481 = vunpack.c.l.b16 %v3777
        %v4482 = vunpack.c.h.b16 %v3777
        %v4483 = vunpack.c.l.b16 %v3778
        %v4484 = vunpack.c.l.b16 %v3779
        %v4485 = vunpack.c.h.b16 %v3779
        %v4486 = vunpack.c.l.b16 %v3780
        %v4487 = vunpack.c.h.b16 %v3780
        %v4488 = vunpack.c.l.b16 %v3781
        %v4489 = vunpack.c.h.b16 %v3781
        %v4490 = vunpack.c.l.b16 %v3782
        %v4491 = vunpack.c.l.b16 %v3783
        %v4492 = vunpack.c.h.b16 %v3783
        %v4493 = vunpack.c.l.b16 %v3784
        %v4494 = vunpack.c.h.b16 %v3784
        %v4495 = vunpack.c.l.b16 %v3785
        %v4496 = vunpack.c.h.b16 %v3785
        %v4497 = vunpack.c.l.b16 %v3786
        %v4498 = vunpack.c.l.b16 %v3787
        %v4499 = vunpack.c.h.b16 %v3787
        %v4500 = vunpack.c.l.b16 %v3788
        %v4501 = vunpack.c.h.b16 %v3788
        %v4502 = vunpack.c.l.b16 %v3789
        %v4503 = vunpack.c.h.b16 %v3789
        %v4504 = vunpack.c.l.b16 %v3790
        %v4505 = vunpack.c.l.b16 %v3791
        %v4506 = vunpack.c.h.b16 %v3791
        %v4507 = vunpack.c.l.b16 %v3792
        %v4508 = vunpack.c.h.b16 %v3792
        %v4509 = vunpack.c.l.b16 %v3793
        %v4510 = vunpack.c.h.b16 %v3793
        %v4511 = vunpack.c.l.b16 %v3794
        %v4512 = vunpack.c.l.b16 %v3795
        %v4513 = vunpack.c.h.b16 %v3795
        %v4514 = vunpack.c.l.b16 %v3796
        %v4515 = vunpack.c.h.b16 %v3796
        %v4516 = vunpack.c.l.b16 %v3797
        %v4517 = vunpack.c.h.b16 %v3797
        %v4518 = vunpack.c.l.b16 %v3798
        %v4519 = vunpack.c.l.b16 %v3799
        %v4520 = vunpack.c.h.b16 %v3799
        %v4521 = vunpack.c.l.b16 %v3800
        %v4522 = vunpack.c.h.b16 %v3800
        %v4523 = vunpack.c.l.b16 %v3801
        %v4524 = vunpack.c.h.b16 %v3801
        %v4525 = vunpack.c.l.b16 %v3802
        %v4526 = vunpack.c.l.b16 %v3803
        %v4527 = vunpack.c.h.b16 %v3803
        %v4528 = vunpack.c.l.b16 %v3804
        %v4529 = vunpack.c.h.b16 %v3804
        %v4530 = vunpack.c.l.b16 %v3805
        %v4531 = vunpack.c.h.b16 %v3805
        %v4532 = vunpack.c.l.b16 %v3806
        %v4533 = vunpack.c.l.b16 %v3807
        %v4534 = vunpack.c.h.b16 %v3807
        %v4535 = vunpack.c.l.b16 %v3808
        %v4536 = vunpack.c.h.b16 %v3808
        %v4537 = vunpack.c.l.b16 %v3809
        %v4538 = vunpack.c.h.b16 %v3809
        %v4539 = vunpack.c.l.b16 %v3810
        %v4540 = vunpack.c.l.b16 %v3811
        %v4541 = vunpack.c.h.b16 %v3811
        %v4542 = vunpack.c.l.b16 %v3812
        %v4543 = vunpack.c.h.b16 %v3812
        %v4544 = vunpack.c.l.b16 %v3813
        %v4545 = vunpack.c.h.b16 %v3813
        %v4546 = vunpack.c.l.b16 %v3814
        %v4547 = vunpack.c.l.b16 %v3815
        %v4548 = vunpack.c.h.b16 %v3815
        %v4549 = vunpack.c.l.b16 %v3816
        %v4550 = vunpack.c.h.b16 %v3816
        %v4551 = vunpack.c.l.b16 %v3817
        %v4552 = vunpack.c.h.b16 %v3817
        %v4553 = vunpack.c.l.b16 %v3818
        %v4554 = vunpack.c.l.b16 %v3819
        %v4555 = vunpack.c.h.b16 %v3819
        %v4556 = vunpack.c.l.b16 %v3820
        %v4557 = vunpack.c.h.b16 %v3820
        %v4558 = vunpack.c.l.b16 %v3821
        %v4559 = vunpack.c.h.b16 %v3821
        %v4560 = vunpack.c.l.b16 %v3822
        %v4561 = vunpack.c.l.b16 %v3823
        %v4562 = vunpack.c.h.b16 %v3823
        %v4563 = vunpack.c.l.b16 %v3824
        %v4564 = vunpack.c.h.b16 %v3824
        %v4565 = vunpack.c.l.b16 %v3825
        %v4566 = vunpack.c.h.b16 %v3825
        %v4567 = vunpack.c.l.b16 %v3826
        %v4568 = vpack.c.b16 %v4127, %v4120
        %v4569 = vpack.c.b16 %v4128, %v4121
        %v4570 = vpack.c.b16 %v4129, %v4122
        %v4571 = vpack.c.b16 %v4130, %v4123
        %v4572 = vpack.c.b16 %v4131, %v4124
        %v4573 = vpack.c.b16 %v4132, %v4125
        %v4574 = vpack.c.b16 %v4133, %v4126
        %v4575 = vpack.c.b16 %v4141, %v4134
        %v4576 = vpack.c.b16 %v4142, %v4135
        %v4577 = vpack.c.b16 %v4143, %v4136
        %v4578 = vpack.c.b16 %v4144, %v4137
        %v4579 = vpack.c.b16 %v4145, %v4138
        %v4580 = vpack.c.b16 %v4146, %v4139
        %v4581 = vpack.c.b16 %v4147, %v4140
        %v4582 = vpack.c.b16 %v4155, %v4148
        %v4583 = vpack.c.b16 %v4156, %v4149
        %v4584 = vpack.c.b16 %v4157, %v4150
        %v4585 = vpack.c.b16 %v4158, %v4151
        %v4586 = vpack.c.b16 %v4159, %v4152
        %v4587 = vpack.c.b16 %v4160, %v4153
        %v4588 = vpack.c.b16 %v4161, %v4154
        %v4589 = vpack.c.b16 %v4169, %v4162
        %v4590 = vpack.c.b16 %v4170, %v4163
        %v4591 = vpack.c.b16 %v4171, %v4164
        %v4592 = vpack.c.b16 %v4172, %v4165
        %v4593 = vpack.c.b16 %v4173, %v4166
        %v4594 = vpack.c.b16 %v4174, %v4167
        %v4595 = vpack.c.b16 %v4175, %v4168
        %v4596 = vpack.c.b16 %v4183, %v4176
        %v4597 = vpack.c.b16 %v4184, %v4177
        %v4598 = vpack.c.b16 %v4185, %v4178
        %v4599 = vpack.c.b16 %v4186, %v4179
        %v4600 = vpack.c.b16 %v4187, %v4180
        %v4601 = vpack.c.b16 %v4188, %v4181
        %v4602 = vpack.c.b16 %v4189, %v4182
        %v4603 = vpack.c.b16 %v4197, %v4190
        %v4604 = vpack.c.b16 %v4198, %v4191
        %v4605 = vpack.c.b16 %v4199, %v4192
        %v4606 = vpack.c.b16 %v4200, %v4193
        %v4607 = vpack.c.b16 %v4201, %v4194
        %v4608 = vpack.c.b16 %v4202, %v4195
        %v4609 = vpack.c.b16 %v4203, %v4196
        %v4610 = vpack.c.b16 %v4211, %v4204
        %v4611 = vpack.c.b16 %v4212, %v4205
        %v4612 = vpack.c.b16 %v4213, %v4206
        %v4613 = vpack.c.b16 %v4214, %v4207
        %v4614 = vpack.c.b16 %v4215, %v4208
        %v4615 = vpack.c.b16 %v4216, %v4209
        %v4616 = vpack.c.b16 %v4217, %v4210
        %v4617 = vpack.c.b16 %v4225, %v4218
        %v4618 = vpack.c.b16 %v4226, %v4219
        %v4619 = vpack.c.b16 %v4227, %v4220
        %v4620 = vpack.c.b16 %v4228, %v4221
        %v4621 = vpack.c.b16 %v4229, %v4222
        %v4622 = vpack.c.b16 %v4230, %v4223
        %v4623 = vpack.c.b16 %v4231, %v4224
        %v4624 = vpack.c.b16 %v4239, %v4232
        %v4625 = vpack.c.b16 %v4240, %v4233
        %v4626 = vpack.c.b16 %v4241, %v4234
        %v4627 = vpack.c.b16 %v4242, %v4235
        %v4628 = vpack.c.b16 %v4243, %v4236
        %v4629 = vpack.c.b16 %v4244, %v4237
        %v4630 = vpack.c.b16 %v4245, %v4238
        %v4631 = vpack.c.b16 %v4253, %v4246
        %v4632 = vpack.c.b16 %v4254, %v4247
        %v4633 = vpack.c.b16 %v4255, %v4248
        %v4634 = vpack.c.b16 %v4256, %v4249
        %v4635 = vpack.c.b16 %v4257, %v4250
        %v4636 = vpack.c.b16 %v4258, %v4251
        %v4637 = vpack.c.b16 %v4259, %v4252
        %v4638 = vpack.c.b16 %v4267, %v4260
        %v4639 = vpack.c.b16 %v4268, %v4261
        %v4640 = vpack.c.b16 %v4269, %v4262
        %v4641 = vpack.c.b16 %v4270, %v4263
        %v4642 = vpack.c.b16 %v4271, %v4264
        %v4643 = vpack.c.b16 %v4272, %v4265
        %v4644 = vpack.c.b16 %v4273, %v4266
        %v4645 = vpack.c.b16 %v4281, %v4274
        %v4646 = vpack.c.b16 %v4282, %v4275
        %v4647 = vpack.c.b16 %v4283, %v4276
        %v4648 = vpack.c.b16 %v4284, %v4277
        %v4649 = vpack.c.b16 %v4285, %v4278
        %v4650 = vpack.c.b16 %v4286, %v4279
        %v4651 = vpack.c.b16 %v4287, %v4280
        %v4652 = vpack.c.b16 %v4295, %v4288
        %v4653 = vpack.c.b16 %v4296, %v4289
        %v4654 = vpack.c.b16 %v4297, %v4290
        %v4655 = vpack.c.b16 %v4298, %v4291
        %v4656 = vpack.c.b16 %v4299, %v4292
        %v4657 = vpack.c.b16 %v4300, %v4293
        %v4658 = vpack.c.b16 %v4301, %v4294
        %v4659 = vpack.c.b16 %v4309, %v4302
        %v4660 = vpack.c.b16 %v4310, %v4303
        %v4661 = vpack.c.b16 %v4311, %v4304
        %v4662 = vpack.c.b16 %v4312, %v4305
        %v4663 = vpack.c.b16 %v4313, %v4306
        %v4664 = vpack.c.b16 %v4314, %v4307
        %v4665 = vpack.c.b16 %v4315, %v4308
        %v4666 = vpack.c.b16 %v4323, %v4316
        %v4667 = vpack.c.b16 %v4324, %v4317
        %v4668 = vpack.c.b16 %v4325, %v4318
        %v4669 = vpack.c.b16 %v4326, %v4319
        %v4670 = vpack.c.b16 %v4327, %v4320
        %v4671 = vpack.c.b16 %v4328, %v4321
        %v4672 = vpack.c.b16 %v4329, %v4322
        %v4673 = vpack.c.b16 %v4337, %v4330
        %v4674 = vpack.c.b16 %v4338, %v4331
        %v4675 = vpack.c.b16 %v4339, %v4332
        %v4676 = vpack.c.b16 %v4340, %v4333
        %v4677 = vpack.c.b16 %v4341, %v4334
        %v4678 = vpack.c.b16 %v4342, %v4335
        %v4679 = vpack.c.b16 %v4343, %v4336
        %v4680 = vpack.c.b16 %v4351, %v4344
        %v4681 = vpack.c.b16 %v4352, %v4345
        %v4682 = vpack.c.b16 %v4353, %v4346
        %v4683 = vpack.c.b16 %v4354, %v4347
        %v4684 = vpack.c.b16 %v4355, %v4348
        %v4685 = vpack.c.b16 %v4356, %v4349
        %v4686 = vpack.c.b16 %v4357, %v4350
        %v4687 = vpack.c.b16 %v4365, %v4358
        %v4688 = vpack.c.b16 %v4366, %v4359
        %v4689 = vpack.c.b16 %v4367, %v4360
        %v4690 = vpack.c.b16 %v4368, %v4361
        %v4691 = vpack.c.b16 %v4369, %v4362
        %v4692 = vpack.c.b16 %v4370, %v4363
        %v4693 = vpack.c.b16 %v4371, %v4364
        %v4694 = vpack.c.b16 %v4379, %v4372
        %v4695 = vpack.c.b16 %v4380, %v4373
        %v4696 = vpack.c.b16 %v4381, %v4374
        %v4697 = vpack.c.b16 %v4382, %v4375
        %v4698 = vpack.c.b16 %v4383, %v4376
        %v4699 = vpack.c.b16 %v4384, %v4377
        %v4700 = vpack.c.b16 %v4385, %v4378
        %v4701 = vpack.c.b16 %v4393, %v4386
        %v4702 = vpack.c.b16 %v4394, %v4387
        %v4703 = vpack.c.b16 %v4395, %v4388
        %v4704 = vpack.c.b16 %v4396, %v4389
        %v4705 = vpack.c.b16 %v4397, %v4390
        %v4706 = vpack.c.b16 %v4398, %v4391
        %v4707 = vpack.c.b16 %v4399, %v4392
        %v4708 = vpack.c.b16 %v4407, %v4400
        %v4709 = vpack.c.b16 %v4408, %v4401
        %v4710 = vpack.c.b16 %v4409, %v4402
        %v4711 = vpack.c.b16 %v4410, %v4403
        %v4712 = vpack.c.b16 %v4411, %v4404
        %v4713 = vpack.c.b16 %v4412, %v4405
        %v4714 = vpack.c.b16 %v4413, %v4406
        %v4715 = vpack.c.b16 %v4421, %v4414
        %v4716 = vpack.c.b16 %v4422, %v4415
        %v4717 = vpack.c.b16 %v4423, %v4416
        %v4718 = vpack.c.b16 %v4424, %v4417
        %v4719 = vpack.c.b16 %v4425, %v4418
        %v4720 = vpack.c.b16 %v4426, %v4419
        %v4721 = vpack.c.b16 %v4427, %v4420
        %v4722 = vpack.c.b16 %v4435, %v4428
        %v4723 = vpack.c.b16 %v4436, %v4429
        %v4724 = vpack.c.b16 %v4437, %v4430
        %v4725 = vpack.c.b16 %v4438, %v4431
        %v4726 = vpack.c.b16 %v4439, %v4432
        %v4727 = vpack.c.b16 %v4440, %v4433
        %v4728 = vpack.c.b16 %v4441, %v4434
        %v4729 = vpack.c.b16 %v4449, %v4442
        %v4730 = vpack.c.b16 %v4450, %v4443
        %v4731 = vpack.c.b16 %v4451, %v4444
        %v4732 = vpack.c.b16 %v4452, %v4445
        %v4733 = vpack.c.b16 %v4453, %v4446
        %v4734 = vpack.c.b16 %v4454, %v4447
        %v4735 = vpack.c.b16 %v4455, %v4448
        %v4736 = vpack.c.b16 %v4463, %v4456
        %v4737 = vpack.c.b16 %v4464, %v4457
        %v4738 = vpack.c.b16 %v4465, %v4458
        %v4739 = vpack.c.b16 %v4466, %v4459
        %v4740 = vpack.c.b16 %v4467, %v4460
        %v4741 = vpack.c.b16 %v4468, %v4461
        %v4742 = vpack.c.b16 %v4469, %v4462
        %v4743 = vpack.c.b16 %v4477, %v4470
        %v4744 = vpack.c.b16 %v4478, %v4471
        %v4745 = vpack.c.b16 %v4479, %v4472
        %v4746 = vpack.c.b16 %v4480, %v4473
        %v4747 = vpack.c.b16 %v4481, %v4474
        %v4748 = vpack.c.b16 %v4482, %v4475
        %v4749 = vpack.c.b16 %v4483, %v4476
        %v4750 = vpack.c.b16 %v4491, %v4484
        %v4751 = vpack.c.b16 %v4492, %v4485
        %v4752 = vpack.c.b16 %v4493, %v4486
        %v4753 = vpack.c.b16 %v4494, %v4487
        %v4754 = vpack.c.b16 %v4495, %v4488
        %v4755 = vpack.c.b16 %v4496, %v4489
        %v4756 = vpack.c.b16 %v4497, %v4490
        %v4757 = vpack.c.b16 %v4505, %v4498
        %v4758 = vpack.c.b16 %v4506, %v4499
        %v4759 = vpack.c.b16 %v4507, %v4500
        %v4760 = vpack.c.b16 %v4508, %v4501
        %v4761 = vpack.c.b16 %v4509, %v4502
        %v4762 = vpack.c.b16 %v4510, %v4503
        %v4763 = vpack.c.b16 %v4511, %v4504
        %v4764 = vpack.c.b16 %v4519, %v4512
        %v4765 = vpack.c.b16 %v4520, %v4513
        %v4766 = vpack.c.b16 %v4521, %v4514
        %v4767 = vpack.c.b16 %v4522, %v4515
        %v4768 = vpack.c.b16 %v4523, %v4516
        %v4769 = vpack.c.b16 %v4524, %v4517
        %v4770 = vpack.c.b16 %v4525, %v4518
        %v4771 = vpack.c.b16 %v4533, %v4526
        %v4772 = vpack.c.b16 %v4534, %v4527
        %v4773 = vpack.c.b16 %v4535, %v4528
        %v4774 = vpack.c.b16 %v4536, %v4529
        %v4775 = vpack.c.b16 %v4537, %v4530
        %v4776 = vpack.c.b16 %v4538, %v4531
        %v4777 = vpack.c.b16 %v4539, %v4532
        %v4778 = vpack.c.b16 %v4547, %v4540
        %v4779 = vpack.c.b16 %v4548, %v4541
        %v4780 = vpack.c.b16 %v4549, %v4542
        %v4781 = vpack.c.b16 %v4550, %v4543
        %v4782 = vpack.c.b16 %v4551, %v4544
        %v4783 = vpack.c.b16 %v4552, %v4545
        %v4784 = vpack.c.b16 %v4553, %v4546
        %v4785 = vpack.c.b16 %v4561, %v4554
        %v4786 = vpack.c.b16 %v4562, %v4555
        %v4787 = vpack.c.b16 %v4563, %v4556
        %v4788 = vpack.c.b16 %v4564, %v4557
        %v4789 = vpack.c.b16 %v4565, %v4558
        %v4790 = vpack.c.b16 %v4566, %v4559
        %v4791 = vpack.c.b16 %v4567, %v4560
        %5016 = vmatprep.subr.bf16.mxu0 %v4618
        %5017 = vmatpush1.bf16.msra.mxu0 %v4617
        %5018 = vmatprep.subr.bf16.mxu0 %v4611
        %5019 = vmatpush1.bf16.msra.mxu0 %v4610
        %5020 = vmatprep.subr.bf16.mxu0 %v4604
        %5021 = vmatpush1.bf16.msra.mxu0 %v4603
        %5022 = vmatprep.subr.bf16.mxu0 %v4597
        %5023 = vmatpush1.bf16.msra.mxu0 %v4596
        %5024 = vmatprep.subr.bf16.mxu0 %v4590
        %5025 = vmatpush1.bf16.msra.mxu0 %v4589
        %5026 = vmatprep.subr.bf16.mxu0 %v4583
        %5027 = vmatpush1.bf16.msra.mxu0 %v4582
        %5028 = vmatprep.subr.bf16.mxu0 %v4576
        %5029 = vmatpush1.bf16.msra.mxu0 %v4575
        %5030 = vmatprep.subr.bf16.mxu0 %v4569
        %5031 = vmatpush1.bf16.msra.mxu0 %v4568
        %5032 = vmatprep.subr.bf16.mxu0 %v4674
        %5033 = vmatpush2.bf16.msra.mxu0 %v4673
        %5034 = vmatprep.subr.bf16.mxu0 %v4667
        %5035 = vmatpush2.bf16.msra.mxu0 %v4666
        %5036 = vmatprep.subr.bf16.mxu0 %v4660
        %5037 = vmatpush2.bf16.msra.mxu0 %v4659
        %5038 = vmatprep.subr.bf16.mxu0 %v4653
        %5039 = vmatpush2.bf16.msra.mxu0 %v4652
        %5040 = vmatprep.subr.bf16.mxu0 %v4646
        %5041 = vmatpush2.bf16.msra.mxu0 %v4645
        %5042 = vmatprep.subr.bf16.mxu0 %v4639
        %5043 = vmatpush2.bf16.msra.mxu0 %v4638
        %5044 = vmatprep.subr.bf16.mxu0 %v4632
        %5045 = vmatpush2.bf16.msra.mxu0 %v4631
        %5046 = vmatprep.subr.bf16.mxu0 %v4625
        %5047 = vmatpush2.bf16.msra.mxu0 %v4624
        %5048 = vmatprep.mubr.bf16.mxu0 %v3568
        %5049 = vmatmul.mubr.bf16.gmra.mxu0 %v3567
        %v5050 = vpop.f32.mrf.mxu0
        %v5051 = vadd.f32 %v3832, %v5050
        %v5052 = vpop.f32.mrf.mxu0
        %v5053 = vadd.f32 %v3836, %v5052
        %v5054 = vpop.f32.mrf.mxu0
        %v5055 = vadd.f32 %v3832, %v5054
        %v5056 = vpop.f32.mrf.mxu0
        %v5057 = vadd.f32 %v3836, %v5056
        %5058 = vdwg.mxu0
        %5059 = vmatprep.subr.bf16.mxu0 %v4730
        %5060 = vmatpush1.bf16.msra.mxu0 %v4729
        %5061 = vmatprep.subr.bf16.mxu0 %v4723
        %5062 = vmatpush1.bf16.msra.mxu0 %v4722
        %5063 = vmatprep.subr.bf16.mxu0 %v4716
        %5064 = vmatpush1.bf16.msra.mxu0 %v4715
        %5065 = vmatprep.subr.bf16.mxu0 %v4709
        %5066 = vmatpush1.bf16.msra.mxu0 %v4708
        %5067 = vmatprep.subr.bf16.mxu0 %v4702
        %5068 = vmatpush1.bf16.msra.mxu0 %v4701
        %5069 = vmatprep.subr.bf16.mxu0 %v4695
        %5070 = vmatpush1.bf16.msra.mxu0 %v4694
        %5071 = vmatprep.subr.bf16.mxu0 %v4688
        %5072 = vmatpush1.bf16.msra.mxu0 %v4687
        %5073 = vmatprep.subr.bf16.mxu0 %v4681
        %5074 = vmatpush1.bf16.msra.mxu0 %v4680
        %5075 = vmatprep.subr.bf16.mxu0 %v4786
        %5076 = vmatpush2.bf16.msra.mxu0 %v4785
        %5077 = vmatprep.subr.bf16.mxu0 %v4779
        %5078 = vmatpush2.bf16.msra.mxu0 %v4778
        %5079 = vmatprep.subr.bf16.mxu0 %v4772
        %5080 = vmatpush2.bf16.msra.mxu0 %v4771
        %5081 = vmatprep.subr.bf16.mxu0 %v4765
        %5082 = vmatpush2.bf16.msra.mxu0 %v4764
        %5083 = vmatprep.subr.bf16.mxu0 %v4758
        %5084 = vmatpush2.bf16.msra.mxu0 %v4757
        %5085 = vmatprep.subr.bf16.mxu0 %v4751
        %5086 = vmatpush2.bf16.msra.mxu0 %v4750
        %5087 = vmatprep.subr.bf16.mxu0 %v4744
        %5088 = vmatpush2.bf16.msra.mxu0 %v4743
        %5089 = vmatprep.subr.bf16.mxu0 %v4737
        %5090 = vmatpush2.bf16.msra.mxu0 %v4736
        %5091 = vmatprep.mubr.bf16.mxu0 %v3570
        %5092 = vmatmul.mubr.bf16.gmra.mxu0 %v3569
        %v5093 = vpop.f32.mrf.mxu0
        %v5094 = vadd.f32 %v5051, %v5093
        %v5095 = vpop.f32.mrf.mxu0
        %v5096 = vadd.f32 %v5053, %v5095
        %v5097 = vpop.f32.mrf.mxu0
        %v5098 = vadd.f32 %v5055, %v5097
        %v5099 = vpop.f32.mrf.mxu0
        %v5100 = vadd.f32 %v5057, %v5099
        %5101 = vdwg.mxu0
        %5102 = vmatprep.subr.bf16.mxu0 %v4620
        %5103 = vmatpush1.bf16.msra.mxu0 %v4619
        %5104 = vmatprep.subr.bf16.mxu0 %v4613
        %5105 = vmatpush1.bf16.msra.mxu0 %v4612
        %5106 = vmatprep.subr.bf16.mxu0 %v4606
        %5107 = vmatpush1.bf16.msra.mxu0 %v4605
        %5108 = vmatprep.subr.bf16.mxu0 %v4599
        %5109 = vmatpush1.bf16.msra.mxu0 %v4598
        %5110 = vmatprep.subr.bf16.mxu0 %v4592
        %5111 = vmatpush1.bf16.msra.mxu0 %v4591
        %5112 = vmatprep.subr.bf16.mxu0 %v4585
        %5113 = vmatpush1.bf16.msra.mxu0 %v4584
        %5114 = vmatprep.subr.bf16.mxu0 %v4578
        %5115 = vmatpush1.bf16.msra.mxu0 %v4577
        %5116 = vmatprep.subr.bf16.mxu0 %v4571
        %5117 = vmatpush1.bf16.msra.mxu0 %v4570
        %5118 = vmatprep.subr.bf16.mxu0 %v4676
        %5119 = vmatpush2.bf16.msra.mxu0 %v4675
        %5120 = vmatprep.subr.bf16.mxu0 %v4669
        %5121 = vmatpush2.bf16.msra.mxu0 %v4668
        %5122 = vmatprep.subr.bf16.mxu0 %v4662
        %5123 = vmatpush2.bf16.msra.mxu0 %v4661
        %5124 = vmatprep.subr.bf16.mxu0 %v4655
        %5125 = vmatpush2.bf16.msra.mxu0 %v4654
        %5126 = vmatprep.subr.bf16.mxu0 %v4648
        %5127 = vmatpush2.bf16.msra.mxu0 %v4647
        %5128 = vmatprep.subr.bf16.mxu0 %v4641
        %5129 = vmatpush2.bf16.msra.mxu0 %v4640
        %5130 = vmatprep.subr.bf16.mxu0 %v4634
        %5131 = vmatpush2.bf16.msra.mxu0 %v4633
        %5132 = vmatprep.subr.bf16.mxu0 %v4627
        %5133 = vmatpush2.bf16.msra.mxu0 %v4626
        %5134 = vmatprep.mubr.bf16.mxu0 %v3568
        %5135 = vmatmul.mubr.bf16.gmra.mxu0 %v3567
        %v5136 = vpop.f32.mrf.mxu0
        %v5137 = vadd.f32 %v3840, %v5136
        %v5138 = vpop.f32.mrf.mxu0
        %v5139 = vadd.f32 %v3844, %v5138
        %v5140 = vpop.f32.mrf.mxu0
        %v5141 = vadd.f32 %v3840, %v5140
        %v5142 = vpop.f32.mrf.mxu0
        %v5143 = vadd.f32 %v3844, %v5142
        %5144 = vdwg.mxu0
        %5145 = vmatprep.subr.bf16.mxu0 %v4732
        %5146 = vmatpush1.bf16.msra.mxu0 %v4731
        %5147 = vmatprep.subr.bf16.mxu0 %v4725
        %5148 = vmatpush1.bf16.msra.mxu0 %v4724
        %5149 = vmatprep.subr.bf16.mxu0 %v4718
        %5150 = vmatpush1.bf16.msra.mxu0 %v4717
        %5151 = vmatprep.subr.bf16.mxu0 %v4711
        %5152 = vmatpush1.bf16.msra.mxu0 %v4710
        %5153 = vmatprep.subr.bf16.mxu0 %v4704
        %5154 = vmatpush1.bf16.msra.mxu0 %v4703
        %5155 = vmatprep.subr.bf16.mxu0 %v4697
        %5156 = vmatpush1.bf16.msra.mxu0 %v4696
        %5157 = vmatprep.subr.bf16.mxu0 %v4690
        %5158 = vmatpush1.bf16.msra.mxu0 %v4689
        %5159 = vmatprep.subr.bf16.mxu0 %v4683
        %5160 = vmatpush1.bf16.msra.mxu0 %v4682
        %5161 = vmatprep.subr.bf16.mxu0 %v4788
        %5162 = vmatpush2.bf16.msra.mxu0 %v4787
        %5163 = vmatprep.subr.bf16.mxu0 %v4781
        %5164 = vmatpush2.bf16.msra.mxu0 %v4780
        %5165 = vmatprep.subr.bf16.mxu0 %v4774
        %5166 = vmatpush2.bf16.msra.mxu0 %v4773
        %5167 = vmatprep.subr.bf16.mxu0 %v4767
        %5168 = vmatpush2.bf16.msra.mxu0 %v4766
        %5169 = vmatprep.subr.bf16.mxu0 %v4760
        %5170 = vmatpush2.bf16.msra.mxu0 %v4759
        %5171 = vmatprep.subr.bf16.mxu0 %v4753
        %5172 = vmatpush2.bf16.msra.mxu0 %v4752
        %5173 = vmatprep.subr.bf16.mxu0 %v4746
        %5174 = vmatpush2.bf16.msra.mxu0 %v4745
        %5175 = vmatprep.subr.bf16.mxu0 %v4739
        %5176 = vmatpush2.bf16.msra.mxu0 %v4738
        %5177 = vmatprep.mubr.bf16.mxu0 %v3570
        %5178 = vmatmul.mubr.bf16.gmra.mxu0 %v3569
        %v5179 = vpop.f32.mrf.mxu0
        %v5180 = vadd.f32 %v5137, %v5179
        %v5181 = vpop.f32.mrf.mxu0
        %v5182 = vadd.f32 %v5139, %v5181
        %v5183 = vpop.f32.mrf.mxu0
        %v5184 = vadd.f32 %v5141, %v5183
        %v5185 = vpop.f32.mrf.mxu0
        %v5186 = vadd.f32 %v5143, %v5185
        %5187 = vdwg.mxu0
        %5188 = vmatprep.subr.bf16.mxu0 %v4622
        %5189 = vmatpush1.bf16.msra.mxu0 %v4621
        %5190 = vmatprep.subr.bf16.mxu0 %v4615
        %5191 = vmatpush1.bf16.msra.mxu0 %v4614
        %5192 = vmatprep.subr.bf16.mxu0 %v4608
        %5193 = vmatpush1.bf16.msra.mxu0 %v4607
        %5194 = vmatprep.subr.bf16.mxu0 %v4601
        %5195 = vmatpush1.bf16.msra.mxu0 %v4600
        %5196 = vmatprep.subr.bf16.mxu0 %v4594
        %5197 = vmatpush1.bf16.msra.mxu0 %v4593
        %5198 = vmatprep.subr.bf16.mxu0 %v4587
        %5199 = vmatpush1.bf16.msra.mxu0 %v4586
        %5200 = vmatprep.subr.bf16.mxu0 %v4580
        %5201 = vmatpush1.bf16.msra.mxu0 %v4579
        %5202 = vmatprep.subr.bf16.mxu0 %v4573
        %5203 = vmatpush1.bf16.msra.mxu0 %v4572
        %5204 = vmatprep.subr.bf16.mxu0 %v4678
        %5205 = vmatpush2.bf16.msra.mxu0 %v4677
        %5206 = vmatprep.subr.bf16.mxu0 %v4671
        %5207 = vmatpush2.bf16.msra.mxu0 %v4670
        %5208 = vmatprep.subr.bf16.mxu0 %v4664
        %5209 = vmatpush2.bf16.msra.mxu0 %v4663
        %5210 = vmatprep.subr.bf16.mxu0 %v4657
        %5211 = vmatpush2.bf16.msra.mxu0 %v4656
        %5212 = vmatprep.subr.bf16.mxu0 %v4650
        %5213 = vmatpush2.bf16.msra.mxu0 %v4649
        %5214 = vmatprep.subr.bf16.mxu0 %v4643
        %5215 = vmatpush2.bf16.msra.mxu0 %v4642
        %5216 = vmatprep.subr.bf16.mxu0 %v4636
        %5217 = vmatpush2.bf16.msra.mxu0 %v4635
        %5218 = vmatprep.subr.bf16.mxu0 %v4629
        %5219 = vmatpush2.bf16.msra.mxu0 %v4628
        %5220 = vmatprep.mubr.bf16.mxu0 %v3568
        %5221 = vmatmul.mubr.bf16.gmra.mxu0 %v3567
        %v5222 = vpop.f32.mrf.mxu0
        %v5223 = vadd.f32 %v3848, %v5222
        %v5224 = vpop.f32.mrf.mxu0
        %v5225 = vadd.f32 %v3852, %v5224
        %v5226 = vpop.f32.mrf.mxu0
        %v5227 = vadd.f32 %v3848, %v5226
        %v5228 = vpop.f32.mrf.mxu0
        %v5229 = vadd.f32 %v3852, %v5228
        %5230 = vdwg.mxu0
        %5231 = vmatprep.subr.bf16.mxu0 %v4734
        %5232 = vmatpush1.bf16.msra.mxu0 %v4733
        %5233 = vmatprep.subr.bf16.mxu0 %v4727
        %5234 = vmatpush1.bf16.msra.mxu0 %v4726
        %5235 = vmatprep.subr.bf16.mxu0 %v4720
        %5236 = vmatpush1.bf16.msra.mxu0 %v4719
        %5237 = vmatprep.subr.bf16.mxu0 %v4713
        %5238 = vmatpush1.bf16.msra.mxu0 %v4712
        %5239 = vmatprep.subr.bf16.mxu0 %v4706
        %5240 = vmatpush1.bf16.msra.mxu0 %v4705
        %5241 = vmatprep.subr.bf16.mxu0 %v4699
        %5242 = vmatpush1.bf16.msra.mxu0 %v4698
        %5243 = vmatprep.subr.bf16.mxu0 %v4692
        %5244 = vmatpush1.bf16.msra.mxu0 %v4691
        %5245 = vmatprep.subr.bf16.mxu0 %v4685
        %5246 = vmatpush1.bf16.msra.mxu0 %v4684
        %5247 = vmatprep.subr.bf16.mxu0 %v4790
        %5248 = vmatpush2.bf16.msra.mxu0 %v4789
        %5249 = vmatprep.subr.bf16.mxu0 %v4783
        %5250 = vmatpush2.bf16.msra.mxu0 %v4782
        %5251 = vmatprep.subr.bf16.mxu0 %v4776
        %5252 = vmatpush2.bf16.msra.mxu0 %v4775
        %5253 = vmatprep.subr.bf16.mxu0 %v4769
        %5254 = vmatpush2.bf16.msra.mxu0 %v4768
        %5255 = vmatprep.subr.bf16.mxu0 %v4762
        %5256 = vmatpush2.bf16.msra.mxu0 %v4761
        %5257 = vmatprep.subr.bf16.mxu0 %v4755
        %5258 = vmatpush2.bf16.msra.mxu0 %v4754
        %5259 = vmatprep.subr.bf16.mxu0 %v4748
        %5260 = vmatpush2.bf16.msra.mxu0 %v4747
        %5261 = vmatprep.subr.bf16.mxu0 %v4741
        %5262 = vmatpush2.bf16.msra.mxu0 %v4740
        %5263 = vmatprep.mubr.bf16.mxu0 %v3570
        %5264 = vmatmul.mubr.bf16.gmra.mxu0 %v3569
        %v5265 = vpop.f32.mrf.mxu0
        %v5266 = vadd.f32 %v5223, %v5265
        %v5267 = vpop.f32.mrf.mxu0
        %v5268 = vadd.f32 %v5225, %v5267
        %v5269 = vpop.f32.mrf.mxu0
        %v5270 = vadd.f32 %v5227, %v5269
        %v5271 = vpop.f32.mrf.mxu0
        %v5272 = vadd.f32 %v5229, %v5271
        %5273 = vdwg.mxu0
        %5274 = vmatprep.subr.bf16.mxu0 0
        %5275 = vmatpush1.bf16.msra.mxu0 %v4623
        %5276 = vmatprep.subr.bf16.mxu0 0
        %5277 = vmatpush1.bf16.msra.mxu0 %v4616
        %5278 = vmatprep.subr.bf16.mxu0 0
        %5279 = vmatpush1.bf16.msra.mxu0 %v4609
        %5280 = vmatprep.subr.bf16.mxu0 0
        %5281 = vmatpush1.bf16.msra.mxu0 %v4602
        %5282 = vmatprep.subr.bf16.mxu0 0
        %5283 = vmatpush1.bf16.msra.mxu0 %v4595
        %5284 = vmatprep.subr.bf16.mxu0 0
        %5285 = vmatpush1.bf16.msra.mxu0 %v4588
        %5286 = vmatprep.subr.bf16.mxu0 0
        %5287 = vmatpush1.bf16.msra.mxu0 %v4581
        %5288 = vmatprep.subr.bf16.mxu0 0
        %5289 = vmatpush1.bf16.msra.mxu0 %v4574
        %5290 = vmatprep.subr.bf16.mxu0 0
        %5291 = vmatpush2.bf16.msra.mxu0 %v4679
        %5292 = vmatprep.subr.bf16.mxu0 0
        %5293 = vmatpush2.bf16.msra.mxu0 %v4672
        %5294 = vmatprep.subr.bf16.mxu0 0
        %5295 = vmatpush2.bf16.msra.mxu0 %v4665
        %5296 = vmatprep.subr.bf16.mxu0 0
        %5297 = vmatpush2.bf16.msra.mxu0 %v4658
        %5298 = vmatprep.subr.bf16.mxu0 0
        %5299 = vmatpush2.bf16.msra.mxu0 %v4651
        %5300 = vmatprep.subr.bf16.mxu0 0
        %5301 = vmatpush2.bf16.msra.mxu0 %v4644
        %5302 = vmatprep.subr.bf16.mxu0 0
        %5303 = vmatpush2.bf16.msra.mxu0 %v4637
        %5304 = vmatprep.subr.bf16.mxu0 0
        %5305 = vmatpush2.bf16.msra.mxu0 %v4630
        %5306 = vmatprep.mubr.bf16.mxu0 %v3568
        %5307 = vmatmul.mubr.bf16.gmra.mxu0 %v3567
        %v5308 = vpop.f32.mrf.mxu0
        %v5309 = vadd.f32 %v3856, %v5308
        %v5310 = vpop.f32.mrf.mxu0
        %v5311 = vpop.f32.mrf.mxu0
        %v5312 = vadd.f32 %v3856, %v5311
        %v5313 = vpop.f32.mrf.mxu0
        %5314 = vdwg.mxu0
        %5315 = vmatprep.subr.bf16.mxu0 0
        %5316 = vmatpush1.bf16.msra.mxu0 %v4735
        %5317 = vmatprep.subr.bf16.mxu0 0
        %5318 = vmatpush1.bf16.msra.mxu0 %v4728
        %5319 = vmatprep.subr.bf16.mxu0 0
        %5320 = vmatpush1.bf16.msra.mxu0 %v4721
        %5321 = vmatprep.subr.bf16.mxu0 0
        %5322 = vmatpush1.bf16.msra.mxu0 %v4714
        %5323 = vmatprep.subr.bf16.mxu0 0
        %5324 = vmatpush1.bf16.msra.mxu0 %v4707
        %5325 = vmatprep.subr.bf16.mxu0 0
        %5326 = vmatpush1.bf16.msra.mxu0 %v4700
        %5327 = vmatprep.subr.bf16.mxu0 0
        %5328 = vmatpush1.bf16.msra.mxu0 %v4693
        %5329 = vmatprep.subr.bf16.mxu0 0
        %5330 = vmatpush1.bf16.msra.mxu0 %v4686
        %5331 = vmatprep.subr.bf16.mxu0 0
        %5332 = vmatpush2.bf16.msra.mxu0 %v4791
        %5333 = vmatprep.subr.bf16.mxu0 0
        %5334 = vmatpush2.bf16.msra.mxu0 %v4784
        %5335 = vmatprep.subr.bf16.mxu0 0
        %5336 = vmatpush2.bf16.msra.mxu0 %v4777
        %5337 = vmatprep.subr.bf16.mxu0 0
        %5338 = vmatpush2.bf16.msra.mxu0 %v4770
        %5339 = vmatprep.subr.bf16.mxu0 0
        %5340 = vmatpush2.bf16.msra.mxu0 %v4763
        %5341 = vmatprep.subr.bf16.mxu0 0
        %5342 = vmatpush2.bf16.msra.mxu0 %v4756
        %5343 = vmatprep.subr.bf16.mxu0 0
        %5344 = vmatpush2.bf16.msra.mxu0 %v4749
        %5345 = vmatprep.subr.bf16.mxu0 0
        %5346 = vmatpush2.bf16.msra.mxu0 %v4742
        %5347 = vmatprep.mubr.bf16.mxu0 %v3570
        %5348 = vmatmul.mubr.bf16.gmra.mxu0 %v3569
        %v5349 = vpop.f32.mrf.mxu0
        %v5350 = vadd.f32 %v5309, %v5349
        %v5351 = vpop.f32.mrf.mxu0
        %v5352 = vpop.f32.mrf.mxu0
        %v5353 = vadd.f32 %v5312, %v5352
        %v5354 = vpop.f32.mrf.mxu0
        %5355 = vdwg.mxu0
        %v5356 = vxor.u32 %v5094, 2147483648
        %v5357 = vxor.u32 %v5096, 2147483648
        %v5358 = vxor.u32 %v5180, 2147483648
        %v5359 = vxor.u32 %v5182, 2147483648
        %v5360 = vxor.u32 %v5266, 2147483648
        %v5361 = vxor.u32 %v5268, 2147483648
        %v5362 = vxor.u32 %v5350, 2147483648
        %v5363 = vxor.u32 %v5098, 2147483648
        %v5364 = vxor.u32 %v5100, 2147483648
        %v5365 = vxor.u32 %v5184, 2147483648
        %v5366 = vxor.u32 %v5186, 2147483648
        %v5367 = vxor.u32 %v5270, 2147483648
        %v5368 = vxor.u32 %v5272, 2147483648
        %v5369 = vxor.u32 %v5353, 2147483648
        %v5370 = vmul.f32 %v5356, 1.442695
        %v5371 = vpow.pop %v5370
        %v5372 = vmul.f32 %v5357, 1.442695
        %v5373 = vpow.pop %v5372
        %v5374 = vmul.f32 %v5358, 1.442695
        %v5375 = vpow.pop %v5374
        %v5376 = vmul.f32 %v5359, 1.442695
        %v5377 = vpow.pop %v5376
        %v5378 = vmul.f32 %v5360, 1.442695
        %v5379 = vpow.pop %v5378
        %v5380 = vmul.f32 %v5361, 1.442695
        %v5381 = vpow.pop %v5380
        %v5382 = vmul.f32 %v5362, 1.442695
        %v5383 = vpow.pop %v5382
        %v5384 = vmul.f32 %v5363, 1.442695
        %v5385 = vpow.pop %v5384
        %v5386 = vmul.f32 %v5364, 1.442695
        %v5387 = vpow.pop %v5386
        %v5388 = vmul.f32 %v5365, 1.442695
        %v5389 = vpow.pop %v5388
        %v5390 = vmul.f32 %v5366, 1.442695
        %v5391 = vpow.pop %v5390
        %v5392 = vmul.f32 %v5367, 1.442695
        %v5393 = vpow.pop %v5392
        %v5394 = vmul.f32 %v5368, 1.442695
        %v5395 = vpow.pop %v5394
        %v5396 = vmul.f32 %v5369, 1.442695
        %v5397 = vpow.pop %v5396
        %v5398 = vadd.f32 %v5371, 1.0
        %v5399 = vadd.f32 %v5373, 1.0
        %v5400 = vadd.f32 %v5375, 1.0
        %v5401 = vadd.f32 %v5377, 1.0
        %v5402 = vadd.f32 %v5379, 1.0
        %v5403 = vadd.f32 %v5381, 1.0
        %v5404 = vadd.f32 %v5383, 1.0
        %v5405 = vadd.f32 %v5385, 1.0
        %v5406 = vadd.f32 %v5387, 1.0
        %v5407 = vadd.f32 %v5389, 1.0
        %v5408 = vadd.f32 %v5391, 1.0
        %v5409 = vadd.f32 %v5393, 1.0
        %v5410 = vadd.f32 %v5395, 1.0
        %v5411 = vadd.f32 %v5397, 1.0
        %v5412 = vrcp.pop %v5398
        %v5413 = vmul.f32 1.0, %v5412
        %v5414 = vrcp.pop %v5399
        %v5415 = vmul.f32 1.0, %v5414
        %v5416 = vrcp.pop %v5400
        %v5417 = vmul.f32 1.0, %v5416
        %v5418 = vrcp.pop %v5401
        %v5419 = vmul.f32 1.0, %v5418
        %v5420 = vrcp.pop %v5402
        %v5421 = vmul.f32 1.0, %v5420
        %v5422 = vrcp.pop %v5403
        %v5423 = vmul.f32 1.0, %v5422
        %v5424 = vrcp.pop %v5404
        %v5425 = vmul.f32 1.0, %v5424
        %v5426 = vrcp.pop %v5405
        %v5427 = vmul.f32 1.0, %v5426
        %v5428 = vrcp.pop %v5406
        %v5429 = vmul.f32 1.0, %v5428
        %v5430 = vrcp.pop %v5407
        %v5431 = vmul.f32 1.0, %v5430
        %v5432 = vrcp.pop %v5408
        %v5433 = vmul.f32 1.0, %v5432
        %v5434 = vrcp.pop %v5409
        %v5435 = vmul.f32 1.0, %v5434
        %v5436 = vrcp.pop %v5410
        %v5437 = vmul.f32 1.0, %v5436
        %v5438 = vrcp.pop %v5411
        %v5439 = vmul.f32 1.0, %v5438
        %v5440 = vpack.c.bf16 %v5427, %v5413
        %v5441 = vpack.c.bf16 %v5429, %v5415
        %v5442 = vpack.c.bf16 %v5431, %v5417
        %v5443 = vpack.c.bf16 %v5433, %v5419
        %v5444 = vpack.c.bf16 %v5435, %v5421
        %v5445 = vpack.c.bf16 %v5437, %v5423
        %v5446 = vpack.c.bf16 %v5439, %v5425
        %v5454 = vunpack.c.l.b16 %v5440
        %v5455 = vunpack.c.l.b16 %v5441
        %v5456 = vunpack.c.l.b16 %v5442
        %v5457 = vunpack.c.l.b16 %v5443
        %v5458 = vunpack.c.l.b16 %v5444
        %v5459 = vunpack.c.l.b16 %v5445
        %v5460 = vunpack.c.l.b16 %v5446
        %v5461 = vunpack.c.h.b16 %v5440
        %v5462 = vunpack.c.h.b16 %v5441
        %v5463 = vunpack.c.h.b16 %v5442
        %v5464 = vunpack.c.h.b16 %v5443
        %v5465 = vunpack.c.h.b16 %v5444
        %v5466 = vunpack.c.h.b16 %v5445
        %v5467 = vunpack.c.h.b16 %v5446
        %v5468 = vpack.c.b16 %v5455, %v5454
        %v5469 = vpack.c.b16 %v5457, %v5456
        %v5470 = vpack.c.b16 %v5459, %v5458
        %v5471 = vpack.c.b16 %v5460, %v5460
        %v5472 = vpack.c.b16 %v5462, %v5461
        %v5473 = vpack.c.b16 %v5464, %v5463
        %v5474 = vpack.c.b16 %v5466, %v5465
        %v5475 = vpack.c.b16 %v5467, %v5467
        %5484 = vst [vmem:[%s590] sm:$0xff] %v5468
        %5485 = vst [vmem:[%s590 + $0x8] sm:$0xff] %v5469
        %5486 = vst [vmem:[%s590 + $0x10] sm:$0xff] %v5470
        %5487 = vst [vmem:[%s590 + $0x18] sm:$0xf] %v5471
        %5488 = vst [vmem:[%s590 + $0x1c] sm:$0xff] %v5472
        %5489 = vst [vmem:[%s590 + $0x24] sm:$0xff] %v5473
        %5490 = vst [vmem:[%s590 + $0x2c] sm:$0xff] %v5474
        %5491 = vst [vmem:[%s590 + $0x34] sm:$0xf] %v5475
        %s5492 = smul.u32 2, %s30
        %p5493 = scmp.lt.s32.totalorder %s5492, 3
        %s5494 = scalar_select %p5493, %s5492, 3
        %s5495 = smul.addr %s5494, 7
        %s5496 = smul.addr %s5495, 4
        %s5497 = scalar_lea.vmem %s14, %s5496
        %s5498 = smul.u32 2, %s30
        %p5499 = scmp.lt.s32.totalorder %s5498, 3
        %s5500 = scalar_select %p5499, %s5498, 3
        %s5501 = smul.addr %s5500, 8
        %s5502 = scalar_lea.vmem %s15, %s5501
        // Predicated region
        $region93: #{_vae_forward_impl.1} parent=75 // pred_check
          %p5503 = pneg %p352
        $region94: #{_vae_forward_impl.1} parent=75 // pred_check_branch
          %5505 = sbr.rel (%p5503) target = $region96
        $region95: #{_vae_forward_impl.1} parent=75 // pred_region
          %s5506 = smul.u32 2, %s30
        $region96: #{_vae_forward_impl.1} parent=75 // pred_fallthru
          _
        // Predicated region
        $region97: #{_vae_forward_impl.1} parent=75 // pred_check
          %p5507 = pneg %p378
        $region98: #{_vae_forward_impl.1} parent=75 // pred_check_branch
          %5509 = sbr.rel (%p5507) target = $region100
        $region99: #{_vae_forward_impl.1} parent=75 // pred_region
          %s5510 = smul.u32 2, %s30
        $region100: #{_vae_forward_impl.1} parent=75 // pred_fallthru
          _
      $region76: #{_vae_forward_impl.1} parent=5 // pred_fallthru
        _
      %p5511 = scmp.le.s32.totalorder 2, %s25
      // Predicated region
      $region101: #{_vae_forward_impl.1} parent=5 // pred_check
        %p5512 = pneg %p5511
      $region102: #{_vae_forward_impl.1} parent=5 // pred_check_branch
        %5514 = sbr.rel (%p5512) target = $region104
      $region103: #{_vae_forward_impl.1} parent=5 // pred_region
        %s5515 = ssub.s32 %s25, 2
        // Predicated region
        $region105: #{_vae_forward_impl.1} parent=103 // pred_check
          %p5516 = pneg %p358
        $region106: #{_vae_forward_impl.1} parent=103 // pred_check_branch
          %5518 = sbr.rel (%p5516) target = $region108
        $region107: #{_vae_forward_impl.1} parent=103 // pred_region
          %s5519 = smul.u32 2, %s31
          %p5520 = scmp.lt.s32.totalorder %s5519, 3
          %s5521 = scalar_select %p5520, %s5519, 3
          %s5522 = smul.addr %s5521, 7
          %s5523 = smul.addr %s5522, 4
          %s5524 = scalar_lea.vmem %s14, %s5523
        $region108: #{_vae_forward_impl.1} parent=103 // pred_fallthru
          _
        // Predicated region
        $region109: #{_vae_forward_impl.1} parent=103 // pred_check
          %p5525 = pneg %p384
        $region110: #{_vae_forward_impl.1} parent=103 // pred_check_branch
          %5527 = sbr.rel (%p5525) target = $region112
        $region111: #{_vae_forward_impl.1} parent=103 // pred_region
          %s5528 = smul.u32 2, %s31
          %p5529 = scmp.lt.s32.totalorder %s5528, 3
          %s5530 = scalar_select %p5529, %s5528, 3
          %s5531 = smul.addr %s5530, 8
          %s5532 = scalar_lea.vmem %s15, %s5531
        $region112: #{_vae_forward_impl.1} parent=103 // pred_fallthru
          _
      $region104: #{_vae_forward_impl.1} parent=5 // pred_fallthru
        _
    $region6: #{_vae_forward_impl.1} parent=1 // loop_footer
      %s29 = sadd.s32 1, %s25
    $region7: #{_vae_forward_impl.1} parent=1 // loop_footer_branch
      %24 = sbr.rel target = $region3
    $region8: #{_vae_forward_impl.1} parent=1 // loop_exit
      _
    %5533 = vsyncpa [#allocation3], 1
    %s5534 = scalar_lea.sflag [#allocation3], 1
    %5535 = vsyncpa %s5534, 1
    %5536 = vsyncpa [#allocation5], 1
    %5537 = vsyncpa [#allocation8], 1

</llo_original>
